<compile_context>
chip_gen: v5e
topology: v5e:2x2
jax: 0.10.0
libtpu: 0.0.40
codegen_flags: <defaults>
</compile_context>

<pallas_src>
import functools

import jax
import jax.numpy as jnp
from jax import lax
from jax.experimental import pallas as pl
from jax.experimental.pallas import tpu as pltpu

GROUPS = 32   # normalization() == GroupNorm32(32, channels)
EPS = 1e-5


def _silu(x):
    return x * jax.nn.sigmoid(x)


def _resblock_kernel(x_ref, e_ref, avg_ref,
                     g1_ref, b1_ref, w1_ref, bc1_ref,
                     g2_ref, b2_ref, w2_ref, bc2_ref,
                     out_ref, acat_ref, h_ref, *, conv_dtype):
    B, C, L = x_ref.shape

    # Lane-index masks for the two shifted conv taps (hoisted, once per step).
    col = lax.broadcasted_iota(jnp.int32, (1, L), 1)
    mask_lo = (col >= 1).astype(jnp.float32)        # tap k=0 reads position l-1
    mask_hi = (col <= L - 2).astype(jnp.float32)    # tap k=2 reads position l+1

    avg = avg_ref[...]      # [C, C] symmetric block-diag group averaging / (Cg*L)

    def gn_silu_taps(load_fn, gamma, beta):
        # GroupNorm -> SiLU -> assemble the fused conv RHS into acat_ref.
        # Two-pass statistics, batched over the tile:
        #   pass 1: per-sample channel sums (lane reduce) -> [C, B] -> one
        #           avg @ S matmul gives all per-sample group means.
        #   pass 2: centered second moments -> [C, B] -> one avg @ SS matmul.
        #   pass 3: normalize + affine + SiLU per sample, write the three taps
        #           into the [3C, B*L] scratch (static slices; values die at
        #           the store, so the Python loop keeps live ranges small).
        s_cols = [jnp.sum(load_fn(b), axis=1, keepdims=True) for b in range(B)]
        S = jnp.concatenate(s_cols, axis=1)                              # [C, B]
        MEAN = jnp.dot(avg, S, preferred_element_type=jnp.float32)       # [C, B]

        ss_cols = [jnp.sum(jnp.square(load_fn(b) - MEAN[:, b:b + 1]),
                           axis=1, keepdims=True) for b in range(B)]
        SS = jnp.concatenate(ss_cols, axis=1)                            # [C, B]
        VAR = jnp.dot(avg, SS, preferred_element_type=jnp.float32)       # [C, B]
        RSTD = lax.rsqrt(VAR + EPS)                                      # [C, B]

        for b in range(B):
            hb = (load_fn(b) - MEAN[:, b:b + 1]) * RSTD[:, b:b + 1]
            hb = _silu(hb * gamma + beta)                                # [C, L]
            hm = pltpu.roll(hb, 1, axis=1) * mask_lo        # value at l-1 (k=0)
            hp = pltpu.roll(hb, L - 1, axis=1) * mask_hi    # value at l+1 (k=2)
            acat_ref[0 * C:1 * C, b * L:(b + 1) * L] = hm.astype(conv_dtype)
            acat_ref[1 * C:2 * C, b * L:(b + 1) * L] = hb.astype(conv_dtype)
            acat_ref[2 * C:3 * C, b * L:(b + 1) * L] = hp.astype(conv_dtype)

    # ---- in_layers: GroupNorm(32) -> SiLU -> conv1d(k=3, pad=1) -------------
    gn_silu_taps(lambda b: x_ref[b].astype(jnp.float32), g1_ref[...], b1_ref[...])
    y = jnp.dot(w1_ref[...], acat_ref[...],
                preferred_element_type=jnp.float32) + bc1_ref[...]       # [C, B*L]

    # ---- + emb_layers output (precomputed in the wrapper), broadcast over L -
    for b in range(B):
        h_ref[b] = y[:, b * L:(b + 1) * L] + e_ref[b]        # [C, L] + [C, 1]

    # ---- out_layers: GroupNorm -> SiLU -> Dropout -> conv1d ------------------
    # TODO(synk): dropout treated as identity (eval mode).
    gn_silu_taps(lambda b: h_ref[b], g2_ref[...], b2_ref[...])
    y = jnp.dot(w2_ref[...], acat_ref[...],
                preferred_element_type=jnp.float32) + bc2_ref[...]       # [C, B*L]

    # ---- skip_connection: Identity (out_channels == channels, no up/down) ---
    for b in range(B):
        out_ref[b] = (x_ref[b].astype(jnp.float32)
                      + y[:, b * L:(b + 1) * L]).astype(out_ref.dtype)


def _tpu_vmem_capacity_bytes():
    """Physical VMEM per core (128 MiB v5e/v6e, 64 MiB per TC on v7x)."""
    try:
        cap = int(getattr(pltpu.get_tpu_info(), "vmem_capacity_bytes", 0))
    except Exception:   # hardware query unavailable in this environment
        cap = 0
    return cap if cap > 0 else 64 * 2**20   # conservative fallback (v7x per-TC)


def _min_grid_steps():
    """Require >=2 grid steps only where dimension_semantics=('parallel',) can
    shard them across TensorCores (v7x: 2 TCs per chip; v4/v5p megacore)."""
    devs = jax.devices()
    kind = (getattr(devs[0], "device_kind", "") or "").lower() if devs else ""
    multi_tc = any(tag in kind for tag in ("v7", "v4", "v5p"))
    return 2 if multi_tc else 1


def _pick_batch_tile(n, c, l, x_bytes, conv_bytes, vmem_cap, min_steps):
    """Largest divisor of n whose per-step working set fits a VMEM budget while
    keeping at least `min_steps` grid steps."""
    min_steps = min(min_steps, n)
    per_sample = (4 * c * l * x_bytes          # x + out blocks, double-buffered
                  + 3 * c * l * conv_bytes     # [3C, B*L] conv-RHS scratch share
                  + c * l * 4                  # [B, C, L] f32 intermediate scratch
                  + 6 * c * l * 4)             # f32 temporaries headroom (y, taps)
    budget = int(0.45 * vmem_cap)
    bt = 1
    for d in range(1, n + 1):
        if n % d:
            continue
        if n // d < min_steps:
            break
        if d * per_sample > budget:
            break
        bt = d
    return bt


def _build_resblock_call(N, C, L, B, x_dtype, conv_dtype, out_dtype, vmem_cap):
    in_specs = [
        pl.BlockSpec((B, C, L), lambda n: (n, 0, 0)),    # x (NCL, only batch tiled)
        pl.BlockSpec((B, C, 1), lambda n: (n, 0, 0)),    # precomputed emb projection
        pl.BlockSpec((C, C), lambda n: (0, 0)),          # group-averaging matrix
        pl.BlockSpec((C, 1), lambda n: (0, 0)),          # gn1 gamma
        pl.BlockSpec((C, 1), lambda n: (0, 0)),          # gn1 beta
        pl.BlockSpec((C, 3 * C), lambda n: (0, 0)),      # conv1 weight (taps on K)
        pl.BlockSpec((C, 1), lambda n: (0, 0)),          # conv1 bias
        pl.BlockSpec((C, 1), lambda n: (0, 0)),          # gn2 gamma
        pl.BlockSpec((C, 1), lambda n: (0, 0)),          # gn2 beta
        pl.BlockSpec((C, 3 * C), lambda n: (0, 0)),      # conv2 weight
        pl.BlockSpec((C, 1), lambda n: (0, 0)),          # conv2 bias
    ]

    cb = jnp.dtype(conv_dtype).itemsize
    xb = jnp.dtype(x_dtype).itemsize
    ob = jnp.dtype(out_dtype).itemsize
    est = (2 * B * C * L * (xb + ob)                            # x / out blocks (2 bufs)
           + 2 * B * C * 4                                      # emb blocks
           + 2 * (2 * 3 * C * C * cb + (C * C + 8 * C) * 4)     # invariant operands
           + 3 * C * B * L * cb + B * C * L * 4                 # acat + h scratches
           + 8 * C * B * L * 4)                                 # in-kernel f32 temporaries
    vmem_limit = int(min(vmem_cap - 2 * 2**20, max(32 * 2**20, 2 * est)))

    return pl.pallas_call(
        functools.partial(_resblock_kernel, conv_dtype=conv_dtype),
        out_shape=jax.ShapeDtypeStruct((N, C, L), out_dtype),
        grid_spec=pltpu.PrefetchScalarGridSpec(
            num_scalar_prefetch=0,
            grid=(N // B,),
            in_specs=in_specs,
            out_specs=pl.BlockSpec((B, C, L), lambda n: (n, 0, 0)),
            scratch_shapes=[
                pltpu.VMEM((3 * C, B * L), conv_dtype),   # fused conv RHS (3 taps)
                pltpu.VMEM((B, C, L), jnp.float32),       # conv1-output + emb
            ],
        ),
        compiler_params=pltpu.CompilerParams(
            dimension_semantics=("parallel",),
            vmem_limit_bytes=vmem_limit,
        ),
    )


def resblock_forward(x_ncl, emb, params, *, conv_dtype=jnp.bfloat16, batch_tile=None):
    """Fused ResBlock forward.  x_ncl: [N, C, L] (caller dtype), emb: [N, E]."""
    N, C, L = x_ncl.shape
    assert C % GROUPS == 0

    vmem_cap = _tpu_vmem_capacity_bytes()
    B = batch_tile or _pick_batch_tile(
        N, C, L, jnp.dtype(x_ncl.dtype).itemsize, jnp.dtype(conv_dtype).itemsize,
        vmem_cap, _min_grid_steps())
    assert N % B == 0

    # emb path hoisted out of the kernel: one batched XLA matmul ([N,E] x [E,C]).
    e = (jax.nn.silu(emb.astype(jnp.float32)) @ params["we"].T.astype(jnp.float32)
         + params["be"].astype(jnp.float32))                  # [N, C]
    e3 = e[:, :, None]                                         # [N, C, 1]

    # Fused conv weights: torch [Cout, Cin, K] -> [Cout, K, Cin] -> [Cout, 3*Cin]
    w1 = jnp.transpose(params["w1"], (0, 2, 1)).reshape(C, 3 * C).astype(conv_dtype)
    w2 = jnp.transpose(params["w2"], (0, 2, 1)).reshape(C, 3 * C).astype(conv_dtype)

    # Block-diagonal group-averaging matrix (includes the 1/(Cg*L) factor).
    gid = jnp.arange(C, dtype=jnp.int32) // (C // GROUPS)
    avg = (gid[:, None] == gid[None, :]).astype(jnp.float32) / float((C // GROUPS) * L)

    def _as_col(v):
        return v.astype(jnp.float32)[:, None]                  # [C] -> [C, 1]

    fn = _build_resblock_call(N, C, L, B, x_ncl.dtype, conv_dtype, x_ncl.dtype,
                              vmem_cap)
    return fn(x_ncl, e3, avg,
              _as_col(params["g1"]), _as_col(params["b1"]), w1, _as_col(params["bc1"]),
              _as_col(params["g2"]), _as_col(params["b2"]), w2, _as_col(params["bc2"]))


def resblock_reference(x_ncl, emb, params, conv_dtype=jnp.float32):
    # Pure-JAX mirror of the PyTorch forward (eval mode) for verification.
    def gn(a, gamma, beta):
        N, C, L = a.shape
        r = a.reshape(N, GROUPS, (C // GROUPS) * L)
        mean = r.mean(axis=2, keepdims=True)
        var = r.var(axis=2, keepdims=True)
        r = (r - mean) / jnp.sqrt(var + EPS)
        return r.reshape(N, C, L) * gamma[None, :, None] + beta[None, :, None]

    def conv(a, w, b):
        y = lax.conv_general_dilated(
            a.astype(conv_dtype), w.astype(conv_dtype),
            window_strides=(1,), padding=((1, 1),),
            dimension_numbers=("NCH", "OIH", "NCH"),
            preferred_element_type=jnp.float32)
        return y + b[None, :, None]

    h = jax.nn.silu(gn(x_ncl, params["g1"], params["b1"]))
    h = conv(h, params["w1"], params["bc1"])
    e = jax.nn.silu(emb) @ params["we"].T + params["be"]
    h = h + e[:, :, None]
    h = jax.nn.silu(gn(h, params["g2"], params["b2"]))
    h = conv(h, params["w2"], params["bc2"])
    return x_ncl + h


if __name__ == "__main__":
    # batch=4, channels(=out_channels)=128, length=128, emb_channels=256
    N, C, L, E = 4, 128, 128, 256
    key = jax.random.PRNGKey(0)
    ks = jax.random.split(key, 12)
    params = {
        "g1": 1.0 + 0.1 * jax.random.normal(ks[0], (C,), jnp.float32),
        "b1": 0.1 * jax.random.normal(ks[1], (C,), jnp.float32),
        "w1": 0.1 * jax.random.normal(ks[2], (C, C, 3), jnp.float32),
        "bc1": 0.1 * jax.random.normal(ks[3], (C,), jnp.float32),
        "we": 0.1 * jax.random.normal(ks[4], (C, E), jnp.float32),
        "be": 0.1 * jax.random.normal(ks[5], (C,), jnp.float32),
        "g2": 1.0 + 0.1 * jax.random.normal(ks[6], (C,), jnp.float32),
        "b2": 0.1 * jax.random.normal(ks[7], (C,), jnp.float32),
        # NOTE: the PyTorch module zero-initializes this conv (zero_module); nonzero
        # values are used here so the second conv path is actually exercised.
        "w2": 0.1 * jax.random.normal(ks[8], (C, C, 3), jnp.float32),
        "bc2": 0.1 * jax.random.normal(ks[9], (C,), jnp.float32),
    }
    x = jax.random.normal(ks[10], (N, C, L), jnp.float32)
    emb = jax.random.normal(ks[11], (N, E), jnp.float32)

    ref_f32 = jax.block_until_ready(resblock_reference(x, emb, params))

    # f32 conv operands: matches the PyTorch f32 forward.
    out_f32 = jax.block_until_ready(
        resblock_forward(x, emb, params, conv_dtype=jnp.float32))
    assert out_f32.shape == (N, C, L)
    err = float(jnp.max(jnp.abs(out_f32 - ref_f32)))
    assert err < 5e-3, f"f32 path: max abs err {err}"

    # Default path: bf16 MXU operands, f32 accumulation / norms / residual.
    ref_bf16 = jax.block_until_ready(
        resblock_reference(x, emb, params, conv_dtype=jnp.bfloat16))
    out_bf16 = jax.block_until_ready(resblock_forward(x, emb, params))
    err_bf = float(jnp.max(jnp.abs(out_bf16 - ref_bf16)))
    assert err_bf < 2e-2, f"bf16 path: max abs err {err_bf}"

    print("KERNEL_OK")
</pallas_src>

<mosaic_0001>
module attributes {stable_mosaic.version = 11 : i64} {
  func.func @_resblock_kernel(%arg0: i32, %arg1: memref<4x128x128xf32, #tpu.memory_space<vmem>>, %arg2: memref<4x128x1xf32, #tpu.memory_space<vmem>>, %arg3: memref<128x128xf32, #tpu.memory_space<vmem>>, %arg4: memref<128x1xf32, #tpu.memory_space<vmem>>, %arg5: memref<128x1xf32, #tpu.memory_space<vmem>>, %arg6: memref<128x384xf32, #tpu.memory_space<vmem>>, %arg7: memref<128x1xf32, #tpu.memory_space<vmem>>, %arg8: memref<128x1xf32, #tpu.memory_space<vmem>>, %arg9: memref<128x1xf32, #tpu.memory_space<vmem>>, %arg10: memref<128x384xf32, #tpu.memory_space<vmem>>, %arg11: memref<128x1xf32, #tpu.memory_space<vmem>>, %arg12: memref<4x128x128xf32, #tpu.memory_space<vmem>>, %arg13: memref<384x512xf32, #tpu.memory_space<vmem>>, %arg14: memref<4x128x128xf32, #tpu.memory_space<vmem>>) attributes {dimension_semantics = [#tpu.dimension_semantics<parallel>], iteration_bounds = array<i64: 1>, scalar_prefetch = 0 : i64, scratch_operands = 2 : i64, tpu.core_type = #tpu.core_type<tc>, window_params = [{transform_indices = @transform_0, window_bounds = array<i64: 4, 128, 128>}, {transform_indices = @transform_1, window_bounds = array<i64: 4, 128, 1>}, {pipeline_mode = #tpu.pipeline_mode<synchronous>, transform_indices = @transform_2, window_bounds = array<i64: 128, 128>}, {pipeline_mode = #tpu.pipeline_mode<synchronous>, transform_indices = @transform_3, window_bounds = array<i64: 128, 1>}, {pipeline_mode = #tpu.pipeline_mode<synchronous>, transform_indices = @transform_4, window_bounds = array<i64: 128, 1>}, {pipeline_mode = #tpu.pipeline_mode<synchronous>, transform_indices = @transform_5, window_bounds = array<i64: 128, 384>}, {pipeline_mode = #tpu.pipeline_mode<synchronous>, transform_indices = @transform_6, window_bounds = array<i64: 128, 1>}, {pipeline_mode = #tpu.pipeline_mode<synchronous>, transform_indices = @transform_7, window_bounds = array<i64: 128, 1>}, {pipeline_mode = #tpu.pipeline_mode<synchronous>, transform_indices = @transform_8, window_bounds = array<i64: 128, 1>}, {pipeline_mode = #tpu.pipeline_mode<synchronous>, transform_indices = @transform_9, window_bounds = array<i64: 128, 384>}, {pipeline_mode = #tpu.pipeline_mode<synchronous>, transform_indices = @transform_10, window_bounds = array<i64: 128, 1>}, {transform_indices = @transform_11, window_bounds = array<i64: 4, 128, 128>}]} {
    %0 = tpu.iota {dimensions = array<i32: 1>} : vector<1x128xi32>
    %c1_i32 = arith.constant 1 : i32
    %1 = vector.broadcast %c1_i32 : i32 to vector<1x128xi32>
    %2 = arith.cmpi sge, %0, %1 : vector<1x128xi32>
    %3 = arith.extui %2 : vector<1x128xi1> to vector<1x128xi32>
    %4 = arith.sitofp %3 : vector<1x128xi32> to vector<1x128xf32>
    %c126_i32 = arith.constant 126 : i32
    %5 = vector.broadcast %c126_i32 : i32 to vector<1x128xi32>
    %6 = arith.cmpi sle, %0, %5 : vector<1x128xi32>
    %7 = arith.extui %6 : vector<1x128xi1> to vector<1x128xi32>
    %8 = arith.sitofp %7 : vector<1x128xi32> to vector<1x128xf32>
    %c0 = arith.constant 0 : index
    %c0_0 = arith.constant 0 : index
    %9 = vector.load %arg3[%c0, %c0_0] : memref<128x128xf32, #tpu.memory_space<vmem>>, vector<128x128xf32>
    %c0_1 = arith.constant 0 : index
    %c0_2 = arith.constant 0 : index
    %10 = vector.load %arg4[%c0_1, %c0_2] : memref<128x1xf32, #tpu.memory_space<vmem>>, vector<128x1xf32>
    %c0_3 = arith.constant 0 : index
    %c0_4 = arith.constant 0 : index
    %11 = vector.load %arg5[%c0_3, %c0_4] : memref<128x1xf32, #tpu.memory_space<vmem>>, vector<128x1xf32>
    %c0_5 = arith.constant 0 : index
    %c0_6 = arith.constant 0 : index
    %c0_7 = arith.constant 0 : index
    %12 = vector.load %arg1[%c0_5, %c0_6, %c0_7] : memref<4x128x128xf32, #tpu.memory_space<vmem>>, vector<1x128x128xf32>
    %13 = vector.shape_cast %12 : vector<1x128x128xf32> to vector<128x128xf32>
    %cst = arith.constant dense<0.000000e+00> : vector<128xf32>
    %14 = vector.multi_reduction <add>, %13, %cst [1] : vector<128x128xf32> to vector<128xf32>
    %15 = vector.shape_cast %14 : vector<128xf32> to vector<128x1xf32>
    %c1 = arith.constant 1 : index
    %c0_8 = arith.constant 0 : index
    %c0_9 = arith.constant 0 : index
    %16 = vector.load %arg1[%c1, %c0_8, %c0_9] : memref<4x128x128xf32, #tpu.memory_space<vmem>>, vector<1x128x128xf32>
    %17 = vector.shape_cast %16 : vector<1x128x128xf32> to vector<128x128xf32>
    %cst_10 = arith.constant dense<0.000000e+00> : vector<128xf32>
    %18 = vector.multi_reduction <add>, %17, %cst_10 [1] : vector<128x128xf32> to vector<128xf32>
    %19 = vector.shape_cast %18 : vector<128xf32> to vector<128x1xf32>
    %c2 = arith.constant 2 : index
    %c0_11 = arith.constant 0 : index
    %c0_12 = arith.constant 0 : index
    %20 = vector.load %arg1[%c2, %c0_11, %c0_12] : memref<4x128x128xf32, #tpu.memory_space<vmem>>, vector<1x128x128xf32>
    %21 = vector.shape_cast %20 : vector<1x128x128xf32> to vector<128x128xf32>
    %cst_13 = arith.constant dense<0.000000e+00> : vector<128xf32>
    %22 = vector.multi_reduction <add>, %21, %cst_13 [1] : vector<128x128xf32> to vector<128xf32>
    %23 = vector.shape_cast %22 : vector<128xf32> to vector<128x1xf32>
    %c3 = arith.constant 3 : index
    %c0_14 = arith.constant 0 : index
    %c0_15 = arith.constant 0 : index
    %24 = vector.load %arg1[%c3, %c0_14, %c0_15] : memref<4x128x128xf32, #tpu.memory_space<vmem>>, vector<1x128x128xf32>
    %25 = vector.shape_cast %24 : vector<1x128x128xf32> to vector<128x128xf32>
    %cst_16 = arith.constant dense<0.000000e+00> : vector<128xf32>
    %26 = vector.multi_reduction <add>, %25, %cst_16 [1] : vector<128x128xf32> to vector<128xf32>
    %27 = vector.shape_cast %26 : vector<128xf32> to vector<128x1xf32>
    %28 = tpu.concatenate %15, %19, %23, %27 in 1 : vector<128x1xf32>, vector<128x1xf32>, vector<128x1xf32>, vector<128x1xf32> -> vector<128x4xf32>
    %cst_17 = arith.constant dense<0.000000e+00> : vector<128x4xf32>
    %29 = tpu.matmul %9, %28, %cst_17 {dimension_numbers = #tpu.dot_dimension_numbers<[1], [0], [0], [1], [0, 0, 1, 1], [], []>} : vector<128x128xf32>, vector<128x4xf32>, vector<128x4xf32> -> vector<128x4xf32>
    %c0_18 = arith.constant 0 : index
    %c0_19 = arith.constant 0 : index
    %c0_20 = arith.constant 0 : index
    %30 = vector.load %arg1[%c0_18, %c0_19, %c0_20] : memref<4x128x128xf32, #tpu.memory_space<vmem>>, vector<1x128x128xf32>
    %31 = vector.shape_cast %30 : vector<1x128x128xf32> to vector<128x128xf32>
    %32 = vector.extract_strided_slice %29 {offsets = [0, 0], sizes = [128, 1], strides = [1, 1]} : vector<128x4xf32> to vector<128x1xf32>
    %33 = vector.broadcast %32 : vector<128x1xf32> to vector<128x128xf32>
    %34 = arith.subf %31, %33 : vector<128x128xf32>
    %35 = arith.mulf %34, %34 : vector<128x128xf32>
    %cst_21 = arith.constant dense<0.000000e+00> : vector<128xf32>
    %36 = vector.multi_reduction <add>, %35, %cst_21 [1] : vector<128x128xf32> to vector<128xf32>
    %37 = vector.shape_cast %36 : vector<128xf32> to vector<128x1xf32>
    %c1_22 = arith.constant 1 : index
    %c0_23 = arith.constant 0 : index
    %c0_24 = arith.constant 0 : index
    %38 = vector.load %arg1[%c1_22, %c0_23, %c0_24] : memref<4x128x128xf32, #tpu.memory_space<vmem>>, vector<1x128x128xf32>
    %39 = vector.shape_cast %38 : vector<1x128x128xf32> to vector<128x128xf32>
    %40 = vector.extract_strided_slice %29 {offsets = [0, 1], sizes = [128, 1], strides = [1, 1]} : vector<128x4xf32> to vector<128x1xf32>
    %41 = vector.broadcast %40 : vector<128x1xf32> to vector<128x128xf32>
    %42 = arith.subf %39, %41 : vector<128x128xf32>
    %43 = arith.mulf %42, %42 : vector<128x128xf32>
    %cst_25 = arith.constant dense<0.000000e+00> : vector<128xf32>
    %44 = vector.multi_reduction <add>, %43, %cst_25 [1] : vector<128x128xf32> to vector<128xf32>
    %45 = vector.shape_cast %44 : vector<128xf32> to vector<128x1xf32>
    %c2_26 = arith.constant 2 : index
    %c0_27 = arith.constant 0 : index
    %c0_28 = arith.constant 0 : index
    %46 = vector.load %arg1[%c2_26, %c0_27, %c0_28] : memref<4x128x128xf32, #tpu.memory_space<vmem>>, vector<1x128x128xf32>
    %47 = vector.shape_cast %46 : vector<1x128x128xf32> to vector<128x128xf32>
    %48 = vector.extract_strided_slice %29 {offsets = [0, 2], sizes = [128, 1], strides = [1, 1]} : vector<128x4xf32> to vector<128x1xf32>
    %49 = vector.broadcast %48 : vector<128x1xf32> to vector<128x128xf32>
    %50 = arith.subf %47, %49 : vector<128x128xf32>
    %51 = arith.mulf %50, %50 : vector<128x128xf32>
    %cst_29 = arith.constant dense<0.000000e+00> : vector<128xf32>
    %52 = vector.multi_reduction <add>, %51, %cst_29 [1] : vector<128x128xf32> to vector<128xf32>
    %53 = vector.shape_cast %52 : vector<128xf32> to vector<128x1xf32>
    %c3_30 = arith.constant 3 : index
    %c0_31 = arith.constant 0 : index
    %c0_32 = arith.constant 0 : index
    %54 = vector.load %arg1[%c3_30, %c0_31, %c0_32] : memref<4x128x128xf32, #tpu.memory_space<vmem>>, vector<1x128x128xf32>
    %55 = vector.shape_cast %54 : vector<1x128x128xf32> to vector<128x128xf32>
    %56 = vector.extract_strided_slice %29 {offsets = [0, 3], sizes = [128, 1], strides = [1, 1]} : vector<128x4xf32> to vector<128x1xf32>
    %57 = vector.broadcast %56 : vector<128x1xf32> to vector<128x128xf32>
    %58 = arith.subf %55, %57 : vector<128x128xf32>
    %59 = arith.mulf %58, %58 : vector<128x128xf32>
    %cst_33 = arith.constant dense<0.000000e+00> : vector<128xf32>
    %60 = vector.multi_reduction <add>, %59, %cst_33 [1] : vector<128x128xf32> to vector<128xf32>
    %61 = vector.shape_cast %60 : vector<128xf32> to vector<128x1xf32>
    %62 = tpu.concatenate %37, %45, %53, %61 in 1 : vector<128x1xf32>, vector<128x1xf32>, vector<128x1xf32>, vector<128x1xf32> -> vector<128x4xf32>
    %cst_34 = arith.constant dense<0.000000e+00> : vector<128x4xf32>
    %63 = tpu.matmul %9, %62, %cst_34 {dimension_numbers = #tpu.dot_dimension_numbers<[1], [0], [0], [1], [0, 0, 1, 1], [], []>} : vector<128x128xf32>, vector<128x4xf32>, vector<128x4xf32> -> vector<128x4xf32>
    %cst_35 = arith.constant 9.99999974E-6 : f32
    %64 = vector.broadcast %cst_35 : f32 to vector<128x4xf32>
    %65 = arith.addf %63, %64 : vector<128x4xf32>
    %66 = math.rsqrt %65 : vector<128x4xf32>
    %c0_36 = arith.constant 0 : index
    %c0_37 = arith.constant 0 : index
    %c0_38 = arith.constant 0 : index
    %67 = vector.load %arg1[%c0_36, %c0_37, %c0_38] : memref<4x128x128xf32, #tpu.memory_space<vmem>>, vector<1x128x128xf32>
    %68 = vector.shape_cast %67 : vector<1x128x128xf32> to vector<128x128xf32>
    %69 = vector.extract_strided_slice %29 {offsets = [0, 0], sizes = [128, 1], strides = [1, 1]} : vector<128x4xf32> to vector<128x1xf32>
    %70 = vector.broadcast %69 : vector<128x1xf32> to vector<128x128xf32>
    %71 = arith.subf %68, %70 : vector<128x128xf32>
    %72 = vector.extract_strided_slice %66 {offsets = [0, 0], sizes = [128, 1], strides = [1, 1]} : vector<128x4xf32> to vector<128x1xf32>
    %73 = vector.broadcast %72 : vector<128x1xf32> to vector<128x128xf32>
    %74 = arith.mulf %71, %73 : vector<128x128xf32>
    %75 = vector.broadcast %10 : vector<128x1xf32> to vector<128x128xf32>
    %76 = arith.mulf %74, %75 : vector<128x128xf32>
    %77 = vector.broadcast %11 : vector<128x1xf32> to vector<128x128xf32>
    %78 = arith.addf %76, %77 : vector<128x128xf32>
    %79 = arith.negf %78 : vector<128x128xf32>
    %80 = math.exp %79 : vector<128x128xf32>
    %cst_39 = arith.constant 1.000000e+00 : f32
    %81 = vector.broadcast %cst_39 : f32 to vector<128x128xf32>
    %82 = arith.addf %81, %80 : vector<128x128xf32>
    %83 = arith.divf %81, %82 : vector<128x128xf32>
    %84 = arith.mulf %78, %83 : vector<128x128xf32>
    %c1_i32_40 = arith.constant 1 : i32
    %85 = tpu.dynamic_rotate %84 by %c1_i32_40 dim 1 : vector<128x128xf32>, i32 -> vector<128x128xf32>
    %86 = vector.broadcast %4 : vector<1x128xf32> to vector<128x128xf32>
    %87 = arith.mulf %85, %86 : vector<128x128xf32>
    %c127_i32 = arith.constant 127 : i32
    %88 = tpu.dynamic_rotate %84 by %c127_i32 dim 1 : vector<128x128xf32>, i32 -> vector<128x128xf32>
    %89 = vector.broadcast %8 : vector<1x128xf32> to vector<128x128xf32>
    %90 = arith.mulf %88, %89 : vector<128x128xf32>
    %c0_41 = arith.constant 0 : index
    %c0_42 = arith.constant 0 : index
    %91 = vector.load %arg13[%c0_41, %c0_42] : memref<384x512xf32, #tpu.memory_space<vmem>>, vector<128x128xf32>
    tpu.vector_store %arg13[%c0_41, %c0_42], %87 {strides = array<i32>} : memref<384x512xf32, #tpu.memory_space<vmem>>, vector<128x128xf32>,
    %c128 = arith.constant 128 : index
    %c0_43 = arith.constant 0 : index
    %92 = vector.load %arg13[%c128, %c0_43] : memref<384x512xf32, #tpu.memory_space<vmem>>, vector<128x128xf32>
    tpu.vector_store %arg13[%c128, %c0_43], %84 {strides = array<i32>} : memref<384x512xf32, #tpu.memory_space<vmem>>, vector<128x128xf32>,
    %c256 = arith.constant 256 : index
    %c0_44 = arith.constant 0 : index
    %93 = vector.load %arg13[%c256, %c0_44] : memref<384x512xf32, #tpu.memory_space<vmem>>, vector<128x128xf32>
    tpu.vector_store %arg13[%c256, %c0_44], %90 {strides = array<i32>} : memref<384x512xf32, #tpu.memory_space<vmem>>, vector<128x128xf32>,
    %c1_45 = arith.constant 1 : index
    %c0_46 = arith.constant 0 : index
    %c0_47 = arith.constant 0 : index
    %94 = vector.load %arg1[%c1_45, %c0_46, %c0_47] : memref<4x128x128xf32, #tpu.memory_space<vmem>>, vector<1x128x128xf32>
    %95 = vector.shape_cast %94 : vector<1x128x128xf32> to vector<128x128xf32>
    %96 = vector.extract_strided_slice %29 {offsets = [0, 1], sizes = [128, 1], strides = [1, 1]} : vector<128x4xf32> to vector<128x1xf32>
    %97 = vector.broadcast %96 : vector<128x1xf32> to vector<128x128xf32>
    %98 = arith.subf %95, %97 : vector<128x128xf32>
    %99 = vector.extract_strided_slice %66 {offsets = [0, 1], sizes = [128, 1], strides = [1, 1]} : vector<128x4xf32> to vector<128x1xf32>
    %100 = vector.broadcast %99 : vector<128x1xf32> to vector<128x128xf32>
    %101 = arith.mulf %98, %100 : vector<128x128xf32>
    %102 = vector.broadcast %10 : vector<128x1xf32> to vector<128x128xf32>
    %103 = arith.mulf %101, %102 : vector<128x128xf32>
    %104 = vector.broadcast %11 : vector<128x1xf32> to vector<128x128xf32>
    %105 = arith.addf %103, %104 : vector<128x128xf32>
    %106 = arith.negf %105 : vector<128x128xf32>
    %107 = math.exp %106 : vector<128x128xf32>
    %cst_48 = arith.constant 1.000000e+00 : f32
    %108 = vector.broadcast %cst_48 : f32 to vector<128x128xf32>
    %109 = arith.addf %108, %107 : vector<128x128xf32>
    %110 = arith.divf %108, %109 : vector<128x128xf32>
    %111 = arith.mulf %105, %110 : vector<128x128xf32>
    %c1_i32_49 = arith.constant 1 : i32
    %112 = tpu.dynamic_rotate %111 by %c1_i32_49 dim 1 : vector<128x128xf32>, i32 -> vector<128x128xf32>
    %113 = vector.broadcast %4 : vector<1x128xf32> to vector<128x128xf32>
    %114 = arith.mulf %112, %113 : vector<128x128xf32>
    %c127_i32_50 = arith.constant 127 : i32
    %115 = tpu.dynamic_rotate %111 by %c127_i32_50 dim 1 : vector<128x128xf32>, i32 -> vector<128x128xf32>
    %116 = vector.broadcast %8 : vector<1x128xf32> to vector<128x128xf32>
    %117 = arith.mulf %115, %116 : vector<128x128xf32>
    %c0_51 = arith.constant 0 : index
    %c128_52 = arith.constant 128 : index
    %118 = vector.load %arg13[%c0_51, %c128_52] : memref<384x512xf32, #tpu.memory_space<vmem>>, vector<128x128xf32>
    tpu.vector_store %arg13[%c0_51, %c128_52], %114 {strides = array<i32>} : memref<384x512xf32, #tpu.memory_space<vmem>>, vector<128x128xf32>,
    %c128_53 = arith.constant 128 : index
    %c128_54 = arith.constant 128 : index
    %119 = vector.load %arg13[%c128_53, %c128_54] : memref<384x512xf32, #tpu.memory_space<vmem>>, vector<128x128xf32>
    tpu.vector_store %arg13[%c128_53, %c128_54], %111 {strides = array<i32>} : memref<384x512xf32, #tpu.memory_space<vmem>>, vector<128x128xf32>,
    %c256_55 = arith.constant 256 : index
    %c128_56 = arith.constant 128 : index
    %120 = vector.load %arg13[%c256_55, %c128_56] : memref<384x512xf32, #tpu.memory_space<vmem>>, vector<128x128xf32>
    tpu.vector_store %arg13[%c256_55, %c128_56], %117 {strides = array<i32>} : memref<384x512xf32, #tpu.memory_space<vmem>>, vector<128x128xf32>,
    %c2_57 = arith.constant 2 : index
    %c0_58 = arith.constant 0 : index
    %c0_59 = arith.constant 0 : index
    %121 = vector.load %arg1[%c2_57, %c0_58, %c0_59] : memref<4x128x128xf32, #tpu.memory_space<vmem>>, vector<1x128x128xf32>
    %122 = vector.shape_cast %121 : vector<1x128x128xf32> to vector<128x128xf32>
    %123 = vector.extract_strided_slice %29 {offsets = [0, 2], sizes = [128, 1], strides = [1, 1]} : vector<128x4xf32> to vector<128x1xf32>
    %124 = vector.broadcast %123 : vector<128x1xf32> to vector<128x128xf32>
    %125 = arith.subf %122, %124 : vector<128x128xf32>
    %126 = vector.extract_strided_slice %66 {offsets = [0, 2], sizes = [128, 1], strides = [1, 1]} : vector<128x4xf32> to vector<128x1xf32>
    %127 = vector.broadcast %126 : vector<128x1xf32> to vector<128x128xf32>
    %128 = arith.mulf %125, %127 : vector<128x128xf32>
    %129 = vector.broadcast %10 : vector<128x1xf32> to vector<128x128xf32>
    %130 = arith.mulf %128, %129 : vector<128x128xf32>
    %131 = vector.broadcast %11 : vector<128x1xf32> to vector<128x128xf32>
    %132 = arith.addf %130, %131 : vector<128x128xf32>
    %133 = arith.negf %132 : vector<128x128xf32>
    %134 = math.exp %133 : vector<128x128xf32>
    %cst_60 = arith.constant 1.000000e+00 : f32
    %135 = vector.broadcast %cst_60 : f32 to vector<128x128xf32>
    %136 = arith.addf %135, %134 : vector<128x128xf32>
    %137 = arith.divf %135, %136 : vector<128x128xf32>
    %138 = arith.mulf %132, %137 : vector<128x128xf32>
    %c1_i32_61 = arith.constant 1 : i32
    %139 = tpu.dynamic_rotate %138 by %c1_i32_61 dim 1 : vector<128x128xf32>, i32 -> vector<128x128xf32>
    %140 = vector.broadcast %4 : vector<1x128xf32> to vector<128x128xf32>
    %141 = arith.mulf %139, %140 : vector<128x128xf32>
    %c127_i32_62 = arith.constant 127 : i32
    %142 = tpu.dynamic_rotate %138 by %c127_i32_62 dim 1 : vector<128x128xf32>, i32 -> vector<128x128xf32>
    %143 = vector.broadcast %8 : vector<1x128xf32> to vector<128x128xf32>
    %144 = arith.mulf %142, %143 : vector<128x128xf32>
    %c0_63 = arith.constant 0 : index
    %c256_64 = arith.constant 256 : index
    %145 = vector.load %arg13[%c0_63, %c256_64] : memref<384x512xf32, #tpu.memory_space<vmem>>, vector<128x128xf32>
    tpu.vector_store %arg13[%c0_63, %c256_64], %141 {strides = array<i32>} : memref<384x512xf32, #tpu.memory_space<vmem>>, vector<128x128xf32>,
    %c128_65 = arith.constant 128 : index
    %c256_66 = arith.constant 256 : index
    %146 = vector.load %arg13[%c128_65, %c256_66] : memref<384x512xf32, #tpu.memory_space<vmem>>, vector<128x128xf32>
    tpu.vector_store %arg13[%c128_65, %c256_66], %138 {strides = array<i32>} : memref<384x512xf32, #tpu.memory_space<vmem>>, vector<128x128xf32>,
    %c256_67 = arith.constant 256 : index
    %c256_68 = arith.constant 256 : index
    %147 = vector.load %arg13[%c256_67, %c256_68] : memref<384x512xf32, #tpu.memory_space<vmem>>, vector<128x128xf32>
    tpu.vector_store %arg13[%c256_67, %c256_68], %144 {strides = array<i32>} : memref<384x512xf32, #tpu.memory_space<vmem>>, vector<128x128xf32>,
    %c3_69 = arith.constant 3 : index
    %c0_70 = arith.constant 0 : index
    %c0_71 = arith.constant 0 : index
    %148 = vector.load %arg1[%c3_69, %c0_70, %c0_71] : memref<4x128x128xf32, #tpu.memory_space<vmem>>, vector<1x128x128xf32>
    %149 = vector.shape_cast %148 : vector<1x128x128xf32> to vector<128x128xf32>
    %150 = vector.extract_strided_slice %29 {offsets = [0, 3], sizes = [128, 1], strides = [1, 1]} : vector<128x4xf32> to vector<128x1xf32>
    %151 = vector.broadcast %150 : vector<128x1xf32> to vector<128x128xf32>
    %152 = arith.subf %149, %151 : vector<128x128xf32>
    %153 = vector.extract_strided_slice %66 {offsets = [0, 3], sizes = [128, 1], strides = [1, 1]} : vector<128x4xf32> to vector<128x1xf32>
    %154 = vector.broadcast %153 : vector<128x1xf32> to vector<128x128xf32>
    %155 = arith.mulf %152, %154 : vector<128x128xf32>
    %156 = vector.broadcast %10 : vector<128x1xf32> to vector<128x128xf32>
    %157 = arith.mulf %155, %156 : vector<128x128xf32>
    %158 = vector.broadcast %11 : vector<128x1xf32> to vector<128x128xf32>
    %159 = arith.addf %157, %158 : vector<128x128xf32>
    %160 = arith.negf %159 : vector<128x128xf32>
    %161 = math.exp %160 : vector<128x128xf32>
    %cst_72 = arith.constant 1.000000e+00 : f32
    %162 = vector.broadcast %cst_72 : f32 to vector<128x128xf32>
    %163 = arith.addf %162, %161 : vector<128x128xf32>
    %164 = arith.divf %162, %163 : vector<128x128xf32>
    %165 = arith.mulf %159, %164 : vector<128x128xf32>
    %c1_i32_73 = arith.constant 1 : i32
    %166 = tpu.dynamic_rotate %165 by %c1_i32_73 dim 1 : vector<128x128xf32>, i32 -> vector<128x128xf32>
    %167 = vector.broadcast %4 : vector<1x128xf32> to vector<128x128xf32>
    %168 = arith.mulf %166, %167 : vector<128x128xf32>
    %c127_i32_74 = arith.constant 127 : i32
    %169 = tpu.dynamic_rotate %165 by %c127_i32_74 dim 1 : vector<128x128xf32>, i32 -> vector<128x128xf32>
    %170 = vector.broadcast %8 : vector<1x128xf32> to vector<128x128xf32>
    %171 = arith.mulf %169, %170 : vector<128x128xf32>
    %c0_75 = arith.constant 0 : index
    %c384 = arith.constant 384 : index
    %172 = vector.load %arg13[%c0_75, %c384] : memref<384x512xf32, #tpu.memory_space<vmem>>, vector<128x128xf32>
    tpu.vector_store %arg13[%c0_75, %c384], %168 {strides = array<i32>} : memref<384x512xf32, #tpu.memory_space<vmem>>, vector<128x128xf32>,
    %c128_76 = arith.constant 128 : index
    %c384_77 = arith.constant 384 : index
    %173 = vector.load %arg13[%c128_76, %c384_77] : memref<384x512xf32, #tpu.memory_space<vmem>>, vector<128x128xf32>
    tpu.vector_store %arg13[%c128_76, %c384_77], %165 {strides = array<i32>} : memref<384x512xf32, #tpu.memory_space<vmem>>, vector<128x128xf32>,
    %c256_78 = arith.constant 256 : index
    %c384_79 = arith.constant 384 : index
    %174 = vector.load %arg13[%c256_78, %c384_79] : memref<384x512xf32, #tpu.memory_space<vmem>>, vector<128x128xf32>
    tpu.vector_store %arg13[%c256_78, %c384_79], %171 {strides = array<i32>} : memref<384x512xf32, #tpu.memory_space<vmem>>, vector<128x128xf32>,
    %c0_80 = arith.constant 0 : index
    %c0_81 = arith.constant 0 : index
    %175 = vector.load %arg6[%c0_80, %c0_81] : memref<128x384xf32, #tpu.memory_space<vmem>>, vector<128x384xf32>
    %c0_82 = arith.constant 0 : index
    %c0_83 = arith.constant 0 : index
    %176 = vector.load %arg13[%c0_82, %c0_83] : memref<384x512xf32, #tpu.memory_space<vmem>>, vector<384x512xf32>
    %cst_84 = arith.constant dense<0.000000e+00> : vector<128x512xf32>
    %177 = tpu.matmul %175, %176, %cst_84 {dimension_numbers = #tpu.dot_dimension_numbers<[1], [0], [0], [1], [0, 0, 1, 1], [], []>} : vector<128x384xf32>, vector<384x512xf32>, vector<128x512xf32> -> vector<128x512xf32>
    %c0_85 = arith.constant 0 : index
    %c0_86 = arith.constant 0 : index
    %178 = vector.load %arg7[%c0_85, %c0_86] : memref<128x1xf32, #tpu.memory_space<vmem>>, vector<128x1xf32>
    %179 = vector.broadcast %178 : vector<128x1xf32> to vector<128x512xf32>
    %180 = arith.addf %177, %179 : vector<128x512xf32>
    %181 = vector.extract_strided_slice %180 {offsets = [0, 0], sizes = [128, 128], strides = [1, 1]} : vector<128x512xf32> to vector<128x128xf32>
    %c0_87 = arith.constant 0 : index
    %c0_88 = arith.constant 0 : index
    %c0_89 = arith.constant 0 : index
    %182 = vector.load %arg2[%c0_87, %c0_88, %c0_89] : memref<4x128x1xf32, #tpu.memory_space<vmem>>, vector<1x128x1xf32>
    %183 = vector.shape_cast %182 : vector<1x128x1xf32> to vector<128x1xf32>
    %184 = vector.broadcast %183 : vector<128x1xf32> to vector<128x128xf32>
    %185 = arith.addf %181, %184 : vector<128x128xf32>
    %c0_90 = arith.constant 0 : index
    %c0_91 = arith.constant 0 : index
    %c0_92 = arith.constant 0 : index
    %186 = vector.load %arg14[%c0_90, %c0_91, %c0_92] : memref<4x128x128xf32, #tpu.memory_space<vmem>>, vector<1x128x128xf32>
    %187 = vector.shape_cast %186 : vector<1x128x128xf32> to vector<128x128xf32>
    %188 = vector.shape_cast %185 : vector<128x128xf32> to vector<1x128x128xf32>
    tpu.vector_store %arg14[%c0_90, %c0_91, %c0_92], %188 {strides = array<i32>} : memref<4x128x128xf32, #tpu.memory_space<vmem>>, vector<1x128x128xf32>,
    %189 = vector.extract_strided_slice %180 {offsets = [0, 128], sizes = [128, 128], strides = [1, 1]} : vector<128x512xf32> to vector<128x128xf32>
    %c1_93 = arith.constant 1 : index
    %c0_94 = arith.constant 0 : index
    %c0_95 = arith.constant 0 : index
    %190 = vector.load %arg2[%c1_93, %c0_94, %c0_95] : memref<4x128x1xf32, #tpu.memory_space<vmem>>, vector<1x128x1xf32>
    %191 = vector.shape_cast %190 : vector<1x128x1xf32> to vector<128x1xf32>
    %192 = vector.broadcast %191 : vector<128x1xf32> to vector<128x128xf32>
    %193 = arith.addf %189, %192 : vector<128x128xf32>
    %c1_96 = arith.constant 1 : index
    %c0_97 = arith.constant 0 : index
    %c0_98 = arith.constant 0 : index
    %194 = vector.load %arg14[%c1_96, %c0_97, %c0_98] : memref<4x128x128xf32, #tpu.memory_space<vmem>>, vector<1x128x128xf32>
    %195 = vector.shape_cast %194 : vector<1x128x128xf32> to vector<128x128xf32>
    %196 = vector.shape_cast %193 : vector<128x128xf32> to vector<1x128x128xf32>
    tpu.vector_store %arg14[%c1_96, %c0_97, %c0_98], %196 {strides = array<i32>} : memref<4x128x128xf32, #tpu.memory_space<vmem>>, vector<1x128x128xf32>,
    %197 = vector.extract_strided_slice %180 {offsets = [0, 256], sizes = [128, 128], strides = [1, 1]} : vector<128x512xf32> to vector<128x128xf32>
    %c2_99 = arith.constant 2 : index
    %c0_100 = arith.constant 0 : index
    %c0_101 = arith.constant 0 : index
    %198 = vector.load %arg2[%c2_99, %c0_100, %c0_101] : memref<4x128x1xf32, #tpu.memory_space<vmem>>, vector<1x128x1xf32>
    %199 = vector.shape_cast %198 : vector<1x128x1xf32> to vector<128x1xf32>
    %200 = vector.broadcast %199 : vector<128x1xf32> to vector<128x128xf32>
    %201 = arith.addf %197, %200 : vector<128x128xf32>
    %c2_102 = arith.constant 2 : index
    %c0_103 = arith.constant 0 : index
    %c0_104 = arith.constant 0 : index
    %202 = vector.load %arg14[%c2_102, %c0_103, %c0_104] : memref<4x128x128xf32, #tpu.memory_space<vmem>>, vector<1x128x128xf32>
    %203 = vector.shape_cast %202 : vector<1x128x128xf32> to vector<128x128xf32>
    %204 = vector.shape_cast %201 : vector<128x128xf32> to vector<1x128x128xf32>
    tpu.vector_store %arg14[%c2_102, %c0_103, %c0_104], %204 {strides = array<i32>} : memref<4x128x128xf32, #tpu.memory_space<vmem>>, vector<1x128x128xf32>,
    %205 = vector.extract_strided_slice %180 {offsets = [0, 384], sizes = [128, 128], strides = [1, 1]} : vector<128x512xf32> to vector<128x128xf32>
    %c3_105 = arith.constant 3 : index
    %c0_106 = arith.constant 0 : index
    %c0_107 = arith.constant 0 : index
    %206 = vector.load %arg2[%c3_105, %c0_106, %c0_107] : memref<4x128x1xf32, #tpu.memory_space<vmem>>, vector<1x128x1xf32>
    %207 = vector.shape_cast %206 : vector<1x128x1xf32> to vector<128x1xf32>
    %208 = vector.broadcast %207 : vector<128x1xf32> to vector<128x128xf32>
    %209 = arith.addf %205, %208 : vector<128x128xf32>
    %c3_108 = arith.constant 3 : index
    %c0_109 = arith.constant 0 : index
    %c0_110 = arith.constant 0 : index
    %210 = vector.load %arg14[%c3_108, %c0_109, %c0_110] : memref<4x128x128xf32, #tpu.memory_space<vmem>>, vector<1x128x128xf32>
    %211 = vector.shape_cast %210 : vector<1x128x128xf32> to vector<128x128xf32>
    %212 = vector.shape_cast %209 : vector<128x128xf32> to vector<1x128x128xf32>
    tpu.vector_store %arg14[%c3_108, %c0_109, %c0_110], %212 {strides = array<i32>} : memref<4x128x128xf32, #tpu.memory_space<vmem>>, vector<1x128x128xf32>,
    %c0_111 = arith.constant 0 : index
    %c0_112 = arith.constant 0 : index
    %213 = vector.load %arg8[%c0_111, %c0_112] : memref<128x1xf32, #tpu.memory_space<vmem>>, vector<128x1xf32>
    %c0_113 = arith.constant 0 : index
    %c0_114 = arith.constant 0 : index
    %214 = vector.load %arg9[%c0_113, %c0_114] : memref<128x1xf32, #tpu.memory_space<vmem>>, vector<128x1xf32>
    %c0_115 = arith.constant 0 : index
    %c0_116 = arith.constant 0 : index
    %c0_117 = arith.constant 0 : index
    %215 = vector.load %arg14[%c0_115, %c0_116, %c0_117] : memref<4x128x128xf32, #tpu.memory_space<vmem>>, vector<1x128x128xf32>
    %216 = vector.shape_cast %215 : vector<1x128x128xf32> to vector<128x128xf32>
    %cst_118 = arith.constant dense<0.000000e+00> : vector<128xf32>
    %217 = vector.multi_reduction <add>, %216, %cst_118 [1] : vector<128x128xf32> to vector<128xf32>
    %218 = vector.shape_cast %217 : vector<128xf32> to vector<128x1xf32>
    %c1_119 = arith.constant 1 : index
    %c0_120 = arith.constant 0 : index
    %c0_121 = arith.constant 0 : index
    %219 = vector.load %arg14[%c1_119, %c0_120, %c0_121] : memref<4x128x128xf32, #tpu.memory_space<vmem>>, vector<1x128x128xf32>
    %220 = vector.shape_cast %219 : vector<1x128x128xf32> to vector<128x128xf32>
    %cst_122 = arith.constant dense<0.000000e+00> : vector<128xf32>
    %221 = vector.multi_reduction <add>, %220, %cst_122 [1] : vector<128x128xf32> to vector<128xf32>
    %222 = vector.shape_cast %221 : vector<128xf32> to vector<128x1xf32>
    %c2_123 = arith.constant 2 : index
    %c0_124 = arith.constant 0 : index
    %c0_125 = arith.constant 0 : index
    %223 = vector.load %arg14[%c2_123, %c0_124, %c0_125] : memref<4x128x128xf32, #tpu.memory_space<vmem>>, vector<1x128x128xf32>
    %224 = vector.shape_cast %223 : vector<1x128x128xf32> to vector<128x128xf32>
    %cst_126 = arith.constant dense<0.000000e+00> : vector<128xf32>
    %225 = vector.multi_reduction <add>, %224, %cst_126 [1] : vector<128x128xf32> to vector<128xf32>
    %226 = vector.shape_cast %225 : vector<128xf32> to vector<128x1xf32>
    %c3_127 = arith.constant 3 : index
    %c0_128 = arith.constant 0 : index
    %c0_129 = arith.constant 0 : index
    %227 = vector.load %arg14[%c3_127, %c0_128, %c0_129] : memref<4x128x128xf32, #tpu.memory_space<vmem>>, vector<1x128x128xf32>
    %228 = vector.shape_cast %227 : vector<1x128x128xf32> to vector<128x128xf32>
    %cst_130 = arith.constant dense<0.000000e+00> : vector<128xf32>
    %229 = vector.multi_reduction <add>, %228, %cst_130 [1] : vector<128x128xf32> to vector<128xf32>
    %230 = vector.shape_cast %229 : vector<128xf32> to vector<128x1xf32>
    %231 = tpu.concatenate %218, %222, %226, %230 in 1 : vector<128x1xf32>, vector<128x1xf32>, vector<128x1xf32>, vector<128x1xf32> -> vector<128x4xf32>
    %cst_131 = arith.constant dense<0.000000e+00> : vector<128x4xf32>
    %232 = tpu.matmul %9, %231, %cst_131 {dimension_numbers = #tpu.dot_dimension_numbers<[1], [0], [0], [1], [0, 0, 1, 1], [], []>} : vector<128x128xf32>, vector<128x4xf32>, vector<128x4xf32> -> vector<128x4xf32>
    %c0_132 = arith.constant 0 : index
    %c0_133 = arith.constant 0 : index
    %c0_134 = arith.constant 0 : index
    %233 = vector.load %arg14[%c0_132, %c0_133, %c0_134] : memref<4x128x128xf32, #tpu.memory_space<vmem>>, vector<1x128x128xf32>
    %234 = vector.shape_cast %233 : vector<1x128x128xf32> to vector<128x128xf32>
    %235 = vector.extract_strided_slice %232 {offsets = [0, 0], sizes = [128, 1], strides = [1, 1]} : vector<128x4xf32> to vector<128x1xf32>
    %236 = vector.broadcast %235 : vector<128x1xf32> to vector<128x128xf32>
    %237 = arith.subf %234, %236 : vector<128x128xf32>
    %238 = arith.mulf %237, %237 : vector<128x128xf32>
    %cst_135 = arith.constant dense<0.000000e+00> : vector<128xf32>
    %239 = vector.multi_reduction <add>, %238, %cst_135 [1] : vector<128x128xf32> to vector<128xf32>
    %240 = vector.shape_cast %239 : vector<128xf32> to vector<128x1xf32>
    %c1_136 = arith.constant 1 : index
    %c0_137 = arith.constant 0 : index
    %c0_138 = arith.constant 0 : index
    %241 = vector.load %arg14[%c1_136, %c0_137, %c0_138] : memref<4x128x128xf32, #tpu.memory_space<vmem>>, vector<1x128x128xf32>
    %242 = vector.shape_cast %241 : vector<1x128x128xf32> to vector<128x128xf32>
    %243 = vector.extract_strided_slice %232 {offsets = [0, 1], sizes = [128, 1], strides = [1, 1]} : vector<128x4xf32> to vector<128x1xf32>
    %244 = vector.broadcast %243 : vector<128x1xf32> to vector<128x128xf32>
    %245 = arith.subf %242, %244 : vector<128x128xf32>
    %246 = arith.mulf %245, %245 : vector<128x128xf32>
    %cst_139 = arith.constant dense<0.000000e+00> : vector<128xf32>
    %247 = vector.multi_reduction <add>, %246, %cst_139 [1] : vector<128x128xf32> to vector<128xf32>
    %248 = vector.shape_cast %247 : vector<128xf32> to vector<128x1xf32>
    %c2_140 = arith.constant 2 : index
    %c0_141 = arith.constant 0 : index
    %c0_142 = arith.constant 0 : index
    %249 = vector.load %arg14[%c2_140, %c0_141, %c0_142] : memref<4x128x128xf32, #tpu.memory_space<vmem>>, vector<1x128x128xf32>
    %250 = vector.shape_cast %249 : vector<1x128x128xf32> to vector<128x128xf32>
    %251 = vector.extract_strided_slice %232 {offsets = [0, 2], sizes = [128, 1], strides = [1, 1]} : vector<128x4xf32> to vector<128x1xf32>
    %252 = vector.broadcast %251 : vector<128x1xf32> to vector<128x128xf32>
    %253 = arith.subf %250, %252 : vector<128x128xf32>
    %254 = arith.mulf %253, %253 : vector<128x128xf32>
    %cst_143 = arith.constant dense<0.000000e+00> : vector<128xf32>
    %255 = vector.multi_reduction <add>, %254, %cst_143 [1] : vector<128x128xf32> to vector<128xf32>
    %256 = vector.shape_cast %255 : vector<128xf32> to vector<128x1xf32>
    %c3_144 = arith.constant 3 : index
    %c0_145 = arith.constant 0 : index
    %c0_146 = arith.constant 0 : index
    %257 = vector.load %arg14[%c3_144, %c0_145, %c0_146] : memref<4x128x128xf32, #tpu.memory_space<vmem>>, vector<1x128x128xf32>
    %258 = vector.shape_cast %257 : vector<1x128x128xf32> to vector<128x128xf32>
    %259 = vector.extract_strided_slice %232 {offsets = [0, 3], sizes = [128, 1], strides = [1, 1]} : vector<128x4xf32> to vector<128x1xf32>
    %260 = vector.broadcast %259 : vector<128x1xf32> to vector<128x128xf32>
    %261 = arith.subf %258, %260 : vector<128x128xf32>
    %262 = arith.mulf %261, %261 : vector<128x128xf32>
    %cst_147 = arith.constant dense<0.000000e+00> : vector<128xf32>
    %263 = vector.multi_reduction <add>, %262, %cst_147 [1] : vector<128x128xf32> to vector<128xf32>
    %264 = vector.shape_cast %263 : vector<128xf32> to vector<128x1xf32>
    %265 = tpu.concatenate %240, %248, %256, %264 in 1 : vector<128x1xf32>, vector<128x1xf32>, vector<128x1xf32>, vector<128x1xf32> -> vector<128x4xf32>
    %cst_148 = arith.constant dense<0.000000e+00> : vector<128x4xf32>
    %266 = tpu.matmul %9, %265, %cst_148 {dimension_numbers = #tpu.dot_dimension_numbers<[1], [0], [0], [1], [0, 0, 1, 1], [], []>} : vector<128x128xf32>, vector<128x4xf32>, vector<128x4xf32> -> vector<128x4xf32>
    %cst_149 = arith.constant 9.99999974E-6 : f32
    %267 = vector.broadcast %cst_149 : f32 to vector<128x4xf32>
    %268 = arith.addf %266, %267 : vector<128x4xf32>
    %269 = math.rsqrt %268 : vector<128x4xf32>
    %c0_150 = arith.constant 0 : index
    %c0_151 = arith.constant 0 : index
    %c0_152 = arith.constant 0 : index
    %270 = vector.load %arg14[%c0_150, %c0_151, %c0_152] : memref<4x128x128xf32, #tpu.memory_space<vmem>>, vector<1x128x128xf32>
    %271 = vector.shape_cast %270 : vector<1x128x128xf32> to vector<128x128xf32>
    %272 = vector.extract_strided_slice %232 {offsets = [0, 0], sizes = [128, 1], strides = [1, 1]} : vector<128x4xf32> to vector<128x1xf32>
    %273 = vector.broadcast %272 : vector<128x1xf32> to vector<128x128xf32>
    %274 = arith.subf %271, %273 : vector<128x128xf32>
    %275 = vector.extract_strided_slice %269 {offsets = [0, 0], sizes = [128, 1], strides = [1, 1]} : vector<128x4xf32> to vector<128x1xf32>
    %276 = vector.broadcast %275 : vector<128x1xf32> to vector<128x128xf32>
    %277 = arith.mulf %274, %276 : vector<128x128xf32>
    %278 = vector.broadcast %213 : vector<128x1xf32> to vector<128x128xf32>
    %279 = arith.mulf %277, %278 : vector<128x128xf32>
    %280 = vector.broadcast %214 : vector<128x1xf32> to vector<128x128xf32>
    %281 = arith.addf %279, %280 : vector<128x128xf32>
    %282 = arith.negf %281 : vector<128x128xf32>
    %283 = math.exp %282 : vector<128x128xf32>
    %cst_153 = arith.constant 1.000000e+00 : f32
    %284 = vector.broadcast %cst_153 : f32 to vector<128x128xf32>
    %285 = arith.addf %284, %283 : vector<128x128xf32>
    %286 = arith.divf %284, %285 : vector<128x128xf32>
    %287 = arith.mulf %281, %286 : vector<128x128xf32>
    %c1_i32_154 = arith.constant 1 : i32
    %288 = tpu.dynamic_rotate %287 by %c1_i32_154 dim 1 : vector<128x128xf32>, i32 -> vector<128x128xf32>
    %289 = vector.broadcast %4 : vector<1x128xf32> to vector<128x128xf32>
    %290 = arith.mulf %288, %289 : vector<128x128xf32>
    %c127_i32_155 = arith.constant 127 : i32
    %291 = tpu.dynamic_rotate %287 by %c127_i32_155 dim 1 : vector<128x128xf32>, i32 -> vector<128x128xf32>
    %292 = vector.broadcast %8 : vector<1x128xf32> to vector<128x128xf32>
    %293 = arith.mulf %291, %292 : vector<128x128xf32>
    %c0_156 = arith.constant 0 : index
    %c0_157 = arith.constant 0 : index
    %294 = vector.load %arg13[%c0_156, %c0_157] : memref<384x512xf32, #tpu.memory_space<vmem>>, vector<128x128xf32>
    tpu.vector_store %arg13[%c0_156, %c0_157], %290 {strides = array<i32>} : memref<384x512xf32, #tpu.memory_space<vmem>>, vector<128x128xf32>,
    %c128_158 = arith.constant 128 : index
    %c0_159 = arith.constant 0 : index
    %295 = vector.load %arg13[%c128_158, %c0_159] : memref<384x512xf32, #tpu.memory_space<vmem>>, vector<128x128xf32>
    tpu.vector_store %arg13[%c128_158, %c0_159], %287 {strides = array<i32>} : memref<384x512xf32, #tpu.memory_space<vmem>>, vector<128x128xf32>,
    %c256_160 = arith.constant 256 : index
    %c0_161 = arith.constant 0 : index
    %296 = vector.load %arg13[%c256_160, %c0_161] : memref<384x512xf32, #tpu.memory_space<vmem>>, vector<128x128xf32>
    tpu.vector_store %arg13[%c256_160, %c0_161], %293 {strides = array<i32>} : memref<384x512xf32, #tpu.memory_space<vmem>>, vector<128x128xf32>,
    %c1_162 = arith.constant 1 : index
    %c0_163 = arith.constant 0 : index
    %c0_164 = arith.constant 0 : index
    %297 = vector.load %arg14[%c1_162, %c0_163, %c0_164] : memref<4x128x128xf32, #tpu.memory_space<vmem>>, vector<1x128x128xf32>
    %298 = vector.shape_cast %297 : vector<1x128x128xf32> to vector<128x128xf32>
    %299 = vector.extract_strided_slice %232 {offsets = [0, 1], sizes = [128, 1], strides = [1, 1]} : vector<128x4xf32> to vector<128x1xf32>
    %300 = vector.broadcast %299 : vector<128x1xf32> to vector<128x128xf32>
    %301 = arith.subf %298, %300 : vector<128x128xf32>
    %302 = vector.extract_strided_slice %269 {offsets = [0, 1], sizes = [128, 1], strides = [1, 1]} : vector<128x4xf32> to vector<128x1xf32>
    %303 = vector.broadcast %302 : vector<128x1xf32> to vector<128x128xf32>
    %304 = arith.mulf %301, %303 : vector<128x128xf32>
    %305 = vector.broadcast %213 : vector<128x1xf32> to vector<128x128xf32>
    %306 = arith.mulf %304, %305 : vector<128x128xf32>
    %307 = vector.broadcast %214 : vector<128x1xf32> to vector<128x128xf32>
    %308 = arith.addf %306, %307 : vector<128x128xf32>
    %309 = arith.negf %308 : vector<128x128xf32>
    %310 = math.exp %309 : vector<128x128xf32>
    %cst_165 = arith.constant 1.000000e+00 : f32
    %311 = vector.broadcast %cst_165 : f32 to vector<128x128xf32>
    %312 = arith.addf %311, %310 : vector<128x128xf32>
    %313 = arith.divf %311, %312 : vector<128x128xf32>
    %314 = arith.mulf %308, %313 : vector<128x128xf32>
    %c1_i32_166 = arith.constant 1 : i32
    %315 = tpu.dynamic_rotate %314 by %c1_i32_166 dim 1 : vector<128x128xf32>, i32 -> vector<128x128xf32>
    %316 = vector.broadcast %4 : vector<1x128xf32> to vector<128x128xf32>
    %317 = arith.mulf %315, %316 : vector<128x128xf32>
    %c127_i32_167 = arith.constant 127 : i32
    %318 = tpu.dynamic_rotate %314 by %c127_i32_167 dim 1 : vector<128x128xf32>, i32 -> vector<128x128xf32>
    %319 = vector.broadcast %8 : vector<1x128xf32> to vector<128x128xf32>
    %320 = arith.mulf %318, %319 : vector<128x128xf32>
    %c0_168 = arith.constant 0 : index
    %c128_169 = arith.constant 128 : index
    %321 = vector.load %arg13[%c0_168, %c128_169] : memref<384x512xf32, #tpu.memory_space<vmem>>, vector<128x128xf32>
    tpu.vector_store %arg13[%c0_168, %c128_169], %317 {strides = array<i32>} : memref<384x512xf32, #tpu.memory_space<vmem>>, vector<128x128xf32>,
    %c128_170 = arith.constant 128 : index
    %c128_171 = arith.constant 128 : index
    %322 = vector.load %arg13[%c128_170, %c128_171] : memref<384x512xf32, #tpu.memory_space<vmem>>, vector<128x128xf32>
    tpu.vector_store %arg13[%c128_170, %c128_171], %314 {strides = array<i32>} : memref<384x512xf32, #tpu.memory_space<vmem>>, vector<128x128xf32>,
    %c256_172 = arith.constant 256 : index
    %c128_173 = arith.constant 128 : index
    %323 = vector.load %arg13[%c256_172, %c128_173] : memref<384x512xf32, #tpu.memory_space<vmem>>, vector<128x128xf32>
    tpu.vector_store %arg13[%c256_172, %c128_173], %320 {strides = array<i32>} : memref<384x512xf32, #tpu.memory_space<vmem>>, vector<128x128xf32>,
    %c2_174 = arith.constant 2 : index
    %c0_175 = arith.constant 0 : index
    %c0_176 = arith.constant 0 : index
    %324 = vector.load %arg14[%c2_174, %c0_175, %c0_176] : memref<4x128x128xf32, #tpu.memory_space<vmem>>, vector<1x128x128xf32>
    %325 = vector.shape_cast %324 : vector<1x128x128xf32> to vector<128x128xf32>
    %326 = vector.extract_strided_slice %232 {offsets = [0, 2], sizes = [128, 1], strides = [1, 1]} : vector<128x4xf32> to vector<128x1xf32>
    %327 = vector.broadcast %326 : vector<128x1xf32> to vector<128x128xf32>
    %328 = arith.subf %325, %327 : vector<128x128xf32>
    %329 = vector.extract_strided_slice %269 {offsets = [0, 2], sizes = [128, 1], strides = [1, 1]} : vector<128x4xf32> to vector<128x1xf32>
    %330 = vector.broadcast %329 : vector<128x1xf32> to vector<128x128xf32>
    %331 = arith.mulf %328, %330 : vector<128x128xf32>
    %332 = vector.broadcast %213 : vector<128x1xf32> to vector<128x128xf32>
    %333 = arith.mulf %331, %332 : vector<128x128xf32>
    %334 = vector.broadcast %214 : vector<128x1xf32> to vector<128x128xf32>
    %335 = arith.addf %333, %334 : vector<128x128xf32>
    %336 = arith.negf %335 : vector<128x128xf32>
    %337 = math.exp %336 : vector<128x128xf32>
    %cst_177 = arith.constant 1.000000e+00 : f32
    %338 = vector.broadcast %cst_177 : f32 to vector<128x128xf32>
    %339 = arith.addf %338, %337 : vector<128x128xf32>
    %340 = arith.divf %338, %339 : vector<128x128xf32>
    %341 = arith.mulf %335, %340 : vector<128x128xf32>
    %c1_i32_178 = arith.constant 1 : i32
    %342 = tpu.dynamic_rotate %341 by %c1_i32_178 dim 1 : vector<128x128xf32>, i32 -> vector<128x128xf32>
    %343 = vector.broadcast %4 : vector<1x128xf32> to vector<128x128xf32>
    %344 = arith.mulf %342, %343 : vector<128x128xf32>
    %c127_i32_179 = arith.constant 127 : i32
    %345 = tpu.dynamic_rotate %341 by %c127_i32_179 dim 1 : vector<128x128xf32>, i32 -> vector<128x128xf32>
    %346 = vector.broadcast %8 : vector<1x128xf32> to vector<128x128xf32>
    %347 = arith.mulf %345, %346 : vector<128x128xf32>
    %c0_180 = arith.constant 0 : index
    %c256_181 = arith.constant 256 : index
    %348 = vector.load %arg13[%c0_180, %c256_181] : memref<384x512xf32, #tpu.memory_space<vmem>>, vector<128x128xf32>
    tpu.vector_store %arg13[%c0_180, %c256_181], %344 {strides = array<i32>} : memref<384x512xf32, #tpu.memory_space<vmem>>, vector<128x128xf32>,
    %c128_182 = arith.constant 128 : index
    %c256_183 = arith.constant 256 : index
    %349 = vector.load %arg13[%c128_182, %c256_183] : memref<384x512xf32, #tpu.memory_space<vmem>>, vector<128x128xf32>
    tpu.vector_store %arg13[%c128_182, %c256_183], %341 {strides = array<i32>} : memref<384x512xf32, #tpu.memory_space<vmem>>, vector<128x128xf32>,
    %c256_184 = arith.constant 256 : index
    %c256_185 = arith.constant 256 : index
    %350 = vector.load %arg13[%c256_184, %c256_185] : memref<384x512xf32, #tpu.memory_space<vmem>>, vector<128x128xf32>
    tpu.vector_store %arg13[%c256_184, %c256_185], %347 {strides = array<i32>} : memref<384x512xf32, #tpu.memory_space<vmem>>, vector<128x128xf32>,
    %c3_186 = arith.constant 3 : index
    %c0_187 = arith.constant 0 : index
    %c0_188 = arith.constant 0 : index
    %351 = vector.load %arg14[%c3_186, %c0_187, %c0_188] : memref<4x128x128xf32, #tpu.memory_space<vmem>>, vector<1x128x128xf32>
    %352 = vector.shape_cast %351 : vector<1x128x128xf32> to vector<128x128xf32>
    %353 = vector.extract_strided_slice %232 {offsets = [0, 3], sizes = [128, 1], strides = [1, 1]} : vector<128x4xf32> to vector<128x1xf32>
    %354 = vector.broadcast %353 : vector<128x1xf32> to vector<128x128xf32>
    %355 = arith.subf %352, %354 : vector<128x128xf32>
    %356 = vector.extract_strided_slice %269 {offsets = [0, 3], sizes = [128, 1], strides = [1, 1]} : vector<128x4xf32> to vector<128x1xf32>
    %357 = vector.broadcast %356 : vector<128x1xf32> to vector<128x128xf32>
    %358 = arith.mulf %355, %357 : vector<128x128xf32>
    %359 = vector.broadcast %213 : vector<128x1xf32> to vector<128x128xf32>
    %360 = arith.mulf %358, %359 : vector<128x128xf32>
    %361 = vector.broadcast %214 : vector<128x1xf32> to vector<128x128xf32>
    %362 = arith.addf %360, %361 : vector<128x128xf32>
    %363 = arith.negf %362 : vector<128x128xf32>
    %364 = math.exp %363 : vector<128x128xf32>
    %cst_189 = arith.constant 1.000000e+00 : f32
    %365 = vector.broadcast %cst_189 : f32 to vector<128x128xf32>
    %366 = arith.addf %365, %364 : vector<128x128xf32>
    %367 = arith.divf %365, %366 : vector<128x128xf32>
    %368 = arith.mulf %362, %367 : vector<128x128xf32>
    %c1_i32_190 = arith.constant 1 : i32
    %369 = tpu.dynamic_rotate %368 by %c1_i32_190 dim 1 : vector<128x128xf32>, i32 -> vector<128x128xf32>
    %370 = vector.broadcast %4 : vector<1x128xf32> to vector<128x128xf32>
    %371 = arith.mulf %369, %370 : vector<128x128xf32>
    %c127_i32_191 = arith.constant 127 : i32
    %372 = tpu.dynamic_rotate %368 by %c127_i32_191 dim 1 : vector<128x128xf32>, i32 -> vector<128x128xf32>
    %373 = vector.broadcast %8 : vector<1x128xf32> to vector<128x128xf32>
    %374 = arith.mulf %372, %373 : vector<128x128xf32>
    %c0_192 = arith.constant 0 : index
    %c384_193 = arith.constant 384 : index
    %375 = vector.load %arg13[%c0_192, %c384_193] : memref<384x512xf32, #tpu.memory_space<vmem>>, vector<128x128xf32>
    tpu.vector_store %arg13[%c0_192, %c384_193], %371 {strides = array<i32>} : memref<384x512xf32, #tpu.memory_space<vmem>>, vector<128x128xf32>,
    %c128_194 = arith.constant 128 : index
    %c384_195 = arith.constant 384 : index
    %376 = vector.load %arg13[%c128_194, %c384_195] : memref<384x512xf32, #tpu.memory_space<vmem>>, vector<128x128xf32>
    tpu.vector_store %arg13[%c128_194, %c384_195], %368 {strides = array<i32>} : memref<384x512xf32, #tpu.memory_space<vmem>>, vector<128x128xf32>,
    %c256_196 = arith.constant 256 : index
    %c384_197 = arith.constant 384 : index
    %377 = vector.load %arg13[%c256_196, %c384_197] : memref<384x512xf32, #tpu.memory_space<vmem>>, vector<128x128xf32>
    tpu.vector_store %arg13[%c256_196, %c384_197], %374 {strides = array<i32>} : memref<384x512xf32, #tpu.memory_space<vmem>>, vector<128x128xf32>,
    %c0_198 = arith.constant 0 : index
    %c0_199 = arith.constant 0 : index
    %378 = vector.load %arg10[%c0_198, %c0_199] : memref<128x384xf32, #tpu.memory_space<vmem>>, vector<128x384xf32>
    %c0_200 = arith.constant 0 : index
    %c0_201 = arith.constant 0 : index
    %379 = vector.load %arg13[%c0_200, %c0_201] : memref<384x512xf32, #tpu.memory_space<vmem>>, vector<384x512xf32>
    %cst_202 = arith.constant dense<0.000000e+00> : vector<128x512xf32>
    %380 = tpu.matmul %378, %379, %cst_202 {dimension_numbers = #tpu.dot_dimension_numbers<[1], [0], [0], [1], [0, 0, 1, 1], [], []>} : vector<128x384xf32>, vector<384x512xf32>, vector<128x512xf32> -> vector<128x512xf32>
    %c0_203 = arith.constant 0 : index
    %c0_204 = arith.constant 0 : index
    %381 = vector.load %arg11[%c0_203, %c0_204] : memref<128x1xf32, #tpu.memory_space<vmem>>, vector<128x1xf32>
    %382 = vector.broadcast %381 : vector<128x1xf32> to vector<128x512xf32>
    %383 = arith.addf %380, %382 : vector<128x512xf32>
    %c0_205 = arith.constant 0 : index
    %c0_206 = arith.constant 0 : index
    %c0_207 = arith.constant 0 : index
    %384 = vector.load %arg1[%c0_205, %c0_206, %c0_207] : memref<4x128x128xf32, #tpu.memory_space<vmem>>, vector<1x128x128xf32>
    %385 = vector.shape_cast %384 : vector<1x128x128xf32> to vector<128x128xf32>
    %386 = vector.extract_strided_slice %383 {offsets = [0, 0], sizes = [128, 128], strides = [1, 1]} : vector<128x512xf32> to vector<128x128xf32>
    %387 = arith.addf %385, %386 : vector<128x128xf32>
    %c0_208 = arith.constant 0 : index
    %c0_209 = arith.constant 0 : index
    %c0_210 = arith.constant 0 : index
    %388 = vector.load %arg12[%c0_208, %c0_209, %c0_210] : memref<4x128x128xf32, #tpu.memory_space<vmem>>, vector<1x128x128xf32>
    %389 = vector.shape_cast %388 : vector<1x128x128xf32> to vector<128x128xf32>
    %390 = vector.shape_cast %387 : vector<128x128xf32> to vector<1x128x128xf32>
    tpu.vector_store %arg12[%c0_208, %c0_209, %c0_210], %390 {strides = array<i32>} : memref<4x128x128xf32, #tpu.memory_space<vmem>>, vector<1x128x128xf32>,
    %c1_211 = arith.constant 1 : index
    %c0_212 = arith.constant 0 : index
    %c0_213 = arith.constant 0 : index
    %391 = vector.load %arg1[%c1_211, %c0_212, %c0_213] : memref<4x128x128xf32, #tpu.memory_space<vmem>>, vector<1x128x128xf32>
    %392 = vector.shape_cast %391 : vector<1x128x128xf32> to vector<128x128xf32>
    %393 = vector.extract_strided_slice %383 {offsets = [0, 128], sizes = [128, 128], strides = [1, 1]} : vector<128x512xf32> to vector<128x128xf32>
    %394 = arith.addf %392, %393 : vector<128x128xf32>
    %c1_214 = arith.constant 1 : index
    %c0_215 = arith.constant 0 : index
    %c0_216 = arith.constant 0 : index
    %395 = vector.load %arg12[%c1_214, %c0_215, %c0_216] : memref<4x128x128xf32, #tpu.memory_space<vmem>>, vector<1x128x128xf32>
    %396 = vector.shape_cast %395 : vector<1x128x128xf32> to vector<128x128xf32>
    %397 = vector.shape_cast %394 : vector<128x128xf32> to vector<1x128x128xf32>
    tpu.vector_store %arg12[%c1_214, %c0_215, %c0_216], %397 {strides = array<i32>} : memref<4x128x128xf32, #tpu.memory_space<vmem>>, vector<1x128x128xf32>,
    %c2_217 = arith.constant 2 : index
    %c0_218 = arith.constant 0 : index
    %c0_219 = arith.constant 0 : index
    %398 = vector.load %arg1[%c2_217, %c0_218, %c0_219] : memref<4x128x128xf32, #tpu.memory_space<vmem>>, vector<1x128x128xf32>
    %399 = vector.shape_cast %398 : vector<1x128x128xf32> to vector<128x128xf32>
    %400 = vector.extract_strided_slice %383 {offsets = [0, 256], sizes = [128, 128], strides = [1, 1]} : vector<128x512xf32> to vector<128x128xf32>
    %401 = arith.addf %399, %400 : vector<128x128xf32>
    %c2_220 = arith.constant 2 : index
    %c0_221 = arith.constant 0 : index
    %c0_222 = arith.constant 0 : index
    %402 = vector.load %arg12[%c2_220, %c0_221, %c0_222] : memref<4x128x128xf32, #tpu.memory_space<vmem>>, vector<1x128x128xf32>
    %403 = vector.shape_cast %402 : vector<1x128x128xf32> to vector<128x128xf32>
    %404 = vector.shape_cast %401 : vector<128x128xf32> to vector<1x128x128xf32>
    tpu.vector_store %arg12[%c2_220, %c0_221, %c0_222], %404 {strides = array<i32>} : memref<4x128x128xf32, #tpu.memory_space<vmem>>, vector<1x128x128xf32>,
    %c3_223 = arith.constant 3 : index
    %c0_224 = arith.constant 0 : index
    %c0_225 = arith.constant 0 : index
    %405 = vector.load %arg1[%c3_223, %c0_224, %c0_225] : memref<4x128x128xf32, #tpu.memory_space<vmem>>, vector<1x128x128xf32>
    %406 = vector.shape_cast %405 : vector<1x128x128xf32> to vector<128x128xf32>
    %407 = vector.extract_strided_slice %383 {offsets = [0, 384], sizes = [128, 128], strides = [1, 1]} : vector<128x512xf32> to vector<128x128xf32>
    %408 = arith.addf %406, %407 : vector<128x128xf32>
    %c3_226 = arith.constant 3 : index
    %c0_227 = arith.constant 0 : index
    %c0_228 = arith.constant 0 : index
    %409 = vector.load %arg12[%c3_226, %c0_227, %c0_228] : memref<4x128x128xf32, #tpu.memory_space<vmem>>, vector<1x128x128xf32>
    %410 = vector.shape_cast %409 : vector<1x128x128xf32> to vector<128x128xf32>
    %411 = vector.shape_cast %408 : vector<128x128xf32> to vector<1x128x128xf32>
    tpu.vector_store %arg12[%c3_226, %c0_227, %c0_228], %411 {strides = array<i32>} : memref<4x128x128xf32, #tpu.memory_space<vmem>>, vector<1x128x128xf32>,
    return
  }
  func.func @transform_0(%arg0: i32) -> (i32, i32, i32) {
    %c0_i32 = arith.constant 0 : i32
    %c0_i32_0 = arith.constant 0 : i32
    %c0_i32_1 = arith.constant 0 : i32
    return %arg0, %c0_i32, %c0_i32_0 : i32, i32, i32
  }
  func.func @transform_1(%arg0: i32) -> (i32, i32, i32) {
    %c0_i32 = arith.constant 0 : i32
    %c0_i32_0 = arith.constant 0 : i32
    %c0_i32_1 = arith.constant 0 : i32
    return %arg0, %c0_i32, %c0_i32_0 : i32, i32, i32
  }
  func.func @transform_2(%arg0: i32) -> (i32, i32) {
    %c0_i32 = arith.constant 0 : i32
    %c0_i32_0 = arith.constant 0 : i32
    %c0_i32_1 = arith.constant 0 : i32
    return %c0_i32, %c0_i32_0 : i32, i32
  }
  func.func @transform_3(%arg0: i32) -> (i32, i32) {
    %c0_i32 = arith.constant 0 : i32
    %c0_i32_0 = arith.constant 0 : i32
    %c0_i32_1 = arith.constant 0 : i32
    return %c0_i32, %c0_i32_0 : i32, i32
  }
  func.func @transform_4(%arg0: i32) -> (i32, i32) {
    %c0_i32 = arith.constant 0 : i32
    %c0_i32_0 = arith.constant 0 : i32
    %c0_i32_1 = arith.constant 0 : i32
    return %c0_i32, %c0_i32_0 : i32, i32
  }
  func.func @transform_5(%arg0: i32) -> (i32, i32) {
    %c0_i32 = arith.constant 0 : i32
    %c0_i32_0 = arith.constant 0 : i32
    %c0_i32_1 = arith.constant 0 : i32
    return %c0_i32, %c0_i32_0 : i32, i32
  }
  func.func @transform_6(%arg0: i32) -> (i32, i32) {
    %c0_i32 = arith.constant 0 : i32
    %c0_i32_0 = arith.constant 0 : i32
    %c0_i32_1 = arith.constant 0 : i32
    return %c0_i32, %c0_i32_0 : i32, i32
  }
  func.func @transform_7(%arg0: i32) -> (i32, i32) {
    %c0_i32 = arith.constant 0 : i32
    %c0_i32_0 = arith.constant 0 : i32
    %c0_i32_1 = arith.constant 0 : i32
    return %c0_i32, %c0_i32_0 : i32, i32
  }
  func.func @transform_8(%arg0: i32) -> (i32, i32) {
    %c0_i32 = arith.constant 0 : i32
    %c0_i32_0 = arith.constant 0 : i32
    %c0_i32_1 = arith.constant 0 : i32
    return %c0_i32, %c0_i32_0 : i32, i32
  }
  func.func @transform_9(%arg0: i32) -> (i32, i32) {
    %c0_i32 = arith.constant 0 : i32
    %c0_i32_0 = arith.constant 0 : i32
    %c0_i32_1 = arith.constant 0 : i32
    return %c0_i32, %c0_i32_0 : i32, i32
  }
  func.func @transform_10(%arg0: i32) -> (i32, i32) {
    %c0_i32 = arith.constant 0 : i32
    %c0_i32_0 = arith.constant 0 : i32
    %c0_i32_1 = arith.constant 0 : i32
    return %c0_i32, %c0_i32_0 : i32, i32
  }
  func.func @transform_11(%arg0: i32) -> (i32, i32, i32) {
    %c0_i32 = arith.constant 0 : i32
    %c0_i32_0 = arith.constant 0 : i32
    %c0_i32_1 = arith.constant 0 : i32
    return %arg0, %c0_i32, %c0_i32_0 : i32, i32, i32
  }
}

</mosaic_0001>

<llo_original>
// kernel: tpu_custom_call.1
$region0: #{tpu_custom_call.1}
  #allocation0 [shape = 'u32[]', space=smem, size = 0x4, offset = 0x4, fixed_abs, tag = 'smem constant byte address 0x4 - core index']
  #allocation1 [shape = 'u32[72,128]{1,0:T(1,128)}', space=vmem, size = 0x9000, scoped, tag = 'internal scratch']
  #allocation2 [shape = 'f32[384,512]{1,0:T(8,128)}', space=vmem, size = 0xc0000, scoped, tag = 'scratch operand']
  #allocation3 [shape = 'f32[4,128,128]{2,1,0:T(8,128)}', space=vmem, size = 0x40000, scoped, tag = 'scratch operand']
  %s0 = inlined_call_operand.vmem [shape: f32[4,128,128], index: 0, kind: input, shape index: {}]
  %s1 = inlined_call_operand.vmem [shape: f32[4,128,1], index: 1, kind: input, shape index: {}]
  %s2 = inlined_call_operand.vmem [shape: f32[128,128], index: 2, kind: input, shape index: {}]
  %s3 = inlined_call_operand.vmem [shape: f32[128,1], index: 3, kind: input, shape index: {}]
  %s4 = inlined_call_operand.vmem [shape: f32[128,1], index: 4, kind: input, shape index: {}]
  %s5 = inlined_call_operand.hbm [shape: f32[128,384], index: 5, kind: input, shape index: {}]
  %s6 = inlined_call_operand.vmem [shape: f32[128,1], index: 6, kind: input, shape index: {}]
  %s7 = inlined_call_operand.vmem [shape: f32[128,1], index: 7, kind: input, shape index: {}]
  %s8 = inlined_call_operand.vmem [shape: f32[128,1], index: 8, kind: input, shape index: {}]
  %s9 = inlined_call_operand.hbm [shape: f32[128,384], index: 9, kind: input, shape index: {}]
  %s10 = inlined_call_operand.vmem [shape: f32[128,1], index: 10, kind: input, shape index: {}]
  %s11 = inlined_call_operand.hbm [shape: f32[4,128,128], index: 11, kind: output, shape index: {}]
  %s12 = sld [smem:[#allocation0]]
  $region62: #{tpu_custom_call.1} parent=0
    _
  %s14 = ssub.s32 1, %s12
  %s15 = scalar_select 0, %s14, %s12
  $region1: #{tpu_custom_call.1} parent=0
    #allocation4 [shape = 'u8[196608]{0}', space=vmem, size = 0x30000, scoped, tag = 'input window, operand 5, single buffered']
    #allocation5 [shape = 's32[1]{0}', space=sflag, size = 0x4, scoped, tag = 'scoped memory for tpu_custom_call.1']
    #allocation6 [shape = 's32[1]{0}', space=sflag, size = 0x4, scoped, tag = 'scoped memory for tpu_custom_call.1']
    #allocation7 [shape = 'u8[196608]{0}', space=vmem, size = 0x30000, scoped, tag = 'input window, operand 9, single buffered']
    #allocation8 [shape = 's32[1]{0}', space=sflag, size = 0x4, scoped, tag = 'scoped memory for tpu_custom_call.1']
    #allocation9 [shape = 'u8[262144]{0}', space=vmem, size = 0x40000, scoped, tag = 'output window, operand 0, single buffered']
    %16 = vsyncpa [#allocation5], 0
    %17 = vsyncpa [#allocation8], 0
    %18 = vsyncpa [#allocation6], 0
    // Predicated region
    $region2: #{tpu_custom_call.1} parent=1 // pred_check
      _
    $region3: #{tpu_custom_call.1} parent=1 // pred_check_branch
      %20 = sbr.rel (0) target = $region5
    $region4: #{tpu_custom_call.1} parent=1 // pred_region
      _
    $region5: #{tpu_custom_call.1} parent=1 // pred_fallthru
      _
    // Predicated region
    $region6: #{tpu_custom_call.1} parent=1 // pred_check
      _
    $region7: #{tpu_custom_call.1} parent=1 // pred_check_branch
      %22 = sbr.rel (0) target = $region9
    $region8: #{tpu_custom_call.1} parent=1 // pred_region
      _
    $region9: #{tpu_custom_call.1} parent=1 // pred_fallthru
      _
    // Predicated region
    $region10: #{tpu_custom_call.1} parent=1 // pred_check
      _
    $region11: #{tpu_custom_call.1} parent=1 // pred_check_branch
      %24 = sbr.rel (0) target = $region13
    $region12: #{tpu_custom_call.1} parent=1 // pred_region
      _
    $region13: #{tpu_custom_call.1} parent=1 // pred_fallthru
      _
    // Predicated region
    $region14: #{tpu_custom_call.1} parent=1 // pred_check
      _
    $region15: #{tpu_custom_call.1} parent=1 // pred_check_branch
      %26 = sbr.rel (0) target = $region17
    $region16: #{tpu_custom_call.1} parent=1 // pred_region
      _
    $region17: #{tpu_custom_call.1} parent=1 // pred_fallthru
      _
    // Predicated region
    $region18: #{tpu_custom_call.1} parent=1 // pred_check
      _
    $region19: #{tpu_custom_call.1} parent=1 // pred_check_branch
      %28 = sbr.rel (0) target = $region21
    $region20: #{tpu_custom_call.1} parent=1 // pred_region
      _
    $region21: #{tpu_custom_call.1} parent=1 // pred_fallthru
      _
    // Predicated region
    $region22: #{tpu_custom_call.1} parent=1 // pred_check
      _
    $region23: #{tpu_custom_call.1} parent=1 // pred_check_branch
      %30 = sbr.rel (0) target = $region25
    $region24: #{tpu_custom_call.1} parent=1 // pred_region
      %32 = vsyncadd [#allocation5], 0
      %s33 = sshll.u32 %s5, 4
      %s34 = int_to_ptr.hbm [resolvable:$true] %s33
      %s35 = sshll.u32 [#allocation4], 4
      %s36 = int_to_ptr.vmem [resolvable:$true] %s35
      %41 = dma.hbm_to_vmem [thread:$0]  %s34, 6144, %s36, [#allocation5], 384, 384, 24
    $region25: #{tpu_custom_call.1} parent=1 // pred_fallthru
      _
    // Predicated region
    $region26: #{tpu_custom_call.1} parent=1 // pred_check
      _
    $region27: #{tpu_custom_call.1} parent=1 // pred_check_branch
      %43 = sbr.rel (0) target = $region29
    $region28: #{tpu_custom_call.1} parent=1 // pred_region
      _
    $region29: #{tpu_custom_call.1} parent=1 // pred_fallthru
      _
    // Predicated region
    $region30: #{tpu_custom_call.1} parent=1 // pred_check
      _
    $region31: #{tpu_custom_call.1} parent=1 // pred_check_branch
      %45 = sbr.rel (0) target = $region33
    $region32: #{tpu_custom_call.1} parent=1 // pred_region
      _
    $region33: #{tpu_custom_call.1} parent=1 // pred_fallthru
      _
    // Predicated region
    $region34: #{tpu_custom_call.1} parent=1 // pred_check
      _
    $region35: #{tpu_custom_call.1} parent=1 // pred_check_branch
      %47 = sbr.rel (0) target = $region37
    $region36: #{tpu_custom_call.1} parent=1 // pred_region
      _
    $region37: #{tpu_custom_call.1} parent=1 // pred_fallthru
      _
    // Predicated region
    $region38: #{tpu_custom_call.1} parent=1 // pred_check
      _
    $region39: #{tpu_custom_call.1} parent=1 // pred_check_branch
      %49 = sbr.rel (0) target = $region41
    $region40: #{tpu_custom_call.1} parent=1 // pred_region
      %51 = vsyncadd [#allocation8], 0
      %s52 = sshll.u32 %s9, 4
      %s53 = int_to_ptr.hbm [resolvable:$true] %s52
      %s54 = sshll.u32 [#allocation7], 4
      %s55 = int_to_ptr.vmem [resolvable:$true] %s54
      %60 = dma.hbm_to_vmem [thread:$0]  %s53, 6144, %s55, [#allocation8], 384, 384, 24
    $region41: #{tpu_custom_call.1} parent=1 // pred_fallthru
      _
    // Predicated region
    $region42: #{tpu_custom_call.1} parent=1 // pred_check
      _
    $region43: #{tpu_custom_call.1} parent=1 // pred_check_branch
      %62 = sbr.rel (0) target = $region45
    $region44: #{tpu_custom_call.1} parent=1 // pred_region
      _
    $region45: #{tpu_custom_call.1} parent=1 // pred_fallthru
      _
    // Predicated region
    $region46: #{tpu_custom_call.1} parent=1 // pred_check
      _
    $region47: #{tpu_custom_call.1} parent=1 // pred_check_branch
      %64 = sbr.rel (0) target = $region49
    $region48: #{tpu_custom_call.1} parent=1 // pred_region
      %66 = dma.done [#allocation5], 6144
    $region49: #{tpu_custom_call.1} parent=1 // pred_fallthru
      _
    // Predicated region
    $region50: #{tpu_custom_call.1} parent=1 // pred_check
      _
    $region51: #{tpu_custom_call.1} parent=1 // pred_check_branch
      %68 = sbr.rel (0) target = $region53
    $region52: #{tpu_custom_call.1} parent=1 // pred_region
      %70 = dma.done [#allocation8], 6144
    $region53: #{tpu_custom_call.1} parent=1 // pred_fallthru
      _
    %v71 = vlaneseq
    %v72 = vand.u32 %v71, 127
    %vm73 = vcmp.ge.s32.totalorder %v72, 1
    %v74 = vsel %vm73, 1, 0
    %v75 = vcvt.s32.f32 %v74
    %vm76 = vcmp.le.s32.totalorder %v72, 126
    %v77 = vsel %vm76, 1, 0
    %v78 = vcvt.s32.f32 %v77
    %v79 = vld [vmem:[%s2] sm:$0xff]
    %v80 = vld [vmem:[%s2 + $0x8] sm:$0xff]
    %v81 = vld [vmem:[%s2 + $0x10] sm:$0xff]
    %v82 = vld [vmem:[%s2 + $0x18] sm:$0xff]
    %v83 = vld [vmem:[%s2 + $0x20] sm:$0xff]
    %v84 = vld [vmem:[%s2 + $0x28] sm:$0xff]
    %v85 = vld [vmem:[%s2 + $0x30] sm:$0xff]
    %v86 = vld [vmem:[%s2 + $0x38] sm:$0xff]
    %v87 = vld [vmem:[%s2 + $0x40] sm:$0xff]
    %v88 = vld [vmem:[%s2 + $0x48] sm:$0xff]
    %v89 = vld [vmem:[%s2 + $0x50] sm:$0xff]
    %v90 = vld [vmem:[%s2 + $0x58] sm:$0xff]
    %v91 = vld [vmem:[%s2 + $0x60] sm:$0xff]
    %v92 = vld [vmem:[%s2 + $0x68] sm:$0xff]
    %v93 = vld [vmem:[%s2 + $0x70] sm:$0xff]
    %v94 = vld [vmem:[%s2 + $0x78] sm:$0xff]
    %v95 = vld [vmem:[%s3] sm:$0xff]
    %v96 = vld [vmem:[%s3 + $0x8] sm:$0xff]
    %v97 = vld [vmem:[%s3 + $0x10] sm:$0xff]
    %v98 = vld [vmem:[%s3 + $0x18] sm:$0xff]
    %v99 = vld [vmem:[%s3 + $0x20] sm:$0xff]
    %v100 = vld [vmem:[%s3 + $0x28] sm:$0xff]
    %v101 = vld [vmem:[%s3 + $0x30] sm:$0xff]
    %v102 = vld [vmem:[%s3 + $0x38] sm:$0xff]
    %v103 = vld [vmem:[%s3 + $0x40] sm:$0xff]
    %v104 = vld [vmem:[%s3 + $0x48] sm:$0xff]
    %v105 = vld [vmem:[%s3 + $0x50] sm:$0xff]
    %v106 = vld [vmem:[%s3 + $0x58] sm:$0xff]
    %v107 = vld [vmem:[%s3 + $0x60] sm:$0xff]
    %v108 = vld [vmem:[%s3 + $0x68] sm:$0xff]
    %v109 = vld [vmem:[%s3 + $0x70] sm:$0xff]
    %v110 = vld [vmem:[%s3 + $0x78] sm:$0xff]
    %v111 = vld [vmem:[%s4] sm:$0xff]
    %v112 = vld [vmem:[%s4 + $0x8] sm:$0xff]
    %v113 = vld [vmem:[%s4 + $0x10] sm:$0xff]
    %v114 = vld [vmem:[%s4 + $0x18] sm:$0xff]
    %v115 = vld [vmem:[%s4 + $0x20] sm:$0xff]
    %v116 = vld [vmem:[%s4 + $0x28] sm:$0xff]
    %v117 = vld [vmem:[%s4 + $0x30] sm:$0xff]
    %v118 = vld [vmem:[%s4 + $0x38] sm:$0xff]
    %v119 = vld [vmem:[%s4 + $0x40] sm:$0xff]
    %v120 = vld [vmem:[%s4 + $0x48] sm:$0xff]
    %v121 = vld [vmem:[%s4 + $0x50] sm:$0xff]
    %v122 = vld [vmem:[%s4 + $0x58] sm:$0xff]
    %v123 = vld [vmem:[%s4 + $0x60] sm:$0xff]
    %v124 = vld [vmem:[%s4 + $0x68] sm:$0xff]
    %v125 = vld [vmem:[%s4 + $0x70] sm:$0xff]
    %v126 = vld [vmem:[%s4 + $0x78] sm:$0xff]
    %v127 = vld [vmem:[%s0] sm:$0xff]
    %v128 = vld [vmem:[%s0 + $0x8] sm:$0xff]
    %v129 = vld [vmem:[%s0 + $0x10] sm:$0xff]
    %v130 = vld [vmem:[%s0 + $0x18] sm:$0xff]
    %v131 = vld [vmem:[%s0 + $0x20] sm:$0xff]
    %v132 = vld [vmem:[%s0 + $0x28] sm:$0xff]
    %v133 = vld [vmem:[%s0 + $0x30] sm:$0xff]
    %v134 = vld [vmem:[%s0 + $0x38] sm:$0xff]
    %v135 = vld [vmem:[%s0 + $0x40] sm:$0xff]
    %v136 = vld [vmem:[%s0 + $0x48] sm:$0xff]
    %v137 = vld [vmem:[%s0 + $0x50] sm:$0xff]
    %v138 = vld [vmem:[%s0 + $0x58] sm:$0xff]
    %v139 = vld [vmem:[%s0 + $0x60] sm:$0xff]
    %v140 = vld [vmem:[%s0 + $0x68] sm:$0xff]
    %v141 = vld [vmem:[%s0 + $0x70] sm:$0xff]
    %v142 = vld [vmem:[%s0 + $0x78] sm:$0xff]
    %143 = vadd.xlane.f32.xlu0 %v127
    %v144 = vpop.xlane.xlu0 %143
    %145 = vadd.xlane.f32.xlu0 %v128
    %v146 = vpop.xlane.xlu0 %145
    %147 = vadd.xlane.f32.xlu0 %v129
    %v148 = vpop.xlane.xlu0 %147
    %149 = vadd.xlane.f32.xlu0 %v130
    %v150 = vpop.xlane.xlu0 %149
    %151 = vadd.xlane.f32.xlu0 %v131
    %v152 = vpop.xlane.xlu0 %151
    %153 = vadd.xlane.f32.xlu0 %v132
    %v154 = vpop.xlane.xlu0 %153
    %155 = vadd.xlane.f32.xlu0 %v133
    %v156 = vpop.xlane.xlu0 %155
    %157 = vadd.xlane.f32.xlu0 %v134
    %v158 = vpop.xlane.xlu0 %157
    %159 = vadd.xlane.f32.xlu0 %v135
    %v160 = vpop.xlane.xlu0 %159
    %161 = vadd.xlane.f32.xlu0 %v136
    %v162 = vpop.xlane.xlu0 %161
    %163 = vadd.xlane.f32.xlu0 %v137
    %v164 = vpop.xlane.xlu0 %163
    %165 = vadd.xlane.f32.xlu0 %v138
    %v166 = vpop.xlane.xlu0 %165
    %167 = vadd.xlane.f32.xlu0 %v139
    %v168 = vpop.xlane.xlu0 %167
    %169 = vadd.xlane.f32.xlu0 %v140
    %v170 = vpop.xlane.xlu0 %169
    %171 = vadd.xlane.f32.xlu0 %v141
    %v172 = vpop.xlane.xlu0 %171
    %173 = vadd.xlane.f32.xlu0 %v142
    %v174 = vpop.xlane.xlu0 %173
    %s175 = scalar_lea.vmem %s0, 128
    %v176 = vld [vmem:[%s175] sm:$0xff]
    %v177 = vld [vmem:[%s175 + $0x8] sm:$0xff]
    %v178 = vld [vmem:[%s175 + $0x10] sm:$0xff]
    %v179 = vld [vmem:[%s175 + $0x18] sm:$0xff]
    %v180 = vld [vmem:[%s175 + $0x20] sm:$0xff]
    %v181 = vld [vmem:[%s175 + $0x28] sm:$0xff]
    %v182 = vld [vmem:[%s175 + $0x30] sm:$0xff]
    %v183 = vld [vmem:[%s175 + $0x38] sm:$0xff]
    %v184 = vld [vmem:[%s175 + $0x40] sm:$0xff]
    %v185 = vld [vmem:[%s175 + $0x48] sm:$0xff]
    %v186 = vld [vmem:[%s175 + $0x50] sm:$0xff]
    %v187 = vld [vmem:[%s175 + $0x58] sm:$0xff]
    %v188 = vld [vmem:[%s175 + $0x60] sm:$0xff]
    %v189 = vld [vmem:[%s175 + $0x68] sm:$0xff]
    %v190 = vld [vmem:[%s175 + $0x70] sm:$0xff]
    %v191 = vld [vmem:[%s175 + $0x78] sm:$0xff]
    %192 = vadd.xlane.f32.xlu0 %v176
    %v193 = vpop.xlane.xlu0 %192
    %194 = vadd.xlane.f32.xlu0 %v177
    %v195 = vpop.xlane.xlu0 %194
    %196 = vadd.xlane.f32.xlu0 %v178
    %v197 = vpop.xlane.xlu0 %196
    %198 = vadd.xlane.f32.xlu0 %v179
    %v199 = vpop.xlane.xlu0 %198
    %200 = vadd.xlane.f32.xlu0 %v180
    %v201 = vpop.xlane.xlu0 %200
    %202 = vadd.xlane.f32.xlu0 %v181
    %v203 = vpop.xlane.xlu0 %202
    %204 = vadd.xlane.f32.xlu0 %v182
    %v205 = vpop.xlane.xlu0 %204
    %206 = vadd.xlane.f32.xlu0 %v183
    %v207 = vpop.xlane.xlu0 %206
    %208 = vadd.xlane.f32.xlu0 %v184
    %v209 = vpop.xlane.xlu0 %208
    %210 = vadd.xlane.f32.xlu0 %v185
    %v211 = vpop.xlane.xlu0 %210
    %212 = vadd.xlane.f32.xlu0 %v186
    %v213 = vpop.xlane.xlu0 %212
    %214 = vadd.xlane.f32.xlu0 %v187
    %v215 = vpop.xlane.xlu0 %214
    %216 = vadd.xlane.f32.xlu0 %v188
    %v217 = vpop.xlane.xlu0 %216
    %218 = vadd.xlane.f32.xlu0 %v189
    %v219 = vpop.xlane.xlu0 %218
    %220 = vadd.xlane.f32.xlu0 %v190
    %v221 = vpop.xlane.xlu0 %220
    %222 = vadd.xlane.f32.xlu0 %v191
    %v223 = vpop.xlane.xlu0 %222
    %s224 = scalar_lea.vmem %s0, 256
    %v225 = vld [vmem:[%s224] sm:$0xff]
    %v226 = vld [vmem:[%s224 + $0x8] sm:$0xff]
    %v227 = vld [vmem:[%s224 + $0x10] sm:$0xff]
    %v228 = vld [vmem:[%s224 + $0x18] sm:$0xff]
    %v229 = vld [vmem:[%s224 + $0x20] sm:$0xff]
    %v230 = vld [vmem:[%s224 + $0x28] sm:$0xff]
    %v231 = vld [vmem:[%s224 + $0x30] sm:$0xff]
    %v232 = vld [vmem:[%s224 + $0x38] sm:$0xff]
    %v233 = vld [vmem:[%s224 + $0x40] sm:$0xff]
    %v234 = vld [vmem:[%s224 + $0x48] sm:$0xff]
    %v235 = vld [vmem:[%s224 + $0x50] sm:$0xff]
    %v236 = vld [vmem:[%s224 + $0x58] sm:$0xff]
    %v237 = vld [vmem:[%s224 + $0x60] sm:$0xff]
    %v238 = vld [vmem:[%s224 + $0x68] sm:$0xff]
    %v239 = vld [vmem:[%s224 + $0x70] sm:$0xff]
    %v240 = vld [vmem:[%s224 + $0x78] sm:$0xff]
    %241 = vadd.xlane.f32.xlu0 %v225
    %v242 = vpop.xlane.xlu0 %241
    %243 = vadd.xlane.f32.xlu0 %v226
    %v244 = vpop.xlane.xlu0 %243
    %245 = vadd.xlane.f32.xlu0 %v227
    %v246 = vpop.xlane.xlu0 %245
    %247 = vadd.xlane.f32.xlu0 %v228
    %v248 = vpop.xlane.xlu0 %247
    %249 = vadd.xlane.f32.xlu0 %v229
    %v250 = vpop.xlane.xlu0 %249
    %251 = vadd.xlane.f32.xlu0 %v230
    %v252 = vpop.xlane.xlu0 %251
    %253 = vadd.xlane.f32.xlu0 %v231
    %v254 = vpop.xlane.xlu0 %253
    %255 = vadd.xlane.f32.xlu0 %v232
    %v256 = vpop.xlane.xlu0 %255
    %257 = vadd.xlane.f32.xlu0 %v233
    %v258 = vpop.xlane.xlu0 %257
    %259 = vadd.xlane.f32.xlu0 %v234
    %v260 = vpop.xlane.xlu0 %259
    %261 = vadd.xlane.f32.xlu0 %v235
    %v262 = vpop.xlane.xlu0 %261
    %263 = vadd.xlane.f32.xlu0 %v236
    %v264 = vpop.xlane.xlu0 %263
    %265 = vadd.xlane.f32.xlu0 %v237
    %v266 = vpop.xlane.xlu0 %265
    %267 = vadd.xlane.f32.xlu0 %v238
    %v268 = vpop.xlane.xlu0 %267
    %269 = vadd.xlane.f32.xlu0 %v239
    %v270 = vpop.xlane.xlu0 %269
    %271 = vadd.xlane.f32.xlu0 %v240
    %v272 = vpop.xlane.xlu0 %271
    %s273 = scalar_lea.vmem %s0, 384
    %v274 = vld [vmem:[%s273] sm:$0xff]
    %v275 = vld [vmem:[%s273 + $0x8] sm:$0xff]
    %v276 = vld [vmem:[%s273 + $0x10] sm:$0xff]
    %v277 = vld [vmem:[%s273 + $0x18] sm:$0xff]
    %v278 = vld [vmem:[%s273 + $0x20] sm:$0xff]
    %v279 = vld [vmem:[%s273 + $0x28] sm:$0xff]
    %v280 = vld [vmem:[%s273 + $0x30] sm:$0xff]
    %v281 = vld [vmem:[%s273 + $0x38] sm:$0xff]
    %v282 = vld [vmem:[%s273 + $0x40] sm:$0xff]
    %v283 = vld [vmem:[%s273 + $0x48] sm:$0xff]
    %v284 = vld [vmem:[%s273 + $0x50] sm:$0xff]
    %v285 = vld [vmem:[%s273 + $0x58] sm:$0xff]
    %v286 = vld [vmem:[%s273 + $0x60] sm:$0xff]
    %v287 = vld [vmem:[%s273 + $0x68] sm:$0xff]
    %v288 = vld [vmem:[%s273 + $0x70] sm:$0xff]
    %v289 = vld [vmem:[%s273 + $0x78] sm:$0xff]
    %290 = vadd.xlane.f32.xlu0 %v274
    %v291 = vpop.xlane.xlu0 %290
    %292 = vadd.xlane.f32.xlu0 %v275
    %v293 = vpop.xlane.xlu0 %292
    %294 = vadd.xlane.f32.xlu0 %v276
    %v295 = vpop.xlane.xlu0 %294
    %296 = vadd.xlane.f32.xlu0 %v277
    %v297 = vpop.xlane.xlu0 %296
    %298 = vadd.xlane.f32.xlu0 %v278
    %v299 = vpop.xlane.xlu0 %298
    %300 = vadd.xlane.f32.xlu0 %v279
    %v301 = vpop.xlane.xlu0 %300
    %302 = vadd.xlane.f32.xlu0 %v280
    %v303 = vpop.xlane.xlu0 %302
    %304 = vadd.xlane.f32.xlu0 %v281
    %v305 = vpop.xlane.xlu0 %304
    %306 = vadd.xlane.f32.xlu0 %v282
    %v307 = vpop.xlane.xlu0 %306
    %308 = vadd.xlane.f32.xlu0 %v283
    %v309 = vpop.xlane.xlu0 %308
    %310 = vadd.xlane.f32.xlu0 %v284
    %v311 = vpop.xlane.xlu0 %310
    %312 = vadd.xlane.f32.xlu0 %v285
    %v313 = vpop.xlane.xlu0 %312
    %314 = vadd.xlane.f32.xlu0 %v286
    %v315 = vpop.xlane.xlu0 %314
    %316 = vadd.xlane.f32.xlu0 %v287
    %v317 = vpop.xlane.xlu0 %316
    %318 = vadd.xlane.f32.xlu0 %v288
    %v319 = vpop.xlane.xlu0 %318
    %320 = vadd.xlane.f32.xlu0 %v289
    %v321 = vpop.xlane.xlu0 %320
    %vm322 = vcmask 7168
    %v323 = vsel %vm322, %v144, %v193
    %v324 = vsel %vm322, %v146, %v195
    %v325 = vsel %vm322, %v148, %v197
    %v326 = vsel %vm322, %v150, %v199
    %v327 = vsel %vm322, %v152, %v201
    %v328 = vsel %vm322, %v154, %v203
    %v329 = vsel %vm322, %v156, %v205
    %v330 = vsel %vm322, %v158, %v207
    %v331 = vsel %vm322, %v160, %v209
    %v332 = vsel %vm322, %v162, %v211
    %v333 = vsel %vm322, %v164, %v213
    %v334 = vsel %vm322, %v166, %v215
    %v335 = vsel %vm322, %v168, %v217
    %v336 = vsel %vm322, %v170, %v219
    %v337 = vsel %vm322, %v172, %v221
    %v338 = vsel %vm322, %v174, %v223
    %vm339 = vcmask 15360
    %v340 = vsel %vm339, %v323, %v242
    %v341 = vsel %vm339, %v324, %v244
    %v342 = vsel %vm339, %v325, %v246
    %v343 = vsel %vm339, %v326, %v248
    %v344 = vsel %vm339, %v327, %v250
    %v345 = vsel %vm339, %v328, %v252
    %v346 = vsel %vm339, %v329, %v254
    %v347 = vsel %vm339, %v330, %v256
    %v348 = vsel %vm339, %v331, %v258
    %v349 = vsel %vm339, %v332, %v260
    %v350 = vsel %vm339, %v333, %v262
    %v351 = vsel %vm339, %v334, %v264
    %v352 = vsel %vm339, %v335, %v266
    %v353 = vsel %vm339, %v336, %v268
    %v354 = vsel %vm339, %v337, %v270
    %v355 = vsel %vm339, %v338, %v272
    %vm356 = vcmask 23552
    %v357 = vsel %vm356, %v340, %v291
    %v358 = vsel %vm356, %v341, %v293
    %v359 = vsel %vm356, %v342, %v295
    %v360 = vsel %vm356, %v343, %v297
    %v361 = vsel %vm356, %v344, %v299
    %v362 = vsel %vm356, %v345, %v301
    %v363 = vsel %vm356, %v346, %v303
    %v364 = vsel %vm356, %v347, %v305
    %v365 = vsel %vm356, %v348, %v307
    %v366 = vsel %vm356, %v349, %v309
    %v367 = vsel %vm356, %v350, %v311
    %v368 = vsel %vm356, %v351, %v313
    %v369 = vsel %vm356, %v352, %v315
    %v370 = vsel %vm356, %v353, %v317
    %v371 = vsel %vm356, %v354, %v319
    %v372 = vsel %vm356, %v355, %v321
    %373 = vmatpush.msra.mxu0 %v372
    %374 = vmatpush.msra.mxu0 %v371
    %375 = vmatpush.msra.mxu0 %v370
    %376 = vmatpush.msra.mxu0 %v369
    %377 = vmatpush.msra.mxu0 %v368
    %378 = vmatpush.msra.mxu0 %v367
    %379 = vmatpush.msra.mxu0 %v366
    %380 = vmatpush.msra.mxu0 %v365
    %381 = vmatpush.msra.mxu0 %v364
    %382 = vmatpush.msra.mxu0 %v363
    %383 = vmatpush.msra.mxu0 %v362
    %384 = vmatpush.msra.mxu0 %v361
    %385 = vmatpush.msra.mxu0 %v360
    %386 = vmatpush.msra.mxu0 %v359
    %387 = vmatpush.msra.mxu0 %v358
    %388 = vmatpush.msra.mxu0 %v357
    %389 = vmatmul.f32.gmra.mxu0 %v79
    %v390 = vpop.f32.mrf.mxu0
    %v391 = vadd.f32 0.0, %v390
    %392 = vmatmul.f32.gmra.mxu0 %v80
    %v393 = vpop.f32.mrf.mxu0
    %v394 = vadd.f32 0.0, %v393
    %395 = vmatmul.f32.gmra.mxu0 %v81
    %v396 = vpop.f32.mrf.mxu0
    %v397 = vadd.f32 0.0, %v396
    %398 = vmatmul.f32.gmra.mxu0 %v82
    %v399 = vpop.f32.mrf.mxu0
    %v400 = vadd.f32 0.0, %v399
    %401 = vmatmul.f32.gmra.mxu0 %v83
    %v402 = vpop.f32.mrf.mxu0
    %v403 = vadd.f32 0.0, %v402
    %404 = vmatmul.f32.gmra.mxu0 %v84
    %v405 = vpop.f32.mrf.mxu0
    %v406 = vadd.f32 0.0, %v405
    %407 = vmatmul.f32.gmra.mxu0 %v85
    %v408 = vpop.f32.mrf.mxu0
    %v409 = vadd.f32 0.0, %v408
    %410 = vmatmul.f32.gmra.mxu0 %v86
    %v411 = vpop.f32.mrf.mxu0
    %v412 = vadd.f32 0.0, %v411
    %413 = vmatmul.f32.gmra.mxu0 %v87
    %v414 = vpop.f32.mrf.mxu0
    %v415 = vadd.f32 0.0, %v414
    %416 = vmatmul.f32.gmra.mxu0 %v88
    %v417 = vpop.f32.mrf.mxu0
    %v418 = vadd.f32 0.0, %v417
    %419 = vmatmul.f32.gmra.mxu0 %v89
    %v420 = vpop.f32.mrf.mxu0
    %v421 = vadd.f32 0.0, %v420
    %422 = vmatmul.f32.gmra.mxu0 %v90
    %v423 = vpop.f32.mrf.mxu0
    %v424 = vadd.f32 0.0, %v423
    %425 = vmatmul.f32.gmra.mxu0 %v91
    %v426 = vpop.f32.mrf.mxu0
    %v427 = vadd.f32 0.0, %v426
    %428 = vmatmul.f32.gmra.mxu0 %v92
    %v429 = vpop.f32.mrf.mxu0
    %v430 = vadd.f32 0.0, %v429
    %431 = vmatmul.f32.gmra.mxu0 %v93
    %v432 = vpop.f32.mrf.mxu0
    %v433 = vadd.f32 0.0, %v432
    %434 = vmatmul.f32.gmra.mxu0 %v94
    %v435 = vpop.f32.mrf.mxu0
    %v436 = vadd.f32 0.0, %v435
    %437 = vdwg.mxu0
    %439 = vset.pattern.permute.xlu0 0
    %440 = vperm.xlu0 %439, %v391
    %v441 = vpop.permute.xlu0 %440
    %444 = vset.pattern.permute.xlu0 0
    %445 = vperm.xlu0 %444, %v394
    %v446 = vpop.permute.xlu0 %445
    %449 = vset.pattern.permute.xlu0 0
    %450 = vperm.xlu0 %449, %v397
    %v451 = vpop.permute.xlu0 %450
    %454 = vset.pattern.permute.xlu0 0
    %455 = vperm.xlu0 %454, %v400
    %v456 = vpop.permute.xlu0 %455
    %459 = vset.pattern.permute.xlu0 0
    %460 = vperm.xlu0 %459, %v403
    %v461 = vpop.permute.xlu0 %460
    %464 = vset.pattern.permute.xlu0 0
    %465 = vperm.xlu0 %464, %v406
    %v466 = vpop.permute.xlu0 %465
    %469 = vset.pattern.permute.xlu0 0
    %470 = vperm.xlu0 %469, %v409
    %v471 = vpop.permute.xlu0 %470
    %474 = vset.pattern.permute.xlu0 0
    %475 = vperm.xlu0 %474, %v412
    %v476 = vpop.permute.xlu0 %475
    %479 = vset.pattern.permute.xlu0 0
    %480 = vperm.xlu0 %479, %v415
    %v481 = vpop.permute.xlu0 %480
    %484 = vset.pattern.permute.xlu0 0
    %485 = vperm.xlu0 %484, %v418
    %v486 = vpop.permute.xlu0 %485
    %489 = vset.pattern.permute.xlu0 0
    %490 = vperm.xlu0 %489, %v421
    %v491 = vpop.permute.xlu0 %490
    %494 = vset.pattern.permute.xlu0 0
    %495 = vperm.xlu0 %494, %v424
    %v496 = vpop.permute.xlu0 %495
    %499 = vset.pattern.permute.xlu0 0
    %500 = vperm.xlu0 %499, %v427
    %v501 = vpop.permute.xlu0 %500
    %504 = vset.pattern.permute.xlu0 0
    %505 = vperm.xlu0 %504, %v430
    %v506 = vpop.permute.xlu0 %505
    %509 = vset.pattern.permute.xlu0 0
    %510 = vperm.xlu0 %509, %v433
    %v511 = vpop.permute.xlu0 %510
    %514 = vset.pattern.permute.xlu0 0
    %515 = vperm.xlu0 %514, %v436
    %v516 = vpop.permute.xlu0 %515
    %v518 = vsub.f32 %v127, %v441
    %v519 = vsub.f32 %v128, %v446
    %v520 = vsub.f32 %v129, %v451
    %v521 = vsub.f32 %v130, %v456
    %v522 = vsub.f32 %v131, %v461
    %v523 = vsub.f32 %v132, %v466
    %v524 = vsub.f32 %v133, %v471
    %v525 = vsub.f32 %v134, %v476
    %v526 = vsub.f32 %v135, %v481
    %v527 = vsub.f32 %v136, %v486
    %v528 = vsub.f32 %v137, %v491
    %v529 = vsub.f32 %v138, %v496
    %v530 = vsub.f32 %v139, %v501
    %v531 = vsub.f32 %v140, %v506
    %v532 = vsub.f32 %v141, %v511
    %v533 = vsub.f32 %v142, %v516
    %v534 = vmul.f32 %v518, %v518
    %v535 = vmul.f32 %v519, %v519
    %v536 = vmul.f32 %v520, %v520
    %v537 = vmul.f32 %v521, %v521
    %v538 = vmul.f32 %v522, %v522
    %v539 = vmul.f32 %v523, %v523
    %v540 = vmul.f32 %v524, %v524
    %v541 = vmul.f32 %v525, %v525
    %v542 = vmul.f32 %v526, %v526
    %v543 = vmul.f32 %v527, %v527
    %v544 = vmul.f32 %v528, %v528
    %v545 = vmul.f32 %v529, %v529
    %v546 = vmul.f32 %v530, %v530
    %v547 = vmul.f32 %v531, %v531
    %v548 = vmul.f32 %v532, %v532
    %v549 = vmul.f32 %v533, %v533
    %550 = vadd.xlane.f32.xlu0 %v534
    %v551 = vpop.xlane.xlu0 %550
    %552 = vadd.xlane.f32.xlu0 %v535
    %v553 = vpop.xlane.xlu0 %552
    %554 = vadd.xlane.f32.xlu0 %v536
    %v555 = vpop.xlane.xlu0 %554
    %556 = vadd.xlane.f32.xlu0 %v537
    %v557 = vpop.xlane.xlu0 %556
    %558 = vadd.xlane.f32.xlu0 %v538
    %v559 = vpop.xlane.xlu0 %558
    %560 = vadd.xlane.f32.xlu0 %v539
    %v561 = vpop.xlane.xlu0 %560
    %562 = vadd.xlane.f32.xlu0 %v540
    %v563 = vpop.xlane.xlu0 %562
    %564 = vadd.xlane.f32.xlu0 %v541
    %v565 = vpop.xlane.xlu0 %564
    %566 = vadd.xlane.f32.xlu0 %v542
    %v567 = vpop.xlane.xlu0 %566
    %568 = vadd.xlane.f32.xlu0 %v543
    %v569 = vpop.xlane.xlu0 %568
    %570 = vadd.xlane.f32.xlu0 %v544
    %v571 = vpop.xlane.xlu0 %570
    %572 = vadd.xlane.f32.xlu0 %v545
    %v573 = vpop.xlane.xlu0 %572
    %574 = vadd.xlane.f32.xlu0 %v546
    %v575 = vpop.xlane.xlu0 %574
    %576 = vadd.xlane.f32.xlu0 %v547
    %v577 = vpop.xlane.xlu0 %576
    %578 = vadd.xlane.f32.xlu0 %v548
    %v579 = vpop.xlane.xlu0 %578
    %580 = vadd.xlane.f32.xlu0 %v549
    %v581 = vpop.xlane.xlu0 %580
    %582 = vset.pattern.permute.xlu0 1
    %583 = vperm.xlu0 %582, %v391
    %v584 = vpop.permute.xlu0 %583
    %586 = vset.pattern.permute.xlu0 1
    %587 = vperm.xlu0 %586, %v394
    %v588 = vpop.permute.xlu0 %587
    %590 = vset.pattern.permute.xlu0 1
    %591 = vperm.xlu0 %590, %v397
    %v592 = vpop.permute.xlu0 %591
    %594 = vset.pattern.permute.xlu0 1
    %595 = vperm.xlu0 %594, %v400
    %v596 = vpop.permute.xlu0 %595
    %598 = vset.pattern.permute.xlu0 1
    %599 = vperm.xlu0 %598, %v403
    %v600 = vpop.permute.xlu0 %599
    %602 = vset.pattern.permute.xlu0 1
    %603 = vperm.xlu0 %602, %v406
    %v604 = vpop.permute.xlu0 %603
    %606 = vset.pattern.permute.xlu0 1
    %607 = vperm.xlu0 %606, %v409
    %v608 = vpop.permute.xlu0 %607
    %610 = vset.pattern.permute.xlu0 1
    %611 = vperm.xlu0 %610, %v412
    %v612 = vpop.permute.xlu0 %611
    %614 = vset.pattern.permute.xlu0 1
    %615 = vperm.xlu0 %614, %v415
    %v616 = vpop.permute.xlu0 %615
    %618 = vset.pattern.permute.xlu0 1
    %619 = vperm.xlu0 %618, %v418
    %v620 = vpop.permute.xlu0 %619
    %622 = vset.pattern.permute.xlu0 1
    %623 = vperm.xlu0 %622, %v421
    %v624 = vpop.permute.xlu0 %623
    %626 = vset.pattern.permute.xlu0 1
    %627 = vperm.xlu0 %626, %v424
    %v628 = vpop.permute.xlu0 %627
    %630 = vset.pattern.permute.xlu0 1
    %631 = vperm.xlu0 %630, %v427
    %v632 = vpop.permute.xlu0 %631
    %634 = vset.pattern.permute.xlu0 1
    %635 = vperm.xlu0 %634, %v430
    %v636 = vpop.permute.xlu0 %635
    %638 = vset.pattern.permute.xlu0 1
    %639 = vperm.xlu0 %638, %v433
    %v640 = vpop.permute.xlu0 %639
    %642 = vset.pattern.permute.xlu0 1
    %643 = vperm.xlu0 %642, %v436
    %v644 = vpop.permute.xlu0 %643
    %v646 = vsub.f32 %v176, %v584
    %v647 = vsub.f32 %v177, %v588
    %v648 = vsub.f32 %v178, %v592
    %v649 = vsub.f32 %v179, %v596
    %v650 = vsub.f32 %v180, %v600
    %v651 = vsub.f32 %v181, %v604
    %v652 = vsub.f32 %v182, %v608
    %v653 = vsub.f32 %v183, %v612
    %v654 = vsub.f32 %v184, %v616
    %v655 = vsub.f32 %v185, %v620
    %v656 = vsub.f32 %v186, %v624
    %v657 = vsub.f32 %v187, %v628
    %v658 = vsub.f32 %v188, %v632
    %v659 = vsub.f32 %v189, %v636
    %v660 = vsub.f32 %v190, %v640
    %v661 = vsub.f32 %v191, %v644
    %v662 = vmul.f32 %v646, %v646
    %v663 = vmul.f32 %v647, %v647
    %v664 = vmul.f32 %v648, %v648
    %v665 = vmul.f32 %v649, %v649
    %v666 = vmul.f32 %v650, %v650
    %v667 = vmul.f32 %v651, %v651
    %v668 = vmul.f32 %v652, %v652
    %v669 = vmul.f32 %v653, %v653
    %v670 = vmul.f32 %v654, %v654
    %v671 = vmul.f32 %v655, %v655
    %v672 = vmul.f32 %v656, %v656
    %v673 = vmul.f32 %v657, %v657
    %v674 = vmul.f32 %v658, %v658
    %v675 = vmul.f32 %v659, %v659
    %v676 = vmul.f32 %v660, %v660
    %v677 = vmul.f32 %v661, %v661
    %678 = vadd.xlane.f32.xlu0 %v662
    %v679 = vpop.xlane.xlu0 %678
    %680 = vadd.xlane.f32.xlu0 %v663
    %v681 = vpop.xlane.xlu0 %680
    %682 = vadd.xlane.f32.xlu0 %v664
    %v683 = vpop.xlane.xlu0 %682
    %684 = vadd.xlane.f32.xlu0 %v665
    %v685 = vpop.xlane.xlu0 %684
    %686 = vadd.xlane.f32.xlu0 %v666
    %v687 = vpop.xlane.xlu0 %686
    %688 = vadd.xlane.f32.xlu0 %v667
    %v689 = vpop.xlane.xlu0 %688
    %690 = vadd.xlane.f32.xlu0 %v668
    %v691 = vpop.xlane.xlu0 %690
    %692 = vadd.xlane.f32.xlu0 %v669
    %v693 = vpop.xlane.xlu0 %692
    %694 = vadd.xlane.f32.xlu0 %v670
    %v695 = vpop.xlane.xlu0 %694
    %696 = vadd.xlane.f32.xlu0 %v671
    %v697 = vpop.xlane.xlu0 %696
    %698 = vadd.xlane.f32.xlu0 %v672
    %v699 = vpop.xlane.xlu0 %698
    %700 = vadd.xlane.f32.xlu0 %v673
    %v701 = vpop.xlane.xlu0 %700
    %702 = vadd.xlane.f32.xlu0 %v674
    %v703 = vpop.xlane.xlu0 %702
    %704 = vadd.xlane.f32.xlu0 %v675
    %v705 = vpop.xlane.xlu0 %704
    %706 = vadd.xlane.f32.xlu0 %v676
    %v707 = vpop.xlane.xlu0 %706
    %708 = vadd.xlane.f32.xlu0 %v677
    %v709 = vpop.xlane.xlu0 %708
    %710 = vset.pattern.permute.xlu0 2
    %711 = vperm.xlu0 %710, %v391
    %v712 = vpop.permute.xlu0 %711
    %714 = vset.pattern.permute.xlu0 2
    %715 = vperm.xlu0 %714, %v394
    %v716 = vpop.permute.xlu0 %715
    %718 = vset.pattern.permute.xlu0 2
    %719 = vperm.xlu0 %718, %v397
    %v720 = vpop.permute.xlu0 %719
    %722 = vset.pattern.permute.xlu0 2
    %723 = vperm.xlu0 %722, %v400
    %v724 = vpop.permute.xlu0 %723
    %726 = vset.pattern.permute.xlu0 2
    %727 = vperm.xlu0 %726, %v403
    %v728 = vpop.permute.xlu0 %727
    %730 = vset.pattern.permute.xlu0 2
    %731 = vperm.xlu0 %730, %v406
    %v732 = vpop.permute.xlu0 %731
    %734 = vset.pattern.permute.xlu0 2
    %735 = vperm.xlu0 %734, %v409
    %v736 = vpop.permute.xlu0 %735
    %738 = vset.pattern.permute.xlu0 2
    %739 = vperm.xlu0 %738, %v412
    %v740 = vpop.permute.xlu0 %739
    %742 = vset.pattern.permute.xlu0 2
    %743 = vperm.xlu0 %742, %v415
    %v744 = vpop.permute.xlu0 %743
    %746 = vset.pattern.permute.xlu0 2
    %747 = vperm.xlu0 %746, %v418
    %v748 = vpop.permute.xlu0 %747
    %750 = vset.pattern.permute.xlu0 2
    %751 = vperm.xlu0 %750, %v421
    %v752 = vpop.permute.xlu0 %751
    %754 = vset.pattern.permute.xlu0 2
    %755 = vperm.xlu0 %754, %v424
    %v756 = vpop.permute.xlu0 %755
    %758 = vset.pattern.permute.xlu0 2
    %759 = vperm.xlu0 %758, %v427
    %v760 = vpop.permute.xlu0 %759
    %762 = vset.pattern.permute.xlu0 2
    %763 = vperm.xlu0 %762, %v430
    %v764 = vpop.permute.xlu0 %763
    %766 = vset.pattern.permute.xlu0 2
    %767 = vperm.xlu0 %766, %v433
    %v768 = vpop.permute.xlu0 %767
    %770 = vset.pattern.permute.xlu0 2
    %771 = vperm.xlu0 %770, %v436
    %v772 = vpop.permute.xlu0 %771
    %v774 = vsub.f32 %v225, %v712
    %v775 = vsub.f32 %v226, %v716
    %v776 = vsub.f32 %v227, %v720
    %v777 = vsub.f32 %v228, %v724
    %v778 = vsub.f32 %v229, %v728
    %v779 = vsub.f32 %v230, %v732
    %v780 = vsub.f32 %v231, %v736
    %v781 = vsub.f32 %v232, %v740
    %v782 = vsub.f32 %v233, %v744
    %v783 = vsub.f32 %v234, %v748
    %v784 = vsub.f32 %v235, %v752
    %v785 = vsub.f32 %v236, %v756
    %v786 = vsub.f32 %v237, %v760
    %v787 = vsub.f32 %v238, %v764
    %v788 = vsub.f32 %v239, %v768
    %v789 = vsub.f32 %v240, %v772
    %v790 = vmul.f32 %v774, %v774
    %v791 = vmul.f32 %v775, %v775
    %v792 = vmul.f32 %v776, %v776
    %v793 = vmul.f32 %v777, %v777
    %v794 = vmul.f32 %v778, %v778
    %v795 = vmul.f32 %v779, %v779
    %v796 = vmul.f32 %v780, %v780
    %v797 = vmul.f32 %v781, %v781
    %v798 = vmul.f32 %v782, %v782
    %v799 = vmul.f32 %v783, %v783
    %v800 = vmul.f32 %v784, %v784
    %v801 = vmul.f32 %v785, %v785
    %v802 = vmul.f32 %v786, %v786
    %v803 = vmul.f32 %v787, %v787
    %v804 = vmul.f32 %v788, %v788
    %v805 = vmul.f32 %v789, %v789
    %806 = vadd.xlane.f32.xlu0 %v790
    %v807 = vpop.xlane.xlu0 %806
    %808 = vadd.xlane.f32.xlu0 %v791
    %v809 = vpop.xlane.xlu0 %808
    %810 = vadd.xlane.f32.xlu0 %v792
    %v811 = vpop.xlane.xlu0 %810
    %812 = vadd.xlane.f32.xlu0 %v793
    %v813 = vpop.xlane.xlu0 %812
    %814 = vadd.xlane.f32.xlu0 %v794
    %v815 = vpop.xlane.xlu0 %814
    %816 = vadd.xlane.f32.xlu0 %v795
    %v817 = vpop.xlane.xlu0 %816
    %818 = vadd.xlane.f32.xlu0 %v796
    %v819 = vpop.xlane.xlu0 %818
    %820 = vadd.xlane.f32.xlu0 %v797
    %v821 = vpop.xlane.xlu0 %820
    %822 = vadd.xlane.f32.xlu0 %v798
    %v823 = vpop.xlane.xlu0 %822
    %824 = vadd.xlane.f32.xlu0 %v799
    %v825 = vpop.xlane.xlu0 %824
    %826 = vadd.xlane.f32.xlu0 %v800
    %v827 = vpop.xlane.xlu0 %826
    %828 = vadd.xlane.f32.xlu0 %v801
    %v829 = vpop.xlane.xlu0 %828
    %830 = vadd.xlane.f32.xlu0 %v802
    %v831 = vpop.xlane.xlu0 %830
    %832 = vadd.xlane.f32.xlu0 %v803
    %v833 = vpop.xlane.xlu0 %832
    %834 = vadd.xlane.f32.xlu0 %v804
    %v835 = vpop.xlane.xlu0 %834
    %836 = vadd.xlane.f32.xlu0 %v805
    %v837 = vpop.xlane.xlu0 %836
    %838 = vset.pattern.permute.xlu0 3
    %839 = vperm.xlu0 %838, %v391
    %v840 = vpop.permute.xlu0 %839
    %842 = vset.pattern.permute.xlu0 3
    %843 = vperm.xlu0 %842, %v394
    %v844 = vpop.permute.xlu0 %843
    %846 = vset.pattern.permute.xlu0 3
    %847 = vperm.xlu0 %846, %v397
    %v848 = vpop.permute.xlu0 %847
    %850 = vset.pattern.permute.xlu0 3
    %851 = vperm.xlu0 %850, %v400
    %v852 = vpop.permute.xlu0 %851
    %854 = vset.pattern.permute.xlu0 3
    %855 = vperm.xlu0 %854, %v403
    %v856 = vpop.permute.xlu0 %855
    %858 = vset.pattern.permute.xlu0 3
    %859 = vperm.xlu0 %858, %v406
    %v860 = vpop.permute.xlu0 %859
    %862 = vset.pattern.permute.xlu0 3
    %863 = vperm.xlu0 %862, %v409
    %v864 = vpop.permute.xlu0 %863
    %866 = vset.pattern.permute.xlu0 3
    %867 = vperm.xlu0 %866, %v412
    %v868 = vpop.permute.xlu0 %867
    %870 = vset.pattern.permute.xlu0 3
    %871 = vperm.xlu0 %870, %v415
    %v872 = vpop.permute.xlu0 %871
    %874 = vset.pattern.permute.xlu0 3
    %875 = vperm.xlu0 %874, %v418
    %v876 = vpop.permute.xlu0 %875
    %878 = vset.pattern.permute.xlu0 3
    %879 = vperm.xlu0 %878, %v421
    %v880 = vpop.permute.xlu0 %879
    %882 = vset.pattern.permute.xlu0 3
    %883 = vperm.xlu0 %882, %v424
    %v884 = vpop.permute.xlu0 %883
    %886 = vset.pattern.permute.xlu0 3
    %887 = vperm.xlu0 %886, %v427
    %v888 = vpop.permute.xlu0 %887
    %890 = vset.pattern.permute.xlu0 3
    %891 = vperm.xlu0 %890, %v430
    %v892 = vpop.permute.xlu0 %891
    %894 = vset.pattern.permute.xlu0 3
    %895 = vperm.xlu0 %894, %v433
    %v896 = vpop.permute.xlu0 %895
    %898 = vset.pattern.permute.xlu0 3
    %899 = vperm.xlu0 %898, %v436
    %v900 = vpop.permute.xlu0 %899
    %v902 = vsub.f32 %v274, %v840
    %v903 = vsub.f32 %v275, %v844
    %v904 = vsub.f32 %v276, %v848
    %v905 = vsub.f32 %v277, %v852
    %v906 = vsub.f32 %v278, %v856
    %v907 = vsub.f32 %v279, %v860
    %v908 = vsub.f32 %v280, %v864
    %v909 = vsub.f32 %v281, %v868
    %v910 = vsub.f32 %v282, %v872
    %v911 = vsub.f32 %v283, %v876
    %v912 = vsub.f32 %v284, %v880
    %v913 = vsub.f32 %v285, %v884
    %v914 = vsub.f32 %v286, %v888
    %v915 = vsub.f32 %v287, %v892
    %v916 = vsub.f32 %v288, %v896
    %v917 = vsub.f32 %v289, %v900
    %v918 = vmul.f32 %v902, %v902
    %v919 = vmul.f32 %v903, %v903
    %v920 = vmul.f32 %v904, %v904
    %v921 = vmul.f32 %v905, %v905
    %v922 = vmul.f32 %v906, %v906
    %v923 = vmul.f32 %v907, %v907
    %v924 = vmul.f32 %v908, %v908
    %v925 = vmul.f32 %v909, %v909
    %v926 = vmul.f32 %v910, %v910
    %v927 = vmul.f32 %v911, %v911
    %v928 = vmul.f32 %v912, %v912
    %v929 = vmul.f32 %v913, %v913
    %v930 = vmul.f32 %v914, %v914
    %v931 = vmul.f32 %v915, %v915
    %v932 = vmul.f32 %v916, %v916
    %v933 = vmul.f32 %v917, %v917
    %934 = vadd.xlane.f32.xlu0 %v918
    %v935 = vpop.xlane.xlu0 %934
    %936 = vadd.xlane.f32.xlu0 %v919
    %v937 = vpop.xlane.xlu0 %936
    %938 = vadd.xlane.f32.xlu0 %v920
    %v939 = vpop.xlane.xlu0 %938
    %940 = vadd.xlane.f32.xlu0 %v921
    %v941 = vpop.xlane.xlu0 %940
    %942 = vadd.xlane.f32.xlu0 %v922
    %v943 = vpop.xlane.xlu0 %942
    %944 = vadd.xlane.f32.xlu0 %v923
    %v945 = vpop.xlane.xlu0 %944
    %946 = vadd.xlane.f32.xlu0 %v924
    %v947 = vpop.xlane.xlu0 %946
    %948 = vadd.xlane.f32.xlu0 %v925
    %v949 = vpop.xlane.xlu0 %948
    %950 = vadd.xlane.f32.xlu0 %v926
    %v951 = vpop.xlane.xlu0 %950
    %952 = vadd.xlane.f32.xlu0 %v927
    %v953 = vpop.xlane.xlu0 %952
    %954 = vadd.xlane.f32.xlu0 %v928
    %v955 = vpop.xlane.xlu0 %954
    %956 = vadd.xlane.f32.xlu0 %v929
    %v957 = vpop.xlane.xlu0 %956
    %958 = vadd.xlane.f32.xlu0 %v930
    %v959 = vpop.xlane.xlu0 %958
    %960 = vadd.xlane.f32.xlu0 %v931
    %v961 = vpop.xlane.xlu0 %960
    %962 = vadd.xlane.f32.xlu0 %v932
    %v963 = vpop.xlane.xlu0 %962
    %964 = vadd.xlane.f32.xlu0 %v933
    %v965 = vpop.xlane.xlu0 %964
    %v966 = vsel %vm322, %v551, %v679
    %v967 = vsel %vm322, %v553, %v681
    %v968 = vsel %vm322, %v555, %v683
    %v969 = vsel %vm322, %v557, %v685
    %v970 = vsel %vm322, %v559, %v687
    %v971 = vsel %vm322, %v561, %v689
    %v972 = vsel %vm322, %v563, %v691
    %v973 = vsel %vm322, %v565, %v693
    %v974 = vsel %vm322, %v567, %v695
    %v975 = vsel %vm322, %v569, %v697
    %v976 = vsel %vm322, %v571, %v699
    %v977 = vsel %vm322, %v573, %v701
    %v978 = vsel %vm322, %v575, %v703
    %v979 = vsel %vm322, %v577, %v705
    %v980 = vsel %vm322, %v579, %v707
    %v981 = vsel %vm322, %v581, %v709
    %v982 = vsel %vm339, %v966, %v807
    %v983 = vsel %vm339, %v967, %v809
    %v984 = vsel %vm339, %v968, %v811
    %v985 = vsel %vm339, %v969, %v813
    %v986 = vsel %vm339, %v970, %v815
    %v987 = vsel %vm339, %v971, %v817
    %v988 = vsel %vm339, %v972, %v819
    %v989 = vsel %vm339, %v973, %v821
    %v990 = vsel %vm339, %v974, %v823
    %v991 = vsel %vm339, %v975, %v825
    %v992 = vsel %vm339, %v976, %v827
    %v993 = vsel %vm339, %v977, %v829
    %v994 = vsel %vm339, %v978, %v831
    %v995 = vsel %vm339, %v979, %v833
    %v996 = vsel %vm339, %v980, %v835
    %v997 = vsel %vm339, %v981, %v837
    %v998 = vsel %vm356, %v982, %v935
    %v999 = vsel %vm356, %v983, %v937
    %v1000 = vsel %vm356, %v984, %v939
    %v1001 = vsel %vm356, %v985, %v941
    %v1002 = vsel %vm356, %v986, %v943
    %v1003 = vsel %vm356, %v987, %v945
    %v1004 = vsel %vm356, %v988, %v947
    %v1005 = vsel %vm356, %v989, %v949
    %v1006 = vsel %vm356, %v990, %v951
    %v1007 = vsel %vm356, %v991, %v953
    %v1008 = vsel %vm356, %v992, %v955
    %v1009 = vsel %vm356, %v993, %v957
    %v1010 = vsel %vm356, %v994, %v959
    %v1011 = vsel %vm356, %v995, %v961
    %v1012 = vsel %vm356, %v996, %v963
    %v1013 = vsel %vm356, %v997, %v965
    %1014 = vmatpush.msra.mxu0 %v1013
    %1015 = vmatpush.msra.mxu0 %v1012
    %1016 = vmatpush.msra.mxu0 %v1011
    %1017 = vmatpush.msra.mxu0 %v1010
    %1018 = vmatpush.msra.mxu0 %v1009
    %1019 = vmatpush.msra.mxu0 %v1008
    %1020 = vmatpush.msra.mxu0 %v1007
    %1021 = vmatpush.msra.mxu0 %v1006
    %1022 = vmatpush.msra.mxu0 %v1005
    %1023 = vmatpush.msra.mxu0 %v1004
    %1024 = vmatpush.msra.mxu0 %v1003
    %1025 = vmatpush.msra.mxu0 %v1002
    %1026 = vmatpush.msra.mxu0 %v1001
    %1027 = vmatpush.msra.mxu0 %v1000
    %1028 = vmatpush.msra.mxu0 %v999
    %1029 = vmatpush.msra.mxu0 %v998
    %1030 = vmatmul.f32.gmra.mxu0 %v79
    %v1031 = vpop.f32.mrf.mxu0
    %v1032 = vadd.f32 1e-05, %v1031
    %1033 = vmatmul.f32.gmra.mxu0 %v80
    %v1034 = vpop.f32.mrf.mxu0
    %v1035 = vadd.f32 1e-05, %v1034
    %1036 = vmatmul.f32.gmra.mxu0 %v81
    %v1037 = vpop.f32.mrf.mxu0
    %v1038 = vadd.f32 1e-05, %v1037
    %1039 = vmatmul.f32.gmra.mxu0 %v82
    %v1040 = vpop.f32.mrf.mxu0
    %v1041 = vadd.f32 1e-05, %v1040
    %1042 = vmatmul.f32.gmra.mxu0 %v83
    %v1043 = vpop.f32.mrf.mxu0
    %v1044 = vadd.f32 1e-05, %v1043
    %1045 = vmatmul.f32.gmra.mxu0 %v84
    %v1046 = vpop.f32.mrf.mxu0
    %v1047 = vadd.f32 1e-05, %v1046
    %1048 = vmatmul.f32.gmra.mxu0 %v85
    %v1049 = vpop.f32.mrf.mxu0
    %v1050 = vadd.f32 1e-05, %v1049
    %1051 = vmatmul.f32.gmra.mxu0 %v86
    %v1052 = vpop.f32.mrf.mxu0
    %v1053 = vadd.f32 1e-05, %v1052
    %1054 = vmatmul.f32.gmra.mxu0 %v87
    %v1055 = vpop.f32.mrf.mxu0
    %v1056 = vadd.f32 1e-05, %v1055
    %1057 = vmatmul.f32.gmra.mxu0 %v88
    %v1058 = vpop.f32.mrf.mxu0
    %v1059 = vadd.f32 1e-05, %v1058
    %1060 = vmatmul.f32.gmra.mxu0 %v89
    %v1061 = vpop.f32.mrf.mxu0
    %v1062 = vadd.f32 1e-05, %v1061
    %1063 = vmatmul.f32.gmra.mxu0 %v90
    %v1064 = vpop.f32.mrf.mxu0
    %v1065 = vadd.f32 1e-05, %v1064
    %1066 = vmatmul.f32.gmra.mxu0 %v91
    %v1067 = vpop.f32.mrf.mxu0
    %v1068 = vadd.f32 1e-05, %v1067
    %1069 = vmatmul.f32.gmra.mxu0 %v92
    %v1070 = vpop.f32.mrf.mxu0
    %v1071 = vadd.f32 1e-05, %v1070
    %1072 = vmatmul.f32.gmra.mxu0 %v93
    %v1073 = vpop.f32.mrf.mxu0
    %v1074 = vadd.f32 1e-05, %v1073
    %1075 = vmatmul.f32.gmra.mxu0 %v94
    %v1076 = vpop.f32.mrf.mxu0
    %v1077 = vadd.f32 1e-05, %v1076
    %1078 = vdwg.mxu0
    %v1079 = vrsqrt.pop %v1032
    %v1080 = vmul.f32 %v1079, %v1032
    %v1081 = vmul.f32 %v1080, %v1079
    %v1082 = vmul.f32 0.5, %v1081
    %v1083 = vsub.f32 1.5, %v1082
    %v1084 = vmul.f32 %v1079, %v1083
    %vm1085 = vweird.f32 %v1032
    %vm1086 = vweird.f32 %v1079
    %vm1087 = vmor %vm1085, %vm1086
    %v1088 = vsel %vm1087, %v1079, %v1084
    %v1089 = vrsqrt.pop %v1035
    %v1090 = vmul.f32 %v1089, %v1035
    %v1091 = vmul.f32 %v1090, %v1089
    %v1092 = vmul.f32 0.5, %v1091
    %v1093 = vsub.f32 1.5, %v1092
    %v1094 = vmul.f32 %v1089, %v1093
    %vm1095 = vweird.f32 %v1035
    %vm1096 = vweird.f32 %v1089
    %vm1097 = vmor %vm1095, %vm1096
    %v1098 = vsel %vm1097, %v1089, %v1094
    %v1099 = vrsqrt.pop %v1038
    %v1100 = vmul.f32 %v1099, %v1038
    %v1101 = vmul.f32 %v1100, %v1099
    %v1102 = vmul.f32 0.5, %v1101
    %v1103 = vsub.f32 1.5, %v1102
    %v1104 = vmul.f32 %v1099, %v1103
    %vm1105 = vweird.f32 %v1038
    %vm1106 = vweird.f32 %v1099
    %vm1107 = vmor %vm1105, %vm1106
    %v1108 = vsel %vm1107, %v1099, %v1104
    %v1109 = vrsqrt.pop %v1041
    %v1110 = vmul.f32 %v1109, %v1041
    %v1111 = vmul.f32 %v1110, %v1109
    %v1112 = vmul.f32 0.5, %v1111
    %v1113 = vsub.f32 1.5, %v1112
    %v1114 = vmul.f32 %v1109, %v1113
    %vm1115 = vweird.f32 %v1041
    %vm1116 = vweird.f32 %v1109
    %vm1117 = vmor %vm1115, %vm1116
    %v1118 = vsel %vm1117, %v1109, %v1114
    %v1119 = vrsqrt.pop %v1044
    %v1120 = vmul.f32 %v1119, %v1044
    %v1121 = vmul.f32 %v1120, %v1119
    %v1122 = vmul.f32 0.5, %v1121
    %v1123 = vsub.f32 1.5, %v1122
    %v1124 = vmul.f32 %v1119, %v1123
    %vm1125 = vweird.f32 %v1044
    %vm1126 = vweird.f32 %v1119
    %vm1127 = vmor %vm1125, %vm1126
    %v1128 = vsel %vm1127, %v1119, %v1124
    %v1129 = vrsqrt.pop %v1047
    %v1130 = vmul.f32 %v1129, %v1047
    %v1131 = vmul.f32 %v1130, %v1129
    %v1132 = vmul.f32 0.5, %v1131
    %v1133 = vsub.f32 1.5, %v1132
    %v1134 = vmul.f32 %v1129, %v1133
    %vm1135 = vweird.f32 %v1047
    %vm1136 = vweird.f32 %v1129
    %vm1137 = vmor %vm1135, %vm1136
    %v1138 = vsel %vm1137, %v1129, %v1134
    %v1139 = vrsqrt.pop %v1050
    %v1140 = vmul.f32 %v1139, %v1050
    %v1141 = vmul.f32 %v1140, %v1139
    %v1142 = vmul.f32 0.5, %v1141
    %v1143 = vsub.f32 1.5, %v1142
    %v1144 = vmul.f32 %v1139, %v1143
    %vm1145 = vweird.f32 %v1050
    %vm1146 = vweird.f32 %v1139
    %vm1147 = vmor %vm1145, %vm1146
    %v1148 = vsel %vm1147, %v1139, %v1144
    %v1149 = vrsqrt.pop %v1053
    %v1150 = vmul.f32 %v1149, %v1053
    %v1151 = vmul.f32 %v1150, %v1149
    %v1152 = vmul.f32 0.5, %v1151
    %v1153 = vsub.f32 1.5, %v1152
    %v1154 = vmul.f32 %v1149, %v1153
    %vm1155 = vweird.f32 %v1053
    %vm1156 = vweird.f32 %v1149
    %vm1157 = vmor %vm1155, %vm1156
    %v1158 = vsel %vm1157, %v1149, %v1154
    %v1159 = vrsqrt.pop %v1056
    %v1160 = vmul.f32 %v1159, %v1056
    %v1161 = vmul.f32 %v1160, %v1159
    %v1162 = vmul.f32 0.5, %v1161
    %v1163 = vsub.f32 1.5, %v1162
    %v1164 = vmul.f32 %v1159, %v1163
    %vm1165 = vweird.f32 %v1056
    %vm1166 = vweird.f32 %v1159
    %vm1167 = vmor %vm1165, %vm1166
    %v1168 = vsel %vm1167, %v1159, %v1164
    %v1169 = vrsqrt.pop %v1059
    %v1170 = vmul.f32 %v1169, %v1059
    %v1171 = vmul.f32 %v1170, %v1169
    %v1172 = vmul.f32 0.5, %v1171
    %v1173 = vsub.f32 1.5, %v1172
    %v1174 = vmul.f32 %v1169, %v1173
    %vm1175 = vweird.f32 %v1059
    %vm1176 = vweird.f32 %v1169
    %vm1177 = vmor %vm1175, %vm1176
    %v1178 = vsel %vm1177, %v1169, %v1174
    %v1179 = vrsqrt.pop %v1062
    %v1180 = vmul.f32 %v1179, %v1062
    %v1181 = vmul.f32 %v1180, %v1179
    %v1182 = vmul.f32 0.5, %v1181
    %v1183 = vsub.f32 1.5, %v1182
    %v1184 = vmul.f32 %v1179, %v1183
    %vm1185 = vweird.f32 %v1062
    %vm1186 = vweird.f32 %v1179
    %vm1187 = vmor %vm1185, %vm1186
    %v1188 = vsel %vm1187, %v1179, %v1184
    %v1189 = vrsqrt.pop %v1065
    %v1190 = vmul.f32 %v1189, %v1065
    %v1191 = vmul.f32 %v1190, %v1189
    %v1192 = vmul.f32 0.5, %v1191
    %v1193 = vsub.f32 1.5, %v1192
    %v1194 = vmul.f32 %v1189, %v1193
    %vm1195 = vweird.f32 %v1065
    %vm1196 = vweird.f32 %v1189
    %vm1197 = vmor %vm1195, %vm1196
    %v1198 = vsel %vm1197, %v1189, %v1194
    %v1199 = vrsqrt.pop %v1068
    %v1200 = vmul.f32 %v1199, %v1068
    %v1201 = vmul.f32 %v1200, %v1199
    %v1202 = vmul.f32 0.5, %v1201
    %v1203 = vsub.f32 1.5, %v1202
    %v1204 = vmul.f32 %v1199, %v1203
    %vm1205 = vweird.f32 %v1068
    %vm1206 = vweird.f32 %v1199
    %vm1207 = vmor %vm1205, %vm1206
    %v1208 = vsel %vm1207, %v1199, %v1204
    %v1209 = vrsqrt.pop %v1071
    %v1210 = vmul.f32 %v1209, %v1071
    %v1211 = vmul.f32 %v1210, %v1209
    %v1212 = vmul.f32 0.5, %v1211
    %v1213 = vsub.f32 1.5, %v1212
    %v1214 = vmul.f32 %v1209, %v1213
    %vm1215 = vweird.f32 %v1071
    %vm1216 = vweird.f32 %v1209
    %vm1217 = vmor %vm1215, %vm1216
    %v1218 = vsel %vm1217, %v1209, %v1214
    %v1219 = vrsqrt.pop %v1074
    %v1220 = vmul.f32 %v1219, %v1074
    %v1221 = vmul.f32 %v1220, %v1219
    %v1222 = vmul.f32 0.5, %v1221
    %v1223 = vsub.f32 1.5, %v1222
    %v1224 = vmul.f32 %v1219, %v1223
    %vm1225 = vweird.f32 %v1074
    %vm1226 = vweird.f32 %v1219
    %vm1227 = vmor %vm1225, %vm1226
    %v1228 = vsel %vm1227, %v1219, %v1224
    %v1229 = vrsqrt.pop %v1077
    %v1230 = vmul.f32 %v1229, %v1077
    %v1231 = vmul.f32 %v1230, %v1229
    %v1232 = vmul.f32 0.5, %v1231
    %v1233 = vsub.f32 1.5, %v1232
    %v1234 = vmul.f32 %v1229, %v1233
    %vm1235 = vweird.f32 %v1077
    %vm1236 = vweird.f32 %v1229
    %vm1237 = vmor %vm1235, %vm1236
    %v1238 = vsel %vm1237, %v1229, %v1234
    %1240 = vset.pattern.permute.xlu0 0
    %1241 = vperm.xlu0 %1240, %v1088
    %v1242 = vpop.permute.xlu0 %1241
    %1245 = vset.pattern.permute.xlu0 0
    %1246 = vperm.xlu0 %1245, %v1098
    %v1247 = vpop.permute.xlu0 %1246
    %1250 = vset.pattern.permute.xlu0 0
    %1251 = vperm.xlu0 %1250, %v1108
    %v1252 = vpop.permute.xlu0 %1251
    %1255 = vset.pattern.permute.xlu0 0
    %1256 = vperm.xlu0 %1255, %v1118
    %v1257 = vpop.permute.xlu0 %1256
    %1260 = vset.pattern.permute.xlu0 0
    %1261 = vperm.xlu0 %1260, %v1128
    %v1262 = vpop.permute.xlu0 %1261
    %1265 = vset.pattern.permute.xlu0 0
    %1266 = vperm.xlu0 %1265, %v1138
    %v1267 = vpop.permute.xlu0 %1266
    %1270 = vset.pattern.permute.xlu0 0
    %1271 = vperm.xlu0 %1270, %v1148
    %v1272 = vpop.permute.xlu0 %1271
    %1275 = vset.pattern.permute.xlu0 0
    %1276 = vperm.xlu0 %1275, %v1158
    %v1277 = vpop.permute.xlu0 %1276
    %1280 = vset.pattern.permute.xlu0 0
    %1281 = vperm.xlu0 %1280, %v1168
    %v1282 = vpop.permute.xlu0 %1281
    %1285 = vset.pattern.permute.xlu0 0
    %1286 = vperm.xlu0 %1285, %v1178
    %v1287 = vpop.permute.xlu0 %1286
    %1290 = vset.pattern.permute.xlu0 0
    %1291 = vperm.xlu0 %1290, %v1188
    %v1292 = vpop.permute.xlu0 %1291
    %1295 = vset.pattern.permute.xlu0 0
    %1296 = vperm.xlu0 %1295, %v1198
    %v1297 = vpop.permute.xlu0 %1296
    %1300 = vset.pattern.permute.xlu0 0
    %1301 = vperm.xlu0 %1300, %v1208
    %v1302 = vpop.permute.xlu0 %1301
    %1305 = vset.pattern.permute.xlu0 0
    %1306 = vperm.xlu0 %1305, %v1218
    %v1307 = vpop.permute.xlu0 %1306
    %1310 = vset.pattern.permute.xlu0 0
    %1311 = vperm.xlu0 %1310, %v1228
    %v1312 = vpop.permute.xlu0 %1311
    %1315 = vset.pattern.permute.xlu0 0
    %1316 = vperm.xlu0 %1315, %v1238
    %v1317 = vpop.permute.xlu0 %1316
    %v1319 = vmul.f32 %v518, %v1242
    %v1320 = vmul.f32 %v519, %v1247
    %v1321 = vmul.f32 %v520, %v1252
    %v1322 = vmul.f32 %v521, %v1257
    %v1323 = vmul.f32 %v522, %v1262
    %v1324 = vmul.f32 %v523, %v1267
    %v1325 = vmul.f32 %v524, %v1272
    %v1326 = vmul.f32 %v525, %v1277
    %v1327 = vmul.f32 %v526, %v1282
    %v1328 = vmul.f32 %v527, %v1287
    %v1329 = vmul.f32 %v528, %v1292
    %v1330 = vmul.f32 %v529, %v1297
    %v1331 = vmul.f32 %v530, %v1302
    %v1332 = vmul.f32 %v531, %v1307
    %v1333 = vmul.f32 %v532, %v1312
    %v1334 = vmul.f32 %v533, %v1317
    %1336 = vset.pattern.permute.xlu0 0
    %1337 = vperm.xlu0 %1336, %v95
    %v1338 = vpop.permute.xlu0 %1337
    %1341 = vset.pattern.permute.xlu0 0
    %1342 = vperm.xlu0 %1341, %v96
    %v1343 = vpop.permute.xlu0 %1342
    %1346 = vset.pattern.permute.xlu0 0
    %1347 = vperm.xlu0 %1346, %v97
    %v1348 = vpop.permute.xlu0 %1347
    %1351 = vset.pattern.permute.xlu0 0
    %1352 = vperm.xlu0 %1351, %v98
    %v1353 = vpop.permute.xlu0 %1352
    %1356 = vset.pattern.permute.xlu0 0
    %1357 = vperm.xlu0 %1356, %v99
    %v1358 = vpop.permute.xlu0 %1357
    %1361 = vset.pattern.permute.xlu0 0
    %1362 = vperm.xlu0 %1361, %v100
    %v1363 = vpop.permute.xlu0 %1362
    %1366 = vset.pattern.permute.xlu0 0
    %1367 = vperm.xlu0 %1366, %v101
    %v1368 = vpop.permute.xlu0 %1367
    %1371 = vset.pattern.permute.xlu0 0
    %1372 = vperm.xlu0 %1371, %v102
    %v1373 = vpop.permute.xlu0 %1372
    %1376 = vset.pattern.permute.xlu0 0
    %1377 = vperm.xlu0 %1376, %v103
    %v1378 = vpop.permute.xlu0 %1377
    %1381 = vset.pattern.permute.xlu0 0
    %1382 = vperm.xlu0 %1381, %v104
    %v1383 = vpop.permute.xlu0 %1382
    %1386 = vset.pattern.permute.xlu0 0
    %1387 = vperm.xlu0 %1386, %v105
    %v1388 = vpop.permute.xlu0 %1387
    %1391 = vset.pattern.permute.xlu0 0
    %1392 = vperm.xlu0 %1391, %v106
    %v1393 = vpop.permute.xlu0 %1392
    %1396 = vset.pattern.permute.xlu0 0
    %1397 = vperm.xlu0 %1396, %v107
    %v1398 = vpop.permute.xlu0 %1397
    %1401 = vset.pattern.permute.xlu0 0
    %1402 = vperm.xlu0 %1401, %v108
    %v1403 = vpop.permute.xlu0 %1402
    %1406 = vset.pattern.permute.xlu0 0
    %1407 = vperm.xlu0 %1406, %v109
    %v1408 = vpop.permute.xlu0 %1407
    %1411 = vset.pattern.permute.xlu0 0
    %1412 = vperm.xlu0 %1411, %v110
    %v1413 = vpop.permute.xlu0 %1412
    %v1415 = vmul.f32 %v1319, %v1338
    %v1416 = vmul.f32 %v1320, %v1343
    %v1417 = vmul.f32 %v1321, %v1348
    %v1418 = vmul.f32 %v1322, %v1353
    %v1419 = vmul.f32 %v1323, %v1358
    %v1420 = vmul.f32 %v1324, %v1363
    %v1421 = vmul.f32 %v1325, %v1368
    %v1422 = vmul.f32 %v1326, %v1373
    %v1423 = vmul.f32 %v1327, %v1378
    %v1424 = vmul.f32 %v1328, %v1383
    %v1425 = vmul.f32 %v1329, %v1388
    %v1426 = vmul.f32 %v1330, %v1393
    %v1427 = vmul.f32 %v1331, %v1398
    %v1428 = vmul.f32 %v1332, %v1403
    %v1429 = vmul.f32 %v1333, %v1408
    %v1430 = vmul.f32 %v1334, %v1413
    %1432 = vset.pattern.permute.xlu0 0
    %1433 = vperm.xlu0 %1432, %v111
    %v1434 = vpop.permute.xlu0 %1433
    %1437 = vset.pattern.permute.xlu0 0
    %1438 = vperm.xlu0 %1437, %v112
    %v1439 = vpop.permute.xlu0 %1438
    %1442 = vset.pattern.permute.xlu0 0
    %1443 = vperm.xlu0 %1442, %v113
    %v1444 = vpop.permute.xlu0 %1443
    %1447 = vset.pattern.permute.xlu0 0
    %1448 = vperm.xlu0 %1447, %v114
    %v1449 = vpop.permute.xlu0 %1448
    %1452 = vset.pattern.permute.xlu0 0
    %1453 = vperm.xlu0 %1452, %v115
    %v1454 = vpop.permute.xlu0 %1453
    %1457 = vset.pattern.permute.xlu0 0
    %1458 = vperm.xlu0 %1457, %v116
    %v1459 = vpop.permute.xlu0 %1458
    %1462 = vset.pattern.permute.xlu0 0
    %1463 = vperm.xlu0 %1462, %v117
    %v1464 = vpop.permute.xlu0 %1463
    %1467 = vset.pattern.permute.xlu0 0
    %1468 = vperm.xlu0 %1467, %v118
    %v1469 = vpop.permute.xlu0 %1468
    %1472 = vset.pattern.permute.xlu0 0
    %1473 = vperm.xlu0 %1472, %v119
    %v1474 = vpop.permute.xlu0 %1473
    %1477 = vset.pattern.permute.xlu0 0
    %1478 = vperm.xlu0 %1477, %v120
    %v1479 = vpop.permute.xlu0 %1478
    %1482 = vset.pattern.permute.xlu0 0
    %1483 = vperm.xlu0 %1482, %v121
    %v1484 = vpop.permute.xlu0 %1483
    %1487 = vset.pattern.permute.xlu0 0
    %1488 = vperm.xlu0 %1487, %v122
    %v1489 = vpop.permute.xlu0 %1488
    %1492 = vset.pattern.permute.xlu0 0
    %1493 = vperm.xlu0 %1492, %v123
    %v1494 = vpop.permute.xlu0 %1493
    %1497 = vset.pattern.permute.xlu0 0
    %1498 = vperm.xlu0 %1497, %v124
    %v1499 = vpop.permute.xlu0 %1498
    %1502 = vset.pattern.permute.xlu0 0
    %1503 = vperm.xlu0 %1502, %v125
    %v1504 = vpop.permute.xlu0 %1503
    %1507 = vset.pattern.permute.xlu0 0
    %1508 = vperm.xlu0 %1507, %v126
    %v1509 = vpop.permute.xlu0 %1508
    %v1511 = vadd.f32 %v1415, %v1434
    %v1512 = vadd.f32 %v1416, %v1439
    %v1513 = vadd.f32 %v1417, %v1444
    %v1514 = vadd.f32 %v1418, %v1449
    %v1515 = vadd.f32 %v1419, %v1454
    %v1516 = vadd.f32 %v1420, %v1459
    %v1517 = vadd.f32 %v1421, %v1464
    %v1518 = vadd.f32 %v1422, %v1469
    %v1519 = vadd.f32 %v1423, %v1474
    %v1520 = vadd.f32 %v1424, %v1479
    %v1521 = vadd.f32 %v1425, %v1484
    %v1522 = vadd.f32 %v1426, %v1489
    %v1523 = vadd.f32 %v1427, %v1494
    %v1524 = vadd.f32 %v1428, %v1499
    %v1525 = vadd.f32 %v1429, %v1504
    %v1526 = vadd.f32 %v1430, %v1509
    %v1527 = vxor.u32 %v1511, 2147483648
    %v1528 = vxor.u32 %v1512, 2147483648
    %v1529 = vxor.u32 %v1513, 2147483648
    %v1530 = vxor.u32 %v1514, 2147483648
    %v1531 = vxor.u32 %v1515, 2147483648
    %v1532 = vxor.u32 %v1516, 2147483648
    %v1533 = vxor.u32 %v1517, 2147483648
    %v1534 = vxor.u32 %v1518, 2147483648
    %v1535 = vxor.u32 %v1519, 2147483648
    %v1536 = vxor.u32 %v1520, 2147483648
    %v1537 = vxor.u32 %v1521, 2147483648
    %v1538 = vxor.u32 %v1522, 2147483648
    %v1539 = vxor.u32 %v1523, 2147483648
    %v1540 = vxor.u32 %v1524, 2147483648
    %v1541 = vxor.u32 %v1525, 2147483648
    %v1542 = vxor.u32 %v1526, 2147483648
    %v1543 = vmul.f32 %v1527, 1.442695
    %v1544 = vpow.pop %v1543
    %v1545 = vmul.f32 %v1528, 1.442695
    %v1546 = vpow.pop %v1545
    %v1547 = vmul.f32 %v1529, 1.442695
    %v1548 = vpow.pop %v1547
    %v1549 = vmul.f32 %v1530, 1.442695
    %v1550 = vpow.pop %v1549
    %v1551 = vmul.f32 %v1531, 1.442695
    %v1552 = vpow.pop %v1551
    %v1553 = vmul.f32 %v1532, 1.442695
    %v1554 = vpow.pop %v1553
    %v1555 = vmul.f32 %v1533, 1.442695
    %v1556 = vpow.pop %v1555
    %v1557 = vmul.f32 %v1534, 1.442695
    %v1558 = vpow.pop %v1557
    %v1559 = vmul.f32 %v1535, 1.442695
    %v1560 = vpow.pop %v1559
    %v1561 = vmul.f32 %v1536, 1.442695
    %v1562 = vpow.pop %v1561
    %v1563 = vmul.f32 %v1537, 1.442695
    %v1564 = vpow.pop %v1563
    %v1565 = vmul.f32 %v1538, 1.442695
    %v1566 = vpow.pop %v1565
    %v1567 = vmul.f32 %v1539, 1.442695
    %v1568 = vpow.pop %v1567
    %v1569 = vmul.f32 %v1540, 1.442695
    %v1570 = vpow.pop %v1569
    %v1571 = vmul.f32 %v1541, 1.442695
    %v1572 = vpow.pop %v1571
    %v1573 = vmul.f32 %v1542, 1.442695
    %v1574 = vpow.pop %v1573
    %v1575 = vadd.f32 %v1544, 1.0
    %v1576 = vadd.f32 %v1546, 1.0
    %v1577 = vadd.f32 %v1548, 1.0
    %v1578 = vadd.f32 %v1550, 1.0
    %v1579 = vadd.f32 %v1552, 1.0
    %v1580 = vadd.f32 %v1554, 1.0
    %v1581 = vadd.f32 %v1556, 1.0
    %v1582 = vadd.f32 %v1558, 1.0
    %v1583 = vadd.f32 %v1560, 1.0
    %v1584 = vadd.f32 %v1562, 1.0
    %v1585 = vadd.f32 %v1564, 1.0
    %v1586 = vadd.f32 %v1566, 1.0
    %v1587 = vadd.f32 %v1568, 1.0
    %v1588 = vadd.f32 %v1570, 1.0
    %v1589 = vadd.f32 %v1572, 1.0
    %v1590 = vadd.f32 %v1574, 1.0
    %v1591 = vrcp.pop %v1575
    %v1592 = vmul.f32 %v1575, %v1591
    %v1593 = vsub.f32 1.0, %v1592
    %v1594 = vmul.f32 %v1591, %v1593
    %v1595 = vadd.f32 %v1591, %v1594
    %vm1596 = vweird.f32 %v1575
    %vm1597 = vweird.f32 %v1591
    %vm1598 = vmor %vm1596, %vm1597
    %v1599 = vsel %vm1598, %v1591, %v1595
    %v1600 = vand.u32 2147483647, %v1575
    %vm1601 = vcmp.eq.f32.partialorder %v1600, 8.507059e+37
    %v1602 = vand.u32 %v1575, 2147483648
    %v1603 = vor.u32 1.1754944e-38, %v1602
    %v1604 = vsel %vm1601, %v1603, %v1599
    %v1605 = vmul.f32 1.0, %v1604
    %v1606 = vrcp.pop %v1576
    %v1607 = vmul.f32 %v1576, %v1606
    %v1608 = vsub.f32 1.0, %v1607
    %v1609 = vmul.f32 %v1606, %v1608
    %v1610 = vadd.f32 %v1606, %v1609
    %vm1611 = vweird.f32 %v1576
    %vm1612 = vweird.f32 %v1606
    %vm1613 = vmor %vm1611, %vm1612
    %v1614 = vsel %vm1613, %v1606, %v1610
    %v1615 = vand.u32 2147483647, %v1576
    %vm1616 = vcmp.eq.f32.partialorder %v1615, 8.507059e+37
    %v1617 = vand.u32 %v1576, 2147483648
    %v1618 = vor.u32 1.1754944e-38, %v1617
    %v1619 = vsel %vm1616, %v1618, %v1614
    %v1620 = vmul.f32 1.0, %v1619
    %v1621 = vrcp.pop %v1577
    %v1622 = vmul.f32 %v1577, %v1621
    %v1623 = vsub.f32 1.0, %v1622
    %v1624 = vmul.f32 %v1621, %v1623
    %v1625 = vadd.f32 %v1621, %v1624
    %vm1626 = vweird.f32 %v1577
    %vm1627 = vweird.f32 %v1621
    %vm1628 = vmor %vm1626, %vm1627
    %v1629 = vsel %vm1628, %v1621, %v1625
    %v1630 = vand.u32 2147483647, %v1577
    %vm1631 = vcmp.eq.f32.partialorder %v1630, 8.507059e+37
    %v1632 = vand.u32 %v1577, 2147483648
    %v1633 = vor.u32 1.1754944e-38, %v1632
    %v1634 = vsel %vm1631, %v1633, %v1629
    %v1635 = vmul.f32 1.0, %v1634
    %v1636 = vrcp.pop %v1578
    %v1637 = vmul.f32 %v1578, %v1636
    %v1638 = vsub.f32 1.0, %v1637
    %v1639 = vmul.f32 %v1636, %v1638
    %v1640 = vadd.f32 %v1636, %v1639
    %vm1641 = vweird.f32 %v1578
    %vm1642 = vweird.f32 %v1636
    %vm1643 = vmor %vm1641, %vm1642
    %v1644 = vsel %vm1643, %v1636, %v1640
    %v1645 = vand.u32 2147483647, %v1578
    %vm1646 = vcmp.eq.f32.partialorder %v1645, 8.507059e+37
    %v1647 = vand.u32 %v1578, 2147483648
    %v1648 = vor.u32 1.1754944e-38, %v1647
    %v1649 = vsel %vm1646, %v1648, %v1644
    %v1650 = vmul.f32 1.0, %v1649
    %v1651 = vrcp.pop %v1579
    %v1652 = vmul.f32 %v1579, %v1651
    %v1653 = vsub.f32 1.0, %v1652
    %v1654 = vmul.f32 %v1651, %v1653
    %v1655 = vadd.f32 %v1651, %v1654
    %vm1656 = vweird.f32 %v1579
    %vm1657 = vweird.f32 %v1651
    %vm1658 = vmor %vm1656, %vm1657
    %v1659 = vsel %vm1658, %v1651, %v1655
    %v1660 = vand.u32 2147483647, %v1579
    %vm1661 = vcmp.eq.f32.partialorder %v1660, 8.507059e+37
    %v1662 = vand.u32 %v1579, 2147483648
    %v1663 = vor.u32 1.1754944e-38, %v1662
    %v1664 = vsel %vm1661, %v1663, %v1659
    %v1665 = vmul.f32 1.0, %v1664
    %v1666 = vrcp.pop %v1580
    %v1667 = vmul.f32 %v1580, %v1666
    %v1668 = vsub.f32 1.0, %v1667
    %v1669 = vmul.f32 %v1666, %v1668
    %v1670 = vadd.f32 %v1666, %v1669
    %vm1671 = vweird.f32 %v1580
    %vm1672 = vweird.f32 %v1666
    %vm1673 = vmor %vm1671, %vm1672
    %v1674 = vsel %vm1673, %v1666, %v1670
    %v1675 = vand.u32 2147483647, %v1580
    %vm1676 = vcmp.eq.f32.partialorder %v1675, 8.507059e+37
    %v1677 = vand.u32 %v1580, 2147483648
    %v1678 = vor.u32 1.1754944e-38, %v1677
    %v1679 = vsel %vm1676, %v1678, %v1674
    %v1680 = vmul.f32 1.0, %v1679
    %v1681 = vrcp.pop %v1581
    %v1682 = vmul.f32 %v1581, %v1681
    %v1683 = vsub.f32 1.0, %v1682
    %v1684 = vmul.f32 %v1681, %v1683
    %v1685 = vadd.f32 %v1681, %v1684
    %vm1686 = vweird.f32 %v1581
    %vm1687 = vweird.f32 %v1681
    %vm1688 = vmor %vm1686, %vm1687
    %v1689 = vsel %vm1688, %v1681, %v1685
    %v1690 = vand.u32 2147483647, %v1581
    %vm1691 = vcmp.eq.f32.partialorder %v1690, 8.507059e+37
    %v1692 = vand.u32 %v1581, 2147483648
    %v1693 = vor.u32 1.1754944e-38, %v1692
    %v1694 = vsel %vm1691, %v1693, %v1689
    %v1695 = vmul.f32 1.0, %v1694
    %v1696 = vrcp.pop %v1582
    %v1697 = vmul.f32 %v1582, %v1696
    %v1698 = vsub.f32 1.0, %v1697
    %v1699 = vmul.f32 %v1696, %v1698
    %v1700 = vadd.f32 %v1696, %v1699
    %vm1701 = vweird.f32 %v1582
    %vm1702 = vweird.f32 %v1696
    %vm1703 = vmor %vm1701, %vm1702
    %v1704 = vsel %vm1703, %v1696, %v1700
    %v1705 = vand.u32 2147483647, %v1582
    %vm1706 = vcmp.eq.f32.partialorder %v1705, 8.507059e+37
    %v1707 = vand.u32 %v1582, 2147483648
    %v1708 = vor.u32 1.1754944e-38, %v1707
    %v1709 = vsel %vm1706, %v1708, %v1704
    %v1710 = vmul.f32 1.0, %v1709
    %v1711 = vrcp.pop %v1583
    %v1712 = vmul.f32 %v1583, %v1711
    %v1713 = vsub.f32 1.0, %v1712
    %v1714 = vmul.f32 %v1711, %v1713
    %v1715 = vadd.f32 %v1711, %v1714
    %vm1716 = vweird.f32 %v1583
    %vm1717 = vweird.f32 %v1711
    %vm1718 = vmor %vm1716, %vm1717
    %v1719 = vsel %vm1718, %v1711, %v1715
    %v1720 = vand.u32 2147483647, %v1583
    %vm1721 = vcmp.eq.f32.partialorder %v1720, 8.507059e+37
    %v1722 = vand.u32 %v1583, 2147483648
    %v1723 = vor.u32 1.1754944e-38, %v1722
    %v1724 = vsel %vm1721, %v1723, %v1719
    %v1725 = vmul.f32 1.0, %v1724
    %v1726 = vrcp.pop %v1584
    %v1727 = vmul.f32 %v1584, %v1726
    %v1728 = vsub.f32 1.0, %v1727
    %v1729 = vmul.f32 %v1726, %v1728
    %v1730 = vadd.f32 %v1726, %v1729
    %vm1731 = vweird.f32 %v1584
    %vm1732 = vweird.f32 %v1726
    %vm1733 = vmor %vm1731, %vm1732
    %v1734 = vsel %vm1733, %v1726, %v1730
    %v1735 = vand.u32 2147483647, %v1584
    %vm1736 = vcmp.eq.f32.partialorder %v1735, 8.507059e+37
    %v1737 = vand.u32 %v1584, 2147483648
    %v1738 = vor.u32 1.1754944e-38, %v1737
    %v1739 = vsel %vm1736, %v1738, %v1734
    %v1740 = vmul.f32 1.0, %v1739
    %v1741 = vrcp.pop %v1585
    %v1742 = vmul.f32 %v1585, %v1741
    %v1743 = vsub.f32 1.0, %v1742
    %v1744 = vmul.f32 %v1741, %v1743
    %v1745 = vadd.f32 %v1741, %v1744
    %vm1746 = vweird.f32 %v1585
    %vm1747 = vweird.f32 %v1741
    %vm1748 = vmor %vm1746, %vm1747
    %v1749 = vsel %vm1748, %v1741, %v1745
    %v1750 = vand.u32 2147483647, %v1585
    %vm1751 = vcmp.eq.f32.partialorder %v1750, 8.507059e+37
    %v1752 = vand.u32 %v1585, 2147483648
    %v1753 = vor.u32 1.1754944e-38, %v1752
    %v1754 = vsel %vm1751, %v1753, %v1749
    %v1755 = vmul.f32 1.0, %v1754
    %v1756 = vrcp.pop %v1586
    %v1757 = vmul.f32 %v1586, %v1756
    %v1758 = vsub.f32 1.0, %v1757
    %v1759 = vmul.f32 %v1756, %v1758
    %v1760 = vadd.f32 %v1756, %v1759
    %vm1761 = vweird.f32 %v1586
    %vm1762 = vweird.f32 %v1756
    %vm1763 = vmor %vm1761, %vm1762
    %v1764 = vsel %vm1763, %v1756, %v1760
    %v1765 = vand.u32 2147483647, %v1586
    %vm1766 = vcmp.eq.f32.partialorder %v1765, 8.507059e+37
    %v1767 = vand.u32 %v1586, 2147483648
    %v1768 = vor.u32 1.1754944e-38, %v1767
    %v1769 = vsel %vm1766, %v1768, %v1764
    %v1770 = vmul.f32 1.0, %v1769
    %v1771 = vrcp.pop %v1587
    %v1772 = vmul.f32 %v1587, %v1771
    %v1773 = vsub.f32 1.0, %v1772
    %v1774 = vmul.f32 %v1771, %v1773
    %v1775 = vadd.f32 %v1771, %v1774
    %vm1776 = vweird.f32 %v1587
    %vm1777 = vweird.f32 %v1771
    %vm1778 = vmor %vm1776, %vm1777
    %v1779 = vsel %vm1778, %v1771, %v1775
    %v1780 = vand.u32 2147483647, %v1587
    %vm1781 = vcmp.eq.f32.partialorder %v1780, 8.507059e+37
    %v1782 = vand.u32 %v1587, 2147483648
    %v1783 = vor.u32 1.1754944e-38, %v1782
    %v1784 = vsel %vm1781, %v1783, %v1779
    %v1785 = vmul.f32 1.0, %v1784
    %v1786 = vrcp.pop %v1588
    %v1787 = vmul.f32 %v1588, %v1786
    %v1788 = vsub.f32 1.0, %v1787
    %v1789 = vmul.f32 %v1786, %v1788
    %v1790 = vadd.f32 %v1786, %v1789
    %vm1791 = vweird.f32 %v1588
    %vm1792 = vweird.f32 %v1786
    %vm1793 = vmor %vm1791, %vm1792
    %v1794 = vsel %vm1793, %v1786, %v1790
    %v1795 = vand.u32 2147483647, %v1588
    %vm1796 = vcmp.eq.f32.partialorder %v1795, 8.507059e+37
    %v1797 = vand.u32 %v1588, 2147483648
    %v1798 = vor.u32 1.1754944e-38, %v1797
    %v1799 = vsel %vm1796, %v1798, %v1794
    %v1800 = vmul.f32 1.0, %v1799
    %v1801 = vrcp.pop %v1589
    %v1802 = vmul.f32 %v1589, %v1801
    %v1803 = vsub.f32 1.0, %v1802
    %v1804 = vmul.f32 %v1801, %v1803
    %v1805 = vadd.f32 %v1801, %v1804
    %vm1806 = vweird.f32 %v1589
    %vm1807 = vweird.f32 %v1801
    %vm1808 = vmor %vm1806, %vm1807
    %v1809 = vsel %vm1808, %v1801, %v1805
    %v1810 = vand.u32 2147483647, %v1589
    %vm1811 = vcmp.eq.f32.partialorder %v1810, 8.507059e+37
    %v1812 = vand.u32 %v1589, 2147483648
    %v1813 = vor.u32 1.1754944e-38, %v1812
    %v1814 = vsel %vm1811, %v1813, %v1809
    %v1815 = vmul.f32 1.0, %v1814
    %v1816 = vrcp.pop %v1590
    %v1817 = vmul.f32 %v1590, %v1816
    %v1818 = vsub.f32 1.0, %v1817
    %v1819 = vmul.f32 %v1816, %v1818
    %v1820 = vadd.f32 %v1816, %v1819
    %vm1821 = vweird.f32 %v1590
    %vm1822 = vweird.f32 %v1816
    %vm1823 = vmor %vm1821, %vm1822
    %v1824 = vsel %vm1823, %v1816, %v1820
    %v1825 = vand.u32 2147483647, %v1590
    %vm1826 = vcmp.eq.f32.partialorder %v1825, 8.507059e+37
    %v1827 = vand.u32 %v1590, 2147483648
    %v1828 = vor.u32 1.1754944e-38, %v1827
    %v1829 = vsel %vm1826, %v1828, %v1824
    %v1830 = vmul.f32 1.0, %v1829
    %v1831 = vmul.f32 %v1511, %v1605
    %v1832 = vmul.f32 %v1512, %v1620
    %v1833 = vmul.f32 %v1513, %v1635
    %v1834 = vmul.f32 %v1514, %v1650
    %v1835 = vmul.f32 %v1515, %v1665
    %v1836 = vmul.f32 %v1516, %v1680
    %v1837 = vmul.f32 %v1517, %v1695
    %v1838 = vmul.f32 %v1518, %v1710
    %v1839 = vmul.f32 %v1519, %v1725
    %v1840 = vmul.f32 %v1520, %v1740
    %v1841 = vmul.f32 %v1521, %v1755
    %v1842 = vmul.f32 %v1522, %v1770
    %v1843 = vmul.f32 %v1523, %v1785
    %v1844 = vmul.f32 %v1524, %v1800
    %v1845 = vmul.f32 %v1525, %v1815
    %v1846 = vmul.f32 %v1526, %v1830
    %1847 = vrot.lane.b32.xlu0 %v1831, 1
    %v1848 = vpop.permute.xlu0 %1847
    %1849 = vrot.lane.b32.xlu0 %v1832, 1
    %v1850 = vpop.permute.xlu0 %1849
    %1851 = vrot.lane.b32.xlu0 %v1833, 1
    %v1852 = vpop.permute.xlu0 %1851
    %1853 = vrot.lane.b32.xlu0 %v1834, 1
    %v1854 = vpop.permute.xlu0 %1853
    %1855 = vrot.lane.b32.xlu0 %v1835, 1
    %v1856 = vpop.permute.xlu0 %1855
    %1857 = vrot.lane.b32.xlu0 %v1836, 1
    %v1858 = vpop.permute.xlu0 %1857
    %1859 = vrot.lane.b32.xlu0 %v1837, 1
    %v1860 = vpop.permute.xlu0 %1859
    %1861 = vrot.lane.b32.xlu0 %v1838, 1
    %v1862 = vpop.permute.xlu0 %1861
    %1863 = vrot.lane.b32.xlu0 %v1839, 1
    %v1864 = vpop.permute.xlu0 %1863
    %1865 = vrot.lane.b32.xlu0 %v1840, 1
    %v1866 = vpop.permute.xlu0 %1865
    %1867 = vrot.lane.b32.xlu0 %v1841, 1
    %v1868 = vpop.permute.xlu0 %1867
    %1869 = vrot.lane.b32.xlu0 %v1842, 1
    %v1870 = vpop.permute.xlu0 %1869
    %1871 = vrot.lane.b32.xlu0 %v1843, 1
    %v1872 = vpop.permute.xlu0 %1871
    %1873 = vrot.lane.b32.xlu0 %v1844, 1
    %v1874 = vpop.permute.xlu0 %1873
    %1875 = vrot.lane.b32.xlu0 %v1845, 1
    %v1876 = vpop.permute.xlu0 %1875
    %1877 = vrot.lane.b32.xlu0 %v1846, 1
    %v1878 = vpop.permute.xlu0 %1877
    %v1879 = vmul.f32 %v1848, %v75
    %v1880 = vmul.f32 %v1850, %v75
    %v1881 = vmul.f32 %v1852, %v75
    %v1882 = vmul.f32 %v1854, %v75
    %v1883 = vmul.f32 %v1856, %v75
    %v1884 = vmul.f32 %v1858, %v75
    %v1885 = vmul.f32 %v1860, %v75
    %v1886 = vmul.f32 %v1862, %v75
    %v1887 = vmul.f32 %v1864, %v75
    %v1888 = vmul.f32 %v1866, %v75
    %v1889 = vmul.f32 %v1868, %v75
    %v1890 = vmul.f32 %v1870, %v75
    %v1891 = vmul.f32 %v1872, %v75
    %v1892 = vmul.f32 %v1874, %v75
    %v1893 = vmul.f32 %v1876, %v75
    %v1894 = vmul.f32 %v1878, %v75
    %1895 = vrot.lane.b32.xlu0 %v1831, 127
    %v1896 = vpop.permute.xlu0 %1895
    %1897 = vrot.lane.b32.xlu0 %v1832, 127
    %v1898 = vpop.permute.xlu0 %1897
    %1899 = vrot.lane.b32.xlu0 %v1833, 127
    %v1900 = vpop.permute.xlu0 %1899
    %1901 = vrot.lane.b32.xlu0 %v1834, 127
    %v1902 = vpop.permute.xlu0 %1901
    %1903 = vrot.lane.b32.xlu0 %v1835, 127
    %v1904 = vpop.permute.xlu0 %1903
    %1905 = vrot.lane.b32.xlu0 %v1836, 127
    %v1906 = vpop.permute.xlu0 %1905
    %1907 = vrot.lane.b32.xlu0 %v1837, 127
    %v1908 = vpop.permute.xlu0 %1907
    %1909 = vrot.lane.b32.xlu0 %v1838, 127
    %v1910 = vpop.permute.xlu0 %1909
    %1911 = vrot.lane.b32.xlu0 %v1839, 127
    %v1912 = vpop.permute.xlu0 %1911
    %1913 = vrot.lane.b32.xlu0 %v1840, 127
    %v1914 = vpop.permute.xlu0 %1913
    %1915 = vrot.lane.b32.xlu0 %v1841, 127
    %v1916 = vpop.permute.xlu0 %1915
    %1917 = vrot.lane.b32.xlu0 %v1842, 127
    %v1918 = vpop.permute.xlu0 %1917
    %1919 = vrot.lane.b32.xlu0 %v1843, 127
    %v1920 = vpop.permute.xlu0 %1919
    %1921 = vrot.lane.b32.xlu0 %v1844, 127
    %v1922 = vpop.permute.xlu0 %1921
    %1923 = vrot.lane.b32.xlu0 %v1845, 127
    %v1924 = vpop.permute.xlu0 %1923
    %1925 = vrot.lane.b32.xlu0 %v1846, 127
    %v1926 = vpop.permute.xlu0 %1925
    %v1927 = vmul.f32 %v1896, %v78
    %v1928 = vmul.f32 %v1898, %v78
    %v1929 = vmul.f32 %v1900, %v78
    %v1930 = vmul.f32 %v1902, %v78
    %v1931 = vmul.f32 %v1904, %v78
    %v1932 = vmul.f32 %v1906, %v78
    %v1933 = vmul.f32 %v1908, %v78
    %v1934 = vmul.f32 %v1910, %v78
    %v1935 = vmul.f32 %v1912, %v78
    %v1936 = vmul.f32 %v1914, %v78
    %v1937 = vmul.f32 %v1916, %v78
    %v1938 = vmul.f32 %v1918, %v78
    %v1939 = vmul.f32 %v1920, %v78
    %v1940 = vmul.f32 %v1922, %v78
    %v1941 = vmul.f32 %v1924, %v78
    %v1942 = vmul.f32 %v1926, %v78
    %1943 = vst [vmem:[#allocation2] sm:$0xff] %v1879
    %1944 = vst [vmem:[#allocation2 + $0x20] sm:$0xff] %v1880
    %1945 = vst [vmem:[#allocation2 + $0x40] sm:$0xff] %v1881
    %1946 = vst [vmem:[#allocation2 + $0x60] sm:$0xff] %v1882
    %1947 = vst [vmem:[#allocation2 + $0x80] sm:$0xff] %v1883
    %1948 = vst [vmem:[#allocation2 + $0xa0] sm:$0xff] %v1884
    %1949 = vst [vmem:[#allocation2 + $0xc0] sm:$0xff] %v1885
    %1950 = vst [vmem:[#allocation2 + $0xe0] sm:$0xff] %v1886
    %1951 = vst [vmem:[#allocation2 + $0x100] sm:$0xff] %v1887
    %1952 = vst [vmem:[#allocation2 + $0x120] sm:$0xff] %v1888
    %1953 = vst [vmem:[#allocation2 + $0x140] sm:$0xff] %v1889
    %1954 = vst [vmem:[#allocation2 + $0x160] sm:$0xff] %v1890
    %1955 = vst [vmem:[#allocation2 + $0x180] sm:$0xff] %v1891
    %1956 = vst [vmem:[#allocation2 + $0x1a0] sm:$0xff] %v1892
    %1957 = vst [vmem:[#allocation2 + $0x1c0] sm:$0xff] %v1893
    %1958 = vst [vmem:[#allocation2 + $0x1e0] sm:$0xff] %v1894
    %1959 = vst [vmem:[#allocation2 + $0x200] sm:$0xff] %v1831
    %1960 = vst [vmem:[#allocation2 + $0x220] sm:$0xff] %v1832
    %1961 = vst [vmem:[#allocation2 + $0x240] sm:$0xff] %v1833
    %1962 = vst [vmem:[#allocation2 + $0x260] sm:$0xff] %v1834
    %1963 = vst [vmem:[#allocation2 + $0x280] sm:$0xff] %v1835
    %1964 = vst [vmem:[#allocation2 + $0x2a0] sm:$0xff] %v1836
    %1965 = vst [vmem:[#allocation2 + $0x2c0] sm:$0xff] %v1837
    %1966 = vst [vmem:[#allocation2 + $0x2e0] sm:$0xff] %v1838
    %1967 = vst [vmem:[#allocation2 + $0x300] sm:$0xff] %v1839
    %1968 = vst [vmem:[#allocation2 + $0x320] sm:$0xff] %v1840
    %1969 = vst [vmem:[#allocation2 + $0x340] sm:$0xff] %v1841
    %1970 = vst [vmem:[#allocation2 + $0x360] sm:$0xff] %v1842
    %1971 = vst [vmem:[#allocation2 + $0x380] sm:$0xff] %v1843
    %1972 = vst [vmem:[#allocation2 + $0x3a0] sm:$0xff] %v1844
    %1973 = vst [vmem:[#allocation2 + $0x3c0] sm:$0xff] %v1845
    %1974 = vst [vmem:[#allocation2 + $0x3e0] sm:$0xff] %v1846
    %1975 = vst [vmem:[#allocation2 + $0x400] sm:$0xff] %v1927
    %1976 = vst [vmem:[#allocation2 + $0x420] sm:$0xff] %v1928
    %1977 = vst [vmem:[#allocation2 + $0x440] sm:$0xff] %v1929
    %1978 = vst [vmem:[#allocation2 + $0x460] sm:$0xff] %v1930
    %1979 = vst [vmem:[#allocation2 + $0x480] sm:$0xff] %v1931
    %1980 = vst [vmem:[#allocation2 + $0x4a0] sm:$0xff] %v1932
    %1981 = vst [vmem:[#allocation2 + $0x4c0] sm:$0xff] %v1933
    %1982 = vst [vmem:[#allocation2 + $0x4e0] sm:$0xff] %v1934
    %1983 = vst [vmem:[#allocation2 + $0x500] sm:$0xff] %v1935
    %1984 = vst [vmem:[#allocation2 + $0x520] sm:$0xff] %v1936
    %1985 = vst [vmem:[#allocation2 + $0x540] sm:$0xff] %v1937
    %1986 = vst [vmem:[#allocation2 + $0x560] sm:$0xff] %v1938
    %1987 = vst [vmem:[#allocation2 + $0x580] sm:$0xff] %v1939
    %1988 = vst [vmem:[#allocation2 + $0x5a0] sm:$0xff] %v1940
    %1989 = vst [vmem:[#allocation2 + $0x5c0] sm:$0xff] %v1941
    %1990 = vst [vmem:[#allocation2 + $0x5e0] sm:$0xff] %v1942
    %v1991 = vld [vmem:[%s175] sm:$0xff]
    %v1992 = vld [vmem:[%s175 + $0x8] sm:$0xff]
    %v1993 = vld [vmem:[%s175 + $0x10] sm:$0xff]
    %v1994 = vld [vmem:[%s175 + $0x18] sm:$0xff]
    %v1995 = vld [vmem:[%s175 + $0x20] sm:$0xff]
    %v1996 = vld [vmem:[%s175 + $0x28] sm:$0xff]
    %v1997 = vld [vmem:[%s175 + $0x30] sm:$0xff]
    %v1998 = vld [vmem:[%s175 + $0x38] sm:$0xff]
    %v1999 = vld [vmem:[%s175 + $0x40] sm:$0xff]
    %v2000 = vld [vmem:[%s175 + $0x48] sm:$0xff]
    %v2001 = vld [vmem:[%s175 + $0x50] sm:$0xff]
    %v2002 = vld [vmem:[%s175 + $0x58] sm:$0xff]
    %v2003 = vld [vmem:[%s175 + $0x60] sm:$0xff]
    %v2004 = vld [vmem:[%s175 + $0x68] sm:$0xff]
    %v2005 = vld [vmem:[%s175 + $0x70] sm:$0xff]
    %v2006 = vld [vmem:[%s175 + $0x78] sm:$0xff]
    %v2007 = vsub.f32 %v1991, %v584
    %v2008 = vsub.f32 %v1992, %v588
    %v2009 = vsub.f32 %v1993, %v592
    %v2010 = vsub.f32 %v1994, %v596
    %v2011 = vsub.f32 %v1995, %v600
    %v2012 = vsub.f32 %v1996, %v604
    %v2013 = vsub.f32 %v1997, %v608
    %v2014 = vsub.f32 %v1998, %v612
    %v2015 = vsub.f32 %v1999, %v616
    %v2016 = vsub.f32 %v2000, %v620
    %v2017 = vsub.f32 %v2001, %v624
    %v2018 = vsub.f32 %v2002, %v628
    %v2019 = vsub.f32 %v2003, %v632
    %v2020 = vsub.f32 %v2004, %v636
    %v2021 = vsub.f32 %v2005, %v640
    %v2022 = vsub.f32 %v2006, %v644
    %2023 = vset.pattern.permute.xlu0 1
    %2024 = vperm.xlu0 %2023, %v1088
    %v2025 = vpop.permute.xlu0 %2024
    %2027 = vset.pattern.permute.xlu0 1
    %2028 = vperm.xlu0 %2027, %v1098
    %v2029 = vpop.permute.xlu0 %2028
    %2031 = vset.pattern.permute.xlu0 1
    %2032 = vperm.xlu0 %2031, %v1108
    %v2033 = vpop.permute.xlu0 %2032
    %2035 = vset.pattern.permute.xlu0 1
    %2036 = vperm.xlu0 %2035, %v1118
    %v2037 = vpop.permute.xlu0 %2036
    %2039 = vset.pattern.permute.xlu0 1
    %2040 = vperm.xlu0 %2039, %v1128
    %v2041 = vpop.permute.xlu0 %2040
    %2043 = vset.pattern.permute.xlu0 1
    %2044 = vperm.xlu0 %2043, %v1138
    %v2045 = vpop.permute.xlu0 %2044
    %2047 = vset.pattern.permute.xlu0 1
    %2048 = vperm.xlu0 %2047, %v1148
    %v2049 = vpop.permute.xlu0 %2048
    %2051 = vset.pattern.permute.xlu0 1
    %2052 = vperm.xlu0 %2051, %v1158
    %v2053 = vpop.permute.xlu0 %2052
    %2055 = vset.pattern.permute.xlu0 1
    %2056 = vperm.xlu0 %2055, %v1168
    %v2057 = vpop.permute.xlu0 %2056
    %2059 = vset.pattern.permute.xlu0 1
    %2060 = vperm.xlu0 %2059, %v1178
    %v2061 = vpop.permute.xlu0 %2060
    %2063 = vset.pattern.permute.xlu0 1
    %2064 = vperm.xlu0 %2063, %v1188
    %v2065 = vpop.permute.xlu0 %2064
    %2067 = vset.pattern.permute.xlu0 1
    %2068 = vperm.xlu0 %2067, %v1198
    %v2069 = vpop.permute.xlu0 %2068
    %2071 = vset.pattern.permute.xlu0 1
    %2072 = vperm.xlu0 %2071, %v1208
    %v2073 = vpop.permute.xlu0 %2072
    %2075 = vset.pattern.permute.xlu0 1
    %2076 = vperm.xlu0 %2075, %v1218
    %v2077 = vpop.permute.xlu0 %2076
    %2079 = vset.pattern.permute.xlu0 1
    %2080 = vperm.xlu0 %2079, %v1228
    %v2081 = vpop.permute.xlu0 %2080
    %2083 = vset.pattern.permute.xlu0 1
    %2084 = vperm.xlu0 %2083, %v1238
    %v2085 = vpop.permute.xlu0 %2084
    %v2087 = vmul.f32 %v2007, %v2025
    %v2088 = vmul.f32 %v2008, %v2029
    %v2089 = vmul.f32 %v2009, %v2033
    %v2090 = vmul.f32 %v2010, %v2037
    %v2091 = vmul.f32 %v2011, %v2041
    %v2092 = vmul.f32 %v2012, %v2045
    %v2093 = vmul.f32 %v2013, %v2049
    %v2094 = vmul.f32 %v2014, %v2053
    %v2095 = vmul.f32 %v2015, %v2057
    %v2096 = vmul.f32 %v2016, %v2061
    %v2097 = vmul.f32 %v2017, %v2065
    %v2098 = vmul.f32 %v2018, %v2069
    %v2099 = vmul.f32 %v2019, %v2073
    %v2100 = vmul.f32 %v2020, %v2077
    %v2101 = vmul.f32 %v2021, %v2081
    %v2102 = vmul.f32 %v2022, %v2085
    %v2103 = vmul.f32 %v2087, %v1338
    %v2104 = vmul.f32 %v2088, %v1343
    %v2105 = vmul.f32 %v2089, %v1348
    %v2106 = vmul.f32 %v2090, %v1353
    %v2107 = vmul.f32 %v2091, %v1358
    %v2108 = vmul.f32 %v2092, %v1363
    %v2109 = vmul.f32 %v2093, %v1368
    %v2110 = vmul.f32 %v2094, %v1373
    %v2111 = vmul.f32 %v2095, %v1378
    %v2112 = vmul.f32 %v2096, %v1383
    %v2113 = vmul.f32 %v2097, %v1388
    %v2114 = vmul.f32 %v2098, %v1393
    %v2115 = vmul.f32 %v2099, %v1398
    %v2116 = vmul.f32 %v2100, %v1403
    %v2117 = vmul.f32 %v2101, %v1408
    %v2118 = vmul.f32 %v2102, %v1413
    %v2119 = vadd.f32 %v2103, %v1434
    %v2120 = vadd.f32 %v2104, %v1439
    %v2121 = vadd.f32 %v2105, %v1444
    %v2122 = vadd.f32 %v2106, %v1449
    %v2123 = vadd.f32 %v2107, %v1454
    %v2124 = vadd.f32 %v2108, %v1459
    %v2125 = vadd.f32 %v2109, %v1464
    %v2126 = vadd.f32 %v2110, %v1469
    %v2127 = vadd.f32 %v2111, %v1474
    %v2128 = vadd.f32 %v2112, %v1479
    %v2129 = vadd.f32 %v2113, %v1484
    %v2130 = vadd.f32 %v2114, %v1489
    %v2131 = vadd.f32 %v2115, %v1494
    %v2132 = vadd.f32 %v2116, %v1499
    %v2133 = vadd.f32 %v2117, %v1504
    %v2134 = vadd.f32 %v2118, %v1509
    %v2135 = vxor.u32 %v2119, 2147483648
    %v2136 = vxor.u32 %v2120, 2147483648
    %v2137 = vxor.u32 %v2121, 2147483648
    %v2138 = vxor.u32 %v2122, 2147483648
    %v2139 = vxor.u32 %v2123, 2147483648
    %v2140 = vxor.u32 %v2124, 2147483648
    %v2141 = vxor.u32 %v2125, 2147483648
    %v2142 = vxor.u32 %v2126, 2147483648
    %v2143 = vxor.u32 %v2127, 2147483648
    %v2144 = vxor.u32 %v2128, 2147483648
    %v2145 = vxor.u32 %v2129, 2147483648
    %v2146 = vxor.u32 %v2130, 2147483648
    %v2147 = vxor.u32 %v2131, 2147483648
    %v2148 = vxor.u32 %v2132, 2147483648
    %v2149 = vxor.u32 %v2133, 2147483648
    %v2150 = vxor.u32 %v2134, 2147483648
    %v2151 = vmul.f32 %v2135, 1.442695
    %v2152 = vpow.pop %v2151
    %v2153 = vmul.f32 %v2136, 1.442695
    %v2154 = vpow.pop %v2153
    %v2155 = vmul.f32 %v2137, 1.442695
    %v2156 = vpow.pop %v2155
    %v2157 = vmul.f32 %v2138, 1.442695
    %v2158 = vpow.pop %v2157
    %v2159 = vmul.f32 %v2139, 1.442695
    %v2160 = vpow.pop %v2159
    %v2161 = vmul.f32 %v2140, 1.442695
    %v2162 = vpow.pop %v2161
    %v2163 = vmul.f32 %v2141, 1.442695
    %v2164 = vpow.pop %v2163
    %v2165 = vmul.f32 %v2142, 1.442695
    %v2166 = vpow.pop %v2165
    %v2167 = vmul.f32 %v2143, 1.442695
    %v2168 = vpow.pop %v2167
    %v2169 = vmul.f32 %v2144, 1.442695
    %v2170 = vpow.pop %v2169
    %v2171 = vmul.f32 %v2145, 1.442695
    %v2172 = vpow.pop %v2171
    %v2173 = vmul.f32 %v2146, 1.442695
    %v2174 = vpow.pop %v2173
    %v2175 = vmul.f32 %v2147, 1.442695
    %v2176 = vpow.pop %v2175
    %v2177 = vmul.f32 %v2148, 1.442695
    %v2178 = vpow.pop %v2177
    %v2179 = vmul.f32 %v2149, 1.442695
    %v2180 = vpow.pop %v2179
    %v2181 = vmul.f32 %v2150, 1.442695
    %v2182 = vpow.pop %v2181
    %v2183 = vadd.f32 %v2152, 1.0
    %v2184 = vadd.f32 %v2154, 1.0
    %v2185 = vadd.f32 %v2156, 1.0
    %v2186 = vadd.f32 %v2158, 1.0
    %v2187 = vadd.f32 %v2160, 1.0
    %v2188 = vadd.f32 %v2162, 1.0
    %v2189 = vadd.f32 %v2164, 1.0
    %v2190 = vadd.f32 %v2166, 1.0
    %v2191 = vadd.f32 %v2168, 1.0
    %v2192 = vadd.f32 %v2170, 1.0
    %v2193 = vadd.f32 %v2172, 1.0
    %v2194 = vadd.f32 %v2174, 1.0
    %v2195 = vadd.f32 %v2176, 1.0
    %v2196 = vadd.f32 %v2178, 1.0
    %v2197 = vadd.f32 %v2180, 1.0
    %v2198 = vadd.f32 %v2182, 1.0
    %v2199 = vrcp.pop %v2183
    %v2200 = vmul.f32 %v2183, %v2199
    %v2201 = vsub.f32 1.0, %v2200
    %v2202 = vmul.f32 %v2199, %v2201
    %v2203 = vadd.f32 %v2199, %v2202
    %vm2204 = vweird.f32 %v2183
    %vm2205 = vweird.f32 %v2199
    %vm2206 = vmor %vm2204, %vm2205
    %v2207 = vsel %vm2206, %v2199, %v2203
    %v2208 = vand.u32 2147483647, %v2183
    %vm2209 = vcmp.eq.f32.partialorder %v2208, 8.507059e+37
    %v2210 = vand.u32 %v2183, 2147483648
    %v2211 = vor.u32 1.1754944e-38, %v2210
    %v2212 = vsel %vm2209, %v2211, %v2207
    %v2213 = vmul.f32 1.0, %v2212
    %v2214 = vrcp.pop %v2184
    %v2215 = vmul.f32 %v2184, %v2214
    %v2216 = vsub.f32 1.0, %v2215
    %v2217 = vmul.f32 %v2214, %v2216
    %v2218 = vadd.f32 %v2214, %v2217
    %vm2219 = vweird.f32 %v2184
    %vm2220 = vweird.f32 %v2214
    %vm2221 = vmor %vm2219, %vm2220
    %v2222 = vsel %vm2221, %v2214, %v2218
    %v2223 = vand.u32 2147483647, %v2184
    %vm2224 = vcmp.eq.f32.partialorder %v2223, 8.507059e+37
    %v2225 = vand.u32 %v2184, 2147483648
    %v2226 = vor.u32 1.1754944e-38, %v2225
    %v2227 = vsel %vm2224, %v2226, %v2222
    %v2228 = vmul.f32 1.0, %v2227
    %v2229 = vrcp.pop %v2185
    %v2230 = vmul.f32 %v2185, %v2229
    %v2231 = vsub.f32 1.0, %v2230
    %v2232 = vmul.f32 %v2229, %v2231
    %v2233 = vadd.f32 %v2229, %v2232
    %vm2234 = vweird.f32 %v2185
    %vm2235 = vweird.f32 %v2229
    %vm2236 = vmor %vm2234, %vm2235
    %v2237 = vsel %vm2236, %v2229, %v2233
    %v2238 = vand.u32 2147483647, %v2185
    %vm2239 = vcmp.eq.f32.partialorder %v2238, 8.507059e+37
    %v2240 = vand.u32 %v2185, 2147483648
    %v2241 = vor.u32 1.1754944e-38, %v2240
    %v2242 = vsel %vm2239, %v2241, %v2237
    %v2243 = vmul.f32 1.0, %v2242
    %v2244 = vrcp.pop %v2186
    %v2245 = vmul.f32 %v2186, %v2244
    %v2246 = vsub.f32 1.0, %v2245
    %v2247 = vmul.f32 %v2244, %v2246
    %v2248 = vadd.f32 %v2244, %v2247
    %vm2249 = vweird.f32 %v2186
    %vm2250 = vweird.f32 %v2244
    %vm2251 = vmor %vm2249, %vm2250
    %v2252 = vsel %vm2251, %v2244, %v2248
    %v2253 = vand.u32 2147483647, %v2186
    %vm2254 = vcmp.eq.f32.partialorder %v2253, 8.507059e+37
    %v2255 = vand.u32 %v2186, 2147483648
    %v2256 = vor.u32 1.1754944e-38, %v2255
    %v2257 = vsel %vm2254, %v2256, %v2252
    %v2258 = vmul.f32 1.0, %v2257
    %v2259 = vrcp.pop %v2187
    %v2260 = vmul.f32 %v2187, %v2259
    %v2261 = vsub.f32 1.0, %v2260
    %v2262 = vmul.f32 %v2259, %v2261
    %v2263 = vadd.f32 %v2259, %v2262
    %vm2264 = vweird.f32 %v2187
    %vm2265 = vweird.f32 %v2259
    %vm2266 = vmor %vm2264, %vm2265
    %v2267 = vsel %vm2266, %v2259, %v2263
    %v2268 = vand.u32 2147483647, %v2187
    %vm2269 = vcmp.eq.f32.partialorder %v2268, 8.507059e+37
    %v2270 = vand.u32 %v2187, 2147483648
    %v2271 = vor.u32 1.1754944e-38, %v2270
    %v2272 = vsel %vm2269, %v2271, %v2267
    %v2273 = vmul.f32 1.0, %v2272
    %v2274 = vrcp.pop %v2188
    %v2275 = vmul.f32 %v2188, %v2274
    %v2276 = vsub.f32 1.0, %v2275
    %v2277 = vmul.f32 %v2274, %v2276
    %v2278 = vadd.f32 %v2274, %v2277
    %vm2279 = vweird.f32 %v2188
    %vm2280 = vweird.f32 %v2274
    %vm2281 = vmor %vm2279, %vm2280
    %v2282 = vsel %vm2281, %v2274, %v2278
    %v2283 = vand.u32 2147483647, %v2188
    %vm2284 = vcmp.eq.f32.partialorder %v2283, 8.507059e+37
    %v2285 = vand.u32 %v2188, 2147483648
    %v2286 = vor.u32 1.1754944e-38, %v2285
    %v2287 = vsel %vm2284, %v2286, %v2282
    %v2288 = vmul.f32 1.0, %v2287
    %v2289 = vrcp.pop %v2189
    %v2290 = vmul.f32 %v2189, %v2289
    %v2291 = vsub.f32 1.0, %v2290
    %v2292 = vmul.f32 %v2289, %v2291
    %v2293 = vadd.f32 %v2289, %v2292
    %vm2294 = vweird.f32 %v2189
    %vm2295 = vweird.f32 %v2289
    %vm2296 = vmor %vm2294, %vm2295
    %v2297 = vsel %vm2296, %v2289, %v2293
    %v2298 = vand.u32 2147483647, %v2189
    %vm2299 = vcmp.eq.f32.partialorder %v2298, 8.507059e+37
    %v2300 = vand.u32 %v2189, 2147483648
    %v2301 = vor.u32 1.1754944e-38, %v2300
    %v2302 = vsel %vm2299, %v2301, %v2297
    %v2303 = vmul.f32 1.0, %v2302
    %v2304 = vrcp.pop %v2190
    %v2305 = vmul.f32 %v2190, %v2304
    %v2306 = vsub.f32 1.0, %v2305
    %v2307 = vmul.f32 %v2304, %v2306
    %v2308 = vadd.f32 %v2304, %v2307
    %vm2309 = vweird.f32 %v2190
    %vm2310 = vweird.f32 %v2304
    %vm2311 = vmor %vm2309, %vm2310
    %v2312 = vsel %vm2311, %v2304, %v2308
    %v2313 = vand.u32 2147483647, %v2190
    %vm2314 = vcmp.eq.f32.partialorder %v2313, 8.507059e+37
    %v2315 = vand.u32 %v2190, 2147483648
    %v2316 = vor.u32 1.1754944e-38, %v2315
    %v2317 = vsel %vm2314, %v2316, %v2312
    %v2318 = vmul.f32 1.0, %v2317
    %v2319 = vrcp.pop %v2191
    %v2320 = vmul.f32 %v2191, %v2319
    %v2321 = vsub.f32 1.0, %v2320
    %v2322 = vmul.f32 %v2319, %v2321
    %v2323 = vadd.f32 %v2319, %v2322
    %vm2324 = vweird.f32 %v2191
    %vm2325 = vweird.f32 %v2319
    %vm2326 = vmor %vm2324, %vm2325
    %v2327 = vsel %vm2326, %v2319, %v2323
    %v2328 = vand.u32 2147483647, %v2191
    %vm2329 = vcmp.eq.f32.partialorder %v2328, 8.507059e+37
    %v2330 = vand.u32 %v2191, 2147483648
    %v2331 = vor.u32 1.1754944e-38, %v2330
    %v2332 = vsel %vm2329, %v2331, %v2327
    %v2333 = vmul.f32 1.0, %v2332
    %v2334 = vrcp.pop %v2192
    %v2335 = vmul.f32 %v2192, %v2334
    %v2336 = vsub.f32 1.0, %v2335
    %v2337 = vmul.f32 %v2334, %v2336
    %v2338 = vadd.f32 %v2334, %v2337
    %vm2339 = vweird.f32 %v2192
    %vm2340 = vweird.f32 %v2334
    %vm2341 = vmor %vm2339, %vm2340
    %v2342 = vsel %vm2341, %v2334, %v2338
    %v2343 = vand.u32 2147483647, %v2192
    %vm2344 = vcmp.eq.f32.partialorder %v2343, 8.507059e+37
    %v2345 = vand.u32 %v2192, 2147483648
    %v2346 = vor.u32 1.1754944e-38, %v2345
    %v2347 = vsel %vm2344, %v2346, %v2342
    %v2348 = vmul.f32 1.0, %v2347
    %v2349 = vrcp.pop %v2193
    %v2350 = vmul.f32 %v2193, %v2349
    %v2351 = vsub.f32 1.0, %v2350
    %v2352 = vmul.f32 %v2349, %v2351
    %v2353 = vadd.f32 %v2349, %v2352
    %vm2354 = vweird.f32 %v2193
    %vm2355 = vweird.f32 %v2349
    %vm2356 = vmor %vm2354, %vm2355
    %v2357 = vsel %vm2356, %v2349, %v2353
    %v2358 = vand.u32 2147483647, %v2193
    %vm2359 = vcmp.eq.f32.partialorder %v2358, 8.507059e+37
    %v2360 = vand.u32 %v2193, 2147483648
    %v2361 = vor.u32 1.1754944e-38, %v2360
    %v2362 = vsel %vm2359, %v2361, %v2357
    %v2363 = vmul.f32 1.0, %v2362
    %v2364 = vrcp.pop %v2194
    %v2365 = vmul.f32 %v2194, %v2364
    %v2366 = vsub.f32 1.0, %v2365
    %v2367 = vmul.f32 %v2364, %v2366
    %v2368 = vadd.f32 %v2364, %v2367
    %vm2369 = vweird.f32 %v2194
    %vm2370 = vweird.f32 %v2364
    %vm2371 = vmor %vm2369, %vm2370
    %v2372 = vsel %vm2371, %v2364, %v2368
    %v2373 = vand.u32 2147483647, %v2194
    %vm2374 = vcmp.eq.f32.partialorder %v2373, 8.507059e+37
    %v2375 = vand.u32 %v2194, 2147483648
    %v2376 = vor.u32 1.1754944e-38, %v2375
    %v2377 = vsel %vm2374, %v2376, %v2372
    %v2378 = vmul.f32 1.0, %v2377
    %v2379 = vrcp.pop %v2195
    %v2380 = vmul.f32 %v2195, %v2379
    %v2381 = vsub.f32 1.0, %v2380
    %v2382 = vmul.f32 %v2379, %v2381
    %v2383 = vadd.f32 %v2379, %v2382
    %vm2384 = vweird.f32 %v2195
    %vm2385 = vweird.f32 %v2379
    %vm2386 = vmor %vm2384, %vm2385
    %v2387 = vsel %vm2386, %v2379, %v2383
    %v2388 = vand.u32 2147483647, %v2195
    %vm2389 = vcmp.eq.f32.partialorder %v2388, 8.507059e+37
    %v2390 = vand.u32 %v2195, 2147483648
    %v2391 = vor.u32 1.1754944e-38, %v2390
    %v2392 = vsel %vm2389, %v2391, %v2387
    %v2393 = vmul.f32 1.0, %v2392
    %v2394 = vrcp.pop %v2196
    %v2395 = vmul.f32 %v2196, %v2394
    %v2396 = vsub.f32 1.0, %v2395
    %v2397 = vmul.f32 %v2394, %v2396
    %v2398 = vadd.f32 %v2394, %v2397
    %vm2399 = vweird.f32 %v2196
    %vm2400 = vweird.f32 %v2394
    %vm2401 = vmor %vm2399, %vm2400
    %v2402 = vsel %vm2401, %v2394, %v2398
    %v2403 = vand.u32 2147483647, %v2196
    %vm2404 = vcmp.eq.f32.partialorder %v2403, 8.507059e+37
    %v2405 = vand.u32 %v2196, 2147483648
    %v2406 = vor.u32 1.1754944e-38, %v2405
    %v2407 = vsel %vm2404, %v2406, %v2402
    %v2408 = vmul.f32 1.0, %v2407
    %v2409 = vrcp.pop %v2197
    %v2410 = vmul.f32 %v2197, %v2409
    %v2411 = vsub.f32 1.0, %v2410
    %v2412 = vmul.f32 %v2409, %v2411
    %v2413 = vadd.f32 %v2409, %v2412
    %vm2414 = vweird.f32 %v2197
    %vm2415 = vweird.f32 %v2409
    %vm2416 = vmor %vm2414, %vm2415
    %v2417 = vsel %vm2416, %v2409, %v2413
    %v2418 = vand.u32 2147483647, %v2197
    %vm2419 = vcmp.eq.f32.partialorder %v2418, 8.507059e+37
    %v2420 = vand.u32 %v2197, 2147483648
    %v2421 = vor.u32 1.1754944e-38, %v2420
    %v2422 = vsel %vm2419, %v2421, %v2417
    %v2423 = vmul.f32 1.0, %v2422
    %v2424 = vrcp.pop %v2198
    %v2425 = vmul.f32 %v2198, %v2424
    %v2426 = vsub.f32 1.0, %v2425
    %v2427 = vmul.f32 %v2424, %v2426
    %v2428 = vadd.f32 %v2424, %v2427
    %vm2429 = vweird.f32 %v2198
    %vm2430 = vweird.f32 %v2424
    %vm2431 = vmor %vm2429, %vm2430
    %v2432 = vsel %vm2431, %v2424, %v2428
    %v2433 = vand.u32 2147483647, %v2198
    %vm2434 = vcmp.eq.f32.partialorder %v2433, 8.507059e+37
    %v2435 = vand.u32 %v2198, 2147483648
    %v2436 = vor.u32 1.1754944e-38, %v2435
    %v2437 = vsel %vm2434, %v2436, %v2432
    %v2438 = vmul.f32 1.0, %v2437
    %v2439 = vmul.f32 %v2119, %v2213
    %v2440 = vmul.f32 %v2120, %v2228
    %v2441 = vmul.f32 %v2121, %v2243
    %v2442 = vmul.f32 %v2122, %v2258
    %v2443 = vmul.f32 %v2123, %v2273
    %v2444 = vmul.f32 %v2124, %v2288
    %v2445 = vmul.f32 %v2125, %v2303
    %v2446 = vmul.f32 %v2126, %v2318
    %v2447 = vmul.f32 %v2127, %v2333
    %v2448 = vmul.f32 %v2128, %v2348
    %v2449 = vmul.f32 %v2129, %v2363
    %v2450 = vmul.f32 %v2130, %v2378
    %v2451 = vmul.f32 %v2131, %v2393
    %v2452 = vmul.f32 %v2132, %v2408
    %v2453 = vmul.f32 %v2133, %v2423
    %v2454 = vmul.f32 %v2134, %v2438
    %2455 = vrot.lane.b32.xlu0 %v2439, 1
    %v2456 = vpop.permute.xlu0 %2455
    %2457 = vrot.lane.b32.xlu0 %v2440, 1
    %v2458 = vpop.permute.xlu0 %2457
    %2459 = vrot.lane.b32.xlu0 %v2441, 1
    %v2460 = vpop.permute.xlu0 %2459
    %2461 = vrot.lane.b32.xlu0 %v2442, 1
    %v2462 = vpop.permute.xlu0 %2461
    %2463 = vrot.lane.b32.xlu0 %v2443, 1
    %v2464 = vpop.permute.xlu0 %2463
    %2465 = vrot.lane.b32.xlu0 %v2444, 1
    %v2466 = vpop.permute.xlu0 %2465
    %2467 = vrot.lane.b32.xlu0 %v2445, 1
    %v2468 = vpop.permute.xlu0 %2467
    %2469 = vrot.lane.b32.xlu0 %v2446, 1
    %v2470 = vpop.permute.xlu0 %2469
    %2471 = vrot.lane.b32.xlu0 %v2447, 1
    %v2472 = vpop.permute.xlu0 %2471
    %2473 = vrot.lane.b32.xlu0 %v2448, 1
    %v2474 = vpop.permute.xlu0 %2473
    %2475 = vrot.lane.b32.xlu0 %v2449, 1
    %v2476 = vpop.permute.xlu0 %2475
    %2477 = vrot.lane.b32.xlu0 %v2450, 1
    %v2478 = vpop.permute.xlu0 %2477
    %2479 = vrot.lane.b32.xlu0 %v2451, 1
    %v2480 = vpop.permute.xlu0 %2479
    %2481 = vrot.lane.b32.xlu0 %v2452, 1
    %v2482 = vpop.permute.xlu0 %2481
    %2483 = vrot.lane.b32.xlu0 %v2453, 1
    %v2484 = vpop.permute.xlu0 %2483
    %2485 = vrot.lane.b32.xlu0 %v2454, 1
    %v2486 = vpop.permute.xlu0 %2485
    %v2487 = vmul.f32 %v2456, %v75
    %v2488 = vmul.f32 %v2458, %v75
    %v2489 = vmul.f32 %v2460, %v75
    %v2490 = vmul.f32 %v2462, %v75
    %v2491 = vmul.f32 %v2464, %v75
    %v2492 = vmul.f32 %v2466, %v75
    %v2493 = vmul.f32 %v2468, %v75
    %v2494 = vmul.f32 %v2470, %v75
    %v2495 = vmul.f32 %v2472, %v75
    %v2496 = vmul.f32 %v2474, %v75
    %v2497 = vmul.f32 %v2476, %v75
    %v2498 = vmul.f32 %v2478, %v75
    %v2499 = vmul.f32 %v2480, %v75
    %v2500 = vmul.f32 %v2482, %v75
    %v2501 = vmul.f32 %v2484, %v75
    %v2502 = vmul.f32 %v2486, %v75
    %2503 = vrot.lane.b32.xlu0 %v2439, 127
    %v2504 = vpop.permute.xlu0 %2503
    %2505 = vrot.lane.b32.xlu0 %v2440, 127
    %v2506 = vpop.permute.xlu0 %2505
    %2507 = vrot.lane.b32.xlu0 %v2441, 127
    %v2508 = vpop.permute.xlu0 %2507
    %2509 = vrot.lane.b32.xlu0 %v2442, 127
    %v2510 = vpop.permute.xlu0 %2509
    %2511 = vrot.lane.b32.xlu0 %v2443, 127
    %v2512 = vpop.permute.xlu0 %2511
    %2513 = vrot.lane.b32.xlu0 %v2444, 127
    %v2514 = vpop.permute.xlu0 %2513
    %2515 = vrot.lane.b32.xlu0 %v2445, 127
    %v2516 = vpop.permute.xlu0 %2515
    %2517 = vrot.lane.b32.xlu0 %v2446, 127
    %v2518 = vpop.permute.xlu0 %2517
    %2519 = vrot.lane.b32.xlu0 %v2447, 127
    %v2520 = vpop.permute.xlu0 %2519
    %2521 = vrot.lane.b32.xlu0 %v2448, 127
    %v2522 = vpop.permute.xlu0 %2521
    %2523 = vrot.lane.b32.xlu0 %v2449, 127
    %v2524 = vpop.permute.xlu0 %2523
    %2525 = vrot.lane.b32.xlu0 %v2450, 127
    %v2526 = vpop.permute.xlu0 %2525
    %2527 = vrot.lane.b32.xlu0 %v2451, 127
    %v2528 = vpop.permute.xlu0 %2527
    %2529 = vrot.lane.b32.xlu0 %v2452, 127
    %v2530 = vpop.permute.xlu0 %2529
    %2531 = vrot.lane.b32.xlu0 %v2453, 127
    %v2532 = vpop.permute.xlu0 %2531
    %2533 = vrot.lane.b32.xlu0 %v2454, 127
    %v2534 = vpop.permute.xlu0 %2533
    %v2535 = vmul.f32 %v2504, %v78
    %v2536 = vmul.f32 %v2506, %v78
    %v2537 = vmul.f32 %v2508, %v78
    %v2538 = vmul.f32 %v2510, %v78
    %v2539 = vmul.f32 %v2512, %v78
    %v2540 = vmul.f32 %v2514, %v78
    %v2541 = vmul.f32 %v2516, %v78
    %v2542 = vmul.f32 %v2518, %v78
    %v2543 = vmul.f32 %v2520, %v78
    %v2544 = vmul.f32 %v2522, %v78
    %v2545 = vmul.f32 %v2524, %v78
    %v2546 = vmul.f32 %v2526, %v78
    %v2547 = vmul.f32 %v2528, %v78
    %v2548 = vmul.f32 %v2530, %v78
    %v2549 = vmul.f32 %v2532, %v78
    %v2550 = vmul.f32 %v2534, %v78
    %2551 = vst [vmem:[#allocation2 + $0x8] sm:$0xff] %v2487
    %2552 = vst [vmem:[#allocation2 + $0x28] sm:$0xff] %v2488
    %2553 = vst [vmem:[#allocation2 + $0x48] sm:$0xff] %v2489
    %2554 = vst [vmem:[#allocation2 + $0x68] sm:$0xff] %v2490
    %2555 = vst [vmem:[#allocation2 + $0x88] sm:$0xff] %v2491
    %2556 = vst [vmem:[#allocation2 + $0xa8] sm:$0xff] %v2492
    %2557 = vst [vmem:[#allocation2 + $0xc8] sm:$0xff] %v2493
    %2558 = vst [vmem:[#allocation2 + $0xe8] sm:$0xff] %v2494
    %2559 = vst [vmem:[#allocation2 + $0x108] sm:$0xff] %v2495
    %2560 = vst [vmem:[#allocation2 + $0x128] sm:$0xff] %v2496
    %2561 = vst [vmem:[#allocation2 + $0x148] sm:$0xff] %v2497
    %2562 = vst [vmem:[#allocation2 + $0x168] sm:$0xff] %v2498
    %2563 = vst [vmem:[#allocation2 + $0x188] sm:$0xff] %v2499
    %2564 = vst [vmem:[#allocation2 + $0x1a8] sm:$0xff] %v2500
    %2565 = vst [vmem:[#allocation2 + $0x1c8] sm:$0xff] %v2501
    %2566 = vst [vmem:[#allocation2 + $0x1e8] sm:$0xff] %v2502
    %2567 = vst [vmem:[#allocation2 + $0x208] sm:$0xff] %v2439
    %2568 = vst [vmem:[#allocation2 + $0x228] sm:$0xff] %v2440
    %2569 = vst [vmem:[#allocation2 + $0x248] sm:$0xff] %v2441
    %2570 = vst [vmem:[#allocation2 + $0x268] sm:$0xff] %v2442
    %2571 = vst [vmem:[#allocation2 + $0x288] sm:$0xff] %v2443
    %2572 = vst [vmem:[#allocation2 + $0x2a8] sm:$0xff] %v2444
    %2573 = vst [vmem:[#allocation2 + $0x2c8] sm:$0xff] %v2445
    %2574 = vst [vmem:[#allocation2 + $0x2e8] sm:$0xff] %v2446
    %2575 = vst [vmem:[#allocation2 + $0x308] sm:$0xff] %v2447
    %2576 = vst [vmem:[#allocation2 + $0x328] sm:$0xff] %v2448
    %2577 = vst [vmem:[#allocation2 + $0x348] sm:$0xff] %v2449
    %2578 = vst [vmem:[#allocation2 + $0x368] sm:$0xff] %v2450
    %2579 = vst [vmem:[#allocation2 + $0x388] sm:$0xff] %v2451
    %2580 = vst [vmem:[#allocation2 + $0x3a8] sm:$0xff] %v2452
    %2581 = vst [vmem:[#allocation2 + $0x3c8] sm:$0xff] %v2453
    %2582 = vst [vmem:[#allocation2 + $0x3e8] sm:$0xff] %v2454
    %2583 = vst [vmem:[#allocation2 + $0x408] sm:$0xff] %v2535
    %2584 = vst [vmem:[#allocation2 + $0x428] sm:$0xff] %v2536
    %2585 = vst [vmem:[#allocation2 + $0x448] sm:$0xff] %v2537
    %2586 = vst [vmem:[#allocation2 + $0x468] sm:$0xff] %v2538
    %2587 = vst [vmem:[#allocation2 + $0x488] sm:$0xff] %v2539
    %2588 = vst [vmem:[#allocation2 + $0x4a8] sm:$0xff] %v2540
    %2589 = vst [vmem:[#allocation2 + $0x4c8] sm:$0xff] %v2541
    %2590 = vst [vmem:[#allocation2 + $0x4e8] sm:$0xff] %v2542
    %2591 = vst [vmem:[#allocation2 + $0x508] sm:$0xff] %v2543
    %2592 = vst [vmem:[#allocation2 + $0x528] sm:$0xff] %v2544
    %2593 = vst [vmem:[#allocation2 + $0x548] sm:$0xff] %v2545
    %2594 = vst [vmem:[#allocation2 + $0x568] sm:$0xff] %v2546
    %2595 = vst [vmem:[#allocation2 + $0x588] sm:$0xff] %v2547
    %2596 = vst [vmem:[#allocation2 + $0x5a8] sm:$0xff] %v2548
    %2597 = vst [vmem:[#allocation2 + $0x5c8] sm:$0xff] %v2549
    %2598 = vst [vmem:[#allocation2 + $0x5e8] sm:$0xff] %v2550
    %v2599 = vld [vmem:[%s224] sm:$0xff]
    %v2600 = vld [vmem:[%s224 + $0x8] sm:$0xff]
    %v2601 = vld [vmem:[%s224 + $0x10] sm:$0xff]
    %v2602 = vld [vmem:[%s224 + $0x18] sm:$0xff]
    %v2603 = vld [vmem:[%s224 + $0x20] sm:$0xff]
    %v2604 = vld [vmem:[%s224 + $0x28] sm:$0xff]
    %v2605 = vld [vmem:[%s224 + $0x30] sm:$0xff]
    %v2606 = vld [vmem:[%s224 + $0x38] sm:$0xff]
    %v2607 = vld [vmem:[%s224 + $0x40] sm:$0xff]
    %v2608 = vld [vmem:[%s224 + $0x48] sm:$0xff]
    %v2609 = vld [vmem:[%s224 + $0x50] sm:$0xff]
    %v2610 = vld [vmem:[%s224 + $0x58] sm:$0xff]
    %v2611 = vld [vmem:[%s224 + $0x60] sm:$0xff]
    %v2612 = vld [vmem:[%s224 + $0x68] sm:$0xff]
    %v2613 = vld [vmem:[%s224 + $0x70] sm:$0xff]
    %v2614 = vld [vmem:[%s224 + $0x78] sm:$0xff]
    %v2615 = vsub.f32 %v2599, %v712
    %v2616 = vsub.f32 %v2600, %v716
    %v2617 = vsub.f32 %v2601, %v720
    %v2618 = vsub.f32 %v2602, %v724
    %v2619 = vsub.f32 %v2603, %v728
    %v2620 = vsub.f32 %v2604, %v732
    %v2621 = vsub.f32 %v2605, %v736
    %v2622 = vsub.f32 %v2606, %v740
    %v2623 = vsub.f32 %v2607, %v744
    %v2624 = vsub.f32 %v2608, %v748
    %v2625 = vsub.f32 %v2609, %v752
    %v2626 = vsub.f32 %v2610, %v756
    %v2627 = vsub.f32 %v2611, %v760
    %v2628 = vsub.f32 %v2612, %v764
    %v2629 = vsub.f32 %v2613, %v768
    %v2630 = vsub.f32 %v2614, %v772
    %2631 = vset.pattern.permute.xlu0 2
    %2632 = vperm.xlu0 %2631, %v1088
    %v2633 = vpop.permute.xlu0 %2632
    %2635 = vset.pattern.permute.xlu0 2
    %2636 = vperm.xlu0 %2635, %v1098
    %v2637 = vpop.permute.xlu0 %2636
    %2639 = vset.pattern.permute.xlu0 2
    %2640 = vperm.xlu0 %2639, %v1108
    %v2641 = vpop.permute.xlu0 %2640
    %2643 = vset.pattern.permute.xlu0 2
    %2644 = vperm.xlu0 %2643, %v1118
    %v2645 = vpop.permute.xlu0 %2644
    %2647 = vset.pattern.permute.xlu0 2
    %2648 = vperm.xlu0 %2647, %v1128
    %v2649 = vpop.permute.xlu0 %2648
    %2651 = vset.pattern.permute.xlu0 2
    %2652 = vperm.xlu0 %2651, %v1138
    %v2653 = vpop.permute.xlu0 %2652
    %2655 = vset.pattern.permute.xlu0 2
    %2656 = vperm.xlu0 %2655, %v1148
    %v2657 = vpop.permute.xlu0 %2656
    %2659 = vset.pattern.permute.xlu0 2
    %2660 = vperm.xlu0 %2659, %v1158
    %v2661 = vpop.permute.xlu0 %2660
    %2663 = vset.pattern.permute.xlu0 2
    %2664 = vperm.xlu0 %2663, %v1168
    %v2665 = vpop.permute.xlu0 %2664
    %2667 = vset.pattern.permute.xlu0 2
    %2668 = vperm.xlu0 %2667, %v1178
    %v2669 = vpop.permute.xlu0 %2668
    %2671 = vset.pattern.permute.xlu0 2
    %2672 = vperm.xlu0 %2671, %v1188
    %v2673 = vpop.permute.xlu0 %2672
    %2675 = vset.pattern.permute.xlu0 2
    %2676 = vperm.xlu0 %2675, %v1198
    %v2677 = vpop.permute.xlu0 %2676
    %2679 = vset.pattern.permute.xlu0 2
    %2680 = vperm.xlu0 %2679, %v1208
    %v2681 = vpop.permute.xlu0 %2680
    %2683 = vset.pattern.permute.xlu0 2
    %2684 = vperm.xlu0 %2683, %v1218
    %v2685 = vpop.permute.xlu0 %2684
    %2687 = vset.pattern.permute.xlu0 2
    %2688 = vperm.xlu0 %2687, %v1228
    %v2689 = vpop.permute.xlu0 %2688
    %2691 = vset.pattern.permute.xlu0 2
    %2692 = vperm.xlu0 %2691, %v1238
    %v2693 = vpop.permute.xlu0 %2692
    %v2695 = vmul.f32 %v2615, %v2633
    %v2696 = vmul.f32 %v2616, %v2637
    %v2697 = vmul.f32 %v2617, %v2641
    %v2698 = vmul.f32 %v2618, %v2645
    %v2699 = vmul.f32 %v2619, %v2649
    %v2700 = vmul.f32 %v2620, %v2653
    %v2701 = vmul.f32 %v2621, %v2657
    %v2702 = vmul.f32 %v2622, %v2661
    %v2703 = vmul.f32 %v2623, %v2665
    %v2704 = vmul.f32 %v2624, %v2669
    %v2705 = vmul.f32 %v2625, %v2673
    %v2706 = vmul.f32 %v2626, %v2677
    %v2707 = vmul.f32 %v2627, %v2681
    %v2708 = vmul.f32 %v2628, %v2685
    %v2709 = vmul.f32 %v2629, %v2689
    %v2710 = vmul.f32 %v2630, %v2693
    %v2711 = vmul.f32 %v2695, %v1338
    %v2712 = vmul.f32 %v2696, %v1343
    %v2713 = vmul.f32 %v2697, %v1348
    %v2714 = vmul.f32 %v2698, %v1353
    %v2715 = vmul.f32 %v2699, %v1358
    %v2716 = vmul.f32 %v2700, %v1363
    %v2717 = vmul.f32 %v2701, %v1368
    %v2718 = vmul.f32 %v2702, %v1373
    %v2719 = vmul.f32 %v2703, %v1378
    %v2720 = vmul.f32 %v2704, %v1383
    %v2721 = vmul.f32 %v2705, %v1388
    %v2722 = vmul.f32 %v2706, %v1393
    %v2723 = vmul.f32 %v2707, %v1398
    %v2724 = vmul.f32 %v2708, %v1403
    %v2725 = vmul.f32 %v2709, %v1408
    %v2726 = vmul.f32 %v2710, %v1413
    %v2727 = vadd.f32 %v2711, %v1434
    %v2728 = vadd.f32 %v2712, %v1439
    %v2729 = vadd.f32 %v2713, %v1444
    %v2730 = vadd.f32 %v2714, %v1449
    %v2731 = vadd.f32 %v2715, %v1454
    %v2732 = vadd.f32 %v2716, %v1459
    %v2733 = vadd.f32 %v2717, %v1464
    %v2734 = vadd.f32 %v2718, %v1469
    %v2735 = vadd.f32 %v2719, %v1474
    %v2736 = vadd.f32 %v2720, %v1479
    %v2737 = vadd.f32 %v2721, %v1484
    %v2738 = vadd.f32 %v2722, %v1489
    %v2739 = vadd.f32 %v2723, %v1494
    %v2740 = vadd.f32 %v2724, %v1499
    %v2741 = vadd.f32 %v2725, %v1504
    %v2742 = vadd.f32 %v2726, %v1509
    %v2743 = vxor.u32 %v2727, 2147483648
    %v2744 = vxor.u32 %v2728, 2147483648
    %v2745 = vxor.u32 %v2729, 2147483648
    %v2746 = vxor.u32 %v2730, 2147483648
    %v2747 = vxor.u32 %v2731, 2147483648
    %v2748 = vxor.u32 %v2732, 2147483648
    %v2749 = vxor.u32 %v2733, 2147483648
    %v2750 = vxor.u32 %v2734, 2147483648
    %v2751 = vxor.u32 %v2735, 2147483648
    %v2752 = vxor.u32 %v2736, 2147483648
    %v2753 = vxor.u32 %v2737, 2147483648
    %v2754 = vxor.u32 %v2738, 2147483648
    %v2755 = vxor.u32 %v2739, 2147483648
    %v2756 = vxor.u32 %v2740, 2147483648
    %v2757 = vxor.u32 %v2741, 2147483648
    %v2758 = vxor.u32 %v2742, 2147483648
    %v2759 = vmul.f32 %v2743, 1.442695
    %v2760 = vpow.pop %v2759
    %v2761 = vmul.f32 %v2744, 1.442695
    %v2762 = vpow.pop %v2761
    %v2763 = vmul.f32 %v2745, 1.442695
    %v2764 = vpow.pop %v2763
    %v2765 = vmul.f32 %v2746, 1.442695
    %v2766 = vpow.pop %v2765
    %v2767 = vmul.f32 %v2747, 1.442695
    %v2768 = vpow.pop %v2767
    %v2769 = vmul.f32 %v2748, 1.442695
    %v2770 = vpow.pop %v2769
    %v2771 = vmul.f32 %v2749, 1.442695
    %v2772 = vpow.pop %v2771
    %v2773 = vmul.f32 %v2750, 1.442695
    %v2774 = vpow.pop %v2773
    %v2775 = vmul.f32 %v2751, 1.442695
    %v2776 = vpow.pop %v2775
    %v2777 = vmul.f32 %v2752, 1.442695
    %v2778 = vpow.pop %v2777
    %v2779 = vmul.f32 %v2753, 1.442695
    %v2780 = vpow.pop %v2779
    %v2781 = vmul.f32 %v2754, 1.442695
    %v2782 = vpow.pop %v2781
    %v2783 = vmul.f32 %v2755, 1.442695
    %v2784 = vpow.pop %v2783
    %v2785 = vmul.f32 %v2756, 1.442695
    %v2786 = vpow.pop %v2785
    %v2787 = vmul.f32 %v2757, 1.442695
    %v2788 = vpow.pop %v2787
    %v2789 = vmul.f32 %v2758, 1.442695
    %v2790 = vpow.pop %v2789
    %v2791 = vadd.f32 %v2760, 1.0
    %v2792 = vadd.f32 %v2762, 1.0
    %v2793 = vadd.f32 %v2764, 1.0
    %v2794 = vadd.f32 %v2766, 1.0
    %v2795 = vadd.f32 %v2768, 1.0
    %v2796 = vadd.f32 %v2770, 1.0
    %v2797 = vadd.f32 %v2772, 1.0
    %v2798 = vadd.f32 %v2774, 1.0
    %v2799 = vadd.f32 %v2776, 1.0
    %v2800 = vadd.f32 %v2778, 1.0
    %v2801 = vadd.f32 %v2780, 1.0
    %v2802 = vadd.f32 %v2782, 1.0
    %v2803 = vadd.f32 %v2784, 1.0
    %v2804 = vadd.f32 %v2786, 1.0
    %v2805 = vadd.f32 %v2788, 1.0
    %v2806 = vadd.f32 %v2790, 1.0
    %v2807 = vrcp.pop %v2791
    %v2808 = vmul.f32 %v2791, %v2807
    %v2809 = vsub.f32 1.0, %v2808
    %v2810 = vmul.f32 %v2807, %v2809
    %v2811 = vadd.f32 %v2807, %v2810
    %vm2812 = vweird.f32 %v2791
    %vm2813 = vweird.f32 %v2807
    %vm2814 = vmor %vm2812, %vm2813
    %v2815 = vsel %vm2814, %v2807, %v2811
    %v2816 = vand.u32 2147483647, %v2791
    %vm2817 = vcmp.eq.f32.partialorder %v2816, 8.507059e+37
    %v2818 = vand.u32 %v2791, 2147483648
    %v2819 = vor.u32 1.1754944e-38, %v2818
    %v2820 = vsel %vm2817, %v2819, %v2815
    %v2821 = vmul.f32 1.0, %v2820
    %v2822 = vrcp.pop %v2792
    %v2823 = vmul.f32 %v2792, %v2822
    %v2824 = vsub.f32 1.0, %v2823
    %v2825 = vmul.f32 %v2822, %v2824
    %v2826 = vadd.f32 %v2822, %v2825
    %vm2827 = vweird.f32 %v2792
    %vm2828 = vweird.f32 %v2822
    %vm2829 = vmor %vm2827, %vm2828
    %v2830 = vsel %vm2829, %v2822, %v2826
    %v2831 = vand.u32 2147483647, %v2792
    %vm2832 = vcmp.eq.f32.partialorder %v2831, 8.507059e+37
    %v2833 = vand.u32 %v2792, 2147483648
    %v2834 = vor.u32 1.1754944e-38, %v2833
    %v2835 = vsel %vm2832, %v2834, %v2830
    %v2836 = vmul.f32 1.0, %v2835
    %v2837 = vrcp.pop %v2793
    %v2838 = vmul.f32 %v2793, %v2837
    %v2839 = vsub.f32 1.0, %v2838
    %v2840 = vmul.f32 %v2837, %v2839
    %v2841 = vadd.f32 %v2837, %v2840
    %vm2842 = vweird.f32 %v2793
    %vm2843 = vweird.f32 %v2837
    %vm2844 = vmor %vm2842, %vm2843
    %v2845 = vsel %vm2844, %v2837, %v2841
    %v2846 = vand.u32 2147483647, %v2793
    %vm2847 = vcmp.eq.f32.partialorder %v2846, 8.507059e+37
    %v2848 = vand.u32 %v2793, 2147483648
    %v2849 = vor.u32 1.1754944e-38, %v2848
    %v2850 = vsel %vm2847, %v2849, %v2845
    %v2851 = vmul.f32 1.0, %v2850
    %v2852 = vrcp.pop %v2794
    %v2853 = vmul.f32 %v2794, %v2852
    %v2854 = vsub.f32 1.0, %v2853
    %v2855 = vmul.f32 %v2852, %v2854
    %v2856 = vadd.f32 %v2852, %v2855
    %vm2857 = vweird.f32 %v2794
    %vm2858 = vweird.f32 %v2852
    %vm2859 = vmor %vm2857, %vm2858
    %v2860 = vsel %vm2859, %v2852, %v2856
    %v2861 = vand.u32 2147483647, %v2794
    %vm2862 = vcmp.eq.f32.partialorder %v2861, 8.507059e+37
    %v2863 = vand.u32 %v2794, 2147483648
    %v2864 = vor.u32 1.1754944e-38, %v2863
    %v2865 = vsel %vm2862, %v2864, %v2860
    %v2866 = vmul.f32 1.0, %v2865
    %v2867 = vrcp.pop %v2795
    %v2868 = vmul.f32 %v2795, %v2867
    %v2869 = vsub.f32 1.0, %v2868
    %v2870 = vmul.f32 %v2867, %v2869
    %v2871 = vadd.f32 %v2867, %v2870
    %vm2872 = vweird.f32 %v2795
    %vm2873 = vweird.f32 %v2867
    %vm2874 = vmor %vm2872, %vm2873
    %v2875 = vsel %vm2874, %v2867, %v2871
    %v2876 = vand.u32 2147483647, %v2795
    %vm2877 = vcmp.eq.f32.partialorder %v2876, 8.507059e+37
    %v2878 = vand.u32 %v2795, 2147483648
    %v2879 = vor.u32 1.1754944e-38, %v2878
    %v2880 = vsel %vm2877, %v2879, %v2875
    %v2881 = vmul.f32 1.0, %v2880
    %v2882 = vrcp.pop %v2796
    %v2883 = vmul.f32 %v2796, %v2882
    %v2884 = vsub.f32 1.0, %v2883
    %v2885 = vmul.f32 %v2882, %v2884
    %v2886 = vadd.f32 %v2882, %v2885
    %vm2887 = vweird.f32 %v2796
    %vm2888 = vweird.f32 %v2882
    %vm2889 = vmor %vm2887, %vm2888
    %v2890 = vsel %vm2889, %v2882, %v2886
    %v2891 = vand.u32 2147483647, %v2796
    %vm2892 = vcmp.eq.f32.partialorder %v2891, 8.507059e+37
    %v2893 = vand.u32 %v2796, 2147483648
    %v2894 = vor.u32 1.1754944e-38, %v2893
    %v2895 = vsel %vm2892, %v2894, %v2890
    %v2896 = vmul.f32 1.0, %v2895
    %v2897 = vrcp.pop %v2797
    %v2898 = vmul.f32 %v2797, %v2897
    %v2899 = vsub.f32 1.0, %v2898
    %v2900 = vmul.f32 %v2897, %v2899
    %v2901 = vadd.f32 %v2897, %v2900
    %vm2902 = vweird.f32 %v2797
    %vm2903 = vweird.f32 %v2897
    %vm2904 = vmor %vm2902, %vm2903
    %v2905 = vsel %vm2904, %v2897, %v2901
    %v2906 = vand.u32 2147483647, %v2797
    %vm2907 = vcmp.eq.f32.partialorder %v2906, 8.507059e+37
    %v2908 = vand.u32 %v2797, 2147483648
    %v2909 = vor.u32 1.1754944e-38, %v2908
    %v2910 = vsel %vm2907, %v2909, %v2905
    %v2911 = vmul.f32 1.0, %v2910
    %v2912 = vrcp.pop %v2798
    %v2913 = vmul.f32 %v2798, %v2912
    %v2914 = vsub.f32 1.0, %v2913
    %v2915 = vmul.f32 %v2912, %v2914
    %v2916 = vadd.f32 %v2912, %v2915
    %vm2917 = vweird.f32 %v2798
    %vm2918 = vweird.f32 %v2912
    %vm2919 = vmor %vm2917, %vm2918
    %v2920 = vsel %vm2919, %v2912, %v2916
    %v2921 = vand.u32 2147483647, %v2798
    %vm2922 = vcmp.eq.f32.partialorder %v2921, 8.507059e+37
    %v2923 = vand.u32 %v2798, 2147483648
    %v2924 = vor.u32 1.1754944e-38, %v2923
    %v2925 = vsel %vm2922, %v2924, %v2920
    %v2926 = vmul.f32 1.0, %v2925
    %v2927 = vrcp.pop %v2799
    %v2928 = vmul.f32 %v2799, %v2927
    %v2929 = vsub.f32 1.0, %v2928
    %v2930 = vmul.f32 %v2927, %v2929
    %v2931 = vadd.f32 %v2927, %v2930
    %vm2932 = vweird.f32 %v2799
    %vm2933 = vweird.f32 %v2927
    %vm2934 = vmor %vm2932, %vm2933
    %v2935 = vsel %vm2934, %v2927, %v2931
    %v2936 = vand.u32 2147483647, %v2799
    %vm2937 = vcmp.eq.f32.partialorder %v2936, 8.507059e+37
    %v2938 = vand.u32 %v2799, 2147483648
    %v2939 = vor.u32 1.1754944e-38, %v2938
    %v2940 = vsel %vm2937, %v2939, %v2935
    %v2941 = vmul.f32 1.0, %v2940
    %v2942 = vrcp.pop %v2800
    %v2943 = vmul.f32 %v2800, %v2942
    %v2944 = vsub.f32 1.0, %v2943
    %v2945 = vmul.f32 %v2942, %v2944
    %v2946 = vadd.f32 %v2942, %v2945
    %vm2947 = vweird.f32 %v2800
    %vm2948 = vweird.f32 %v2942
    %vm2949 = vmor %vm2947, %vm2948
    %v2950 = vsel %vm2949, %v2942, %v2946
    %v2951 = vand.u32 2147483647, %v2800
    %vm2952 = vcmp.eq.f32.partialorder %v2951, 8.507059e+37
    %v2953 = vand.u32 %v2800, 2147483648
    %v2954 = vor.u32 1.1754944e-38, %v2953
    %v2955 = vsel %vm2952, %v2954, %v2950
    %v2956 = vmul.f32 1.0, %v2955
    %v2957 = vrcp.pop %v2801
    %v2958 = vmul.f32 %v2801, %v2957
    %v2959 = vsub.f32 1.0, %v2958
    %v2960 = vmul.f32 %v2957, %v2959
    %v2961 = vadd.f32 %v2957, %v2960
    %vm2962 = vweird.f32 %v2801
    %vm2963 = vweird.f32 %v2957
    %vm2964 = vmor %vm2962, %vm2963
    %v2965 = vsel %vm2964, %v2957, %v2961
    %v2966 = vand.u32 2147483647, %v2801
    %vm2967 = vcmp.eq.f32.partialorder %v2966, 8.507059e+37
    %v2968 = vand.u32 %v2801, 2147483648
    %v2969 = vor.u32 1.1754944e-38, %v2968
    %v2970 = vsel %vm2967, %v2969, %v2965
    %v2971 = vmul.f32 1.0, %v2970
    %v2972 = vrcp.pop %v2802
    %v2973 = vmul.f32 %v2802, %v2972
    %v2974 = vsub.f32 1.0, %v2973
    %v2975 = vmul.f32 %v2972, %v2974
    %v2976 = vadd.f32 %v2972, %v2975
    %vm2977 = vweird.f32 %v2802
    %vm2978 = vweird.f32 %v2972
    %vm2979 = vmor %vm2977, %vm2978
    %v2980 = vsel %vm2979, %v2972, %v2976
    %v2981 = vand.u32 2147483647, %v2802
    %vm2982 = vcmp.eq.f32.partialorder %v2981, 8.507059e+37
    %v2983 = vand.u32 %v2802, 2147483648
    %v2984 = vor.u32 1.1754944e-38, %v2983
    %v2985 = vsel %vm2982, %v2984, %v2980
    %v2986 = vmul.f32 1.0, %v2985
    %v2987 = vrcp.pop %v2803
    %v2988 = vmul.f32 %v2803, %v2987
    %v2989 = vsub.f32 1.0, %v2988
    %v2990 = vmul.f32 %v2987, %v2989
    %v2991 = vadd.f32 %v2987, %v2990
    %vm2992 = vweird.f32 %v2803
    %vm2993 = vweird.f32 %v2987
    %vm2994 = vmor %vm2992, %vm2993
    %v2995 = vsel %vm2994, %v2987, %v2991
    %v2996 = vand.u32 2147483647, %v2803
    %vm2997 = vcmp.eq.f32.partialorder %v2996, 8.507059e+37
    %v2998 = vand.u32 %v2803, 2147483648
    %v2999 = vor.u32 1.1754944e-38, %v2998
    %v3000 = vsel %vm2997, %v2999, %v2995
    %v3001 = vmul.f32 1.0, %v3000
    %v3002 = vrcp.pop %v2804
    %v3003 = vmul.f32 %v2804, %v3002
    %v3004 = vsub.f32 1.0, %v3003
    %v3005 = vmul.f32 %v3002, %v3004
    %v3006 = vadd.f32 %v3002, %v3005
    %vm3007 = vweird.f32 %v2804
    %vm3008 = vweird.f32 %v3002
    %vm3009 = vmor %vm3007, %vm3008
    %v3010 = vsel %vm3009, %v3002, %v3006
    %v3011 = vand.u32 2147483647, %v2804
    %vm3012 = vcmp.eq.f32.partialorder %v3011, 8.507059e+37
    %v3013 = vand.u32 %v2804, 2147483648
    %v3014 = vor.u32 1.1754944e-38, %v3013
    %v3015 = vsel %vm3012, %v3014, %v3010
    %v3016 = vmul.f32 1.0, %v3015
    %v3017 = vrcp.pop %v2805
    %v3018 = vmul.f32 %v2805, %v3017
    %v3019 = vsub.f32 1.0, %v3018
    %v3020 = vmul.f32 %v3017, %v3019
    %v3021 = vadd.f32 %v3017, %v3020
    %vm3022 = vweird.f32 %v2805
    %vm3023 = vweird.f32 %v3017
    %vm3024 = vmor %vm3022, %vm3023
    %v3025 = vsel %vm3024, %v3017, %v3021
    %v3026 = vand.u32 2147483647, %v2805
    %vm3027 = vcmp.eq.f32.partialorder %v3026, 8.507059e+37
    %v3028 = vand.u32 %v2805, 2147483648
    %v3029 = vor.u32 1.1754944e-38, %v3028
    %v3030 = vsel %vm3027, %v3029, %v3025
    %v3031 = vmul.f32 1.0, %v3030
    %v3032 = vrcp.pop %v2806
    %v3033 = vmul.f32 %v2806, %v3032
    %v3034 = vsub.f32 1.0, %v3033
    %v3035 = vmul.f32 %v3032, %v3034
    %v3036 = vadd.f32 %v3032, %v3035
    %vm3037 = vweird.f32 %v2806
    %vm3038 = vweird.f32 %v3032
    %vm3039 = vmor %vm3037, %vm3038
    %v3040 = vsel %vm3039, %v3032, %v3036
    %v3041 = vand.u32 2147483647, %v2806
    %vm3042 = vcmp.eq.f32.partialorder %v3041, 8.507059e+37
    %v3043 = vand.u32 %v2806, 2147483648
    %v3044 = vor.u32 1.1754944e-38, %v3043
    %v3045 = vsel %vm3042, %v3044, %v3040
    %v3046 = vmul.f32 1.0, %v3045
    %v3047 = vmul.f32 %v2727, %v2821
    %v3048 = vmul.f32 %v2728, %v2836
    %v3049 = vmul.f32 %v2729, %v2851
    %v3050 = vmul.f32 %v2730, %v2866
    %v3051 = vmul.f32 %v2731, %v2881
    %v3052 = vmul.f32 %v2732, %v2896
    %v3053 = vmul.f32 %v2733, %v2911
    %v3054 = vmul.f32 %v2734, %v2926
    %v3055 = vmul.f32 %v2735, %v2941
    %v3056 = vmul.f32 %v2736, %v2956
    %v3057 = vmul.f32 %v2737, %v2971
    %v3058 = vmul.f32 %v2738, %v2986
    %v3059 = vmul.f32 %v2739, %v3001
    %v3060 = vmul.f32 %v2740, %v3016
    %v3061 = vmul.f32 %v2741, %v3031
    %v3062 = vmul.f32 %v2742, %v3046
    %3063 = vrot.lane.b32.xlu0 %v3047, 1
    %v3064 = vpop.permute.xlu0 %3063
    %3065 = vrot.lane.b32.xlu0 %v3048, 1
    %v3066 = vpop.permute.xlu0 %3065
    %3067 = vrot.lane.b32.xlu0 %v3049, 1
    %v3068 = vpop.permute.xlu0 %3067
    %3069 = vrot.lane.b32.xlu0 %v3050, 1
    %v3070 = vpop.permute.xlu0 %3069
    %3071 = vrot.lane.b32.xlu0 %v3051, 1
    %v3072 = vpop.permute.xlu0 %3071
    %3073 = vrot.lane.b32.xlu0 %v3052, 1
    %v3074 = vpop.permute.xlu0 %3073
    %3075 = vrot.lane.b32.xlu0 %v3053, 1
    %v3076 = vpop.permute.xlu0 %3075
    %3077 = vrot.lane.b32.xlu0 %v3054, 1
    %v3078 = vpop.permute.xlu0 %3077
    %3079 = vrot.lane.b32.xlu0 %v3055, 1
    %v3080 = vpop.permute.xlu0 %3079
    %3081 = vrot.lane.b32.xlu0 %v3056, 1
    %v3082 = vpop.permute.xlu0 %3081
    %3083 = vrot.lane.b32.xlu0 %v3057, 1
    %v3084 = vpop.permute.xlu0 %3083
    %3085 = vrot.lane.b32.xlu0 %v3058, 1
    %v3086 = vpop.permute.xlu0 %3085
    %3087 = vrot.lane.b32.xlu0 %v3059, 1
    %v3088 = vpop.permute.xlu0 %3087
    %3089 = vrot.lane.b32.xlu0 %v3060, 1
    %v3090 = vpop.permute.xlu0 %3089
    %3091 = vrot.lane.b32.xlu0 %v3061, 1
    %v3092 = vpop.permute.xlu0 %3091
    %3093 = vrot.lane.b32.xlu0 %v3062, 1
    %v3094 = vpop.permute.xlu0 %3093
    %v3095 = vmul.f32 %v3064, %v75
    %v3096 = vmul.f32 %v3066, %v75
    %v3097 = vmul.f32 %v3068, %v75
    %v3098 = vmul.f32 %v3070, %v75
    %v3099 = vmul.f32 %v3072, %v75
    %v3100 = vmul.f32 %v3074, %v75
    %v3101 = vmul.f32 %v3076, %v75
    %v3102 = vmul.f32 %v3078, %v75
    %v3103 = vmul.f32 %v3080, %v75
    %v3104 = vmul.f32 %v3082, %v75
    %v3105 = vmul.f32 %v3084, %v75
    %v3106 = vmul.f32 %v3086, %v75
    %v3107 = vmul.f32 %v3088, %v75
    %v3108 = vmul.f32 %v3090, %v75
    %v3109 = vmul.f32 %v3092, %v75
    %v3110 = vmul.f32 %v3094, %v75
    %3111 = vrot.lane.b32.xlu0 %v3047, 127
    %v3112 = vpop.permute.xlu0 %3111
    %3113 = vrot.lane.b32.xlu0 %v3048, 127
    %v3114 = vpop.permute.xlu0 %3113
    %3115 = vrot.lane.b32.xlu0 %v3049, 127
    %v3116 = vpop.permute.xlu0 %3115
    %3117 = vrot.lane.b32.xlu0 %v3050, 127
    %v3118 = vpop.permute.xlu0 %3117
    %3119 = vrot.lane.b32.xlu0 %v3051, 127
    %v3120 = vpop.permute.xlu0 %3119
    %3121 = vrot.lane.b32.xlu0 %v3052, 127
    %v3122 = vpop.permute.xlu0 %3121
    %3123 = vrot.lane.b32.xlu0 %v3053, 127
    %v3124 = vpop.permute.xlu0 %3123
    %3125 = vrot.lane.b32.xlu0 %v3054, 127
    %v3126 = vpop.permute.xlu0 %3125
    %3127 = vrot.lane.b32.xlu0 %v3055, 127
    %v3128 = vpop.permute.xlu0 %3127
    %3129 = vrot.lane.b32.xlu0 %v3056, 127
    %v3130 = vpop.permute.xlu0 %3129
    %3131 = vrot.lane.b32.xlu0 %v3057, 127
    %v3132 = vpop.permute.xlu0 %3131
    %3133 = vrot.lane.b32.xlu0 %v3058, 127
    %v3134 = vpop.permute.xlu0 %3133
    %3135 = vrot.lane.b32.xlu0 %v3059, 127
    %v3136 = vpop.permute.xlu0 %3135
    %3137 = vrot.lane.b32.xlu0 %v3060, 127
    %v3138 = vpop.permute.xlu0 %3137
    %3139 = vrot.lane.b32.xlu0 %v3061, 127
    %v3140 = vpop.permute.xlu0 %3139
    %3141 = vrot.lane.b32.xlu0 %v3062, 127
    %v3142 = vpop.permute.xlu0 %3141
    %v3143 = vmul.f32 %v3112, %v78
    %v3144 = vmul.f32 %v3114, %v78
    %v3145 = vmul.f32 %v3116, %v78
    %v3146 = vmul.f32 %v3118, %v78
    %v3147 = vmul.f32 %v3120, %v78
    %v3148 = vmul.f32 %v3122, %v78
    %v3149 = vmul.f32 %v3124, %v78
    %v3150 = vmul.f32 %v3126, %v78
    %v3151 = vmul.f32 %v3128, %v78
    %v3152 = vmul.f32 %v3130, %v78
    %v3153 = vmul.f32 %v3132, %v78
    %v3154 = vmul.f32 %v3134, %v78
    %v3155 = vmul.f32 %v3136, %v78
    %v3156 = vmul.f32 %v3138, %v78
    %v3157 = vmul.f32 %v3140, %v78
    %v3158 = vmul.f32 %v3142, %v78
    %3159 = vst [vmem:[#allocation2 + $0x10] sm:$0xff] %v3095
    %3160 = vst [vmem:[#allocation2 + $0x30] sm:$0xff] %v3096
    %3161 = vst [vmem:[#allocation2 + $0x50] sm:$0xff] %v3097
    %3162 = vst [vmem:[#allocation2 + $0x70] sm:$0xff] %v3098
    %3163 = vst [vmem:[#allocation2 + $0x90] sm:$0xff] %v3099
    %3164 = vst [vmem:[#allocation2 + $0xb0] sm:$0xff] %v3100
    %3165 = vst [vmem:[#allocation2 + $0xd0] sm:$0xff] %v3101
    %3166 = vst [vmem:[#allocation2 + $0xf0] sm:$0xff] %v3102
    %3167 = vst [vmem:[#allocation2 + $0x110] sm:$0xff] %v3103
    %3168 = vst [vmem:[#allocation2 + $0x130] sm:$0xff] %v3104
    %3169 = vst [vmem:[#allocation2 + $0x150] sm:$0xff] %v3105
    %3170 = vst [vmem:[#allocation2 + $0x170] sm:$0xff] %v3106
    %3171 = vst [vmem:[#allocation2 + $0x190] sm:$0xff] %v3107
    %3172 = vst [vmem:[#allocation2 + $0x1b0] sm:$0xff] %v3108
    %3173 = vst [vmem:[#allocation2 + $0x1d0] sm:$0xff] %v3109
    %3174 = vst [vmem:[#allocation2 + $0x1f0] sm:$0xff] %v3110
    %3175 = vst [vmem:[#allocation2 + $0x210] sm:$0xff] %v3047
    %3176 = vst [vmem:[#allocation2 + $0x230] sm:$0xff] %v3048
    %3177 = vst [vmem:[#allocation2 + $0x250] sm:$0xff] %v3049
    %3178 = vst [vmem:[#allocation2 + $0x270] sm:$0xff] %v3050
    %3179 = vst [vmem:[#allocation2 + $0x290] sm:$0xff] %v3051
    %3180 = vst [vmem:[#allocation2 + $0x2b0] sm:$0xff] %v3052
    %3181 = vst [vmem:[#allocation2 + $0x2d0] sm:$0xff] %v3053
    %3182 = vst [vmem:[#allocation2 + $0x2f0] sm:$0xff] %v3054
    %3183 = vst [vmem:[#allocation2 + $0x310] sm:$0xff] %v3055
    %3184 = vst [vmem:[#allocation2 + $0x330] sm:$0xff] %v3056
    %3185 = vst [vmem:[#allocation2 + $0x350] sm:$0xff] %v3057
    %3186 = vst [vmem:[#allocation2 + $0x370] sm:$0xff] %v3058
    %3187 = vst [vmem:[#allocation2 + $0x390] sm:$0xff] %v3059
    %3188 = vst [vmem:[#allocation2 + $0x3b0] sm:$0xff] %v3060
    %3189 = vst [vmem:[#allocation2 + $0x3d0] sm:$0xff] %v3061
    %3190 = vst [vmem:[#allocation2 + $0x3f0] sm:$0xff] %v3062
    %3191 = vst [vmem:[#allocation2 + $0x410] sm:$0xff] %v3143
    %3192 = vst [vmem:[#allocation2 + $0x430] sm:$0xff] %v3144
    %3193 = vst [vmem:[#allocation2 + $0x450] sm:$0xff] %v3145
    %3194 = vst [vmem:[#allocation2 + $0x470] sm:$0xff] %v3146
    %3195 = vst [vmem:[#allocation2 + $0x490] sm:$0xff] %v3147
    %3196 = vst [vmem:[#allocation2 + $0x4b0] sm:$0xff] %v3148
    %3197 = vst [vmem:[#allocation2 + $0x4d0] sm:$0xff] %v3149
    %3198 = vst [vmem:[#allocation2 + $0x4f0] sm:$0xff] %v3150
    %3199 = vst [vmem:[#allocation2 + $0x510] sm:$0xff] %v3151
    %3200 = vst [vmem:[#allocation2 + $0x530] sm:$0xff] %v3152
    %3201 = vst [vmem:[#allocation2 + $0x550] sm:$0xff] %v3153
    %3202 = vst [vmem:[#allocation2 + $0x570] sm:$0xff] %v3154
    %3203 = vst [vmem:[#allocation2 + $0x590] sm:$0xff] %v3155
    %3204 = vst [vmem:[#allocation2 + $0x5b0] sm:$0xff] %v3156
    %3205 = vst [vmem:[#allocation2 + $0x5d0] sm:$0xff] %v3157
    %3206 = vst [vmem:[#allocation2 + $0x5f0] sm:$0xff] %v3158
    %v3207 = vld [vmem:[%s273] sm:$0xff]
    %v3208 = vld [vmem:[%s273 + $0x8] sm:$0xff]
    %v3209 = vld [vmem:[%s273 + $0x10] sm:$0xff]
    %v3210 = vld [vmem:[%s273 + $0x18] sm:$0xff]
    %v3211 = vld [vmem:[%s273 + $0x20] sm:$0xff]
    %v3212 = vld [vmem:[%s273 + $0x28] sm:$0xff]
    %v3213 = vld [vmem:[%s273 + $0x30] sm:$0xff]
    %v3214 = vld [vmem:[%s273 + $0x38] sm:$0xff]
    %v3215 = vld [vmem:[%s273 + $0x40] sm:$0xff]
    %v3216 = vld [vmem:[%s273 + $0x48] sm:$0xff]
    %v3217 = vld [vmem:[%s273 + $0x50] sm:$0xff]
    %v3218 = vld [vmem:[%s273 + $0x58] sm:$0xff]
    %v3219 = vld [vmem:[%s273 + $0x60] sm:$0xff]
    %v3220 = vld [vmem:[%s273 + $0x68] sm:$0xff]
    %v3221 = vld [vmem:[%s273 + $0x70] sm:$0xff]
    %v3222 = vld [vmem:[%s273 + $0x78] sm:$0xff]
    %v3223 = vsub.f32 %v3207, %v840
    %v3224 = vsub.f32 %v3208, %v844
    %v3225 = vsub.f32 %v3209, %v848
    %v3226 = vsub.f32 %v3210, %v852
    %v3227 = vsub.f32 %v3211, %v856
    %v3228 = vsub.f32 %v3212, %v860
    %v3229 = vsub.f32 %v3213, %v864
    %v3230 = vsub.f32 %v3214, %v868
    %v3231 = vsub.f32 %v3215, %v872
    %v3232 = vsub.f32 %v3216, %v876
    %v3233 = vsub.f32 %v3217, %v880
    %v3234 = vsub.f32 %v3218, %v884
    %v3235 = vsub.f32 %v3219, %v888
    %v3236 = vsub.f32 %v3220, %v892
    %v3237 = vsub.f32 %v3221, %v896
    %v3238 = vsub.f32 %v3222, %v900
    %3239 = vset.pattern.permute.xlu0 3
    %3240 = vperm.xlu0 %3239, %v1088
    %v3241 = vpop.permute.xlu0 %3240
    %3243 = vset.pattern.permute.xlu0 3
    %3244 = vperm.xlu0 %3243, %v1098
    %v3245 = vpop.permute.xlu0 %3244
    %3247 = vset.pattern.permute.xlu0 3
    %3248 = vperm.xlu0 %3247, %v1108
    %v3249 = vpop.permute.xlu0 %3248
    %3251 = vset.pattern.permute.xlu0 3
    %3252 = vperm.xlu0 %3251, %v1118
    %v3253 = vpop.permute.xlu0 %3252
    %3255 = vset.pattern.permute.xlu0 3
    %3256 = vperm.xlu0 %3255, %v1128
    %v3257 = vpop.permute.xlu0 %3256
    %3259 = vset.pattern.permute.xlu0 3
    %3260 = vperm.xlu0 %3259, %v1138
    %v3261 = vpop.permute.xlu0 %3260
    %3263 = vset.pattern.permute.xlu0 3
    %3264 = vperm.xlu0 %3263, %v1148
    %v3265 = vpop.permute.xlu0 %3264
    %3267 = vset.pattern.permute.xlu0 3
    %3268 = vperm.xlu0 %3267, %v1158
    %v3269 = vpop.permute.xlu0 %3268
    %3271 = vset.pattern.permute.xlu0 3
    %3272 = vperm.xlu0 %3271, %v1168
    %v3273 = vpop.permute.xlu0 %3272
    %3275 = vset.pattern.permute.xlu0 3
    %3276 = vperm.xlu0 %3275, %v1178
    %v3277 = vpop.permute.xlu0 %3276
    %3279 = vset.pattern.permute.xlu0 3
    %3280 = vperm.xlu0 %3279, %v1188
    %v3281 = vpop.permute.xlu0 %3280
    %3283 = vset.pattern.permute.xlu0 3
    %3284 = vperm.xlu0 %3283, %v1198
    %v3285 = vpop.permute.xlu0 %3284
    %3287 = vset.pattern.permute.xlu0 3
    %3288 = vperm.xlu0 %3287, %v1208
    %v3289 = vpop.permute.xlu0 %3288
    %3291 = vset.pattern.permute.xlu0 3
    %3292 = vperm.xlu0 %3291, %v1218
    %v3293 = vpop.permute.xlu0 %3292
    %3295 = vset.pattern.permute.xlu0 3
    %3296 = vperm.xlu0 %3295, %v1228
    %v3297 = vpop.permute.xlu0 %3296
    %3299 = vset.pattern.permute.xlu0 3
    %3300 = vperm.xlu0 %3299, %v1238
    %v3301 = vpop.permute.xlu0 %3300
    %v3303 = vmul.f32 %v3223, %v3241
    %v3304 = vmul.f32 %v3224, %v3245
    %v3305 = vmul.f32 %v3225, %v3249
    %v3306 = vmul.f32 %v3226, %v3253
    %v3307 = vmul.f32 %v3227, %v3257
    %v3308 = vmul.f32 %v3228, %v3261
    %v3309 = vmul.f32 %v3229, %v3265
    %v3310 = vmul.f32 %v3230, %v3269
    %v3311 = vmul.f32 %v3231, %v3273
    %v3312 = vmul.f32 %v3232, %v3277
    %v3313 = vmul.f32 %v3233, %v3281
    %v3314 = vmul.f32 %v3234, %v3285
    %v3315 = vmul.f32 %v3235, %v3289
    %v3316 = vmul.f32 %v3236, %v3293
    %v3317 = vmul.f32 %v3237, %v3297
    %v3318 = vmul.f32 %v3238, %v3301
    %v3319 = vmul.f32 %v3303, %v1338
    %v3320 = vmul.f32 %v3304, %v1343
    %v3321 = vmul.f32 %v3305, %v1348
    %v3322 = vmul.f32 %v3306, %v1353
    %v3323 = vmul.f32 %v3307, %v1358
    %v3324 = vmul.f32 %v3308, %v1363
    %v3325 = vmul.f32 %v3309, %v1368
    %v3326 = vmul.f32 %v3310, %v1373
    %v3327 = vmul.f32 %v3311, %v1378
    %v3328 = vmul.f32 %v3312, %v1383
    %v3329 = vmul.f32 %v3313, %v1388
    %v3330 = vmul.f32 %v3314, %v1393
    %v3331 = vmul.f32 %v3315, %v1398
    %v3332 = vmul.f32 %v3316, %v1403
    %v3333 = vmul.f32 %v3317, %v1408
    %v3334 = vmul.f32 %v3318, %v1413
    %v3335 = vadd.f32 %v3319, %v1434
    %v3336 = vadd.f32 %v3320, %v1439
    %v3337 = vadd.f32 %v3321, %v1444
    %v3338 = vadd.f32 %v3322, %v1449
    %v3339 = vadd.f32 %v3323, %v1454
    %v3340 = vadd.f32 %v3324, %v1459
    %v3341 = vadd.f32 %v3325, %v1464
    %v3342 = vadd.f32 %v3326, %v1469
    %v3343 = vadd.f32 %v3327, %v1474
    %v3344 = vadd.f32 %v3328, %v1479
    %v3345 = vadd.f32 %v3329, %v1484
    %v3346 = vadd.f32 %v3330, %v1489
    %v3347 = vadd.f32 %v3331, %v1494
    %v3348 = vadd.f32 %v3332, %v1499
    %v3349 = vadd.f32 %v3333, %v1504
    %v3350 = vadd.f32 %v3334, %v1509
    %v3351 = vxor.u32 %v3335, 2147483648
    %v3352 = vxor.u32 %v3336, 2147483648
    %v3353 = vxor.u32 %v3337, 2147483648
    %v3354 = vxor.u32 %v3338, 2147483648
    %v3355 = vxor.u32 %v3339, 2147483648
    %v3356 = vxor.u32 %v3340, 2147483648
    %v3357 = vxor.u32 %v3341, 2147483648
    %v3358 = vxor.u32 %v3342, 2147483648
    %v3359 = vxor.u32 %v3343, 2147483648
    %v3360 = vxor.u32 %v3344, 2147483648
    %v3361 = vxor.u32 %v3345, 2147483648
    %v3362 = vxor.u32 %v3346, 2147483648
    %v3363 = vxor.u32 %v3347, 2147483648
    %v3364 = vxor.u32 %v3348, 2147483648
    %v3365 = vxor.u32 %v3349, 2147483648
    %v3366 = vxor.u32 %v3350, 2147483648
    %v3367 = vmul.f32 %v3351, 1.442695
    %v3368 = vpow.pop %v3367
    %v3369 = vmul.f32 %v3352, 1.442695
    %v3370 = vpow.pop %v3369
    %v3371 = vmul.f32 %v3353, 1.442695
    %v3372 = vpow.pop %v3371
    %v3373 = vmul.f32 %v3354, 1.442695
    %v3374 = vpow.pop %v3373
    %v3375 = vmul.f32 %v3355, 1.442695
    %v3376 = vpow.pop %v3375
    %v3377 = vmul.f32 %v3356, 1.442695
    %v3378 = vpow.pop %v3377
    %v3379 = vmul.f32 %v3357, 1.442695
    %v3380 = vpow.pop %v3379
    %v3381 = vmul.f32 %v3358, 1.442695
    %v3382 = vpow.pop %v3381
    %v3383 = vmul.f32 %v3359, 1.442695
    %v3384 = vpow.pop %v3383
    %v3385 = vmul.f32 %v3360, 1.442695
    %v3386 = vpow.pop %v3385
    %v3387 = vmul.f32 %v3361, 1.442695
    %v3388 = vpow.pop %v3387
    %v3389 = vmul.f32 %v3362, 1.442695
    %v3390 = vpow.pop %v3389
    %v3391 = vmul.f32 %v3363, 1.442695
    %v3392 = vpow.pop %v3391
    %v3393 = vmul.f32 %v3364, 1.442695
    %v3394 = vpow.pop %v3393
    %v3395 = vmul.f32 %v3365, 1.442695
    %v3396 = vpow.pop %v3395
    %v3397 = vmul.f32 %v3366, 1.442695
    %v3398 = vpow.pop %v3397
    %v3399 = vadd.f32 %v3368, 1.0
    %v3400 = vadd.f32 %v3370, 1.0
    %v3401 = vadd.f32 %v3372, 1.0
    %v3402 = vadd.f32 %v3374, 1.0
    %v3403 = vadd.f32 %v3376, 1.0
    %v3404 = vadd.f32 %v3378, 1.0
    %v3405 = vadd.f32 %v3380, 1.0
    %v3406 = vadd.f32 %v3382, 1.0
    %v3407 = vadd.f32 %v3384, 1.0
    %v3408 = vadd.f32 %v3386, 1.0
    %v3409 = vadd.f32 %v3388, 1.0
    %v3410 = vadd.f32 %v3390, 1.0
    %v3411 = vadd.f32 %v3392, 1.0
    %v3412 = vadd.f32 %v3394, 1.0
    %v3413 = vadd.f32 %v3396, 1.0
    %v3414 = vadd.f32 %v3398, 1.0
    %v3415 = vrcp.pop %v3399
    %v3416 = vmul.f32 %v3399, %v3415
    %v3417 = vsub.f32 1.0, %v3416
    %v3418 = vmul.f32 %v3415, %v3417
    %v3419 = vadd.f32 %v3415, %v3418
    %vm3420 = vweird.f32 %v3399
    %vm3421 = vweird.f32 %v3415
    %vm3422 = vmor %vm3420, %vm3421
    %v3423 = vsel %vm3422, %v3415, %v3419
    %v3424 = vand.u32 2147483647, %v3399
    %vm3425 = vcmp.eq.f32.partialorder %v3424, 8.507059e+37
    %v3426 = vand.u32 %v3399, 2147483648
    %v3427 = vor.u32 1.1754944e-38, %v3426
    %v3428 = vsel %vm3425, %v3427, %v3423
    %v3429 = vmul.f32 1.0, %v3428
    %v3430 = vrcp.pop %v3400
    %v3431 = vmul.f32 %v3400, %v3430
    %v3432 = vsub.f32 1.0, %v3431
    %v3433 = vmul.f32 %v3430, %v3432
    %v3434 = vadd.f32 %v3430, %v3433
    %vm3435 = vweird.f32 %v3400
    %vm3436 = vweird.f32 %v3430
    %vm3437 = vmor %vm3435, %vm3436
    %v3438 = vsel %vm3437, %v3430, %v3434
    %v3439 = vand.u32 2147483647, %v3400
    %vm3440 = vcmp.eq.f32.partialorder %v3439, 8.507059e+37
    %v3441 = vand.u32 %v3400, 2147483648
    %v3442 = vor.u32 1.1754944e-38, %v3441
    %v3443 = vsel %vm3440, %v3442, %v3438
    %v3444 = vmul.f32 1.0, %v3443
    %v3445 = vrcp.pop %v3401
    %v3446 = vmul.f32 %v3401, %v3445
    %v3447 = vsub.f32 1.0, %v3446
    %v3448 = vmul.f32 %v3445, %v3447
    %v3449 = vadd.f32 %v3445, %v3448
    %vm3450 = vweird.f32 %v3401
    %vm3451 = vweird.f32 %v3445
    %vm3452 = vmor %vm3450, %vm3451
    %v3453 = vsel %vm3452, %v3445, %v3449
    %v3454 = vand.u32 2147483647, %v3401
    %vm3455 = vcmp.eq.f32.partialorder %v3454, 8.507059e+37
    %v3456 = vand.u32 %v3401, 2147483648
    %v3457 = vor.u32 1.1754944e-38, %v3456
    %v3458 = vsel %vm3455, %v3457, %v3453
    %v3459 = vmul.f32 1.0, %v3458
    %v3460 = vrcp.pop %v3402
    %v3461 = vmul.f32 %v3402, %v3460
    %v3462 = vsub.f32 1.0, %v3461
    %v3463 = vmul.f32 %v3460, %v3462
    %v3464 = vadd.f32 %v3460, %v3463
    %vm3465 = vweird.f32 %v3402
    %vm3466 = vweird.f32 %v3460
    %vm3467 = vmor %vm3465, %vm3466
    %v3468 = vsel %vm3467, %v3460, %v3464
    %v3469 = vand.u32 2147483647, %v3402
    %vm3470 = vcmp.eq.f32.partialorder %v3469, 8.507059e+37
    %v3471 = vand.u32 %v3402, 2147483648
    %v3472 = vor.u32 1.1754944e-38, %v3471
    %v3473 = vsel %vm3470, %v3472, %v3468
    %v3474 = vmul.f32 1.0, %v3473
    %v3475 = vrcp.pop %v3403
    %v3476 = vmul.f32 %v3403, %v3475
    %v3477 = vsub.f32 1.0, %v3476
    %v3478 = vmul.f32 %v3475, %v3477
    %v3479 = vadd.f32 %v3475, %v3478
    %vm3480 = vweird.f32 %v3403
    %vm3481 = vweird.f32 %v3475
    %vm3482 = vmor %vm3480, %vm3481
    %v3483 = vsel %vm3482, %v3475, %v3479
    %v3484 = vand.u32 2147483647, %v3403
    %vm3485 = vcmp.eq.f32.partialorder %v3484, 8.507059e+37
    %v3486 = vand.u32 %v3403, 2147483648
    %v3487 = vor.u32 1.1754944e-38, %v3486
    %v3488 = vsel %vm3485, %v3487, %v3483
    %v3489 = vmul.f32 1.0, %v3488
    %v3490 = vrcp.pop %v3404
    %v3491 = vmul.f32 %v3404, %v3490
    %v3492 = vsub.f32 1.0, %v3491
    %v3493 = vmul.f32 %v3490, %v3492
    %v3494 = vadd.f32 %v3490, %v3493
    %vm3495 = vweird.f32 %v3404
    %vm3496 = vweird.f32 %v3490
    %vm3497 = vmor %vm3495, %vm3496
    %v3498 = vsel %vm3497, %v3490, %v3494
    %v3499 = vand.u32 2147483647, %v3404
    %vm3500 = vcmp.eq.f32.partialorder %v3499, 8.507059e+37
    %v3501 = vand.u32 %v3404, 2147483648
    %v3502 = vor.u32 1.1754944e-38, %v3501
    %v3503 = vsel %vm3500, %v3502, %v3498
    %v3504 = vmul.f32 1.0, %v3503
    %v3505 = vrcp.pop %v3405
    %v3506 = vmul.f32 %v3405, %v3505
    %v3507 = vsub.f32 1.0, %v3506
    %v3508 = vmul.f32 %v3505, %v3507
    %v3509 = vadd.f32 %v3505, %v3508
    %vm3510 = vweird.f32 %v3405
    %vm3511 = vweird.f32 %v3505
    %vm3512 = vmor %vm3510, %vm3511
    %v3513 = vsel %vm3512, %v3505, %v3509
    %v3514 = vand.u32 2147483647, %v3405
    %vm3515 = vcmp.eq.f32.partialorder %v3514, 8.507059e+37
    %v3516 = vand.u32 %v3405, 2147483648
    %v3517 = vor.u32 1.1754944e-38, %v3516
    %v3518 = vsel %vm3515, %v3517, %v3513
    %v3519 = vmul.f32 1.0, %v3518
    %v3520 = vrcp.pop %v3406
    %v3521 = vmul.f32 %v3406, %v3520
    %v3522 = vsub.f32 1.0, %v3521
    %v3523 = vmul.f32 %v3520, %v3522
    %v3524 = vadd.f32 %v3520, %v3523
    %vm3525 = vweird.f32 %v3406
    %vm3526 = vweird.f32 %v3520
    %vm3527 = vmor %vm3525, %vm3526
    %v3528 = vsel %vm3527, %v3520, %v3524
    %v3529 = vand.u32 2147483647, %v3406
    %vm3530 = vcmp.eq.f32.partialorder %v3529, 8.507059e+37
    %v3531 = vand.u32 %v3406, 2147483648
    %v3532 = vor.u32 1.1754944e-38, %v3531
    %v3533 = vsel %vm3530, %v3532, %v3528
    %v3534 = vmul.f32 1.0, %v3533
    %v3535 = vrcp.pop %v3407
    %v3536 = vmul.f32 %v3407, %v3535
    %v3537 = vsub.f32 1.0, %v3536
    %v3538 = vmul.f32 %v3535, %v3537
    %v3539 = vadd.f32 %v3535, %v3538
    %vm3540 = vweird.f32 %v3407
    %vm3541 = vweird.f32 %v3535
    %vm3542 = vmor %vm3540, %vm3541
    %v3543 = vsel %vm3542, %v3535, %v3539
    %v3544 = vand.u32 2147483647, %v3407
    %vm3545 = vcmp.eq.f32.partialorder %v3544, 8.507059e+37
    %v3546 = vand.u32 %v3407, 2147483648
    %v3547 = vor.u32 1.1754944e-38, %v3546
    %v3548 = vsel %vm3545, %v3547, %v3543
    %v3549 = vmul.f32 1.0, %v3548
    %v3550 = vrcp.pop %v3408
    %v3551 = vmul.f32 %v3408, %v3550
    %v3552 = vsub.f32 1.0, %v3551
    %v3553 = vmul.f32 %v3550, %v3552
    %v3554 = vadd.f32 %v3550, %v3553
    %vm3555 = vweird.f32 %v3408
    %vm3556 = vweird.f32 %v3550
    %vm3557 = vmor %vm3555, %vm3556
    %v3558 = vsel %vm3557, %v3550, %v3554
    %v3559 = vand.u32 2147483647, %v3408
    %vm3560 = vcmp.eq.f32.partialorder %v3559, 8.507059e+37
    %v3561 = vand.u32 %v3408, 2147483648
    %v3562 = vor.u32 1.1754944e-38, %v3561
    %v3563 = vsel %vm3560, %v3562, %v3558
    %v3564 = vmul.f32 1.0, %v3563
    %v3565 = vrcp.pop %v3409
    %v3566 = vmul.f32 %v3409, %v3565
    %v3567 = vsub.f32 1.0, %v3566
    %v3568 = vmul.f32 %v3565, %v3567
    %v3569 = vadd.f32 %v3565, %v3568
    %vm3570 = vweird.f32 %v3409
    %vm3571 = vweird.f32 %v3565
    %vm3572 = vmor %vm3570, %vm3571
    %v3573 = vsel %vm3572, %v3565, %v3569
    %v3574 = vand.u32 2147483647, %v3409
    %vm3575 = vcmp.eq.f32.partialorder %v3574, 8.507059e+37
    %v3576 = vand.u32 %v3409, 2147483648
    %v3577 = vor.u32 1.1754944e-38, %v3576
    %v3578 = vsel %vm3575, %v3577, %v3573
    %v3579 = vmul.f32 1.0, %v3578
    %v3580 = vrcp.pop %v3410
    %v3581 = vmul.f32 %v3410, %v3580
    %v3582 = vsub.f32 1.0, %v3581
    %v3583 = vmul.f32 %v3580, %v3582
    %v3584 = vadd.f32 %v3580, %v3583
    %vm3585 = vweird.f32 %v3410
    %vm3586 = vweird.f32 %v3580
    %vm3587 = vmor %vm3585, %vm3586
    %v3588 = vsel %vm3587, %v3580, %v3584
    %v3589 = vand.u32 2147483647, %v3410
    %vm3590 = vcmp.eq.f32.partialorder %v3589, 8.507059e+37
    %v3591 = vand.u32 %v3410, 2147483648
    %v3592 = vor.u32 1.1754944e-38, %v3591
    %v3593 = vsel %vm3590, %v3592, %v3588
    %v3594 = vmul.f32 1.0, %v3593
    %v3595 = vrcp.pop %v3411
    %v3596 = vmul.f32 %v3411, %v3595
    %v3597 = vsub.f32 1.0, %v3596
    %v3598 = vmul.f32 %v3595, %v3597
    %v3599 = vadd.f32 %v3595, %v3598
    %vm3600 = vweird.f32 %v3411
    %vm3601 = vweird.f32 %v3595
    %vm3602 = vmor %vm3600, %vm3601
    %v3603 = vsel %vm3602, %v3595, %v3599
    %v3604 = vand.u32 2147483647, %v3411
    %vm3605 = vcmp.eq.f32.partialorder %v3604, 8.507059e+37
    %v3606 = vand.u32 %v3411, 2147483648
    %v3607 = vor.u32 1.1754944e-38, %v3606
    %v3608 = vsel %vm3605, %v3607, %v3603
    %v3609 = vmul.f32 1.0, %v3608
    %v3610 = vrcp.pop %v3412
    %v3611 = vmul.f32 %v3412, %v3610
    %v3612 = vsub.f32 1.0, %v3611
    %v3613 = vmul.f32 %v3610, %v3612
    %v3614 = vadd.f32 %v3610, %v3613
    %vm3615 = vweird.f32 %v3412
    %vm3616 = vweird.f32 %v3610
    %vm3617 = vmor %vm3615, %vm3616
    %v3618 = vsel %vm3617, %v3610, %v3614
    %v3619 = vand.u32 2147483647, %v3412
    %vm3620 = vcmp.eq.f32.partialorder %v3619, 8.507059e+37
    %v3621 = vand.u32 %v3412, 2147483648
    %v3622 = vor.u32 1.1754944e-38, %v3621
    %v3623 = vsel %vm3620, %v3622, %v3618
    %v3624 = vmul.f32 1.0, %v3623
    %v3625 = vrcp.pop %v3413
    %v3626 = vmul.f32 %v3413, %v3625
    %v3627 = vsub.f32 1.0, %v3626
    %v3628 = vmul.f32 %v3625, %v3627
    %v3629 = vadd.f32 %v3625, %v3628
    %vm3630 = vweird.f32 %v3413
    %vm3631 = vweird.f32 %v3625
    %vm3632 = vmor %vm3630, %vm3631
    %v3633 = vsel %vm3632, %v3625, %v3629
    %v3634 = vand.u32 2147483647, %v3413
    %vm3635 = vcmp.eq.f32.partialorder %v3634, 8.507059e+37
    %v3636 = vand.u32 %v3413, 2147483648
    %v3637 = vor.u32 1.1754944e-38, %v3636
    %v3638 = vsel %vm3635, %v3637, %v3633
    %v3639 = vmul.f32 1.0, %v3638
    %v3640 = vrcp.pop %v3414
    %v3641 = vmul.f32 %v3414, %v3640
    %v3642 = vsub.f32 1.0, %v3641
    %v3643 = vmul.f32 %v3640, %v3642
    %v3644 = vadd.f32 %v3640, %v3643
    %vm3645 = vweird.f32 %v3414
    %vm3646 = vweird.f32 %v3640
    %vm3647 = vmor %vm3645, %vm3646
    %v3648 = vsel %vm3647, %v3640, %v3644
    %v3649 = vand.u32 2147483647, %v3414
    %vm3650 = vcmp.eq.f32.partialorder %v3649, 8.507059e+37
    %v3651 = vand.u32 %v3414, 2147483648
    %v3652 = vor.u32 1.1754944e-38, %v3651
    %v3653 = vsel %vm3650, %v3652, %v3648
    %v3654 = vmul.f32 1.0, %v3653
    %v3655 = vmul.f32 %v3335, %v3429
    %v3656 = vmul.f32 %v3336, %v3444
    %v3657 = vmul.f32 %v3337, %v3459
    %v3658 = vmul.f32 %v3338, %v3474
    %v3659 = vmul.f32 %v3339, %v3489
    %v3660 = vmul.f32 %v3340, %v3504
    %v3661 = vmul.f32 %v3341, %v3519
    %v3662 = vmul.f32 %v3342, %v3534
    %v3663 = vmul.f32 %v3343, %v3549
    %v3664 = vmul.f32 %v3344, %v3564
    %v3665 = vmul.f32 %v3345, %v3579
    %v3666 = vmul.f32 %v3346, %v3594
    %v3667 = vmul.f32 %v3347, %v3609
    %v3668 = vmul.f32 %v3348, %v3624
    %v3669 = vmul.f32 %v3349, %v3639
    %v3670 = vmul.f32 %v3350, %v3654
    %3671 = vrot.lane.b32.xlu0 %v3655, 1
    %v3672 = vpop.permute.xlu0 %3671
    %3673 = vrot.lane.b32.xlu0 %v3656, 1
    %v3674 = vpop.permute.xlu0 %3673
    %3675 = vrot.lane.b32.xlu0 %v3657, 1
    %v3676 = vpop.permute.xlu0 %3675
    %3677 = vrot.lane.b32.xlu0 %v3658, 1
    %v3678 = vpop.permute.xlu0 %3677
    %3679 = vrot.lane.b32.xlu0 %v3659, 1
    %v3680 = vpop.permute.xlu0 %3679
    %3681 = vrot.lane.b32.xlu0 %v3660, 1
    %v3682 = vpop.permute.xlu0 %3681
    %3683 = vrot.lane.b32.xlu0 %v3661, 1
    %v3684 = vpop.permute.xlu0 %3683
    %3685 = vrot.lane.b32.xlu0 %v3662, 1
    %v3686 = vpop.permute.xlu0 %3685
    %3687 = vrot.lane.b32.xlu0 %v3663, 1
    %v3688 = vpop.permute.xlu0 %3687
    %3689 = vrot.lane.b32.xlu0 %v3664, 1
    %v3690 = vpop.permute.xlu0 %3689
    %3691 = vrot.lane.b32.xlu0 %v3665, 1
    %v3692 = vpop.permute.xlu0 %3691
    %3693 = vrot.lane.b32.xlu0 %v3666, 1
    %v3694 = vpop.permute.xlu0 %3693
    %3695 = vrot.lane.b32.xlu0 %v3667, 1
    %v3696 = vpop.permute.xlu0 %3695
    %3697 = vrot.lane.b32.xlu0 %v3668, 1
    %v3698 = vpop.permute.xlu0 %3697
    %3699 = vrot.lane.b32.xlu0 %v3669, 1
    %v3700 = vpop.permute.xlu0 %3699
    %3701 = vrot.lane.b32.xlu0 %v3670, 1
    %v3702 = vpop.permute.xlu0 %3701
    %v3703 = vmul.f32 %v3672, %v75
    %v3704 = vmul.f32 %v3674, %v75
    %v3705 = vmul.f32 %v3676, %v75
    %v3706 = vmul.f32 %v3678, %v75
    %v3707 = vmul.f32 %v3680, %v75
    %v3708 = vmul.f32 %v3682, %v75
    %v3709 = vmul.f32 %v3684, %v75
    %v3710 = vmul.f32 %v3686, %v75
    %v3711 = vmul.f32 %v3688, %v75
    %v3712 = vmul.f32 %v3690, %v75
    %v3713 = vmul.f32 %v3692, %v75
    %v3714 = vmul.f32 %v3694, %v75
    %v3715 = vmul.f32 %v3696, %v75
    %v3716 = vmul.f32 %v3698, %v75
    %v3717 = vmul.f32 %v3700, %v75
    %v3718 = vmul.f32 %v3702, %v75
    %3719 = vrot.lane.b32.xlu0 %v3655, 127
    %v3720 = vpop.permute.xlu0 %3719
    %3721 = vrot.lane.b32.xlu0 %v3656, 127
    %v3722 = vpop.permute.xlu0 %3721
    %3723 = vrot.lane.b32.xlu0 %v3657, 127
    %v3724 = vpop.permute.xlu0 %3723
    %3725 = vrot.lane.b32.xlu0 %v3658, 127
    %v3726 = vpop.permute.xlu0 %3725
    %3727 = vrot.lane.b32.xlu0 %v3659, 127
    %v3728 = vpop.permute.xlu0 %3727
    %3729 = vrot.lane.b32.xlu0 %v3660, 127
    %v3730 = vpop.permute.xlu0 %3729
    %3731 = vrot.lane.b32.xlu0 %v3661, 127
    %v3732 = vpop.permute.xlu0 %3731
    %3733 = vrot.lane.b32.xlu0 %v3662, 127
    %v3734 = vpop.permute.xlu0 %3733
    %3735 = vrot.lane.b32.xlu0 %v3663, 127
    %v3736 = vpop.permute.xlu0 %3735
    %3737 = vrot.lane.b32.xlu0 %v3664, 127
    %v3738 = vpop.permute.xlu0 %3737
    %3739 = vrot.lane.b32.xlu0 %v3665, 127
    %v3740 = vpop.permute.xlu0 %3739
    %3741 = vrot.lane.b32.xlu0 %v3666, 127
    %v3742 = vpop.permute.xlu0 %3741
    %3743 = vrot.lane.b32.xlu0 %v3667, 127
    %v3744 = vpop.permute.xlu0 %3743
    %3745 = vrot.lane.b32.xlu0 %v3668, 127
    %v3746 = vpop.permute.xlu0 %3745
    %3747 = vrot.lane.b32.xlu0 %v3669, 127
    %v3748 = vpop.permute.xlu0 %3747
    %3749 = vrot.lane.b32.xlu0 %v3670, 127
    %v3750 = vpop.permute.xlu0 %3749
    %v3751 = vmul.f32 %v3720, %v78
    %v3752 = vmul.f32 %v3722, %v78
    %v3753 = vmul.f32 %v3724, %v78
    %v3754 = vmul.f32 %v3726, %v78
    %v3755 = vmul.f32 %v3728, %v78
    %v3756 = vmul.f32 %v3730, %v78
    %v3757 = vmul.f32 %v3732, %v78
    %v3758 = vmul.f32 %v3734, %v78
    %v3759 = vmul.f32 %v3736, %v78
    %v3760 = vmul.f32 %v3738, %v78
    %v3761 = vmul.f32 %v3740, %v78
    %v3762 = vmul.f32 %v3742, %v78
    %v3763 = vmul.f32 %v3744, %v78
    %v3764 = vmul.f32 %v3746, %v78
    %v3765 = vmul.f32 %v3748, %v78
    %v3766 = vmul.f32 %v3750, %v78
    %3767 = vst [vmem:[#allocation2 + $0x18] sm:$0xff] %v3703
    %3768 = vst [vmem:[#allocation2 + $0x38] sm:$0xff] %v3704
    %3769 = vst [vmem:[#allocation2 + $0x58] sm:$0xff] %v3705
    %3770 = vst [vmem:[#allocation2 + $0x78] sm:$0xff] %v3706
    %3771 = vst [vmem:[#allocation2 + $0x98] sm:$0xff] %v3707
    %3772 = vst [vmem:[#allocation2 + $0xb8] sm:$0xff] %v3708
    %3773 = vst [vmem:[#allocation2 + $0xd8] sm:$0xff] %v3709
    %3774 = vst [vmem:[#allocation2 + $0xf8] sm:$0xff] %v3710
    %3775 = vst [vmem:[#allocation2 + $0x118] sm:$0xff] %v3711
    %3776 = vst [vmem:[#allocation2 + $0x138] sm:$0xff] %v3712
    %3777 = vst [vmem:[#allocation2 + $0x158] sm:$0xff] %v3713
    %3778 = vst [vmem:[#allocation2 + $0x178] sm:$0xff] %v3714
    %3779 = vst [vmem:[#allocation2 + $0x198] sm:$0xff] %v3715
    %3780 = vst [vmem:[#allocation2 + $0x1b8] sm:$0xff] %v3716
    %3781 = vst [vmem:[#allocation2 + $0x1d8] sm:$0xff] %v3717
    %3782 = vst [vmem:[#allocation2 + $0x1f8] sm:$0xff] %v3718
    %3783 = vst [vmem:[#allocation2 + $0x218] sm:$0xff] %v3655
    %3784 = vst [vmem:[#allocation2 + $0x238] sm:$0xff] %v3656
    %3785 = vst [vmem:[#allocation2 + $0x258] sm:$0xff] %v3657
    %3786 = vst [vmem:[#allocation2 + $0x278] sm:$0xff] %v3658
    %3787 = vst [vmem:[#allocation2 + $0x298] sm:$0xff] %v3659
    %3788 = vst [vmem:[#allocation2 + $0x2b8] sm:$0xff] %v3660
    %3789 = vst [vmem:[#allocation2 + $0x2d8] sm:$0xff] %v3661
    %3790 = vst [vmem:[#allocation2 + $0x2f8] sm:$0xff] %v3662
    %3791 = vst [vmem:[#allocation2 + $0x318] sm:$0xff] %v3663
    %3792 = vst [vmem:[#allocation2 + $0x338] sm:$0xff] %v3664
    %3793 = vst [vmem:[#allocation2 + $0x358] sm:$0xff] %v3665
    %3794 = vst [vmem:[#allocation2 + $0x378] sm:$0xff] %v3666
    %3795 = vst [vmem:[#allocation2 + $0x398] sm:$0xff] %v3667
    %3796 = vst [vmem:[#allocation2 + $0x3b8] sm:$0xff] %v3668
    %3797 = vst [vmem:[#allocation2 + $0x3d8] sm:$0xff] %v3669
    %3798 = vst [vmem:[#allocation2 + $0x3f8] sm:$0xff] %v3670
    %3799 = vst [vmem:[#allocation2 + $0x418] sm:$0xff] %v3751
    %3800 = vst [vmem:[#allocation2 + $0x438] sm:$0xff] %v3752
    %3801 = vst [vmem:[#allocation2 + $0x458] sm:$0xff] %v3753
    %3802 = vst [vmem:[#allocation2 + $0x478] sm:$0xff] %v3754
    %3803 = vst [vmem:[#allocation2 + $0x498] sm:$0xff] %v3755
    %3804 = vst [vmem:[#allocation2 + $0x4b8] sm:$0xff] %v3756
    %3805 = vst [vmem:[#allocation2 + $0x4d8] sm:$0xff] %v3757
    %3806 = vst [vmem:[#allocation2 + $0x4f8] sm:$0xff] %v3758
    %3807 = vst [vmem:[#allocation2 + $0x518] sm:$0xff] %v3759
    %3808 = vst [vmem:[#allocation2 + $0x538] sm:$0xff] %v3760
    %3809 = vst [vmem:[#allocation2 + $0x558] sm:$0xff] %v3761
    %3810 = vst [vmem:[#allocation2 + $0x578] sm:$0xff] %v3762
    %3811 = vst [vmem:[#allocation2 + $0x598] sm:$0xff] %v3763
    %3812 = vst [vmem:[#allocation2 + $0x5b8] sm:$0xff] %v3764
    %3813 = vst [vmem:[#allocation2 + $0x5d8] sm:$0xff] %v3765
    %3814 = vst [vmem:[#allocation2 + $0x5f8] sm:$0xff] %v3766
    %v3815 = vld [vmem:[#allocation4] sm:$0xff]
    %v3816 = vld [vmem:[#allocation4 + $0x8] sm:$0xff]
    %v3817 = vld [vmem:[#allocation4 + $0x10] sm:$0xff]
    %v3818 = vld [vmem:[#allocation4 + $0x18] sm:$0xff]
    %v3819 = vld [vmem:[#allocation4 + $0x20] sm:$0xff]
    %v3820 = vld [vmem:[#allocation4 + $0x28] sm:$0xff]
    %v3821 = vld [vmem:[#allocation4 + $0x30] sm:$0xff]
    %v3822 = vld [vmem:[#allocation4 + $0x38] sm:$0xff]
    %v3823 = vld [vmem:[#allocation4 + $0x40] sm:$0xff]
    %v3824 = vld [vmem:[#allocation4 + $0x48] sm:$0xff]
    %v3825 = vld [vmem:[#allocation4 + $0x50] sm:$0xff]
    %v3826 = vld [vmem:[#allocation4 + $0x58] sm:$0xff]
    %v3827 = vld [vmem:[#allocation4 + $0x60] sm:$0xff]
    %v3828 = vld [vmem:[#allocation4 + $0x68] sm:$0xff]
    %v3829 = vld [vmem:[#allocation4 + $0x70] sm:$0xff]
    %v3830 = vld [vmem:[#allocation4 + $0x78] sm:$0xff]
    %v3831 = vld [vmem:[#allocation4 + $0x80] sm:$0xff]
    %v3832 = vld [vmem:[#allocation4 + $0x88] sm:$0xff]
    %v3833 = vld [vmem:[#allocation4 + $0x90] sm:$0xff]
    %v3834 = vld [vmem:[#allocation4 + $0x98] sm:$0xff]
    %v3835 = vld [vmem:[#allocation4 + $0xa0] sm:$0xff]
    %v3836 = vld [vmem:[#allocation4 + $0xa8] sm:$0xff]
    %v3837 = vld [vmem:[#allocation4 + $0xb0] sm:$0xff]
    %v3838 = vld [vmem:[#allocation4 + $0xb8] sm:$0xff]
    %v3839 = vld [vmem:[#allocation4 + $0xc0] sm:$0xff]
    %v3840 = vld [vmem:[#allocation4 + $0xc8] sm:$0xff]
    %v3841 = vld [vmem:[#allocation4 + $0xd0] sm:$0xff]
    %v3842 = vld [vmem:[#allocation4 + $0xd8] sm:$0xff]
    %v3843 = vld [vmem:[#allocation4 + $0xe0] sm:$0xff]
    %v3844 = vld [vmem:[#allocation4 + $0xe8] sm:$0xff]
    %v3845 = vld [vmem:[#allocation4 + $0xf0] sm:$0xff]
    %v3846 = vld [vmem:[#allocation4 + $0xf8] sm:$0xff]
    %v3847 = vld [vmem:[#allocation4 + $0x100] sm:$0xff]
    %v3848 = vld [vmem:[#allocation4 + $0x108] sm:$0xff]
    %v3849 = vld [vmem:[#allocation4 + $0x110] sm:$0xff]
    %v3850 = vld [vmem:[#allocation4 + $0x118] sm:$0xff]
    %v3851 = vld [vmem:[#allocation4 + $0x120] sm:$0xff]
    %v3852 = vld [vmem:[#allocation4 + $0x128] sm:$0xff]
    %v3853 = vld [vmem:[#allocation4 + $0x130] sm:$0xff]
    %v3854 = vld [vmem:[#allocation4 + $0x138] sm:$0xff]
    %v3855 = vld [vmem:[#allocation4 + $0x140] sm:$0xff]
    %v3856 = vld [vmem:[#allocation4 + $0x148] sm:$0xff]
    %v3857 = vld [vmem:[#allocation4 + $0x150] sm:$0xff]
    %v3858 = vld [vmem:[#allocation4 + $0x158] sm:$0xff]
    %v3859 = vld [vmem:[#allocation4 + $0x160] sm:$0xff]
    %v3860 = vld [vmem:[#allocation4 + $0x168] sm:$0xff]
    %v3861 = vld [vmem:[#allocation4 + $0x170] sm:$0xff]
    %v3862 = vld [vmem:[#allocation4 + $0x178] sm:$0xff]
    %v3863 = vld [vmem:[#allocation2] sm:$0xff]
    %v3864 = vld [vmem:[#allocation2 + $0x8] sm:$0xff]
    %v3865 = vld [vmem:[#allocation2 + $0x10] sm:$0xff]
    %v3866 = vld [vmem:[#allocation2 + $0x18] sm:$0xff]
    %v3867 = vld [vmem:[#allocation2 + $0x20] sm:$0xff]
    %v3868 = vld [vmem:[#allocation2 + $0x28] sm:$0xff]
    %v3869 = vld [vmem:[#allocation2 + $0x30] sm:$0xff]
    %v3870 = vld [vmem:[#allocation2 + $0x38] sm:$0xff]
    %v3871 = vld [vmem:[#allocation2 + $0x40] sm:$0xff]
    %v3872 = vld [vmem:[#allocation2 + $0x48] sm:$0xff]
    %v3873 = vld [vmem:[#allocation2 + $0x50] sm:$0xff]
    %v3874 = vld [vmem:[#allocation2 + $0x58] sm:$0xff]
    %v3875 = vld [vmem:[#allocation2 + $0x60] sm:$0xff]
    %v3876 = vld [vmem:[#allocation2 + $0x68] sm:$0xff]
    %v3877 = vld [vmem:[#allocation2 + $0x70] sm:$0xff]
    %v3878 = vld [vmem:[#allocation2 + $0x78] sm:$0xff]
    %v3879 = vld [vmem:[#allocation2 + $0x80] sm:$0xff]
    %v3880 = vld [vmem:[#allocation2 + $0x88] sm:$0xff]
    %v3881 = vld [vmem:[#allocation2 + $0x90] sm:$0xff]
    %v3882 = vld [vmem:[#allocation2 + $0x98] sm:$0xff]
    %v3883 = vld [vmem:[#allocation2 + $0xa0] sm:$0xff]
    %v3884 = vld [vmem:[#allocation2 + $0xa8] sm:$0xff]
    %v3885 = vld [vmem:[#allocation2 + $0xb0] sm:$0xff]
    %v3886 = vld [vmem:[#allocation2 + $0xb8] sm:$0xff]
    %v3887 = vld [vmem:[#allocation2 + $0xc0] sm:$0xff]
    %v3888 = vld [vmem:[#allocation2 + $0xc8] sm:$0xff]
    %v3889 = vld [vmem:[#allocation2 + $0xd0] sm:$0xff]
    %v3890 = vld [vmem:[#allocation2 + $0xd8] sm:$0xff]
    %v3891 = vld [vmem:[#allocation2 + $0xe0] sm:$0xff]
    %v3892 = vld [vmem:[#allocation2 + $0xe8] sm:$0xff]
    %v3893 = vld [vmem:[#allocation2 + $0xf0] sm:$0xff]
    %v3894 = vld [vmem:[#allocation2 + $0xf8] sm:$0xff]
    %v3895 = vld [vmem:[#allocation2 + $0x100] sm:$0xff]
    %v3896 = vld [vmem:[#allocation2 + $0x108] sm:$0xff]
    %v3897 = vld [vmem:[#allocation2 + $0x110] sm:$0xff]
    %v3898 = vld [vmem:[#allocation2 + $0x118] sm:$0xff]
    %v3899 = vld [vmem:[#allocation2 + $0x120] sm:$0xff]
    %v3900 = vld [vmem:[#allocation2 + $0x128] sm:$0xff]
    %v3901 = vld [vmem:[#allocation2 + $0x130] sm:$0xff]
    %v3902 = vld [vmem:[#allocation2 + $0x138] sm:$0xff]
    %v3903 = vld [vmem:[#allocation2 + $0x140] sm:$0xff]
    %v3904 = vld [vmem:[#allocation2 + $0x148] sm:$0xff]
    %v3905 = vld [vmem:[#allocation2 + $0x150] sm:$0xff]
    %v3906 = vld [vmem:[#allocation2 + $0x158] sm:$0xff]
    %v3907 = vld [vmem:[#allocation2 + $0x160] sm:$0xff]
    %v3908 = vld [vmem:[#allocation2 + $0x168] sm:$0xff]
    %v3909 = vld [vmem:[#allocation2 + $0x170] sm:$0xff]
    %v3910 = vld [vmem:[#allocation2 + $0x178] sm:$0xff]
    %v3911 = vld [vmem:[#allocation2 + $0x180] sm:$0xff]
    %v3912 = vld [vmem:[#allocation2 + $0x188] sm:$0xff]
    %v3913 = vld [vmem:[#allocation2 + $0x190] sm:$0xff]
    %v3914 = vld [vmem:[#allocation2 + $0x198] sm:$0xff]
    %v3915 = vld [vmem:[#allocation2 + $0x1a0] sm:$0xff]
    %v3916 = vld [vmem:[#allocation2 + $0x1a8] sm:$0xff]
    %v3917 = vld [vmem:[#allocation2 + $0x1b0] sm:$0xff]
    %v3918 = vld [vmem:[#allocation2 + $0x1b8] sm:$0xff]
    %v3919 = vld [vmem:[#allocation2 + $0x1c0] sm:$0xff]
    %v3920 = vld [vmem:[#allocation2 + $0x1c8] sm:$0xff]
    %v3921 = vld [vmem:[#allocation2 + $0x1d0] sm:$0xff]
    %v3922 = vld [vmem:[#allocation2 + $0x1d8] sm:$0xff]
    %v3923 = vld [vmem:[#allocation2 + $0x1e0] sm:$0xff]
    %v3924 = vld [vmem:[#allocation2 + $0x1e8] sm:$0xff]
    %v3925 = vld [vmem:[#allocation2 + $0x1f0] sm:$0xff]
    %v3926 = vld [vmem:[#allocation2 + $0x1f8] sm:$0xff]
    %v3927 = vld [vmem:[#allocation2 + $0x200] sm:$0xff]
    %v3928 = vld [vmem:[#allocation2 + $0x208] sm:$0xff]
    %v3929 = vld [vmem:[#allocation2 + $0x210] sm:$0xff]
    %v3930 = vld [vmem:[#allocation2 + $0x218] sm:$0xff]
    %v3931 = vld [vmem:[#allocation2 + $0x220] sm:$0xff]
    %v3932 = vld [vmem:[#allocation2 + $0x228] sm:$0xff]
    %v3933 = vld [vmem:[#allocation2 + $0x230] sm:$0xff]
    %v3934 = vld [vmem:[#allocation2 + $0x238] sm:$0xff]
    %v3935 = vld [vmem:[#allocation2 + $0x240] sm:$0xff]
    %v3936 = vld [vmem:[#allocation2 + $0x248] sm:$0xff]
    %v3937 = vld [vmem:[#allocation2 + $0x250] sm:$0xff]
    %v3938 = vld [vmem:[#allocation2 + $0x258] sm:$0xff]
    %v3939 = vld [vmem:[#allocation2 + $0x260] sm:$0xff]
    %v3940 = vld [vmem:[#allocation2 + $0x268] sm:$0xff]
    %v3941 = vld [vmem:[#allocation2 + $0x270] sm:$0xff]
    %v3942 = vld [vmem:[#allocation2 + $0x278] sm:$0xff]
    %v3943 = vld [vmem:[#allocation2 + $0x280] sm:$0xff]
    %v3944 = vld [vmem:[#allocation2 + $0x288] sm:$0xff]
    %v3945 = vld [vmem:[#allocation2 + $0x290] sm:$0xff]
    %v3946 = vld [vmem:[#allocation2 + $0x298] sm:$0xff]
    %v3947 = vld [vmem:[#allocation2 + $0x2a0] sm:$0xff]
    %v3948 = vld [vmem:[#allocation2 + $0x2a8] sm:$0xff]
    %v3949 = vld [vmem:[#allocation2 + $0x2b0] sm:$0xff]
    %v3950 = vld [vmem:[#allocation2 + $0x2b8] sm:$0xff]
    %v3951 = vld [vmem:[#allocation2 + $0x2c0] sm:$0xff]
    %v3952 = vld [vmem:[#allocation2 + $0x2c8] sm:$0xff]
    %v3953 = vld [vmem:[#allocation2 + $0x2d0] sm:$0xff]
    %v3954 = vld [vmem:[#allocation2 + $0x2d8] sm:$0xff]
    %v3955 = vld [vmem:[#allocation2 + $0x2e0] sm:$0xff]
    %v3956 = vld [vmem:[#allocation2 + $0x2e8] sm:$0xff]
    %v3957 = vld [vmem:[#allocation2 + $0x2f0] sm:$0xff]
    %v3958 = vld [vmem:[#allocation2 + $0x2f8] sm:$0xff]
    %v3959 = vld [vmem:[#allocation2 + $0x300] sm:$0xff]
    %v3960 = vld [vmem:[#allocation2 + $0x308] sm:$0xff]
    %v3961 = vld [vmem:[#allocation2 + $0x310] sm:$0xff]
    %v3962 = vld [vmem:[#allocation2 + $0x318] sm:$0xff]
    %v3963 = vld [vmem:[#allocation2 + $0x320] sm:$0xff]
    %v3964 = vld [vmem:[#allocation2 + $0x328] sm:$0xff]
    %v3965 = vld [vmem:[#allocation2 + $0x330] sm:$0xff]
    %v3966 = vld [vmem:[#allocation2 + $0x338] sm:$0xff]
    %v3967 = vld [vmem:[#allocation2 + $0x340] sm:$0xff]
    %v3968 = vld [vmem:[#allocation2 + $0x348] sm:$0xff]
    %v3969 = vld [vmem:[#allocation2 + $0x350] sm:$0xff]
    %v3970 = vld [vmem:[#allocation2 + $0x358] sm:$0xff]
    %v3971 = vld [vmem:[#allocation2 + $0x360] sm:$0xff]
    %v3972 = vld [vmem:[#allocation2 + $0x368] sm:$0xff]
    %v3973 = vld [vmem:[#allocation2 + $0x370] sm:$0xff]
    %v3974 = vld [vmem:[#allocation2 + $0x378] sm:$0xff]
    %v3975 = vld [vmem:[#allocation2 + $0x380] sm:$0xff]
    %v3976 = vld [vmem:[#allocation2 + $0x388] sm:$0xff]
    %v3977 = vld [vmem:[#allocation2 + $0x390] sm:$0xff]
    %v3978 = vld [vmem:[#allocation2 + $0x398] sm:$0xff]
    %v3979 = vld [vmem:[#allocation2 + $0x3a0] sm:$0xff]
    %v3980 = vld [vmem:[#allocation2 + $0x3a8] sm:$0xff]
    %v3981 = vld [vmem:[#allocation2 + $0x3b0] sm:$0xff]
    %v3982 = vld [vmem:[#allocation2 + $0x3b8] sm:$0xff]
    %v3983 = vld [vmem:[#allocation2 + $0x3c0] sm:$0xff]
    %v3984 = vld [vmem:[#allocation2 + $0x3c8] sm:$0xff]
    %v3985 = vld [vmem:[#allocation2 + $0x3d0] sm:$0xff]
    %v3986 = vld [vmem:[#allocation2 + $0x3d8] sm:$0xff]
    %v3987 = vld [vmem:[#allocation2 + $0x3e0] sm:$0xff]
    %v3988 = vld [vmem:[#allocation2 + $0x3e8] sm:$0xff]
    %v3989 = vld [vmem:[#allocation2 + $0x3f0] sm:$0xff]
    %v3990 = vld [vmem:[#allocation2 + $0x3f8] sm:$0xff]
    %v3991 = vld [vmem:[#allocation2 + $0x400] sm:$0xff]
    %v3992 = vld [vmem:[#allocation2 + $0x408] sm:$0xff]
    %v3993 = vld [vmem:[#allocation2 + $0x410] sm:$0xff]
    %v3994 = vld [vmem:[#allocation2 + $0x418] sm:$0xff]
    %v3995 = vld [vmem:[#allocation2 + $0x420] sm:$0xff]
    %v3996 = vld [vmem:[#allocation2 + $0x428] sm:$0xff]
    %v3997 = vld [vmem:[#allocation2 + $0x430] sm:$0xff]
    %v3998 = vld [vmem:[#allocation2 + $0x438] sm:$0xff]
    %v3999 = vld [vmem:[#allocation2 + $0x440] sm:$0xff]
    %v4000 = vld [vmem:[#allocation2 + $0x448] sm:$0xff]
    %v4001 = vld [vmem:[#allocation2 + $0x450] sm:$0xff]
    %v4002 = vld [vmem:[#allocation2 + $0x458] sm:$0xff]
    %v4003 = vld [vmem:[#allocation2 + $0x460] sm:$0xff]
    %v4004 = vld [vmem:[#allocation2 + $0x468] sm:$0xff]
    %v4005 = vld [vmem:[#allocation2 + $0x470] sm:$0xff]
    %v4006 = vld [vmem:[#allocation2 + $0x478] sm:$0xff]
    %v4007 = vld [vmem:[#allocation2 + $0x480] sm:$0xff]
    %v4008 = vld [vmem:[#allocation2 + $0x488] sm:$0xff]
    %v4009 = vld [vmem:[#allocation2 + $0x490] sm:$0xff]
    %v4010 = vld [vmem:[#allocation2 + $0x498] sm:$0xff]
    %v4011 = vld [vmem:[#allocation2 + $0x4a0] sm:$0xff]
    %v4012 = vld [vmem:[#allocation2 + $0x4a8] sm:$0xff]
    %v4013 = vld [vmem:[#allocation2 + $0x4b0] sm:$0xff]
    %v4014 = vld [vmem:[#allocation2 + $0x4b8] sm:$0xff]
    %v4015 = vld [vmem:[#allocation2 + $0x4c0] sm:$0xff]
    %v4016 = vld [vmem:[#allocation2 + $0x4c8] sm:$0xff]
    %v4017 = vld [vmem:[#allocation2 + $0x4d0] sm:$0xff]
    %v4018 = vld [vmem:[#allocation2 + $0x4d8] sm:$0xff]
    %v4019 = vld [vmem:[#allocation2 + $0x4e0] sm:$0xff]
    %v4020 = vld [vmem:[#allocation2 + $0x4e8] sm:$0xff]
    %v4021 = vld [vmem:[#allocation2 + $0x4f0] sm:$0xff]
    %v4022 = vld [vmem:[#allocation2 + $0x4f8] sm:$0xff]
    %v4023 = vld [vmem:[#allocation2 + $0x500] sm:$0xff]
    %v4024 = vld [vmem:[#allocation2 + $0x508] sm:$0xff]
    %v4025 = vld [vmem:[#allocation2 + $0x510] sm:$0xff]
    %v4026 = vld [vmem:[#allocation2 + $0x518] sm:$0xff]
    %v4027 = vld [vmem:[#allocation2 + $0x520] sm:$0xff]
    %v4028 = vld [vmem:[#allocation2 + $0x528] sm:$0xff]
    %v4029 = vld [vmem:[#allocation2 + $0x530] sm:$0xff]
    %v4030 = vld [vmem:[#allocation2 + $0x538] sm:$0xff]
    %v4031 = vld [vmem:[#allocation2 + $0x540] sm:$0xff]
    %v4032 = vld [vmem:[#allocation2 + $0x548] sm:$0xff]
    %v4033 = vld [vmem:[#allocation2 + $0x550] sm:$0xff]
    %v4034 = vld [vmem:[#allocation2 + $0x558] sm:$0xff]
    %v4035 = vld [vmem:[#allocation2 + $0x560] sm:$0xff]
    %v4036 = vld [vmem:[#allocation2 + $0x568] sm:$0xff]
    %v4037 = vld [vmem:[#allocation2 + $0x570] sm:$0xff]
    %v4038 = vld [vmem:[#allocation2 + $0x578] sm:$0xff]
    %v4039 = vld [vmem:[#allocation2 + $0x580] sm:$0xff]
    %v4040 = vld [vmem:[#allocation2 + $0x588] sm:$0xff]
    %v4041 = vld [vmem:[#allocation2 + $0x590] sm:$0xff]
    %v4042 = vld [vmem:[#allocation2 + $0x598] sm:$0xff]
    %v4043 = vld [vmem:[#allocation2 + $0x5a0] sm:$0xff]
    %v4044 = vld [vmem:[#allocation2 + $0x5a8] sm:$0xff]
    %v4045 = vld [vmem:[#allocation2 + $0x5b0] sm:$0xff]
    %v4046 = vld [vmem:[#allocation2 + $0x5b8] sm:$0xff]
    %v4047 = vld [vmem:[#allocation2 + $0x5c0] sm:$0xff]
    %v4048 = vld [vmem:[#allocation2 + $0x5c8] sm:$0xff]
    %v4049 = vld [vmem:[#allocation2 + $0x5d0] sm:$0xff]
    %v4050 = vld [vmem:[#allocation2 + $0x5d8] sm:$0xff]
    %v4051 = vld [vmem:[#allocation2 + $0x5e0] sm:$0xff]
    %v4052 = vld [vmem:[#allocation2 + $0x5e8] sm:$0xff]
    %v4053 = vld [vmem:[#allocation2 + $0x5f0] sm:$0xff]
    %v4054 = vld [vmem:[#allocation2 + $0x5f8] sm:$0xff]
    %v4055 = vld [vmem:[%s6] sm:$0xff]
    %v4056 = vld [vmem:[%s6 + $0x8] sm:$0xff]
    %v4057 = vld [vmem:[%s6 + $0x10] sm:$0xff]
    %v4058 = vld [vmem:[%s6 + $0x18] sm:$0xff]
    %v4059 = vld [vmem:[%s6 + $0x20] sm:$0xff]
    %v4060 = vld [vmem:[%s6 + $0x28] sm:$0xff]
    %v4061 = vld [vmem:[%s6 + $0x30] sm:$0xff]
    %v4062 = vld [vmem:[%s6 + $0x38] sm:$0xff]
    %v4063 = vld [vmem:[%s6 + $0x40] sm:$0xff]
    %v4064 = vld [vmem:[%s6 + $0x48] sm:$0xff]
    %v4065 = vld [vmem:[%s6 + $0x50] sm:$0xff]
    %v4066 = vld [vmem:[%s6 + $0x58] sm:$0xff]
    %v4067 = vld [vmem:[%s6 + $0x60] sm:$0xff]
    %v4068 = vld [vmem:[%s6 + $0x68] sm:$0xff]
    %v4069 = vld [vmem:[%s6 + $0x70] sm:$0xff]
    %v4070 = vld [vmem:[%s6 + $0x78] sm:$0xff]
    %4072 = vset.pattern.permute.xlu0 0
    %4073 = vperm.xlu0 %4072, %v4055
    %v4074 = vpop.permute.xlu0 %4073
    %4077 = vset.pattern.permute.xlu0 0
    %4078 = vperm.xlu0 %4077, %v4056
    %v4079 = vpop.permute.xlu0 %4078
    %4082 = vset.pattern.permute.xlu0 0
    %4083 = vperm.xlu0 %4082, %v4057
    %v4084 = vpop.permute.xlu0 %4083
    %4087 = vset.pattern.permute.xlu0 0
    %4088 = vperm.xlu0 %4087, %v4058
    %v4089 = vpop.permute.xlu0 %4088
    %4092 = vset.pattern.permute.xlu0 0
    %4093 = vperm.xlu0 %4092, %v4059
    %v4094 = vpop.permute.xlu0 %4093
    %4097 = vset.pattern.permute.xlu0 0
    %4098 = vperm.xlu0 %4097, %v4060
    %v4099 = vpop.permute.xlu0 %4098
    %4102 = vset.pattern.permute.xlu0 0
    %4103 = vperm.xlu0 %4102, %v4061
    %v4104 = vpop.permute.xlu0 %4103
    %4107 = vset.pattern.permute.xlu0 0
    %4108 = vperm.xlu0 %4107, %v4062
    %v4109 = vpop.permute.xlu0 %4108
    %4112 = vset.pattern.permute.xlu0 0
    %4113 = vperm.xlu0 %4112, %v4063
    %v4114 = vpop.permute.xlu0 %4113
    %4117 = vset.pattern.permute.xlu0 0
    %4118 = vperm.xlu0 %4117, %v4064
    %v4119 = vpop.permute.xlu0 %4118
    %4122 = vset.pattern.permute.xlu0 0
    %4123 = vperm.xlu0 %4122, %v4065
    %v4124 = vpop.permute.xlu0 %4123
    %4127 = vset.pattern.permute.xlu0 0
    %4128 = vperm.xlu0 %4127, %v4066
    %v4129 = vpop.permute.xlu0 %4128
    %4132 = vset.pattern.permute.xlu0 0
    %4133 = vperm.xlu0 %4132, %v4067
    %v4134 = vpop.permute.xlu0 %4133
    %4137 = vset.pattern.permute.xlu0 0
    %4138 = vperm.xlu0 %4137, %v4068
    %v4139 = vpop.permute.xlu0 %4138
    %4142 = vset.pattern.permute.xlu0 0
    %4143 = vperm.xlu0 %4142, %v4069
    %v4144 = vpop.permute.xlu0 %4143
    %4147 = vset.pattern.permute.xlu0 0
    %4148 = vperm.xlu0 %4147, %v4070
    %v4149 = vpop.permute.xlu0 %4148
    %4151 = vmatpush.msra.mxu0 %v3923
    %4152 = vmatpush.msra.mxu0 %v3919
    %4153 = vmatpush.msra.mxu0 %v3915
    %4154 = vmatpush.msra.mxu0 %v3911
    %4155 = vmatpush.msra.mxu0 %v3907
    %4156 = vmatpush.msra.mxu0 %v3903
    %4157 = vmatpush.msra.mxu0 %v3899
    %4158 = vmatpush.msra.mxu0 %v3895
    %4159 = vmatpush.msra.mxu0 %v3891
    %4160 = vmatpush.msra.mxu0 %v3887
    %4161 = vmatpush.msra.mxu0 %v3883
    %4162 = vmatpush.msra.mxu0 %v3879
    %4163 = vmatpush.msra.mxu0 %v3875
    %4164 = vmatpush.msra.mxu0 %v3871
    %4165 = vmatpush.msra.mxu0 %v3867
    %4166 = vmatpush.msra.mxu0 %v3863
    %4167 = vmatmul.f32.gmra.mxu0 %v3815
    %v4168 = vpop.f32.mrf.mxu0
    %v4169 = vadd.f32 %v4074, %v4168
    %4170 = vmatmul.f32.gmra.mxu0 %v3818
    %v4171 = vpop.f32.mrf.mxu0
    %v4172 = vadd.f32 %v4079, %v4171
    %4173 = vmatmul.f32.gmra.mxu0 %v3821
    %v4174 = vpop.f32.mrf.mxu0
    %v4175 = vadd.f32 %v4084, %v4174
    %4176 = vmatmul.f32.gmra.mxu0 %v3824
    %v4177 = vpop.f32.mrf.mxu0
    %v4178 = vadd.f32 %v4089, %v4177
    %4179 = vmatmul.f32.gmra.mxu0 %v3827
    %v4180 = vpop.f32.mrf.mxu0
    %v4181 = vadd.f32 %v4094, %v4180
    %4182 = vmatmul.f32.gmra.mxu0 %v3830
    %v4183 = vpop.f32.mrf.mxu0
    %v4184 = vadd.f32 %v4099, %v4183
    %4185 = vmatmul.f32.gmra.mxu0 %v3833
    %v4186 = vpop.f32.mrf.mxu0
    %v4187 = vadd.f32 %v4104, %v4186
    %4188 = vmatmul.f32.gmra.mxu0 %v3836
    %v4189 = vpop.f32.mrf.mxu0
    %v4190 = vadd.f32 %v4109, %v4189
    %4191 = vmatmul.f32.gmra.mxu0 %v3839
    %v4192 = vpop.f32.mrf.mxu0
    %v4193 = vadd.f32 %v4114, %v4192
    %4194 = vmatmul.f32.gmra.mxu0 %v3842
    %v4195 = vpop.f32.mrf.mxu0
    %v4196 = vadd.f32 %v4119, %v4195
    %4197 = vmatmul.f32.gmra.mxu0 %v3845
    %v4198 = vpop.f32.mrf.mxu0
    %v4199 = vadd.f32 %v4124, %v4198
    %4200 = vmatmul.f32.gmra.mxu0 %v3848
    %v4201 = vpop.f32.mrf.mxu0
    %v4202 = vadd.f32 %v4129, %v4201
    %4203 = vmatmul.f32.gmra.mxu0 %v3851
    %v4204 = vpop.f32.mrf.mxu0
    %v4205 = vadd.f32 %v4134, %v4204
    %4206 = vmatmul.f32.gmra.mxu0 %v3854
    %v4207 = vpop.f32.mrf.mxu0
    %v4208 = vadd.f32 %v4139, %v4207
    %4209 = vmatmul.f32.gmra.mxu0 %v3857
    %v4210 = vpop.f32.mrf.mxu0
    %v4211 = vadd.f32 %v4144, %v4210
    %4212 = vmatmul.f32.gmra.mxu0 %v3860
    %v4213 = vpop.f32.mrf.mxu0
    %v4214 = vadd.f32 %v4149, %v4213
    %4215 = vdwg.mxu0
    %4216 = vmatpush.msra.mxu0 %v3987
    %4217 = vmatpush.msra.mxu0 %v3983
    %4218 = vmatpush.msra.mxu0 %v3979
    %4219 = vmatpush.msra.mxu0 %v3975
    %4220 = vmatpush.msra.mxu0 %v3971
    %4221 = vmatpush.msra.mxu0 %v3967
    %4222 = vmatpush.msra.mxu0 %v3963
    %4223 = vmatpush.msra.mxu0 %v3959
    %4224 = vmatpush.msra.mxu0 %v3955
    %4225 = vmatpush.msra.mxu0 %v3951
    %4226 = vmatpush.msra.mxu0 %v3947
    %4227 = vmatpush.msra.mxu0 %v3943
    %4228 = vmatpush.msra.mxu0 %v3939
    %4229 = vmatpush.msra.mxu0 %v3935
    %4230 = vmatpush.msra.mxu0 %v3931
    %4231 = vmatpush.msra.mxu0 %v3927
    %4232 = vmatmul.f32.gmra.mxu0 %v3816
    %v4233 = vpop.f32.mrf.mxu0
    %v4234 = vadd.f32 %v4169, %v4233
    %4235 = vmatmul.f32.gmra.mxu0 %v3819
    %v4236 = vpop.f32.mrf.mxu0
    %v4237 = vadd.f32 %v4172, %v4236
    %4238 = vmatmul.f32.gmra.mxu0 %v3822
    %v4239 = vpop.f32.mrf.mxu0
    %v4240 = vadd.f32 %v4175, %v4239
    %4241 = vmatmul.f32.gmra.mxu0 %v3825
    %v4242 = vpop.f32.mrf.mxu0
    %v4243 = vadd.f32 %v4178, %v4242
    %4244 = vmatmul.f32.gmra.mxu0 %v3828
    %v4245 = vpop.f32.mrf.mxu0
    %v4246 = vadd.f32 %v4181, %v4245
    %4247 = vmatmul.f32.gmra.mxu0 %v3831
    %v4248 = vpop.f32.mrf.mxu0
    %v4249 = vadd.f32 %v4184, %v4248
    %4250 = vmatmul.f32.gmra.mxu0 %v3834
    %v4251 = vpop.f32.mrf.mxu0
    %v4252 = vadd.f32 %v4187, %v4251
    %4253 = vmatmul.f32.gmra.mxu0 %v3837
    %v4254 = vpop.f32.mrf.mxu0
    %v4255 = vadd.f32 %v4190, %v4254
    %4256 = vmatmul.f32.gmra.mxu0 %v3840
    %v4257 = vpop.f32.mrf.mxu0
    %v4258 = vadd.f32 %v4193, %v4257
    %4259 = vmatmul.f32.gmra.mxu0 %v3843
    %v4260 = vpop.f32.mrf.mxu0
    %v4261 = vadd.f32 %v4196, %v4260
    %4262 = vmatmul.f32.gmra.mxu0 %v3846
    %v4263 = vpop.f32.mrf.mxu0
    %v4264 = vadd.f32 %v4199, %v4263
    %4265 = vmatmul.f32.gmra.mxu0 %v3849
    %v4266 = vpop.f32.mrf.mxu0
    %v4267 = vadd.f32 %v4202, %v4266
    %4268 = vmatmul.f32.gmra.mxu0 %v3852
    %v4269 = vpop.f32.mrf.mxu0
    %v4270 = vadd.f32 %v4205, %v4269
    %4271 = vmatmul.f32.gmra.mxu0 %v3855
    %v4272 = vpop.f32.mrf.mxu0
    %v4273 = vadd.f32 %v4208, %v4272
    %4274 = vmatmul.f32.gmra.mxu0 %v3858
    %v4275 = vpop.f32.mrf.mxu0
    %v4276 = vadd.f32 %v4211, %v4275
    %4277 = vmatmul.f32.gmra.mxu0 %v3861
    %v4278 = vpop.f32.mrf.mxu0
    %v4279 = vadd.f32 %v4214, %v4278
    %4280 = vdwg.mxu0
    %4281 = vmatpush.msra.mxu0 %v4051
    %4282 = vmatpush.msra.mxu0 %v4047
    %4283 = vmatpush.msra.mxu0 %v4043
    %4284 = vmatpush.msra.mxu0 %v4039
    %4285 = vmatpush.msra.mxu0 %v4035
    %4286 = vmatpush.msra.mxu0 %v4031
    %4287 = vmatpush.msra.mxu0 %v4027
    %4288 = vmatpush.msra.mxu0 %v4023
    %4289 = vmatpush.msra.mxu0 %v4019
    %4290 = vmatpush.msra.mxu0 %v4015
    %4291 = vmatpush.msra.mxu0 %v4011
    %4292 = vmatpush.msra.mxu0 %v4007
    %4293 = vmatpush.msra.mxu0 %v4003
    %4294 = vmatpush.msra.mxu0 %v3999
    %4295 = vmatpush.msra.mxu0 %v3995
    %4296 = vmatpush.msra.mxu0 %v3991
    %4297 = vmatmul.f32.gmra.mxu0 %v3817
    %v4298 = vpop.f32.mrf.mxu0
    %v4299 = vadd.f32 %v4234, %v4298
    %4300 = vmatmul.f32.gmra.mxu0 %v3820
    %v4301 = vpop.f32.mrf.mxu0
    %v4302 = vadd.f32 %v4237, %v4301
    %4303 = vmatmul.f32.gmra.mxu0 %v3823
    %v4304 = vpop.f32.mrf.mxu0
    %v4305 = vadd.f32 %v4240, %v4304
    %4306 = vmatmul.f32.gmra.mxu0 %v3826
    %v4307 = vpop.f32.mrf.mxu0
    %v4308 = vadd.f32 %v4243, %v4307
    %4309 = vmatmul.f32.gmra.mxu0 %v3829
    %v4310 = vpop.f32.mrf.mxu0
    %v4311 = vadd.f32 %v4246, %v4310
    %4312 = vmatmul.f32.gmra.mxu0 %v3832
    %v4313 = vpop.f32.mrf.mxu0
    %v4314 = vadd.f32 %v4249, %v4313
    %4315 = vmatmul.f32.gmra.mxu0 %v3835
    %v4316 = vpop.f32.mrf.mxu0
    %v4317 = vadd.f32 %v4252, %v4316
    %4318 = vmatmul.f32.gmra.mxu0 %v3838
    %v4319 = vpop.f32.mrf.mxu0
    %v4320 = vadd.f32 %v4255, %v4319
    %4321 = vmatmul.f32.gmra.mxu0 %v3841
    %v4322 = vpop.f32.mrf.mxu0
    %v4323 = vadd.f32 %v4258, %v4322
    %4324 = vmatmul.f32.gmra.mxu0 %v3844
    %v4325 = vpop.f32.mrf.mxu0
    %v4326 = vadd.f32 %v4261, %v4325
    %4327 = vmatmul.f32.gmra.mxu0 %v3847
    %v4328 = vpop.f32.mrf.mxu0
    %v4329 = vadd.f32 %v4264, %v4328
    %4330 = vmatmul.f32.gmra.mxu0 %v3850
    %v4331 = vpop.f32.mrf.mxu0
    %v4332 = vadd.f32 %v4267, %v4331
    %4333 = vmatmul.f32.gmra.mxu0 %v3853
    %v4334 = vpop.f32.mrf.mxu0
    %v4335 = vadd.f32 %v4270, %v4334
    %4336 = vmatmul.f32.gmra.mxu0 %v3856
    %v4337 = vpop.f32.mrf.mxu0
    %v4338 = vadd.f32 %v4273, %v4337
    %4339 = vmatmul.f32.gmra.mxu0 %v3859
    %v4340 = vpop.f32.mrf.mxu0
    %v4341 = vadd.f32 %v4276, %v4340
    %4342 = vmatmul.f32.gmra.mxu0 %v3862
    %v4343 = vpop.f32.mrf.mxu0
    %v4344 = vadd.f32 %v4279, %v4343
    %4345 = vdwg.mxu0
    %4346 = vmatpush.msra.mxu0 %v3924
    %4347 = vmatpush.msra.mxu0 %v3920
    %4348 = vmatpush.msra.mxu0 %v3916
    %4349 = vmatpush.msra.mxu0 %v3912
    %4350 = vmatpush.msra.mxu0 %v3908
    %4351 = vmatpush.msra.mxu0 %v3904
    %4352 = vmatpush.msra.mxu0 %v3900
    %4353 = vmatpush.msra.mxu0 %v3896
    %4354 = vmatpush.msra.mxu0 %v3892
    %4355 = vmatpush.msra.mxu0 %v3888
    %4356 = vmatpush.msra.mxu0 %v3884
    %4357 = vmatpush.msra.mxu0 %v3880
    %4358 = vmatpush.msra.mxu0 %v3876
    %4359 = vmatpush.msra.mxu0 %v3872
    %4360 = vmatpush.msra.mxu0 %v3868
    %4361 = vmatpush.msra.mxu0 %v3864
    %4362 = vmatmul.f32.gmra.mxu0 %v3815
    %v4363 = vpop.f32.mrf.mxu0
    %v4364 = vadd.f32 %v4074, %v4363
    %4365 = vmatmul.f32.gmra.mxu0 %v3818
    %v4366 = vpop.f32.mrf.mxu0
    %v4367 = vadd.f32 %v4079, %v4366
    %4368 = vmatmul.f32.gmra.mxu0 %v3821
    %v4369 = vpop.f32.mrf.mxu0
    %v4370 = vadd.f32 %v4084, %v4369
    %4371 = vmatmul.f32.gmra.mxu0 %v3824
    %v4372 = vpop.f32.mrf.mxu0
    %v4373 = vadd.f32 %v4089, %v4372
    %4374 = vmatmul.f32.gmra.mxu0 %v3827
    %v4375 = vpop.f32.mrf.mxu0
    %v4376 = vadd.f32 %v4094, %v4375
    %4377 = vmatmul.f32.gmra.mxu0 %v3830
    %v4378 = vpop.f32.mrf.mxu0
    %v4379 = vadd.f32 %v4099, %v4378
    %4380 = vmatmul.f32.gmra.mxu0 %v3833
    %v4381 = vpop.f32.mrf.mxu0
    %v4382 = vadd.f32 %v4104, %v4381
    %4383 = vmatmul.f32.gmra.mxu0 %v3836
    %v4384 = vpop.f32.mrf.mxu0
    %v4385 = vadd.f32 %v4109, %v4384
    %4386 = vmatmul.f32.gmra.mxu0 %v3839
    %v4387 = vpop.f32.mrf.mxu0
    %v4388 = vadd.f32 %v4114, %v4387
    %4389 = vmatmul.f32.gmra.mxu0 %v3842
    %v4390 = vpop.f32.mrf.mxu0
    %v4391 = vadd.f32 %v4119, %v4390
    %4392 = vmatmul.f32.gmra.mxu0 %v3845
    %v4393 = vpop.f32.mrf.mxu0
    %v4394 = vadd.f32 %v4124, %v4393
    %4395 = vmatmul.f32.gmra.mxu0 %v3848
    %v4396 = vpop.f32.mrf.mxu0
    %v4397 = vadd.f32 %v4129, %v4396
    %4398 = vmatmul.f32.gmra.mxu0 %v3851
    %v4399 = vpop.f32.mrf.mxu0
    %v4400 = vadd.f32 %v4134, %v4399
    %4401 = vmatmul.f32.gmra.mxu0 %v3854
    %v4402 = vpop.f32.mrf.mxu0
    %v4403 = vadd.f32 %v4139, %v4402
    %4404 = vmatmul.f32.gmra.mxu0 %v3857
    %v4405 = vpop.f32.mrf.mxu0
    %v4406 = vadd.f32 %v4144, %v4405
    %4407 = vmatmul.f32.gmra.mxu0 %v3860
    %v4408 = vpop.f32.mrf.mxu0
    %v4409 = vadd.f32 %v4149, %v4408
    %4410 = vdwg.mxu0
    %4411 = vmatpush.msra.mxu0 %v3988
    %4412 = vmatpush.msra.mxu0 %v3984
    %4413 = vmatpush.msra.mxu0 %v3980
    %4414 = vmatpush.msra.mxu0 %v3976
    %4415 = vmatpush.msra.mxu0 %v3972
    %4416 = vmatpush.msra.mxu0 %v3968
    %4417 = vmatpush.msra.mxu0 %v3964
    %4418 = vmatpush.msra.mxu0 %v3960
    %4419 = vmatpush.msra.mxu0 %v3956
    %4420 = vmatpush.msra.mxu0 %v3952
    %4421 = vmatpush.msra.mxu0 %v3948
    %4422 = vmatpush.msra.mxu0 %v3944
    %4423 = vmatpush.msra.mxu0 %v3940
    %4424 = vmatpush.msra.mxu0 %v3936
    %4425 = vmatpush.msra.mxu0 %v3932
    %4426 = vmatpush.msra.mxu0 %v3928
    %4427 = vmatmul.f32.gmra.mxu0 %v3816
    %v4428 = vpop.f32.mrf.mxu0
    %v4429 = vadd.f32 %v4364, %v4428
    %4430 = vmatmul.f32.gmra.mxu0 %v3819
    %v4431 = vpop.f32.mrf.mxu0
    %v4432 = vadd.f32 %v4367, %v4431
    %4433 = vmatmul.f32.gmra.mxu0 %v3822
    %v4434 = vpop.f32.mrf.mxu0
    %v4435 = vadd.f32 %v4370, %v4434
    %4436 = vmatmul.f32.gmra.mxu0 %v3825
    %v4437 = vpop.f32.mrf.mxu0
    %v4438 = vadd.f32 %v4373, %v4437
    %4439 = vmatmul.f32.gmra.mxu0 %v3828
    %v4440 = vpop.f32.mrf.mxu0
    %v4441 = vadd.f32 %v4376, %v4440
    %4442 = vmatmul.f32.gmra.mxu0 %v3831
    %v4443 = vpop.f32.mrf.mxu0
    %v4444 = vadd.f32 %v4379, %v4443
    %4445 = vmatmul.f32.gmra.mxu0 %v3834
    %v4446 = vpop.f32.mrf.mxu0
    %v4447 = vadd.f32 %v4382, %v4446
    %4448 = vmatmul.f32.gmra.mxu0 %v3837
    %v4449 = vpop.f32.mrf.mxu0
    %v4450 = vadd.f32 %v4385, %v4449
    %4451 = vmatmul.f32.gmra.mxu0 %v3840
    %v4452 = vpop.f32.mrf.mxu0
    %v4453 = vadd.f32 %v4388, %v4452
    %4454 = vmatmul.f32.gmra.mxu0 %v3843
    %v4455 = vpop.f32.mrf.mxu0
    %v4456 = vadd.f32 %v4391, %v4455
    %4457 = vmatmul.f32.gmra.mxu0 %v3846
    %v4458 = vpop.f32.mrf.mxu0
    %v4459 = vadd.f32 %v4394, %v4458
    %4460 = vmatmul.f32.gmra.mxu0 %v3849
    %v4461 = vpop.f32.mrf.mxu0
    %v4462 = vadd.f32 %v4397, %v4461
    %4463 = vmatmul.f32.gmra.mxu0 %v3852
    %v4464 = vpop.f32.mrf.mxu0
    %v4465 = vadd.f32 %v4400, %v4464
    %4466 = vmatmul.f32.gmra.mxu0 %v3855
    %v4467 = vpop.f32.mrf.mxu0
    %v4468 = vadd.f32 %v4403, %v4467
    %4469 = vmatmul.f32.gmra.mxu0 %v3858
    %v4470 = vpop.f32.mrf.mxu0
    %v4471 = vadd.f32 %v4406, %v4470
    %4472 = vmatmul.f32.gmra.mxu0 %v3861
    %v4473 = vpop.f32.mrf.mxu0
    %v4474 = vadd.f32 %v4409, %v4473
    %4475 = vdwg.mxu0
    %4476 = vmatpush.msra.mxu0 %v4052
    %4477 = vmatpush.msra.mxu0 %v4048
    %4478 = vmatpush.msra.mxu0 %v4044
    %4479 = vmatpush.msra.mxu0 %v4040
    %4480 = vmatpush.msra.mxu0 %v4036
    %4481 = vmatpush.msra.mxu0 %v4032
    %4482 = vmatpush.msra.mxu0 %v4028
    %4483 = vmatpush.msra.mxu0 %v4024
    %4484 = vmatpush.msra.mxu0 %v4020
    %4485 = vmatpush.msra.mxu0 %v4016
    %4486 = vmatpush.msra.mxu0 %v4012
    %4487 = vmatpush.msra.mxu0 %v4008
    %4488 = vmatpush.msra.mxu0 %v4004
    %4489 = vmatpush.msra.mxu0 %v4000
    %4490 = vmatpush.msra.mxu0 %v3996
    %4491 = vmatpush.msra.mxu0 %v3992
    %4492 = vmatmul.f32.gmra.mxu0 %v3817
    %v4493 = vpop.f32.mrf.mxu0
    %v4494 = vadd.f32 %v4429, %v4493
    %4495 = vmatmul.f32.gmra.mxu0 %v3820
    %v4496 = vpop.f32.mrf.mxu0
    %v4497 = vadd.f32 %v4432, %v4496
    %4498 = vmatmul.f32.gmra.mxu0 %v3823
    %v4499 = vpop.f32.mrf.mxu0
    %v4500 = vadd.f32 %v4435, %v4499
    %4501 = vmatmul.f32.gmra.mxu0 %v3826
    %v4502 = vpop.f32.mrf.mxu0
    %v4503 = vadd.f32 %v4438, %v4502
    %4504 = vmatmul.f32.gmra.mxu0 %v3829
    %v4505 = vpop.f32.mrf.mxu0
    %v4506 = vadd.f32 %v4441, %v4505
    %4507 = vmatmul.f32.gmra.mxu0 %v3832
    %v4508 = vpop.f32.mrf.mxu0
    %v4509 = vadd.f32 %v4444, %v4508
    %4510 = vmatmul.f32.gmra.mxu0 %v3835
    %v4511 = vpop.f32.mrf.mxu0
    %v4512 = vadd.f32 %v4447, %v4511
    %4513 = vmatmul.f32.gmra.mxu0 %v3838
    %v4514 = vpop.f32.mrf.mxu0
    %v4515 = vadd.f32 %v4450, %v4514
    %4516 = vmatmul.f32.gmra.mxu0 %v3841
    %v4517 = vpop.f32.mrf.mxu0
    %v4518 = vadd.f32 %v4453, %v4517
    %4519 = vmatmul.f32.gmra.mxu0 %v3844
    %v4520 = vpop.f32.mrf.mxu0
    %v4521 = vadd.f32 %v4456, %v4520
    %4522 = vmatmul.f32.gmra.mxu0 %v3847
    %v4523 = vpop.f32.mrf.mxu0
    %v4524 = vadd.f32 %v4459, %v4523
    %4525 = vmatmul.f32.gmra.mxu0 %v3850
    %v4526 = vpop.f32.mrf.mxu0
    %v4527 = vadd.f32 %v4462, %v4526
    %4528 = vmatmul.f32.gmra.mxu0 %v3853
    %v4529 = vpop.f32.mrf.mxu0
    %v4530 = vadd.f32 %v4465, %v4529
    %4531 = vmatmul.f32.gmra.mxu0 %v3856
    %v4532 = vpop.f32.mrf.mxu0
    %v4533 = vadd.f32 %v4468, %v4532
    %4534 = vmatmul.f32.gmra.mxu0 %v3859
    %v4535 = vpop.f32.mrf.mxu0
    %v4536 = vadd.f32 %v4471, %v4535
    %4537 = vmatmul.f32.gmra.mxu0 %v3862
    %v4538 = vpop.f32.mrf.mxu0
    %v4539 = vadd.f32 %v4474, %v4538
    %4540 = vdwg.mxu0
    %4541 = vmatpush.msra.mxu0 %v3925
    %4542 = vmatpush.msra.mxu0 %v3921
    %4543 = vmatpush.msra.mxu0 %v3917
    %4544 = vmatpush.msra.mxu0 %v3913
    %4545 = vmatpush.msra.mxu0 %v3909
    %4546 = vmatpush.msra.mxu0 %v3905
    %4547 = vmatpush.msra.mxu0 %v3901
    %4548 = vmatpush.msra.mxu0 %v3897
    %4549 = vmatpush.msra.mxu0 %v3893
    %4550 = vmatpush.msra.mxu0 %v3889
    %4551 = vmatpush.msra.mxu0 %v3885
    %4552 = vmatpush.msra.mxu0 %v3881
    %4553 = vmatpush.msra.mxu0 %v3877
    %4554 = vmatpush.msra.mxu0 %v3873
    %4555 = vmatpush.msra.mxu0 %v3869
    %4556 = vmatpush.msra.mxu0 %v3865
    %4557 = vmatmul.f32.gmra.mxu0 %v3815
    %v4558 = vpop.f32.mrf.mxu0
    %v4559 = vadd.f32 %v4074, %v4558
    %4560 = vmatmul.f32.gmra.mxu0 %v3818
    %v4561 = vpop.f32.mrf.mxu0
    %v4562 = vadd.f32 %v4079, %v4561
    %4563 = vmatmul.f32.gmra.mxu0 %v3821
    %v4564 = vpop.f32.mrf.mxu0
    %v4565 = vadd.f32 %v4084, %v4564
    %4566 = vmatmul.f32.gmra.mxu0 %v3824
    %v4567 = vpop.f32.mrf.mxu0
    %v4568 = vadd.f32 %v4089, %v4567
    %4569 = vmatmul.f32.gmra.mxu0 %v3827
    %v4570 = vpop.f32.mrf.mxu0
    %v4571 = vadd.f32 %v4094, %v4570
    %4572 = vmatmul.f32.gmra.mxu0 %v3830
    %v4573 = vpop.f32.mrf.mxu0
    %v4574 = vadd.f32 %v4099, %v4573
    %4575 = vmatmul.f32.gmra.mxu0 %v3833
    %v4576 = vpop.f32.mrf.mxu0
    %v4577 = vadd.f32 %v4104, %v4576
    %4578 = vmatmul.f32.gmra.mxu0 %v3836
    %v4579 = vpop.f32.mrf.mxu0
    %v4580 = vadd.f32 %v4109, %v4579
    %4581 = vmatmul.f32.gmra.mxu0 %v3839
    %v4582 = vpop.f32.mrf.mxu0
    %v4583 = vadd.f32 %v4114, %v4582
    %4584 = vmatmul.f32.gmra.mxu0 %v3842
    %v4585 = vpop.f32.mrf.mxu0
    %v4586 = vadd.f32 %v4119, %v4585
    %4587 = vmatmul.f32.gmra.mxu0 %v3845
    %v4588 = vpop.f32.mrf.mxu0
    %v4589 = vadd.f32 %v4124, %v4588
    %4590 = vmatmul.f32.gmra.mxu0 %v3848
    %v4591 = vpop.f32.mrf.mxu0
    %v4592 = vadd.f32 %v4129, %v4591
    %4593 = vmatmul.f32.gmra.mxu0 %v3851
    %v4594 = vpop.f32.mrf.mxu0
    %v4595 = vadd.f32 %v4134, %v4594
    %4596 = vmatmul.f32.gmra.mxu0 %v3854
    %v4597 = vpop.f32.mrf.mxu0
    %v4598 = vadd.f32 %v4139, %v4597
    %4599 = vmatmul.f32.gmra.mxu0 %v3857
    %v4600 = vpop.f32.mrf.mxu0
    %v4601 = vadd.f32 %v4144, %v4600
    %4602 = vmatmul.f32.gmra.mxu0 %v3860
    %v4603 = vpop.f32.mrf.mxu0
    %v4604 = vadd.f32 %v4149, %v4603
    %4605 = vdwg.mxu0
    %4606 = vmatpush.msra.mxu0 %v3989
    %4607 = vmatpush.msra.mxu0 %v3985
    %4608 = vmatpush.msra.mxu0 %v3981
    %4609 = vmatpush.msra.mxu0 %v3977
    %4610 = vmatpush.msra.mxu0 %v3973
    %4611 = vmatpush.msra.mxu0 %v3969
    %4612 = vmatpush.msra.mxu0 %v3965
    %4613 = vmatpush.msra.mxu0 %v3961
    %4614 = vmatpush.msra.mxu0 %v3957
    %4615 = vmatpush.msra.mxu0 %v3953
    %4616 = vmatpush.msra.mxu0 %v3949
    %4617 = vmatpush.msra.mxu0 %v3945
    %4618 = vmatpush.msra.mxu0 %v3941
    %4619 = vmatpush.msra.mxu0 %v3937
    %4620 = vmatpush.msra.mxu0 %v3933
    %4621 = vmatpush.msra.mxu0 %v3929
    %4622 = vmatmul.f32.gmra.mxu0 %v3816
    %v4623 = vpop.f32.mrf.mxu0
    %v4624 = vadd.f32 %v4559, %v4623
    %4625 = vmatmul.f32.gmra.mxu0 %v3819
    %v4626 = vpop.f32.mrf.mxu0
    %v4627 = vadd.f32 %v4562, %v4626
    %4628 = vmatmul.f32.gmra.mxu0 %v3822
    %v4629 = vpop.f32.mrf.mxu0
    %v4630 = vadd.f32 %v4565, %v4629
    %4631 = vmatmul.f32.gmra.mxu0 %v3825
    %v4632 = vpop.f32.mrf.mxu0
    %v4633 = vadd.f32 %v4568, %v4632
    %4634 = vmatmul.f32.gmra.mxu0 %v3828
    %v4635 = vpop.f32.mrf.mxu0
    %v4636 = vadd.f32 %v4571, %v4635
    %4637 = vmatmul.f32.gmra.mxu0 %v3831
    %v4638 = vpop.f32.mrf.mxu0
    %v4639 = vadd.f32 %v4574, %v4638
    %4640 = vmatmul.f32.gmra.mxu0 %v3834
    %v4641 = vpop.f32.mrf.mxu0
    %v4642 = vadd.f32 %v4577, %v4641
    %4643 = vmatmul.f32.gmra.mxu0 %v3837
    %v4644 = vpop.f32.mrf.mxu0
    %v4645 = vadd.f32 %v4580, %v4644
    %4646 = vmatmul.f32.gmra.mxu0 %v3840
    %v4647 = vpop.f32.mrf.mxu0
    %v4648 = vadd.f32 %v4583, %v4647
    %4649 = vmatmul.f32.gmra.mxu0 %v3843
    %v4650 = vpop.f32.mrf.mxu0
    %v4651 = vadd.f32 %v4586, %v4650
    %4652 = vmatmul.f32.gmra.mxu0 %v3846
    %v4653 = vpop.f32.mrf.mxu0
    %v4654 = vadd.f32 %v4589, %v4653
    %4655 = vmatmul.f32.gmra.mxu0 %v3849
    %v4656 = vpop.f32.mrf.mxu0
    %v4657 = vadd.f32 %v4592, %v4656
    %4658 = vmatmul.f32.gmra.mxu0 %v3852
    %v4659 = vpop.f32.mrf.mxu0
    %v4660 = vadd.f32 %v4595, %v4659
    %4661 = vmatmul.f32.gmra.mxu0 %v3855
    %v4662 = vpop.f32.mrf.mxu0
    %v4663 = vadd.f32 %v4598, %v4662
    %4664 = vmatmul.f32.gmra.mxu0 %v3858
    %v4665 = vpop.f32.mrf.mxu0
    %v4666 = vadd.f32 %v4601, %v4665
    %4667 = vmatmul.f32.gmra.mxu0 %v3861
    %v4668 = vpop.f32.mrf.mxu0
    %v4669 = vadd.f32 %v4604, %v4668
    %4670 = vdwg.mxu0
    %4671 = vmatpush.msra.mxu0 %v4053
    %4672 = vmatpush.msra.mxu0 %v4049
    %4673 = vmatpush.msra.mxu0 %v4045
    %4674 = vmatpush.msra.mxu0 %v4041
    %4675 = vmatpush.msra.mxu0 %v4037
    %4676 = vmatpush.msra.mxu0 %v4033
    %4677 = vmatpush.msra.mxu0 %v4029
    %4678 = vmatpush.msra.mxu0 %v4025
    %4679 = vmatpush.msra.mxu0 %v4021
    %4680 = vmatpush.msra.mxu0 %v4017
    %4681 = vmatpush.msra.mxu0 %v4013
    %4682 = vmatpush.msra.mxu0 %v4009
    %4683 = vmatpush.msra.mxu0 %v4005
    %4684 = vmatpush.msra.mxu0 %v4001
    %4685 = vmatpush.msra.mxu0 %v3997
    %4686 = vmatpush.msra.mxu0 %v3993
    %4687 = vmatmul.f32.gmra.mxu0 %v3817
    %v4688 = vpop.f32.mrf.mxu0
    %v4689 = vadd.f32 %v4624, %v4688
    %4690 = vmatmul.f32.gmra.mxu0 %v3820
    %v4691 = vpop.f32.mrf.mxu0
    %v4692 = vadd.f32 %v4627, %v4691
    %4693 = vmatmul.f32.gmra.mxu0 %v3823
    %v4694 = vpop.f32.mrf.mxu0
    %v4695 = vadd.f32 %v4630, %v4694
    %4696 = vmatmul.f32.gmra.mxu0 %v3826
    %v4697 = vpop.f32.mrf.mxu0
    %v4698 = vadd.f32 %v4633, %v4697
    %4699 = vmatmul.f32.gmra.mxu0 %v3829
    %v4700 = vpop.f32.mrf.mxu0
    %v4701 = vadd.f32 %v4636, %v4700
    %4702 = vmatmul.f32.gmra.mxu0 %v3832
    %v4703 = vpop.f32.mrf.mxu0
    %v4704 = vadd.f32 %v4639, %v4703
    %4705 = vmatmul.f32.gmra.mxu0 %v3835
    %v4706 = vpop.f32.mrf.mxu0
    %v4707 = vadd.f32 %v4642, %v4706
    %4708 = vmatmul.f32.gmra.mxu0 %v3838
    %v4709 = vpop.f32.mrf.mxu0
    %v4710 = vadd.f32 %v4645, %v4709
    %4711 = vmatmul.f32.gmra.mxu0 %v3841
    %v4712 = vpop.f32.mrf.mxu0
    %v4713 = vadd.f32 %v4648, %v4712
    %4714 = vmatmul.f32.gmra.mxu0 %v3844
    %v4715 = vpop.f32.mrf.mxu0
    %v4716 = vadd.f32 %v4651, %v4715
    %4717 = vmatmul.f32.gmra.mxu0 %v3847
    %v4718 = vpop.f32.mrf.mxu0
    %v4719 = vadd.f32 %v4654, %v4718
    %4720 = vmatmul.f32.gmra.mxu0 %v3850
    %v4721 = vpop.f32.mrf.mxu0
    %v4722 = vadd.f32 %v4657, %v4721
    %4723 = vmatmul.f32.gmra.mxu0 %v3853
    %v4724 = vpop.f32.mrf.mxu0
    %v4725 = vadd.f32 %v4660, %v4724
    %4726 = vmatmul.f32.gmra.mxu0 %v3856
    %v4727 = vpop.f32.mrf.mxu0
    %v4728 = vadd.f32 %v4663, %v4727
    %4729 = vmatmul.f32.gmra.mxu0 %v3859
    %v4730 = vpop.f32.mrf.mxu0
    %v4731 = vadd.f32 %v4666, %v4730
    %4732 = vmatmul.f32.gmra.mxu0 %v3862
    %v4733 = vpop.f32.mrf.mxu0
    %v4734 = vadd.f32 %v4669, %v4733
    %4735 = vdwg.mxu0
    %4736 = vmatpush.msra.mxu0 %v3926
    %4737 = vmatpush.msra.mxu0 %v3922
    %4738 = vmatpush.msra.mxu0 %v3918
    %4739 = vmatpush.msra.mxu0 %v3914
    %4740 = vmatpush.msra.mxu0 %v3910
    %4741 = vmatpush.msra.mxu0 %v3906
    %4742 = vmatpush.msra.mxu0 %v3902
    %4743 = vmatpush.msra.mxu0 %v3898
    %4744 = vmatpush.msra.mxu0 %v3894
    %4745 = vmatpush.msra.mxu0 %v3890
    %4746 = vmatpush.msra.mxu0 %v3886
    %4747 = vmatpush.msra.mxu0 %v3882
    %4748 = vmatpush.msra.mxu0 %v3878
    %4749 = vmatpush.msra.mxu0 %v3874
    %4750 = vmatpush.msra.mxu0 %v3870
    %4751 = vmatpush.msra.mxu0 %v3866
    %4752 = vmatmul.f32.gmra.mxu0 %v3815
    %v4753 = vpop.f32.mrf.mxu0
    %v4754 = vadd.f32 %v4074, %v4753
    %4755 = vmatmul.f32.gmra.mxu0 %v3818
    %v4756 = vpop.f32.mrf.mxu0
    %v4757 = vadd.f32 %v4079, %v4756
    %4758 = vmatmul.f32.gmra.mxu0 %v3821
    %v4759 = vpop.f32.mrf.mxu0
    %v4760 = vadd.f32 %v4084, %v4759
    %4761 = vmatmul.f32.gmra.mxu0 %v3824
    %v4762 = vpop.f32.mrf.mxu0
    %v4763 = vadd.f32 %v4089, %v4762
    %4764 = vmatmul.f32.gmra.mxu0 %v3827
    %v4765 = vpop.f32.mrf.mxu0
    %v4766 = vadd.f32 %v4094, %v4765
    %4767 = vmatmul.f32.gmra.mxu0 %v3830
    %v4768 = vpop.f32.mrf.mxu0
    %v4769 = vadd.f32 %v4099, %v4768
    %4770 = vmatmul.f32.gmra.mxu0 %v3833
    %v4771 = vpop.f32.mrf.mxu0
    %v4772 = vadd.f32 %v4104, %v4771
    %4773 = vmatmul.f32.gmra.mxu0 %v3836
    %v4774 = vpop.f32.mrf.mxu0
    %v4775 = vadd.f32 %v4109, %v4774
    %4776 = vmatmul.f32.gmra.mxu0 %v3839
    %v4777 = vpop.f32.mrf.mxu0
    %v4778 = vadd.f32 %v4114, %v4777
    %4779 = vmatmul.f32.gmra.mxu0 %v3842
    %v4780 = vpop.f32.mrf.mxu0
    %v4781 = vadd.f32 %v4119, %v4780
    %4782 = vmatmul.f32.gmra.mxu0 %v3845
    %v4783 = vpop.f32.mrf.mxu0
    %v4784 = vadd.f32 %v4124, %v4783
    %4785 = vmatmul.f32.gmra.mxu0 %v3848
    %v4786 = vpop.f32.mrf.mxu0
    %v4787 = vadd.f32 %v4129, %v4786
    %4788 = vmatmul.f32.gmra.mxu0 %v3851
    %v4789 = vpop.f32.mrf.mxu0
    %v4790 = vadd.f32 %v4134, %v4789
    %4791 = vmatmul.f32.gmra.mxu0 %v3854
    %v4792 = vpop.f32.mrf.mxu0
    %v4793 = vadd.f32 %v4139, %v4792
    %4794 = vmatmul.f32.gmra.mxu0 %v3857
    %v4795 = vpop.f32.mrf.mxu0
    %v4796 = vadd.f32 %v4144, %v4795
    %4797 = vmatmul.f32.gmra.mxu0 %v3860
    %v4798 = vpop.f32.mrf.mxu0
    %v4799 = vadd.f32 %v4149, %v4798
    %4800 = vdwg.mxu0
    %4801 = vmatpush.msra.mxu0 %v3990
    %4802 = vmatpush.msra.mxu0 %v3986
    %4803 = vmatpush.msra.mxu0 %v3982
    %4804 = vmatpush.msra.mxu0 %v3978
    %4805 = vmatpush.msra.mxu0 %v3974
    %4806 = vmatpush.msra.mxu0 %v3970
    %4807 = vmatpush.msra.mxu0 %v3966
    %4808 = vmatpush.msra.mxu0 %v3962
    %4809 = vmatpush.msra.mxu0 %v3958
    %4810 = vmatpush.msra.mxu0 %v3954
    %4811 = vmatpush.msra.mxu0 %v3950
    %4812 = vmatpush.msra.mxu0 %v3946
    %4813 = vmatpush.msra.mxu0 %v3942
    %4814 = vmatpush.msra.mxu0 %v3938
    %4815 = vmatpush.msra.mxu0 %v3934
    %4816 = vmatpush.msra.mxu0 %v3930
    %4817 = vmatmul.f32.gmra.mxu0 %v3816
    %v4818 = vpop.f32.mrf.mxu0
    %v4819 = vadd.f32 %v4754, %v4818
    %4820 = vmatmul.f32.gmra.mxu0 %v3819
    %v4821 = vpop.f32.mrf.mxu0
    %v4822 = vadd.f32 %v4757, %v4821
    %4823 = vmatmul.f32.gmra.mxu0 %v3822
    %v4824 = vpop.f32.mrf.mxu0
    %v4825 = vadd.f32 %v4760, %v4824
    %4826 = vmatmul.f32.gmra.mxu0 %v3825
    %v4827 = vpop.f32.mrf.mxu0
    %v4828 = vadd.f32 %v4763, %v4827
    %4829 = vmatmul.f32.gmra.mxu0 %v3828
    %v4830 = vpop.f32.mrf.mxu0
    %v4831 = vadd.f32 %v4766, %v4830
    %4832 = vmatmul.f32.gmra.mxu0 %v3831
    %v4833 = vpop.f32.mrf.mxu0
    %v4834 = vadd.f32 %v4769, %v4833
    %4835 = vmatmul.f32.gmra.mxu0 %v3834
    %v4836 = vpop.f32.mrf.mxu0
    %v4837 = vadd.f32 %v4772, %v4836
    %4838 = vmatmul.f32.gmra.mxu0 %v3837
    %v4839 = vpop.f32.mrf.mxu0
    %v4840 = vadd.f32 %v4775, %v4839
    %4841 = vmatmul.f32.gmra.mxu0 %v3840
    %v4842 = vpop.f32.mrf.mxu0
    %v4843 = vadd.f32 %v4778, %v4842
    %4844 = vmatmul.f32.gmra.mxu0 %v3843
    %v4845 = vpop.f32.mrf.mxu0
    %v4846 = vadd.f32 %v4781, %v4845
    %4847 = vmatmul.f32.gmra.mxu0 %v3846
    %v4848 = vpop.f32.mrf.mxu0
    %v4849 = vadd.f32 %v4784, %v4848
    %4850 = vmatmul.f32.gmra.mxu0 %v3849
    %v4851 = vpop.f32.mrf.mxu0
    %v4852 = vadd.f32 %v4787, %v4851
    %4853 = vmatmul.f32.gmra.mxu0 %v3852
    %v4854 = vpop.f32.mrf.mxu0
    %v4855 = vadd.f32 %v4790, %v4854
    %4856 = vmatmul.f32.gmra.mxu0 %v3855
    %v4857 = vpop.f32.mrf.mxu0
    %v4858 = vadd.f32 %v4793, %v4857
    %4859 = vmatmul.f32.gmra.mxu0 %v3858
    %v4860 = vpop.f32.mrf.mxu0
    %v4861 = vadd.f32 %v4796, %v4860
    %4862 = vmatmul.f32.gmra.mxu0 %v3861
    %v4863 = vpop.f32.mrf.mxu0
    %v4864 = vadd.f32 %v4799, %v4863
    %4865 = vdwg.mxu0
    %4866 = vmatpush.msra.mxu0 %v4054
    %4867 = vmatpush.msra.mxu0 %v4050
    %4868 = vmatpush.msra.mxu0 %v4046
    %4869 = vmatpush.msra.mxu0 %v4042
    %4870 = vmatpush.msra.mxu0 %v4038
    %4871 = vmatpush.msra.mxu0 %v4034
    %4872 = vmatpush.msra.mxu0 %v4030
    %4873 = vmatpush.msra.mxu0 %v4026
    %4874 = vmatpush.msra.mxu0 %v4022
    %4875 = vmatpush.msra.mxu0 %v4018
    %4876 = vmatpush.msra.mxu0 %v4014
    %4877 = vmatpush.msra.mxu0 %v4010
    %4878 = vmatpush.msra.mxu0 %v4006
    %4879 = vmatpush.msra.mxu0 %v4002
    %4880 = vmatpush.msra.mxu0 %v3998
    %4881 = vmatpush.msra.mxu0 %v3994
    %4882 = vmatmul.f32.gmra.mxu0 %v3817
    %v4883 = vpop.f32.mrf.mxu0
    %v4884 = vadd.f32 %v4819, %v4883
    %4885 = vmatmul.f32.gmra.mxu0 %v3820
    %v4886 = vpop.f32.mrf.mxu0
    %v4887 = vadd.f32 %v4822, %v4886
    %4888 = vmatmul.f32.gmra.mxu0 %v3823
    %v4889 = vpop.f32.mrf.mxu0
    %v4890 = vadd.f32 %v4825, %v4889
    %4891 = vmatmul.f32.gmra.mxu0 %v3826
    %v4892 = vpop.f32.mrf.mxu0
    %v4893 = vadd.f32 %v4828, %v4892
    %4894 = vmatmul.f32.gmra.mxu0 %v3829
    %v4895 = vpop.f32.mrf.mxu0
    %v4896 = vadd.f32 %v4831, %v4895
    %4897 = vmatmul.f32.gmra.mxu0 %v3832
    %v4898 = vpop.f32.mrf.mxu0
    %v4899 = vadd.f32 %v4834, %v4898
    %4900 = vmatmul.f32.gmra.mxu0 %v3835
    %v4901 = vpop.f32.mrf.mxu0
    %v4902 = vadd.f32 %v4837, %v4901
    %4903 = vmatmul.f32.gmra.mxu0 %v3838
    %v4904 = vpop.f32.mrf.mxu0
    %v4905 = vadd.f32 %v4840, %v4904
    %4906 = vmatmul.f32.gmra.mxu0 %v3841
    %v4907 = vpop.f32.mrf.mxu0
    %v4908 = vadd.f32 %v4843, %v4907
    %4909 = vmatmul.f32.gmra.mxu0 %v3844
    %v4910 = vpop.f32.mrf.mxu0
    %v4911 = vadd.f32 %v4846, %v4910
    %4912 = vmatmul.f32.gmra.mxu0 %v3847
    %v4913 = vpop.f32.mrf.mxu0
    %v4914 = vadd.f32 %v4849, %v4913
    %4915 = vmatmul.f32.gmra.mxu0 %v3850
    %v4916 = vpop.f32.mrf.mxu0
    %v4917 = vadd.f32 %v4852, %v4916
    %4918 = vmatmul.f32.gmra.mxu0 %v3853
    %v4919 = vpop.f32.mrf.mxu0
    %v4920 = vadd.f32 %v4855, %v4919
    %4921 = vmatmul.f32.gmra.mxu0 %v3856
    %v4922 = vpop.f32.mrf.mxu0
    %v4923 = vadd.f32 %v4858, %v4922
    %4924 = vmatmul.f32.gmra.mxu0 %v3859
    %v4925 = vpop.f32.mrf.mxu0
    %v4926 = vadd.f32 %v4861, %v4925
    %4927 = vmatmul.f32.gmra.mxu0 %v3862
    %v4928 = vpop.f32.mrf.mxu0
    %v4929 = vadd.f32 %v4864, %v4928
    %4930 = vdwg.mxu0
    %v4931 = vld [vmem:[%s1] sm:$0xff]
    %v4932 = vld [vmem:[%s1 + $0x8] sm:$0xff]
    %v4933 = vld [vmem:[%s1 + $0x10] sm:$0xff]
    %v4934 = vld [vmem:[%s1 + $0x18] sm:$0xff]
    %v4935 = vld [vmem:[%s1 + $0x20] sm:$0xff]
    %v4936 = vld [vmem:[%s1 + $0x28] sm:$0xff]
    %v4937 = vld [vmem:[%s1 + $0x30] sm:$0xff]
    %v4938 = vld [vmem:[%s1 + $0x38] sm:$0xff]
    %v4939 = vld [vmem:[%s1 + $0x40] sm:$0xff]
    %v4940 = vld [vmem:[%s1 + $0x48] sm:$0xff]
    %v4941 = vld [vmem:[%s1 + $0x50] sm:$0xff]
    %v4942 = vld [vmem:[%s1 + $0x58] sm:$0xff]
    %v4943 = vld [vmem:[%s1 + $0x60] sm:$0xff]
    %v4944 = vld [vmem:[%s1 + $0x68] sm:$0xff]
    %v4945 = vld [vmem:[%s1 + $0x70] sm:$0xff]
    %v4946 = vld [vmem:[%s1 + $0x78] sm:$0xff]
    %4948 = vset.pattern.permute.xlu0 0
    %4949 = vperm.xlu0 %4948, %v4931
    %v4950 = vpop.permute.xlu0 %4949
    %4953 = vset.pattern.permute.xlu0 0
    %4954 = vperm.xlu0 %4953, %v4932
    %v4955 = vpop.permute.xlu0 %4954
    %4958 = vset.pattern.permute.xlu0 0
    %4959 = vperm.xlu0 %4958, %v4933
    %v4960 = vpop.permute.xlu0 %4959
    %4963 = vset.pattern.permute.xlu0 0
    %4964 = vperm.xlu0 %4963, %v4934
    %v4965 = vpop.permute.xlu0 %4964
    %4968 = vset.pattern.permute.xlu0 0
    %4969 = vperm.xlu0 %4968, %v4935
    %v4970 = vpop.permute.xlu0 %4969
    %4973 = vset.pattern.permute.xlu0 0
    %4974 = vperm.xlu0 %4973, %v4936
    %v4975 = vpop.permute.xlu0 %4974
    %4978 = vset.pattern.permute.xlu0 0
    %4979 = vperm.xlu0 %4978, %v4937
    %v4980 = vpop.permute.xlu0 %4979
    %4983 = vset.pattern.permute.xlu0 0
    %4984 = vperm.xlu0 %4983, %v4938
    %v4985 = vpop.permute.xlu0 %4984
    %4988 = vset.pattern.permute.xlu0 0
    %4989 = vperm.xlu0 %4988, %v4939
    %v4990 = vpop.permute.xlu0 %4989
    %4993 = vset.pattern.permute.xlu0 0
    %4994 = vperm.xlu0 %4993, %v4940
    %v4995 = vpop.permute.xlu0 %4994
    %4998 = vset.pattern.permute.xlu0 0
    %4999 = vperm.xlu0 %4998, %v4941
    %v5000 = vpop.permute.xlu0 %4999
    %5003 = vset.pattern.permute.xlu0 0
    %5004 = vperm.xlu0 %5003, %v4942
    %v5005 = vpop.permute.xlu0 %5004
    %5008 = vset.pattern.permute.xlu0 0
    %5009 = vperm.xlu0 %5008, %v4943
    %v5010 = vpop.permute.xlu0 %5009
    %5013 = vset.pattern.permute.xlu0 0
    %5014 = vperm.xlu0 %5013, %v4944
    %v5015 = vpop.permute.xlu0 %5014
    %5018 = vset.pattern.permute.xlu0 0
    %5019 = vperm.xlu0 %5018, %v4945
    %v5020 = vpop.permute.xlu0 %5019
    %5023 = vset.pattern.permute.xlu0 0
    %5024 = vperm.xlu0 %5023, %v4946
    %v5025 = vpop.permute.xlu0 %5024
    %v5027 = vadd.f32 %v4299, %v4950
    %v5028 = vadd.f32 %v4302, %v4955
    %v5029 = vadd.f32 %v4305, %v4960
    %v5030 = vadd.f32 %v4308, %v4965
    %v5031 = vadd.f32 %v4311, %v4970
    %v5032 = vadd.f32 %v4314, %v4975
    %v5033 = vadd.f32 %v4317, %v4980
    %v5034 = vadd.f32 %v4320, %v4985
    %v5035 = vadd.f32 %v4323, %v4990
    %v5036 = vadd.f32 %v4326, %v4995
    %v5037 = vadd.f32 %v4329, %v5000
    %v5038 = vadd.f32 %v4332, %v5005
    %v5039 = vadd.f32 %v4335, %v5010
    %v5040 = vadd.f32 %v4338, %v5015
    %v5041 = vadd.f32 %v4341, %v5020
    %v5042 = vadd.f32 %v4344, %v5025
    %5043 = vst [vmem:[#allocation3] sm:$0xff] %v5027
    %5044 = vst [vmem:[#allocation3 + $0x8] sm:$0xff] %v5028
    %5045 = vst [vmem:[#allocation3 + $0x10] sm:$0xff] %v5029
    %5046 = vst [vmem:[#allocation3 + $0x18] sm:$0xff] %v5030
    %5047 = vst [vmem:[#allocation3 + $0x20] sm:$0xff] %v5031
    %5048 = vst [vmem:[#allocation3 + $0x28] sm:$0xff] %v5032
    %5049 = vst [vmem:[#allocation3 + $0x30] sm:$0xff] %v5033
    %5050 = vst [vmem:[#allocation3 + $0x38] sm:$0xff] %v5034
    %5051 = vst [vmem:[#allocation3 + $0x40] sm:$0xff] %v5035
    %5052 = vst [vmem:[#allocation3 + $0x48] sm:$0xff] %v5036
    %5053 = vst [vmem:[#allocation3 + $0x50] sm:$0xff] %v5037
    %5054 = vst [vmem:[#allocation3 + $0x58] sm:$0xff] %v5038
    %5055 = vst [vmem:[#allocation3 + $0x60] sm:$0xff] %v5039
    %5056 = vst [vmem:[#allocation3 + $0x68] sm:$0xff] %v5040
    %5057 = vst [vmem:[#allocation3 + $0x70] sm:$0xff] %v5041
    %5058 = vst [vmem:[#allocation3 + $0x78] sm:$0xff] %v5042
    %s5059 = scalar_lea.vmem %s1, 128
    %v5060 = vld [vmem:[%s5059] sm:$0xff]
    %v5061 = vld [vmem:[%s5059 + $0x8] sm:$0xff]
    %v5062 = vld [vmem:[%s5059 + $0x10] sm:$0xff]
    %v5063 = vld [vmem:[%s5059 + $0x18] sm:$0xff]
    %v5064 = vld [vmem:[%s5059 + $0x20] sm:$0xff]
    %v5065 = vld [vmem:[%s5059 + $0x28] sm:$0xff]
    %v5066 = vld [vmem:[%s5059 + $0x30] sm:$0xff]
    %v5067 = vld [vmem:[%s5059 + $0x38] sm:$0xff]
    %v5068 = vld [vmem:[%s5059 + $0x40] sm:$0xff]
    %v5069 = vld [vmem:[%s5059 + $0x48] sm:$0xff]
    %v5070 = vld [vmem:[%s5059 + $0x50] sm:$0xff]
    %v5071 = vld [vmem:[%s5059 + $0x58] sm:$0xff]
    %v5072 = vld [vmem:[%s5059 + $0x60] sm:$0xff]
    %v5073 = vld [vmem:[%s5059 + $0x68] sm:$0xff]
    %v5074 = vld [vmem:[%s5059 + $0x70] sm:$0xff]
    %v5075 = vld [vmem:[%s5059 + $0x78] sm:$0xff]
    %5077 = vset.pattern.permute.xlu0 0
    %5078 = vperm.xlu0 %5077, %v5060
    %v5079 = vpop.permute.xlu0 %5078
    %5082 = vset.pattern.permute.xlu0 0
    %5083 = vperm.xlu0 %5082, %v5061
    %v5084 = vpop.permute.xlu0 %5083
    %5087 = vset.pattern.permute.xlu0 0
    %5088 = vperm.xlu0 %5087, %v5062
    %v5089 = vpop.permute.xlu0 %5088
    %5092 = vset.pattern.permute.xlu0 0
    %5093 = vperm.xlu0 %5092, %v5063
    %v5094 = vpop.permute.xlu0 %5093
    %5097 = vset.pattern.permute.xlu0 0
    %5098 = vperm.xlu0 %5097, %v5064
    %v5099 = vpop.permute.xlu0 %5098
    %5102 = vset.pattern.permute.xlu0 0
    %5103 = vperm.xlu0 %5102, %v5065
    %v5104 = vpop.permute.xlu0 %5103
    %5107 = vset.pattern.permute.xlu0 0
    %5108 = vperm.xlu0 %5107, %v5066
    %v5109 = vpop.permute.xlu0 %5108
    %5112 = vset.pattern.permute.xlu0 0
    %5113 = vperm.xlu0 %5112, %v5067
    %v5114 = vpop.permute.xlu0 %5113
    %5117 = vset.pattern.permute.xlu0 0
    %5118 = vperm.xlu0 %5117, %v5068
    %v5119 = vpop.permute.xlu0 %5118
    %5122 = vset.pattern.permute.xlu0 0
    %5123 = vperm.xlu0 %5122, %v5069
    %v5124 = vpop.permute.xlu0 %5123
    %5127 = vset.pattern.permute.xlu0 0
    %5128 = vperm.xlu0 %5127, %v5070
    %v5129 = vpop.permute.xlu0 %5128
    %5132 = vset.pattern.permute.xlu0 0
    %5133 = vperm.xlu0 %5132, %v5071
    %v5134 = vpop.permute.xlu0 %5133
    %5137 = vset.pattern.permute.xlu0 0
    %5138 = vperm.xlu0 %5137, %v5072
    %v5139 = vpop.permute.xlu0 %5138
    %5142 = vset.pattern.permute.xlu0 0
    %5143 = vperm.xlu0 %5142, %v5073
    %v5144 = vpop.permute.xlu0 %5143
    %5147 = vset.pattern.permute.xlu0 0
    %5148 = vperm.xlu0 %5147, %v5074
    %v5149 = vpop.permute.xlu0 %5148
    %5152 = vset.pattern.permute.xlu0 0
    %5153 = vperm.xlu0 %5152, %v5075
    %v5154 = vpop.permute.xlu0 %5153
    %v5156 = vadd.f32 %v4494, %v5079
    %v5157 = vadd.f32 %v4497, %v5084
    %v5158 = vadd.f32 %v4500, %v5089
    %v5159 = vadd.f32 %v4503, %v5094
    %v5160 = vadd.f32 %v4506, %v5099
    %v5161 = vadd.f32 %v4509, %v5104
    %v5162 = vadd.f32 %v4512, %v5109
    %v5163 = vadd.f32 %v4515, %v5114
    %v5164 = vadd.f32 %v4518, %v5119
    %v5165 = vadd.f32 %v4521, %v5124
    %v5166 = vadd.f32 %v4524, %v5129
    %v5167 = vadd.f32 %v4527, %v5134
    %v5168 = vadd.f32 %v4530, %v5139
    %v5169 = vadd.f32 %v4533, %v5144
    %v5170 = vadd.f32 %v4536, %v5149
    %v5171 = vadd.f32 %v4539, %v5154
    %s5172 = scalar_lea.vmem [#allocation3], 128
    %5173 = vst [vmem:[%s5172] sm:$0xff] %v5156
    %5174 = vst [vmem:[%s5172 + $0x8] sm:$0xff] %v5157
    %5175 = vst [vmem:[%s5172 + $0x10] sm:$0xff] %v5158
    %5176 = vst [vmem:[%s5172 + $0x18] sm:$0xff] %v5159
    %5177 = vst [vmem:[%s5172 + $0x20] sm:$0xff] %v5160
    %5178 = vst [vmem:[%s5172 + $0x28] sm:$0xff] %v5161
    %5179 = vst [vmem:[%s5172 + $0x30] sm:$0xff] %v5162
    %5180 = vst [vmem:[%s5172 + $0x38] sm:$0xff] %v5163
    %5181 = vst [vmem:[%s5172 + $0x40] sm:$0xff] %v5164
    %5182 = vst [vmem:[%s5172 + $0x48] sm:$0xff] %v5165
    %5183 = vst [vmem:[%s5172 + $0x50] sm:$0xff] %v5166
    %5184 = vst [vmem:[%s5172 + $0x58] sm:$0xff] %v5167
    %5185 = vst [vmem:[%s5172 + $0x60] sm:$0xff] %v5168
    %5186 = vst [vmem:[%s5172 + $0x68] sm:$0xff] %v5169
    %5187 = vst [vmem:[%s5172 + $0x70] sm:$0xff] %v5170
    %5188 = vst [vmem:[%s5172 + $0x78] sm:$0xff] %v5171
    %s5189 = scalar_lea.vmem %s1, 256
    %v5190 = vld [vmem:[%s5189] sm:$0xff]
    %v5191 = vld [vmem:[%s5189 + $0x8] sm:$0xff]
    %v5192 = vld [vmem:[%s5189 + $0x10] sm:$0xff]
    %v5193 = vld [vmem:[%s5189 + $0x18] sm:$0xff]
    %v5194 = vld [vmem:[%s5189 + $0x20] sm:$0xff]
    %v5195 = vld [vmem:[%s5189 + $0x28] sm:$0xff]
    %v5196 = vld [vmem:[%s5189 + $0x30] sm:$0xff]
    %v5197 = vld [vmem:[%s5189 + $0x38] sm:$0xff]
    %v5198 = vld [vmem:[%s5189 + $0x40] sm:$0xff]
    %v5199 = vld [vmem:[%s5189 + $0x48] sm:$0xff]
    %v5200 = vld [vmem:[%s5189 + $0x50] sm:$0xff]
    %v5201 = vld [vmem:[%s5189 + $0x58] sm:$0xff]
    %v5202 = vld [vmem:[%s5189 + $0x60] sm:$0xff]
    %v5203 = vld [vmem:[%s5189 + $0x68] sm:$0xff]
    %v5204 = vld [vmem:[%s5189 + $0x70] sm:$0xff]
    %v5205 = vld [vmem:[%s5189 + $0x78] sm:$0xff]
    %5207 = vset.pattern.permute.xlu0 0
    %5208 = vperm.xlu0 %5207, %v5190
    %v5209 = vpop.permute.xlu0 %5208
    %5212 = vset.pattern.permute.xlu0 0
    %5213 = vperm.xlu0 %5212, %v5191
    %v5214 = vpop.permute.xlu0 %5213
    %5217 = vset.pattern.permute.xlu0 0
    %5218 = vperm.xlu0 %5217, %v5192
    %v5219 = vpop.permute.xlu0 %5218
    %5222 = vset.pattern.permute.xlu0 0
    %5223 = vperm.xlu0 %5222, %v5193
    %v5224 = vpop.permute.xlu0 %5223
    %5227 = vset.pattern.permute.xlu0 0
    %5228 = vperm.xlu0 %5227, %v5194
    %v5229 = vpop.permute.xlu0 %5228
    %5232 = vset.pattern.permute.xlu0 0
    %5233 = vperm.xlu0 %5232, %v5195
    %v5234 = vpop.permute.xlu0 %5233
    %5237 = vset.pattern.permute.xlu0 0
    %5238 = vperm.xlu0 %5237, %v5196
    %v5239 = vpop.permute.xlu0 %5238
    %5242 = vset.pattern.permute.xlu0 0
    %5243 = vperm.xlu0 %5242, %v5197
    %v5244 = vpop.permute.xlu0 %5243
    %5247 = vset.pattern.permute.xlu0 0
    %5248 = vperm.xlu0 %5247, %v5198
    %v5249 = vpop.permute.xlu0 %5248
    %5252 = vset.pattern.permute.xlu0 0
    %5253 = vperm.xlu0 %5252, %v5199
    %v5254 = vpop.permute.xlu0 %5253
    %5257 = vset.pattern.permute.xlu0 0
    %5258 = vperm.xlu0 %5257, %v5200
    %v5259 = vpop.permute.xlu0 %5258
    %5262 = vset.pattern.permute.xlu0 0
    %5263 = vperm.xlu0 %5262, %v5201
    %v5264 = vpop.permute.xlu0 %5263
    %5267 = vset.pattern.permute.xlu0 0
    %5268 = vperm.xlu0 %5267, %v5202
    %v5269 = vpop.permute.xlu0 %5268
    %5272 = vset.pattern.permute.xlu0 0
    %5273 = vperm.xlu0 %5272, %v5203
    %v5274 = vpop.permute.xlu0 %5273
    %5277 = vset.pattern.permute.xlu0 0
    %5278 = vperm.xlu0 %5277, %v5204
    %v5279 = vpop.permute.xlu0 %5278
    %5282 = vset.pattern.permute.xlu0 0
    %5283 = vperm.xlu0 %5282, %v5205
    %v5284 = vpop.permute.xlu0 %5283
    %v5286 = vadd.f32 %v4689, %v5209
    %v5287 = vadd.f32 %v4692, %v5214
    %v5288 = vadd.f32 %v4695, %v5219
    %v5289 = vadd.f32 %v4698, %v5224
    %v5290 = vadd.f32 %v4701, %v5229
    %v5291 = vadd.f32 %v4704, %v5234
    %v5292 = vadd.f32 %v4707, %v5239
    %v5293 = vadd.f32 %v4710, %v5244
    %v5294 = vadd.f32 %v4713, %v5249
    %v5295 = vadd.f32 %v4716, %v5254
    %v5296 = vadd.f32 %v4719, %v5259
    %v5297 = vadd.f32 %v4722, %v5264
    %v5298 = vadd.f32 %v4725, %v5269
    %v5299 = vadd.f32 %v4728, %v5274
    %v5300 = vadd.f32 %v4731, %v5279
    %v5301 = vadd.f32 %v4734, %v5284
    %s5302 = scalar_lea.vmem [#allocation3], 256
    %5303 = vst [vmem:[%s5302] sm:$0xff] %v5286
    %5304 = vst [vmem:[%s5302 + $0x8] sm:$0xff] %v5287
    %5305 = vst [vmem:[%s5302 + $0x10] sm:$0xff] %v5288
    %5306 = vst [vmem:[%s5302 + $0x18] sm:$0xff] %v5289
    %5307 = vst [vmem:[%s5302 + $0x20] sm:$0xff] %v5290
    %5308 = vst [vmem:[%s5302 + $0x28] sm:$0xff] %v5291
    %5309 = vst [vmem:[%s5302 + $0x30] sm:$0xff] %v5292
    %5310 = vst [vmem:[%s5302 + $0x38] sm:$0xff] %v5293
    %5311 = vst [vmem:[%s5302 + $0x40] sm:$0xff] %v5294
    %5312 = vst [vmem:[%s5302 + $0x48] sm:$0xff] %v5295
    %5313 = vst [vmem:[%s5302 + $0x50] sm:$0xff] %v5296
    %5314 = vst [vmem:[%s5302 + $0x58] sm:$0xff] %v5297
    %5315 = vst [vmem:[%s5302 + $0x60] sm:$0xff] %v5298
    %5316 = vst [vmem:[%s5302 + $0x68] sm:$0xff] %v5299
    %5317 = vst [vmem:[%s5302 + $0x70] sm:$0xff] %v5300
    %5318 = vst [vmem:[%s5302 + $0x78] sm:$0xff] %v5301
    %s5319 = scalar_lea.vmem %s1, 384
    %v5320 = vld [vmem:[%s5319] sm:$0xff]
    %v5321 = vld [vmem:[%s5319 + $0x8] sm:$0xff]
    %v5322 = vld [vmem:[%s5319 + $0x10] sm:$0xff]
    %v5323 = vld [vmem:[%s5319 + $0x18] sm:$0xff]
    %v5324 = vld [vmem:[%s5319 + $0x20] sm:$0xff]
    %v5325 = vld [vmem:[%s5319 + $0x28] sm:$0xff]
    %v5326 = vld [vmem:[%s5319 + $0x30] sm:$0xff]
    %v5327 = vld [vmem:[%s5319 + $0x38] sm:$0xff]
    %v5328 = vld [vmem:[%s5319 + $0x40] sm:$0xff]
    %v5329 = vld [vmem:[%s5319 + $0x48] sm:$0xff]
    %v5330 = vld [vmem:[%s5319 + $0x50] sm:$0xff]
    %v5331 = vld [vmem:[%s5319 + $0x58] sm:$0xff]
    %v5332 = vld [vmem:[%s5319 + $0x60] sm:$0xff]
    %v5333 = vld [vmem:[%s5319 + $0x68] sm:$0xff]
    %v5334 = vld [vmem:[%s5319 + $0x70] sm:$0xff]
    %v5335 = vld [vmem:[%s5319 + $0x78] sm:$0xff]
    %5337 = vset.pattern.permute.xlu0 0
    %5338 = vperm.xlu0 %5337, %v5320
    %v5339 = vpop.permute.xlu0 %5338
    %5342 = vset.pattern.permute.xlu0 0
    %5343 = vperm.xlu0 %5342, %v5321
    %v5344 = vpop.permute.xlu0 %5343
    %5347 = vset.pattern.permute.xlu0 0
    %5348 = vperm.xlu0 %5347, %v5322
    %v5349 = vpop.permute.xlu0 %5348
    %5352 = vset.pattern.permute.xlu0 0
    %5353 = vperm.xlu0 %5352, %v5323
    %v5354 = vpop.permute.xlu0 %5353
    %5357 = vset.pattern.permute.xlu0 0
    %5358 = vperm.xlu0 %5357, %v5324
    %v5359 = vpop.permute.xlu0 %5358
    %5362 = vset.pattern.permute.xlu0 0
    %5363 = vperm.xlu0 %5362, %v5325
    %v5364 = vpop.permute.xlu0 %5363
    %5367 = vset.pattern.permute.xlu0 0
    %5368 = vperm.xlu0 %5367, %v5326
    %v5369 = vpop.permute.xlu0 %5368
    %5372 = vset.pattern.permute.xlu0 0
    %5373 = vperm.xlu0 %5372, %v5327
    %v5374 = vpop.permute.xlu0 %5373
    %5377 = vset.pattern.permute.xlu0 0
    %5378 = vperm.xlu0 %5377, %v5328
    %v5379 = vpop.permute.xlu0 %5378
    %5382 = vset.pattern.permute.xlu0 0
    %5383 = vperm.xlu0 %5382, %v5329
    %v5384 = vpop.permute.xlu0 %5383
    %5387 = vset.pattern.permute.xlu0 0
    %5388 = vperm.xlu0 %5387, %v5330
    %v5389 = vpop.permute.xlu0 %5388
    %5392 = vset.pattern.permute.xlu0 0
    %5393 = vperm.xlu0 %5392, %v5331
    %v5394 = vpop.permute.xlu0 %5393
    %5397 = vset.pattern.permute.xlu0 0
    %5398 = vperm.xlu0 %5397, %v5332
    %v5399 = vpop.permute.xlu0 %5398
    %5402 = vset.pattern.permute.xlu0 0
    %5403 = vperm.xlu0 %5402, %v5333
    %v5404 = vpop.permute.xlu0 %5403
    %5407 = vset.pattern.permute.xlu0 0
    %5408 = vperm.xlu0 %5407, %v5334
    %v5409 = vpop.permute.xlu0 %5408
    %5412 = vset.pattern.permute.xlu0 0
    %5413 = vperm.xlu0 %5412, %v5335
    %v5414 = vpop.permute.xlu0 %5413
    %v5416 = vadd.f32 %v4884, %v5339
    %v5417 = vadd.f32 %v4887, %v5344
    %v5418 = vadd.f32 %v4890, %v5349
    %v5419 = vadd.f32 %v4893, %v5354
    %v5420 = vadd.f32 %v4896, %v5359
    %v5421 = vadd.f32 %v4899, %v5364
    %v5422 = vadd.f32 %v4902, %v5369
    %v5423 = vadd.f32 %v4905, %v5374
    %v5424 = vadd.f32 %v4908, %v5379
    %v5425 = vadd.f32 %v4911, %v5384
    %v5426 = vadd.f32 %v4914, %v5389
    %v5427 = vadd.f32 %v4917, %v5394
    %v5428 = vadd.f32 %v4920, %v5399
    %v5429 = vadd.f32 %v4923, %v5404
    %v5430 = vadd.f32 %v4926, %v5409
    %v5431 = vadd.f32 %v4929, %v5414
    %s5432 = scalar_lea.vmem [#allocation3], 384
    %5433 = vst [vmem:[%s5432] sm:$0xff] %v5416
    %5434 = vst [vmem:[%s5432 + $0x8] sm:$0xff] %v5417
    %5435 = vst [vmem:[%s5432 + $0x10] sm:$0xff] %v5418
    %5436 = vst [vmem:[%s5432 + $0x18] sm:$0xff] %v5419
    %5437 = vst [vmem:[%s5432 + $0x20] sm:$0xff] %v5420
    %5438 = vst [vmem:[%s5432 + $0x28] sm:$0xff] %v5421
    %5439 = vst [vmem:[%s5432 + $0x30] sm:$0xff] %v5422
    %5440 = vst [vmem:[%s5432 + $0x38] sm:$0xff] %v5423
    %5441 = vst [vmem:[%s5432 + $0x40] sm:$0xff] %v5424
    %5442 = vst [vmem:[%s5432 + $0x48] sm:$0xff] %v5425
    %5443 = vst [vmem:[%s5432 + $0x50] sm:$0xff] %v5426
    %5444 = vst [vmem:[%s5432 + $0x58] sm:$0xff] %v5427
    %5445 = vst [vmem:[%s5432 + $0x60] sm:$0xff] %v5428
    %5446 = vst [vmem:[%s5432 + $0x68] sm:$0xff] %v5429
    %5447 = vst [vmem:[%s5432 + $0x70] sm:$0xff] %v5430
    %5448 = vst [vmem:[%s5432 + $0x78] sm:$0xff] %v5431
    %v5449 = vld [vmem:[%s7] sm:$0xff]
    %v5450 = vld [vmem:[%s7 + $0x8] sm:$0xff]
    %v5451 = vld [vmem:[%s7 + $0x10] sm:$0xff]
    %v5452 = vld [vmem:[%s7 + $0x18] sm:$0xff]
    %v5453 = vld [vmem:[%s7 + $0x20] sm:$0xff]
    %v5454 = vld [vmem:[%s7 + $0x28] sm:$0xff]
    %v5455 = vld [vmem:[%s7 + $0x30] sm:$0xff]
    %v5456 = vld [vmem:[%s7 + $0x38] sm:$0xff]
    %v5457 = vld [vmem:[%s7 + $0x40] sm:$0xff]
    %v5458 = vld [vmem:[%s7 + $0x48] sm:$0xff]
    %v5459 = vld [vmem:[%s7 + $0x50] sm:$0xff]
    %v5460 = vld [vmem:[%s7 + $0x58] sm:$0xff]
    %v5461 = vld [vmem:[%s7 + $0x60] sm:$0xff]
    %v5462 = vld [vmem:[%s7 + $0x68] sm:$0xff]
    %v5463 = vld [vmem:[%s7 + $0x70] sm:$0xff]
    %v5464 = vld [vmem:[%s7 + $0x78] sm:$0xff]
    %v5465 = vld [vmem:[%s8] sm:$0xff]
    %v5466 = vld [vmem:[%s8 + $0x8] sm:$0xff]
    %v5467 = vld [vmem:[%s8 + $0x10] sm:$0xff]
    %v5468 = vld [vmem:[%s8 + $0x18] sm:$0xff]
    %v5469 = vld [vmem:[%s8 + $0x20] sm:$0xff]
    %v5470 = vld [vmem:[%s8 + $0x28] sm:$0xff]
    %v5471 = vld [vmem:[%s8 + $0x30] sm:$0xff]
    %v5472 = vld [vmem:[%s8 + $0x38] sm:$0xff]
    %v5473 = vld [vmem:[%s8 + $0x40] sm:$0xff]
    %v5474 = vld [vmem:[%s8 + $0x48] sm:$0xff]
    %v5475 = vld [vmem:[%s8 + $0x50] sm:$0xff]
    %v5476 = vld [vmem:[%s8 + $0x58] sm:$0xff]
    %v5477 = vld [vmem:[%s8 + $0x60] sm:$0xff]
    %v5478 = vld [vmem:[%s8 + $0x68] sm:$0xff]
    %v5479 = vld [vmem:[%s8 + $0x70] sm:$0xff]
    %v5480 = vld [vmem:[%s8 + $0x78] sm:$0xff]
    %v5481 = vld [vmem:[#allocation3] sm:$0xff]
    %v5482 = vld [vmem:[#allocation3 + $0x8] sm:$0xff]
    %v5483 = vld [vmem:[#allocation3 + $0x10] sm:$0xff]
    %v5484 = vld [vmem:[#allocation3 + $0x18] sm:$0xff]
    %v5485 = vld [vmem:[#allocation3 + $0x20] sm:$0xff]
    %v5486 = vld [vmem:[#allocation3 + $0x28] sm:$0xff]
    %v5487 = vld [vmem:[#allocation3 + $0x30] sm:$0xff]
    %v5488 = vld [vmem:[#allocation3 + $0x38] sm:$0xff]
    %v5489 = vld [vmem:[#allocation3 + $0x40] sm:$0xff]
    %v5490 = vld [vmem:[#allocation3 + $0x48] sm:$0xff]
    %v5491 = vld [vmem:[#allocation3 + $0x50] sm:$0xff]
    %v5492 = vld [vmem:[#allocation3 + $0x58] sm:$0xff]
    %v5493 = vld [vmem:[#allocation3 + $0x60] sm:$0xff]
    %v5494 = vld [vmem:[#allocation3 + $0x68] sm:$0xff]
    %v5495 = vld [vmem:[#allocation3 + $0x70] sm:$0xff]
    %v5496 = vld [vmem:[#allocation3 + $0x78] sm:$0xff]
    %5497 = vadd.xlane.f32.xlu0 %v5481
    %v5498 = vpop.xlane.xlu0 %5497
    %5499 = vadd.xlane.f32.xlu0 %v5482
    %v5500 = vpop.xlane.xlu0 %5499
    %5501 = vadd.xlane.f32.xlu0 %v5483
    %v5502 = vpop.xlane.xlu0 %5501
    %5503 = vadd.xlane.f32.xlu0 %v5484
    %v5504 = vpop.xlane.xlu0 %5503
    %5505 = vadd.xlane.f32.xlu0 %v5485
    %v5506 = vpop.xlane.xlu0 %5505
    %5507 = vadd.xlane.f32.xlu0 %v5486
    %v5508 = vpop.xlane.xlu0 %5507
    %5509 = vadd.xlane.f32.xlu0 %v5487
    %v5510 = vpop.xlane.xlu0 %5509
    %5511 = vadd.xlane.f32.xlu0 %v5488
    %v5512 = vpop.xlane.xlu0 %5511
    %5513 = vadd.xlane.f32.xlu0 %v5489
    %v5514 = vpop.xlane.xlu0 %5513
    %5515 = vadd.xlane.f32.xlu0 %v5490
    %v5516 = vpop.xlane.xlu0 %5515
    %5517 = vadd.xlane.f32.xlu0 %v5491
    %v5518 = vpop.xlane.xlu0 %5517
    %5519 = vadd.xlane.f32.xlu0 %v5492
    %v5520 = vpop.xlane.xlu0 %5519
    %5521 = vadd.xlane.f32.xlu0 %v5493
    %v5522 = vpop.xlane.xlu0 %5521
    %5523 = vadd.xlane.f32.xlu0 %v5494
    %v5524 = vpop.xlane.xlu0 %5523
    %5525 = vadd.xlane.f32.xlu0 %v5495
    %v5526 = vpop.xlane.xlu0 %5525
    %5527 = vadd.xlane.f32.xlu0 %v5496
    %v5528 = vpop.xlane.xlu0 %5527
    %v5529 = vld [vmem:[%s5172] sm:$0xff]
    %v5530 = vld [vmem:[%s5172 + $0x8] sm:$0xff]
    %v5531 = vld [vmem:[%s5172 + $0x10] sm:$0xff]
    %v5532 = vld [vmem:[%s5172 + $0x18] sm:$0xff]
    %v5533 = vld [vmem:[%s5172 + $0x20] sm:$0xff]
    %v5534 = vld [vmem:[%s5172 + $0x28] sm:$0xff]
    %v5535 = vld [vmem:[%s5172 + $0x30] sm:$0xff]
    %v5536 = vld [vmem:[%s5172 + $0x38] sm:$0xff]
    %v5537 = vld [vmem:[%s5172 + $0x40] sm:$0xff]
    %v5538 = vld [vmem:[%s5172 + $0x48] sm:$0xff]
    %v5539 = vld [vmem:[%s5172 + $0x50] sm:$0xff]
    %v5540 = vld [vmem:[%s5172 + $0x58] sm:$0xff]
    %v5541 = vld [vmem:[%s5172 + $0x60] sm:$0xff]
    %v5542 = vld [vmem:[%s5172 + $0x68] sm:$0xff]
    %v5543 = vld [vmem:[%s5172 + $0x70] sm:$0xff]
    %v5544 = vld [vmem:[%s5172 + $0x78] sm:$0xff]
    %5545 = vadd.xlane.f32.xlu0 %v5529
    %v5546 = vpop.xlane.xlu0 %5545
    %5547 = vadd.xlane.f32.xlu0 %v5530
    %v5548 = vpop.xlane.xlu0 %5547
    %5549 = vadd.xlane.f32.xlu0 %v5531
    %v5550 = vpop.xlane.xlu0 %5549
    %5551 = vadd.xlane.f32.xlu0 %v5532
    %v5552 = vpop.xlane.xlu0 %5551
    %5553 = vadd.xlane.f32.xlu0 %v5533
    %v5554 = vpop.xlane.xlu0 %5553
    %5555 = vadd.xlane.f32.xlu0 %v5534
    %v5556 = vpop.xlane.xlu0 %5555
    %5557 = vadd.xlane.f32.xlu0 %v5535
    %v5558 = vpop.xlane.xlu0 %5557
    %5559 = vadd.xlane.f32.xlu0 %v5536
    %v5560 = vpop.xlane.xlu0 %5559
    %5561 = vadd.xlane.f32.xlu0 %v5537
    %v5562 = vpop.xlane.xlu0 %5561
    %5563 = vadd.xlane.f32.xlu0 %v5538
    %v5564 = vpop.xlane.xlu0 %5563
    %5565 = vadd.xlane.f32.xlu0 %v5539
    %v5566 = vpop.xlane.xlu0 %5565
    %5567 = vadd.xlane.f32.xlu0 %v5540
    %v5568 = vpop.xlane.xlu0 %5567
    %5569 = vadd.xlane.f32.xlu0 %v5541
    %v5570 = vpop.xlane.xlu0 %5569
    %5571 = vadd.xlane.f32.xlu0 %v5542
    %v5572 = vpop.xlane.xlu0 %5571
    %5573 = vadd.xlane.f32.xlu0 %v5543
    %v5574 = vpop.xlane.xlu0 %5573
    %5575 = vadd.xlane.f32.xlu0 %v5544
    %v5576 = vpop.xlane.xlu0 %5575
    %v5577 = vld [vmem:[%s5302] sm:$0xff]
    %v5578 = vld [vmem:[%s5302 + $0x8] sm:$0xff]
    %v5579 = vld [vmem:[%s5302 + $0x10] sm:$0xff]
    %v5580 = vld [vmem:[%s5302 + $0x18] sm:$0xff]
    %v5581 = vld [vmem:[%s5302 + $0x20] sm:$0xff]
    %v5582 = vld [vmem:[%s5302 + $0x28] sm:$0xff]
    %v5583 = vld [vmem:[%s5302 + $0x30] sm:$0xff]
    %v5584 = vld [vmem:[%s5302 + $0x38] sm:$0xff]
    %v5585 = vld [vmem:[%s5302 + $0x40] sm:$0xff]
    %v5586 = vld [vmem:[%s5302 + $0x48] sm:$0xff]
    %v5587 = vld [vmem:[%s5302 + $0x50] sm:$0xff]
    %v5588 = vld [vmem:[%s5302 + $0x58] sm:$0xff]
    %v5589 = vld [vmem:[%s5302 + $0x60] sm:$0xff]
    %v5590 = vld [vmem:[%s5302 + $0x68] sm:$0xff]
    %v5591 = vld [vmem:[%s5302 + $0x70] sm:$0xff]
    %v5592 = vld [vmem:[%s5302 + $0x78] sm:$0xff]
    %5593 = vadd.xlane.f32.xlu0 %v5577
    %v5594 = vpop.xlane.xlu0 %5593
    %5595 = vadd.xlane.f32.xlu0 %v5578
    %v5596 = vpop.xlane.xlu0 %5595
    %5597 = vadd.xlane.f32.xlu0 %v5579
    %v5598 = vpop.xlane.xlu0 %5597
    %5599 = vadd.xlane.f32.xlu0 %v5580
    %v5600 = vpop.xlane.xlu0 %5599
    %5601 = vadd.xlane.f32.xlu0 %v5581
    %v5602 = vpop.xlane.xlu0 %5601
    %5603 = vadd.xlane.f32.xlu0 %v5582
    %v5604 = vpop.xlane.xlu0 %5603
    %5605 = vadd.xlane.f32.xlu0 %v5583
    %v5606 = vpop.xlane.xlu0 %5605
    %5607 = vadd.xlane.f32.xlu0 %v5584
    %v5608 = vpop.xlane.xlu0 %5607
    %5609 = vadd.xlane.f32.xlu0 %v5585
    %v5610 = vpop.xlane.xlu0 %5609
    %5611 = vadd.xlane.f32.xlu0 %v5586
    %v5612 = vpop.xlane.xlu0 %5611
    %5613 = vadd.xlane.f32.xlu0 %v5587
    %v5614 = vpop.xlane.xlu0 %5613
    %5615 = vadd.xlane.f32.xlu0 %v5588
    %v5616 = vpop.xlane.xlu0 %5615
    %5617 = vadd.xlane.f32.xlu0 %v5589
    %v5618 = vpop.xlane.xlu0 %5617
    %5619 = vadd.xlane.f32.xlu0 %v5590
    %v5620 = vpop.xlane.xlu0 %5619
    %5621 = vadd.xlane.f32.xlu0 %v5591
    %v5622 = vpop.xlane.xlu0 %5621
    %5623 = vadd.xlane.f32.xlu0 %v5592
    %v5624 = vpop.xlane.xlu0 %5623
    %v5625 = vld [vmem:[%s5432] sm:$0xff]
    %v5626 = vld [vmem:[%s5432 + $0x8] sm:$0xff]
    %v5627 = vld [vmem:[%s5432 + $0x10] sm:$0xff]
    %v5628 = vld [vmem:[%s5432 + $0x18] sm:$0xff]
    %v5629 = vld [vmem:[%s5432 + $0x20] sm:$0xff]
    %v5630 = vld [vmem:[%s5432 + $0x28] sm:$0xff]
    %v5631 = vld [vmem:[%s5432 + $0x30] sm:$0xff]
    %v5632 = vld [vmem:[%s5432 + $0x38] sm:$0xff]
    %v5633 = vld [vmem:[%s5432 + $0x40] sm:$0xff]
    %v5634 = vld [vmem:[%s5432 + $0x48] sm:$0xff]
    %v5635 = vld [vmem:[%s5432 + $0x50] sm:$0xff]
    %v5636 = vld [vmem:[%s5432 + $0x58] sm:$0xff]
    %v5637 = vld [vmem:[%s5432 + $0x60] sm:$0xff]
    %v5638 = vld [vmem:[%s5432 + $0x68] sm:$0xff]
    %v5639 = vld [vmem:[%s5432 + $0x70] sm:$0xff]
    %v5640 = vld [vmem:[%s5432 + $0x78] sm:$0xff]
    %5641 = vadd.xlane.f32.xlu0 %v5625
    %v5642 = vpop.xlane.xlu0 %5641
    %5643 = vadd.xlane.f32.xlu0 %v5626
    %v5644 = vpop.xlane.xlu0 %5643
    %5645 = vadd.xlane.f32.xlu0 %v5627
    %v5646 = vpop.xlane.xlu0 %5645
    %5647 = vadd.xlane.f32.xlu0 %v5628
    %v5648 = vpop.xlane.xlu0 %5647
    %5649 = vadd.xlane.f32.xlu0 %v5629
    %v5650 = vpop.xlane.xlu0 %5649
    %5651 = vadd.xlane.f32.xlu0 %v5630
    %v5652 = vpop.xlane.xlu0 %5651
    %5653 = vadd.xlane.f32.xlu0 %v5631
    %v5654 = vpop.xlane.xlu0 %5653
    %5655 = vadd.xlane.f32.xlu0 %v5632
    %v5656 = vpop.xlane.xlu0 %5655
    %5657 = vadd.xlane.f32.xlu0 %v5633
    %v5658 = vpop.xlane.xlu0 %5657
    %5659 = vadd.xlane.f32.xlu0 %v5634
    %v5660 = vpop.xlane.xlu0 %5659
    %5661 = vadd.xlane.f32.xlu0 %v5635
    %v5662 = vpop.xlane.xlu0 %5661
    %5663 = vadd.xlane.f32.xlu0 %v5636
    %v5664 = vpop.xlane.xlu0 %5663
    %5665 = vadd.xlane.f32.xlu0 %v5637
    %v5666 = vpop.xlane.xlu0 %5665
    %5667 = vadd.xlane.f32.xlu0 %v5638
    %v5668 = vpop.xlane.xlu0 %5667
    %5669 = vadd.xlane.f32.xlu0 %v5639
    %v5670 = vpop.xlane.xlu0 %5669
    %5671 = vadd.xlane.f32.xlu0 %v5640
    %v5672 = vpop.xlane.xlu0 %5671
    %v5673 = vsel %vm322, %v5498, %v5546
    %v5674 = vsel %vm322, %v5500, %v5548
    %v5675 = vsel %vm322, %v5502, %v5550
    %v5676 = vsel %vm322, %v5504, %v5552
    %v5677 = vsel %vm322, %v5506, %v5554
    %v5678 = vsel %vm322, %v5508, %v5556
    %v5679 = vsel %vm322, %v5510, %v5558
    %v5680 = vsel %vm322, %v5512, %v5560
    %v5681 = vsel %vm322, %v5514, %v5562
    %v5682 = vsel %vm322, %v5516, %v5564
    %v5683 = vsel %vm322, %v5518, %v5566
    %v5684 = vsel %vm322, %v5520, %v5568
    %v5685 = vsel %vm322, %v5522, %v5570
    %v5686 = vsel %vm322, %v5524, %v5572
    %v5687 = vsel %vm322, %v5526, %v5574
    %v5688 = vsel %vm322, %v5528, %v5576
    %v5689 = vsel %vm339, %v5673, %v5594
    %v5690 = vsel %vm339, %v5674, %v5596
    %v5691 = vsel %vm339, %v5675, %v5598
    %v5692 = vsel %vm339, %v5676, %v5600
    %v5693 = vsel %vm339, %v5677, %v5602
    %v5694 = vsel %vm339, %v5678, %v5604
    %v5695 = vsel %vm339, %v5679, %v5606
    %v5696 = vsel %vm339, %v5680, %v5608
    %v5697 = vsel %vm339, %v5681, %v5610
    %v5698 = vsel %vm339, %v5682, %v5612
    %v5699 = vsel %vm339, %v5683, %v5614
    %v5700 = vsel %vm339, %v5684, %v5616
    %v5701 = vsel %vm339, %v5685, %v5618
    %v5702 = vsel %vm339, %v5686, %v5620
    %v5703 = vsel %vm339, %v5687, %v5622
    %v5704 = vsel %vm339, %v5688, %v5624
    %v5705 = vsel %vm356, %v5689, %v5642
    %v5706 = vsel %vm356, %v5690, %v5644
    %v5707 = vsel %vm356, %v5691, %v5646
    %v5708 = vsel %vm356, %v5692, %v5648
    %v5709 = vsel %vm356, %v5693, %v5650
    %v5710 = vsel %vm356, %v5694, %v5652
    %v5711 = vsel %vm356, %v5695, %v5654
    %v5712 = vsel %vm356, %v5696, %v5656
    %v5713 = vsel %vm356, %v5697, %v5658
    %v5714 = vsel %vm356, %v5698, %v5660
    %v5715 = vsel %vm356, %v5699, %v5662
    %v5716 = vsel %vm356, %v5700, %v5664
    %v5717 = vsel %vm356, %v5701, %v5666
    %v5718 = vsel %vm356, %v5702, %v5668
    %v5719 = vsel %vm356, %v5703, %v5670
    %v5720 = vsel %vm356, %v5704, %v5672
    %5721 = vmatpush.msra.mxu0 %v5720
    %5722 = vmatpush.msra.mxu0 %v5719
    %5723 = vmatpush.msra.mxu0 %v5718
    %5724 = vmatpush.msra.mxu0 %v5717
    %5725 = vmatpush.msra.mxu0 %v5716
    %5726 = vmatpush.msra.mxu0 %v5715
    %5727 = vmatpush.msra.mxu0 %v5714
    %5728 = vmatpush.msra.mxu0 %v5713
    %5729 = vmatpush.msra.mxu0 %v5712
    %5730 = vmatpush.msra.mxu0 %v5711
    %5731 = vmatpush.msra.mxu0 %v5710
    %5732 = vmatpush.msra.mxu0 %v5709
    %5733 = vmatpush.msra.mxu0 %v5708
    %5734 = vmatpush.msra.mxu0 %v5707
    %5735 = vmatpush.msra.mxu0 %v5706
    %5736 = vmatpush.msra.mxu0 %v5705
    %5737 = vmatmul.f32.gmra.mxu0 %v79
    %v5738 = vpop.f32.mrf.mxu0
    %v5739 = vadd.f32 0.0, %v5738
    %5740 = vmatmul.f32.gmra.mxu0 %v80
    %v5741 = vpop.f32.mrf.mxu0
    %v5742 = vadd.f32 0.0, %v5741
    %5743 = vmatmul.f32.gmra.mxu0 %v81
    %v5744 = vpop.f32.mrf.mxu0
    %v5745 = vadd.f32 0.0, %v5744
    %5746 = vmatmul.f32.gmra.mxu0 %v82
    %v5747 = vpop.f32.mrf.mxu0
    %v5748 = vadd.f32 0.0, %v5747
    %5749 = vmatmul.f32.gmra.mxu0 %v83
    %v5750 = vpop.f32.mrf.mxu0
    %v5751 = vadd.f32 0.0, %v5750
    %5752 = vmatmul.f32.gmra.mxu0 %v84
    %v5753 = vpop.f32.mrf.mxu0
    %v5754 = vadd.f32 0.0, %v5753
    %5755 = vmatmul.f32.gmra.mxu0 %v85
    %v5756 = vpop.f32.mrf.mxu0
    %v5757 = vadd.f32 0.0, %v5756
    %5758 = vmatmul.f32.gmra.mxu0 %v86
    %v5759 = vpop.f32.mrf.mxu0
    %v5760 = vadd.f32 0.0, %v5759
    %5761 = vmatmul.f32.gmra.mxu0 %v87
    %v5762 = vpop.f32.mrf.mxu0
    %v5763 = vadd.f32 0.0, %v5762
    %5764 = vmatmul.f32.gmra.mxu0 %v88
    %v5765 = vpop.f32.mrf.mxu0
    %v5766 = vadd.f32 0.0, %v5765
    %5767 = vmatmul.f32.gmra.mxu0 %v89
    %v5768 = vpop.f32.mrf.mxu0
    %v5769 = vadd.f32 0.0, %v5768
    %5770 = vmatmul.f32.gmra.mxu0 %v90
    %v5771 = vpop.f32.mrf.mxu0
    %v5772 = vadd.f32 0.0, %v5771
    %5773 = vmatmul.f32.gmra.mxu0 %v91
    %v5774 = vpop.f32.mrf.mxu0
    %v5775 = vadd.f32 0.0, %v5774
    %5776 = vmatmul.f32.gmra.mxu0 %v92
    %v5777 = vpop.f32.mrf.mxu0
    %v5778 = vadd.f32 0.0, %v5777
    %5779 = vmatmul.f32.gmra.mxu0 %v93
    %v5780 = vpop.f32.mrf.mxu0
    %v5781 = vadd.f32 0.0, %v5780
    %5782 = vmatmul.f32.gmra.mxu0 %v94
    %v5783 = vpop.f32.mrf.mxu0
    %v5784 = vadd.f32 0.0, %v5783
    %5785 = vdwg.mxu0
    %5787 = vset.pattern.permute.xlu0 0
    %5788 = vperm.xlu0 %5787, %v5739
    %v5789 = vpop.permute.xlu0 %5788
    %5792 = vset.pattern.permute.xlu0 0
    %5793 = vperm.xlu0 %5792, %v5742
    %v5794 = vpop.permute.xlu0 %5793
    %5797 = vset.pattern.permute.xlu0 0
    %5798 = vperm.xlu0 %5797, %v5745
    %v5799 = vpop.permute.xlu0 %5798
    %5802 = vset.pattern.permute.xlu0 0
    %5803 = vperm.xlu0 %5802, %v5748
    %v5804 = vpop.permute.xlu0 %5803
    %5807 = vset.pattern.permute.xlu0 0
    %5808 = vperm.xlu0 %5807, %v5751
    %v5809 = vpop.permute.xlu0 %5808
    %5812 = vset.pattern.permute.xlu0 0
    %5813 = vperm.xlu0 %5812, %v5754
    %v5814 = vpop.permute.xlu0 %5813
    %5817 = vset.pattern.permute.xlu0 0
    %5818 = vperm.xlu0 %5817, %v5757
    %v5819 = vpop.permute.xlu0 %5818
    %5822 = vset.pattern.permute.xlu0 0
    %5823 = vperm.xlu0 %5822, %v5760
    %v5824 = vpop.permute.xlu0 %5823
    %5827 = vset.pattern.permute.xlu0 0
    %5828 = vperm.xlu0 %5827, %v5763
    %v5829 = vpop.permute.xlu0 %5828
    %5832 = vset.pattern.permute.xlu0 0
    %5833 = vperm.xlu0 %5832, %v5766
    %v5834 = vpop.permute.xlu0 %5833
    %5837 = vset.pattern.permute.xlu0 0
    %5838 = vperm.xlu0 %5837, %v5769
    %v5839 = vpop.permute.xlu0 %5838
    %5842 = vset.pattern.permute.xlu0 0
    %5843 = vperm.xlu0 %5842, %v5772
    %v5844 = vpop.permute.xlu0 %5843
    %5847 = vset.pattern.permute.xlu0 0
    %5848 = vperm.xlu0 %5847, %v5775
    %v5849 = vpop.permute.xlu0 %5848
    %5852 = vset.pattern.permute.xlu0 0
    %5853 = vperm.xlu0 %5852, %v5778
    %v5854 = vpop.permute.xlu0 %5853
    %5857 = vset.pattern.permute.xlu0 0
    %5858 = vperm.xlu0 %5857, %v5781
    %v5859 = vpop.permute.xlu0 %5858
    %5862 = vset.pattern.permute.xlu0 0
    %5863 = vperm.xlu0 %5862, %v5784
    %v5864 = vpop.permute.xlu0 %5863
    %v5866 = vsub.f32 %v5481, %v5789
    %v5867 = vsub.f32 %v5482, %v5794
    %v5868 = vsub.f32 %v5483, %v5799
    %v5869 = vsub.f32 %v5484, %v5804
    %v5870 = vsub.f32 %v5485, %v5809
    %v5871 = vsub.f32 %v5486, %v5814
    %v5872 = vsub.f32 %v5487, %v5819
    %v5873 = vsub.f32 %v5488, %v5824
    %v5874 = vsub.f32 %v5489, %v5829
    %v5875 = vsub.f32 %v5490, %v5834
    %v5876 = vsub.f32 %v5491, %v5839
    %v5877 = vsub.f32 %v5492, %v5844
    %v5878 = vsub.f32 %v5493, %v5849
    %v5879 = vsub.f32 %v5494, %v5854
    %v5880 = vsub.f32 %v5495, %v5859
    %v5881 = vsub.f32 %v5496, %v5864
    %v5882 = vmul.f32 %v5866, %v5866
    %v5883 = vmul.f32 %v5867, %v5867
    %v5884 = vmul.f32 %v5868, %v5868
    %v5885 = vmul.f32 %v5869, %v5869
    %v5886 = vmul.f32 %v5870, %v5870
    %v5887 = vmul.f32 %v5871, %v5871
    %v5888 = vmul.f32 %v5872, %v5872
    %v5889 = vmul.f32 %v5873, %v5873
    %v5890 = vmul.f32 %v5874, %v5874
    %v5891 = vmul.f32 %v5875, %v5875
    %v5892 = vmul.f32 %v5876, %v5876
    %v5893 = vmul.f32 %v5877, %v5877
    %v5894 = vmul.f32 %v5878, %v5878
    %v5895 = vmul.f32 %v5879, %v5879
    %v5896 = vmul.f32 %v5880, %v5880
    %v5897 = vmul.f32 %v5881, %v5881
    %5898 = vadd.xlane.f32.xlu0 %v5882
    %v5899 = vpop.xlane.xlu0 %5898
    %5900 = vadd.xlane.f32.xlu0 %v5883
    %v5901 = vpop.xlane.xlu0 %5900
    %5902 = vadd.xlane.f32.xlu0 %v5884
    %v5903 = vpop.xlane.xlu0 %5902
    %5904 = vadd.xlane.f32.xlu0 %v5885
    %v5905 = vpop.xlane.xlu0 %5904
    %5906 = vadd.xlane.f32.xlu0 %v5886
    %v5907 = vpop.xlane.xlu0 %5906
    %5908 = vadd.xlane.f32.xlu0 %v5887
    %v5909 = vpop.xlane.xlu0 %5908
    %5910 = vadd.xlane.f32.xlu0 %v5888
    %v5911 = vpop.xlane.xlu0 %5910
    %5912 = vadd.xlane.f32.xlu0 %v5889
    %v5913 = vpop.xlane.xlu0 %5912
    %5914 = vadd.xlane.f32.xlu0 %v5890
    %v5915 = vpop.xlane.xlu0 %5914
    %5916 = vadd.xlane.f32.xlu0 %v5891
    %v5917 = vpop.xlane.xlu0 %5916
    %5918 = vadd.xlane.f32.xlu0 %v5892
    %v5919 = vpop.xlane.xlu0 %5918
    %5920 = vadd.xlane.f32.xlu0 %v5893
    %v5921 = vpop.xlane.xlu0 %5920
    %5922 = vadd.xlane.f32.xlu0 %v5894
    %v5923 = vpop.xlane.xlu0 %5922
    %5924 = vadd.xlane.f32.xlu0 %v5895
    %v5925 = vpop.xlane.xlu0 %5924
    %5926 = vadd.xlane.f32.xlu0 %v5896
    %v5927 = vpop.xlane.xlu0 %5926
    %5928 = vadd.xlane.f32.xlu0 %v5897
    %v5929 = vpop.xlane.xlu0 %5928
    %5930 = vset.pattern.permute.xlu0 1
    %5931 = vperm.xlu0 %5930, %v5739
    %v5932 = vpop.permute.xlu0 %5931
    %5934 = vset.pattern.permute.xlu0 1
    %5935 = vperm.xlu0 %5934, %v5742
    %v5936 = vpop.permute.xlu0 %5935
    %5938 = vset.pattern.permute.xlu0 1
    %5939 = vperm.xlu0 %5938, %v5745
    %v5940 = vpop.permute.xlu0 %5939
    %5942 = vset.pattern.permute.xlu0 1
    %5943 = vperm.xlu0 %5942, %v5748
    %v5944 = vpop.permute.xlu0 %5943
    %5946 = vset.pattern.permute.xlu0 1
    %5947 = vperm.xlu0 %5946, %v5751
    %v5948 = vpop.permute.xlu0 %5947
    %5950 = vset.pattern.permute.xlu0 1
    %5951 = vperm.xlu0 %5950, %v5754
    %v5952 = vpop.permute.xlu0 %5951
    %5954 = vset.pattern.permute.xlu0 1
    %5955 = vperm.xlu0 %5954, %v5757
    %v5956 = vpop.permute.xlu0 %5955
    %5958 = vset.pattern.permute.xlu0 1
    %5959 = vperm.xlu0 %5958, %v5760
    %v5960 = vpop.permute.xlu0 %5959
    %5962 = vset.pattern.permute.xlu0 1
    %5963 = vperm.xlu0 %5962, %v5763
    %v5964 = vpop.permute.xlu0 %5963
    %5966 = vset.pattern.permute.xlu0 1
    %5967 = vperm.xlu0 %5966, %v5766
    %v5968 = vpop.permute.xlu0 %5967
    %5970 = vset.pattern.permute.xlu0 1
    %5971 = vperm.xlu0 %5970, %v5769
    %v5972 = vpop.permute.xlu0 %5971
    %5974 = vset.pattern.permute.xlu0 1
    %5975 = vperm.xlu0 %5974, %v5772
    %v5976 = vpop.permute.xlu0 %5975
    %5978 = vset.pattern.permute.xlu0 1
    %5979 = vperm.xlu0 %5978, %v5775
    %v5980 = vpop.permute.xlu0 %5979
    %5982 = vset.pattern.permute.xlu0 1
    %5983 = vperm.xlu0 %5982, %v5778
    %v5984 = vpop.permute.xlu0 %5983
    %5986 = vset.pattern.permute.xlu0 1
    %5987 = vperm.xlu0 %5986, %v5781
    %v5988 = vpop.permute.xlu0 %5987
    %5990 = vset.pattern.permute.xlu0 1
    %5991 = vperm.xlu0 %5990, %v5784
    %v5992 = vpop.permute.xlu0 %5991
    %v5994 = vsub.f32 %v5529, %v5932
    %v5995 = vsub.f32 %v5530, %v5936
    %v5996 = vsub.f32 %v5531, %v5940
    %v5997 = vsub.f32 %v5532, %v5944
    %v5998 = vsub.f32 %v5533, %v5948
    %v5999 = vsub.f32 %v5534, %v5952
    %v6000 = vsub.f32 %v5535, %v5956
    %v6001 = vsub.f32 %v5536, %v5960
    %v6002 = vsub.f32 %v5537, %v5964
    %v6003 = vsub.f32 %v5538, %v5968
    %v6004 = vsub.f32 %v5539, %v5972
    %v6005 = vsub.f32 %v5540, %v5976
    %v6006 = vsub.f32 %v5541, %v5980
    %v6007 = vsub.f32 %v5542, %v5984
    %v6008 = vsub.f32 %v5543, %v5988
    %v6009 = vsub.f32 %v5544, %v5992
    %v6010 = vmul.f32 %v5994, %v5994
    %v6011 = vmul.f32 %v5995, %v5995
    %v6012 = vmul.f32 %v5996, %v5996
    %v6013 = vmul.f32 %v5997, %v5997
    %v6014 = vmul.f32 %v5998, %v5998
    %v6015 = vmul.f32 %v5999, %v5999
    %v6016 = vmul.f32 %v6000, %v6000
    %v6017 = vmul.f32 %v6001, %v6001
    %v6018 = vmul.f32 %v6002, %v6002
    %v6019 = vmul.f32 %v6003, %v6003
    %v6020 = vmul.f32 %v6004, %v6004
    %v6021 = vmul.f32 %v6005, %v6005
    %v6022 = vmul.f32 %v6006, %v6006
    %v6023 = vmul.f32 %v6007, %v6007
    %v6024 = vmul.f32 %v6008, %v6008
    %v6025 = vmul.f32 %v6009, %v6009
    %6026 = vadd.xlane.f32.xlu0 %v6010
    %v6027 = vpop.xlane.xlu0 %6026
    %6028 = vadd.xlane.f32.xlu0 %v6011
    %v6029 = vpop.xlane.xlu0 %6028
    %6030 = vadd.xlane.f32.xlu0 %v6012
    %v6031 = vpop.xlane.xlu0 %6030
    %6032 = vadd.xlane.f32.xlu0 %v6013
    %v6033 = vpop.xlane.xlu0 %6032
    %6034 = vadd.xlane.f32.xlu0 %v6014
    %v6035 = vpop.xlane.xlu0 %6034
    %6036 = vadd.xlane.f32.xlu0 %v6015
    %v6037 = vpop.xlane.xlu0 %6036
    %6038 = vadd.xlane.f32.xlu0 %v6016
    %v6039 = vpop.xlane.xlu0 %6038
    %6040 = vadd.xlane.f32.xlu0 %v6017
    %v6041 = vpop.xlane.xlu0 %6040
    %6042 = vadd.xlane.f32.xlu0 %v6018
    %v6043 = vpop.xlane.xlu0 %6042
    %6044 = vadd.xlane.f32.xlu0 %v6019
    %v6045 = vpop.xlane.xlu0 %6044
    %6046 = vadd.xlane.f32.xlu0 %v6020
    %v6047 = vpop.xlane.xlu0 %6046
    %6048 = vadd.xlane.f32.xlu0 %v6021
    %v6049 = vpop.xlane.xlu0 %6048
    %6050 = vadd.xlane.f32.xlu0 %v6022
    %v6051 = vpop.xlane.xlu0 %6050
    %6052 = vadd.xlane.f32.xlu0 %v6023
    %v6053 = vpop.xlane.xlu0 %6052
    %6054 = vadd.xlane.f32.xlu0 %v6024
    %v6055 = vpop.xlane.xlu0 %6054
    %6056 = vadd.xlane.f32.xlu0 %v6025
    %v6057 = vpop.xlane.xlu0 %6056
    %6058 = vset.pattern.permute.xlu0 2
    %6059 = vperm.xlu0 %6058, %v5739
    %v6060 = vpop.permute.xlu0 %6059
    %6062 = vset.pattern.permute.xlu0 2
    %6063 = vperm.xlu0 %6062, %v5742
    %v6064 = vpop.permute.xlu0 %6063
    %6066 = vset.pattern.permute.xlu0 2
    %6067 = vperm.xlu0 %6066, %v5745
    %v6068 = vpop.permute.xlu0 %6067
    %6070 = vset.pattern.permute.xlu0 2
    %6071 = vperm.xlu0 %6070, %v5748
    %v6072 = vpop.permute.xlu0 %6071
    %6074 = vset.pattern.permute.xlu0 2
    %6075 = vperm.xlu0 %6074, %v5751
    %v6076 = vpop.permute.xlu0 %6075
    %6078 = vset.pattern.permute.xlu0 2
    %6079 = vperm.xlu0 %6078, %v5754
    %v6080 = vpop.permute.xlu0 %6079
    %6082 = vset.pattern.permute.xlu0 2
    %6083 = vperm.xlu0 %6082, %v5757
    %v6084 = vpop.permute.xlu0 %6083
    %6086 = vset.pattern.permute.xlu0 2
    %6087 = vperm.xlu0 %6086, %v5760
    %v6088 = vpop.permute.xlu0 %6087
    %6090 = vset.pattern.permute.xlu0 2
    %6091 = vperm.xlu0 %6090, %v5763
    %v6092 = vpop.permute.xlu0 %6091
    %6094 = vset.pattern.permute.xlu0 2
    %6095 = vperm.xlu0 %6094, %v5766
    %v6096 = vpop.permute.xlu0 %6095
    %6098 = vset.pattern.permute.xlu0 2
    %6099 = vperm.xlu0 %6098, %v5769
    %v6100 = vpop.permute.xlu0 %6099
    %6102 = vset.pattern.permute.xlu0 2
    %6103 = vperm.xlu0 %6102, %v5772
    %v6104 = vpop.permute.xlu0 %6103
    %6106 = vset.pattern.permute.xlu0 2
    %6107 = vperm.xlu0 %6106, %v5775
    %v6108 = vpop.permute.xlu0 %6107
    %6110 = vset.pattern.permute.xlu0 2
    %6111 = vperm.xlu0 %6110, %v5778
    %v6112 = vpop.permute.xlu0 %6111
    %6114 = vset.pattern.permute.xlu0 2
    %6115 = vperm.xlu0 %6114, %v5781
    %v6116 = vpop.permute.xlu0 %6115
    %6118 = vset.pattern.permute.xlu0 2
    %6119 = vperm.xlu0 %6118, %v5784
    %v6120 = vpop.permute.xlu0 %6119
    %v6122 = vsub.f32 %v5577, %v6060
    %v6123 = vsub.f32 %v5578, %v6064
    %v6124 = vsub.f32 %v5579, %v6068
    %v6125 = vsub.f32 %v5580, %v6072
    %v6126 = vsub.f32 %v5581, %v6076
    %v6127 = vsub.f32 %v5582, %v6080
    %v6128 = vsub.f32 %v5583, %v6084
    %v6129 = vsub.f32 %v5584, %v6088
    %v6130 = vsub.f32 %v5585, %v6092
    %v6131 = vsub.f32 %v5586, %v6096
    %v6132 = vsub.f32 %v5587, %v6100
    %v6133 = vsub.f32 %v5588, %v6104
    %v6134 = vsub.f32 %v5589, %v6108
    %v6135 = vsub.f32 %v5590, %v6112
    %v6136 = vsub.f32 %v5591, %v6116
    %v6137 = vsub.f32 %v5592, %v6120
    %v6138 = vmul.f32 %v6122, %v6122
    %v6139 = vmul.f32 %v6123, %v6123
    %v6140 = vmul.f32 %v6124, %v6124
    %v6141 = vmul.f32 %v6125, %v6125
    %v6142 = vmul.f32 %v6126, %v6126
    %v6143 = vmul.f32 %v6127, %v6127
    %v6144 = vmul.f32 %v6128, %v6128
    %v6145 = vmul.f32 %v6129, %v6129
    %v6146 = vmul.f32 %v6130, %v6130
    %v6147 = vmul.f32 %v6131, %v6131
    %v6148 = vmul.f32 %v6132, %v6132
    %v6149 = vmul.f32 %v6133, %v6133
    %v6150 = vmul.f32 %v6134, %v6134
    %v6151 = vmul.f32 %v6135, %v6135
    %v6152 = vmul.f32 %v6136, %v6136
    %v6153 = vmul.f32 %v6137, %v6137
    %6154 = vadd.xlane.f32.xlu0 %v6138
    %v6155 = vpop.xlane.xlu0 %6154
    %6156 = vadd.xlane.f32.xlu0 %v6139
    %v6157 = vpop.xlane.xlu0 %6156
    %6158 = vadd.xlane.f32.xlu0 %v6140
    %v6159 = vpop.xlane.xlu0 %6158
    %6160 = vadd.xlane.f32.xlu0 %v6141
    %v6161 = vpop.xlane.xlu0 %6160
    %6162 = vadd.xlane.f32.xlu0 %v6142
    %v6163 = vpop.xlane.xlu0 %6162
    %6164 = vadd.xlane.f32.xlu0 %v6143
    %v6165 = vpop.xlane.xlu0 %6164
    %6166 = vadd.xlane.f32.xlu0 %v6144
    %v6167 = vpop.xlane.xlu0 %6166
    %6168 = vadd.xlane.f32.xlu0 %v6145
    %v6169 = vpop.xlane.xlu0 %6168
    %6170 = vadd.xlane.f32.xlu0 %v6146
    %v6171 = vpop.xlane.xlu0 %6170
    %6172 = vadd.xlane.f32.xlu0 %v6147
    %v6173 = vpop.xlane.xlu0 %6172
    %6174 = vadd.xlane.f32.xlu0 %v6148
    %v6175 = vpop.xlane.xlu0 %6174
    %6176 = vadd.xlane.f32.xlu0 %v6149
    %v6177 = vpop.xlane.xlu0 %6176
    %6178 = vadd.xlane.f32.xlu0 %v6150
    %v6179 = vpop.xlane.xlu0 %6178
    %6180 = vadd.xlane.f32.xlu0 %v6151
    %v6181 = vpop.xlane.xlu0 %6180
    %6182 = vadd.xlane.f32.xlu0 %v6152
    %v6183 = vpop.xlane.xlu0 %6182
    %6184 = vadd.xlane.f32.xlu0 %v6153
    %v6185 = vpop.xlane.xlu0 %6184
    %6186 = vset.pattern.permute.xlu0 3
    %6187 = vperm.xlu0 %6186, %v5739
    %v6188 = vpop.permute.xlu0 %6187
    %6190 = vset.pattern.permute.xlu0 3
    %6191 = vperm.xlu0 %6190, %v5742
    %v6192 = vpop.permute.xlu0 %6191
    %6194 = vset.pattern.permute.xlu0 3
    %6195 = vperm.xlu0 %6194, %v5745
    %v6196 = vpop.permute.xlu0 %6195
    %6198 = vset.pattern.permute.xlu0 3
    %6199 = vperm.xlu0 %6198, %v5748
    %v6200 = vpop.permute.xlu0 %6199
    %6202 = vset.pattern.permute.xlu0 3
    %6203 = vperm.xlu0 %6202, %v5751
    %v6204 = vpop.permute.xlu0 %6203
    %6206 = vset.pattern.permute.xlu0 3
    %6207 = vperm.xlu0 %6206, %v5754
    %v6208 = vpop.permute.xlu0 %6207
    %6210 = vset.pattern.permute.xlu0 3
    %6211 = vperm.xlu0 %6210, %v5757
    %v6212 = vpop.permute.xlu0 %6211
    %6214 = vset.pattern.permute.xlu0 3
    %6215 = vperm.xlu0 %6214, %v5760
    %v6216 = vpop.permute.xlu0 %6215
    %6218 = vset.pattern.permute.xlu0 3
    %6219 = vperm.xlu0 %6218, %v5763
    %v6220 = vpop.permute.xlu0 %6219
    %6222 = vset.pattern.permute.xlu0 3
    %6223 = vperm.xlu0 %6222, %v5766
    %v6224 = vpop.permute.xlu0 %6223
    %6226 = vset.pattern.permute.xlu0 3
    %6227 = vperm.xlu0 %6226, %v5769
    %v6228 = vpop.permute.xlu0 %6227
    %6230 = vset.pattern.permute.xlu0 3
    %6231 = vperm.xlu0 %6230, %v5772
    %v6232 = vpop.permute.xlu0 %6231
    %6234 = vset.pattern.permute.xlu0 3
    %6235 = vperm.xlu0 %6234, %v5775
    %v6236 = vpop.permute.xlu0 %6235
    %6238 = vset.pattern.permute.xlu0 3
    %6239 = vperm.xlu0 %6238, %v5778
    %v6240 = vpop.permute.xlu0 %6239
    %6242 = vset.pattern.permute.xlu0 3
    %6243 = vperm.xlu0 %6242, %v5781
    %v6244 = vpop.permute.xlu0 %6243
    %6246 = vset.pattern.permute.xlu0 3
    %6247 = vperm.xlu0 %6246, %v5784
    %v6248 = vpop.permute.xlu0 %6247
    %v6250 = vsub.f32 %v5625, %v6188
    %v6251 = vsub.f32 %v5626, %v6192
    %v6252 = vsub.f32 %v5627, %v6196
    %v6253 = vsub.f32 %v5628, %v6200
    %v6254 = vsub.f32 %v5629, %v6204
    %v6255 = vsub.f32 %v5630, %v6208
    %v6256 = vsub.f32 %v5631, %v6212
    %v6257 = vsub.f32 %v5632, %v6216
    %v6258 = vsub.f32 %v5633, %v6220
    %v6259 = vsub.f32 %v5634, %v6224
    %v6260 = vsub.f32 %v5635, %v6228
    %v6261 = vsub.f32 %v5636, %v6232
    %v6262 = vsub.f32 %v5637, %v6236
    %v6263 = vsub.f32 %v5638, %v6240
    %v6264 = vsub.f32 %v5639, %v6244
    %v6265 = vsub.f32 %v5640, %v6248
    %v6266 = vmul.f32 %v6250, %v6250
    %v6267 = vmul.f32 %v6251, %v6251
    %v6268 = vmul.f32 %v6252, %v6252
    %v6269 = vmul.f32 %v6253, %v6253
    %v6270 = vmul.f32 %v6254, %v6254
    %v6271 = vmul.f32 %v6255, %v6255
    %v6272 = vmul.f32 %v6256, %v6256
    %v6273 = vmul.f32 %v6257, %v6257
    %v6274 = vmul.f32 %v6258, %v6258
    %v6275 = vmul.f32 %v6259, %v6259
    %v6276 = vmul.f32 %v6260, %v6260
    %v6277 = vmul.f32 %v6261, %v6261
    %v6278 = vmul.f32 %v6262, %v6262
    %v6279 = vmul.f32 %v6263, %v6263
    %v6280 = vmul.f32 %v6264, %v6264
    %v6281 = vmul.f32 %v6265, %v6265
    %6282 = vadd.xlane.f32.xlu0 %v6266
    %v6283 = vpop.xlane.xlu0 %6282
    %6284 = vadd.xlane.f32.xlu0 %v6267
    %v6285 = vpop.xlane.xlu0 %6284
    %6286 = vadd.xlane.f32.xlu0 %v6268
    %v6287 = vpop.xlane.xlu0 %6286
    %6288 = vadd.xlane.f32.xlu0 %v6269
    %v6289 = vpop.xlane.xlu0 %6288
    %6290 = vadd.xlane.f32.xlu0 %v6270
    %v6291 = vpop.xlane.xlu0 %6290
    %6292 = vadd.xlane.f32.xlu0 %v6271
    %v6293 = vpop.xlane.xlu0 %6292
    %6294 = vadd.xlane.f32.xlu0 %v6272
    %v6295 = vpop.xlane.xlu0 %6294
    %6296 = vadd.xlane.f32.xlu0 %v6273
    %v6297 = vpop.xlane.xlu0 %6296
    %6298 = vadd.xlane.f32.xlu0 %v6274
    %v6299 = vpop.xlane.xlu0 %6298
    %6300 = vadd.xlane.f32.xlu0 %v6275
    %v6301 = vpop.xlane.xlu0 %6300
    %6302 = vadd.xlane.f32.xlu0 %v6276
    %v6303 = vpop.xlane.xlu0 %6302
    %6304 = vadd.xlane.f32.xlu0 %v6277
    %v6305 = vpop.xlane.xlu0 %6304
    %6306 = vadd.xlane.f32.xlu0 %v6278
    %v6307 = vpop.xlane.xlu0 %6306
    %6308 = vadd.xlane.f32.xlu0 %v6279
    %v6309 = vpop.xlane.xlu0 %6308
    %6310 = vadd.xlane.f32.xlu0 %v6280
    %v6311 = vpop.xlane.xlu0 %6310
    %6312 = vadd.xlane.f32.xlu0 %v6281
    %v6313 = vpop.xlane.xlu0 %6312
    %v6314 = vsel %vm322, %v5899, %v6027
    %v6315 = vsel %vm322, %v5901, %v6029
    %v6316 = vsel %vm322, %v5903, %v6031
    %v6317 = vsel %vm322, %v5905, %v6033
    %v6318 = vsel %vm322, %v5907, %v6035
    %v6319 = vsel %vm322, %v5909, %v6037
    %v6320 = vsel %vm322, %v5911, %v6039
    %v6321 = vsel %vm322, %v5913, %v6041
    %v6322 = vsel %vm322, %v5915, %v6043
    %v6323 = vsel %vm322, %v5917, %v6045
    %v6324 = vsel %vm322, %v5919, %v6047
    %v6325 = vsel %vm322, %v5921, %v6049
    %v6326 = vsel %vm322, %v5923, %v6051
    %v6327 = vsel %vm322, %v5925, %v6053
    %v6328 = vsel %vm322, %v5927, %v6055
    %v6329 = vsel %vm322, %v5929, %v6057
    %v6330 = vsel %vm339, %v6314, %v6155
    %v6331 = vsel %vm339, %v6315, %v6157
    %v6332 = vsel %vm339, %v6316, %v6159
    %v6333 = vsel %vm339, %v6317, %v6161
    %v6334 = vsel %vm339, %v6318, %v6163
    %v6335 = vsel %vm339, %v6319, %v6165
    %v6336 = vsel %vm339, %v6320, %v6167
    %v6337 = vsel %vm339, %v6321, %v6169
    %v6338 = vsel %vm339, %v6322, %v6171
    %v6339 = vsel %vm339, %v6323, %v6173
    %v6340 = vsel %vm339, %v6324, %v6175
    %v6341 = vsel %vm339, %v6325, %v6177
    %v6342 = vsel %vm339, %v6326, %v6179
    %v6343 = vsel %vm339, %v6327, %v6181
    %v6344 = vsel %vm339, %v6328, %v6183
    %v6345 = vsel %vm339, %v6329, %v6185
    %v6346 = vsel %vm356, %v6330, %v6283
    %v6347 = vsel %vm356, %v6331, %v6285
    %v6348 = vsel %vm356, %v6332, %v6287
    %v6349 = vsel %vm356, %v6333, %v6289
    %v6350 = vsel %vm356, %v6334, %v6291
    %v6351 = vsel %vm356, %v6335, %v6293
    %v6352 = vsel %vm356, %v6336, %v6295
    %v6353 = vsel %vm356, %v6337, %v6297
    %v6354 = vsel %vm356, %v6338, %v6299
    %v6355 = vsel %vm356, %v6339, %v6301
    %v6356 = vsel %vm356, %v6340, %v6303
    %v6357 = vsel %vm356, %v6341, %v6305
    %v6358 = vsel %vm356, %v6342, %v6307
    %v6359 = vsel %vm356, %v6343, %v6309
    %v6360 = vsel %vm356, %v6344, %v6311
    %v6361 = vsel %vm356, %v6345, %v6313
    %6362 = vmatpush.msra.mxu0 %v6361
    %6363 = vmatpush.msra.mxu0 %v6360
    %6364 = vmatpush.msra.mxu0 %v6359
    %6365 = vmatpush.msra.mxu0 %v6358
    %6366 = vmatpush.msra.mxu0 %v6357
    %6367 = vmatpush.msra.mxu0 %v6356
    %6368 = vmatpush.msra.mxu0 %v6355
    %6369 = vmatpush.msra.mxu0 %v6354
    %6370 = vmatpush.msra.mxu0 %v6353
    %6371 = vmatpush.msra.mxu0 %v6352
    %6372 = vmatpush.msra.mxu0 %v6351
    %6373 = vmatpush.msra.mxu0 %v6350
    %6374 = vmatpush.msra.mxu0 %v6349
    %6375 = vmatpush.msra.mxu0 %v6348
    %6376 = vmatpush.msra.mxu0 %v6347
    %6377 = vmatpush.msra.mxu0 %v6346
    %6378 = vmatmul.f32.gmra.mxu0 %v79
    %v6379 = vpop.f32.mrf.mxu0
    %v6380 = vadd.f32 1e-05, %v6379
    %6381 = vmatmul.f32.gmra.mxu0 %v80
    %v6382 = vpop.f32.mrf.mxu0
    %v6383 = vadd.f32 1e-05, %v6382
    %6384 = vmatmul.f32.gmra.mxu0 %v81
    %v6385 = vpop.f32.mrf.mxu0
    %v6386 = vadd.f32 1e-05, %v6385
    %6387 = vmatmul.f32.gmra.mxu0 %v82
    %v6388 = vpop.f32.mrf.mxu0
    %v6389 = vadd.f32 1e-05, %v6388
    %6390 = vmatmul.f32.gmra.mxu0 %v83
    %v6391 = vpop.f32.mrf.mxu0
    %v6392 = vadd.f32 1e-05, %v6391
    %6393 = vmatmul.f32.gmra.mxu0 %v84
    %v6394 = vpop.f32.mrf.mxu0
    %v6395 = vadd.f32 1e-05, %v6394
    %6396 = vmatmul.f32.gmra.mxu0 %v85
    %v6397 = vpop.f32.mrf.mxu0
    %v6398 = vadd.f32 1e-05, %v6397
    %6399 = vmatmul.f32.gmra.mxu0 %v86
    %v6400 = vpop.f32.mrf.mxu0
    %v6401 = vadd.f32 1e-05, %v6400
    %6402 = vmatmul.f32.gmra.mxu0 %v87
    %v6403 = vpop.f32.mrf.mxu0
    %v6404 = vadd.f32 1e-05, %v6403
    %6405 = vmatmul.f32.gmra.mxu0 %v88
    %v6406 = vpop.f32.mrf.mxu0
    %v6407 = vadd.f32 1e-05, %v6406
    %6408 = vmatmul.f32.gmra.mxu0 %v89
    %v6409 = vpop.f32.mrf.mxu0
    %v6410 = vadd.f32 1e-05, %v6409
    %6411 = vmatmul.f32.gmra.mxu0 %v90
    %v6412 = vpop.f32.mrf.mxu0
    %v6413 = vadd.f32 1e-05, %v6412
    %6414 = vmatmul.f32.gmra.mxu0 %v91
    %v6415 = vpop.f32.mrf.mxu0
    %v6416 = vadd.f32 1e-05, %v6415
    %6417 = vmatmul.f32.gmra.mxu0 %v92
    %v6418 = vpop.f32.mrf.mxu0
    %v6419 = vadd.f32 1e-05, %v6418
    %6420 = vmatmul.f32.gmra.mxu0 %v93
    %v6421 = vpop.f32.mrf.mxu0
    %v6422 = vadd.f32 1e-05, %v6421
    %6423 = vmatmul.f32.gmra.mxu0 %v94
    %v6424 = vpop.f32.mrf.mxu0
    %v6425 = vadd.f32 1e-05, %v6424
    %6426 = vdwg.mxu0
    %v6427 = vrsqrt.pop %v6380
    %v6428 = vmul.f32 %v6427, %v6380
    %v6429 = vmul.f32 %v6428, %v6427
    %v6430 = vmul.f32 0.5, %v6429
    %v6431 = vsub.f32 1.5, %v6430
    %v6432 = vmul.f32 %v6427, %v6431
    %vm6433 = vweird.f32 %v6380
    %vm6434 = vweird.f32 %v6427
    %vm6435 = vmor %vm6433, %vm6434
    %v6436 = vsel %vm6435, %v6427, %v6432
    %v6437 = vrsqrt.pop %v6383
    %v6438 = vmul.f32 %v6437, %v6383
    %v6439 = vmul.f32 %v6438, %v6437
    %v6440 = vmul.f32 0.5, %v6439
    %v6441 = vsub.f32 1.5, %v6440
    %v6442 = vmul.f32 %v6437, %v6441
    %vm6443 = vweird.f32 %v6383
    %vm6444 = vweird.f32 %v6437
    %vm6445 = vmor %vm6443, %vm6444
    %v6446 = vsel %vm6445, %v6437, %v6442
    %v6447 = vrsqrt.pop %v6386
    %v6448 = vmul.f32 %v6447, %v6386
    %v6449 = vmul.f32 %v6448, %v6447
    %v6450 = vmul.f32 0.5, %v6449
    %v6451 = vsub.f32 1.5, %v6450
    %v6452 = vmul.f32 %v6447, %v6451
    %vm6453 = vweird.f32 %v6386
    %vm6454 = vweird.f32 %v6447
    %vm6455 = vmor %vm6453, %vm6454
    %v6456 = vsel %vm6455, %v6447, %v6452
    %v6457 = vrsqrt.pop %v6389
    %v6458 = vmul.f32 %v6457, %v6389
    %v6459 = vmul.f32 %v6458, %v6457
    %v6460 = vmul.f32 0.5, %v6459
    %v6461 = vsub.f32 1.5, %v6460
    %v6462 = vmul.f32 %v6457, %v6461
    %vm6463 = vweird.f32 %v6389
    %vm6464 = vweird.f32 %v6457
    %vm6465 = vmor %vm6463, %vm6464
    %v6466 = vsel %vm6465, %v6457, %v6462
    %v6467 = vrsqrt.pop %v6392
    %v6468 = vmul.f32 %v6467, %v6392
    %v6469 = vmul.f32 %v6468, %v6467
    %v6470 = vmul.f32 0.5, %v6469
    %v6471 = vsub.f32 1.5, %v6470
    %v6472 = vmul.f32 %v6467, %v6471
    %vm6473 = vweird.f32 %v6392
    %vm6474 = vweird.f32 %v6467
    %vm6475 = vmor %vm6473, %vm6474
    %v6476 = vsel %vm6475, %v6467, %v6472
    %v6477 = vrsqrt.pop %v6395
    %v6478 = vmul.f32 %v6477, %v6395
    %v6479 = vmul.f32 %v6478, %v6477
    %v6480 = vmul.f32 0.5, %v6479
    %v6481 = vsub.f32 1.5, %v6480
    %v6482 = vmul.f32 %v6477, %v6481
    %vm6483 = vweird.f32 %v6395
    %vm6484 = vweird.f32 %v6477
    %vm6485 = vmor %vm6483, %vm6484
    %v6486 = vsel %vm6485, %v6477, %v6482
    %v6487 = vrsqrt.pop %v6398
    %v6488 = vmul.f32 %v6487, %v6398
    %v6489 = vmul.f32 %v6488, %v6487
    %v6490 = vmul.f32 0.5, %v6489
    %v6491 = vsub.f32 1.5, %v6490
    %v6492 = vmul.f32 %v6487, %v6491
    %vm6493 = vweird.f32 %v6398
    %vm6494 = vweird.f32 %v6487
    %vm6495 = vmor %vm6493, %vm6494
    %v6496 = vsel %vm6495, %v6487, %v6492
    %v6497 = vrsqrt.pop %v6401
    %v6498 = vmul.f32 %v6497, %v6401
    %v6499 = vmul.f32 %v6498, %v6497
    %v6500 = vmul.f32 0.5, %v6499
    %v6501 = vsub.f32 1.5, %v6500
    %v6502 = vmul.f32 %v6497, %v6501
    %vm6503 = vweird.f32 %v6401
    %vm6504 = vweird.f32 %v6497
    %vm6505 = vmor %vm6503, %vm6504
    %v6506 = vsel %vm6505, %v6497, %v6502
    %v6507 = vrsqrt.pop %v6404
    %v6508 = vmul.f32 %v6507, %v6404
    %v6509 = vmul.f32 %v6508, %v6507
    %v6510 = vmul.f32 0.5, %v6509
    %v6511 = vsub.f32 1.5, %v6510
    %v6512 = vmul.f32 %v6507, %v6511
    %vm6513 = vweird.f32 %v6404
    %vm6514 = vweird.f32 %v6507
    %vm6515 = vmor %vm6513, %vm6514
    %v6516 = vsel %vm6515, %v6507, %v6512
    %v6517 = vrsqrt.pop %v6407
    %v6518 = vmul.f32 %v6517, %v6407
    %v6519 = vmul.f32 %v6518, %v6517
    %v6520 = vmul.f32 0.5, %v6519
    %v6521 = vsub.f32 1.5, %v6520
    %v6522 = vmul.f32 %v6517, %v6521
    %vm6523 = vweird.f32 %v6407
    %vm6524 = vweird.f32 %v6517
    %vm6525 = vmor %vm6523, %vm6524
    %v6526 = vsel %vm6525, %v6517, %v6522
    %v6527 = vrsqrt.pop %v6410
    %v6528 = vmul.f32 %v6527, %v6410
    %v6529 = vmul.f32 %v6528, %v6527
    %v6530 = vmul.f32 0.5, %v6529
    %v6531 = vsub.f32 1.5, %v6530
    %v6532 = vmul.f32 %v6527, %v6531
    %vm6533 = vweird.f32 %v6410
    %vm6534 = vweird.f32 %v6527
    %vm6535 = vmor %vm6533, %vm6534
    %v6536 = vsel %vm6535, %v6527, %v6532
    %v6537 = vrsqrt.pop %v6413
    %v6538 = vmul.f32 %v6537, %v6413
    %v6539 = vmul.f32 %v6538, %v6537
    %v6540 = vmul.f32 0.5, %v6539
    %v6541 = vsub.f32 1.5, %v6540
    %v6542 = vmul.f32 %v6537, %v6541
    %vm6543 = vweird.f32 %v6413
    %vm6544 = vweird.f32 %v6537
    %vm6545 = vmor %vm6543, %vm6544
    %v6546 = vsel %vm6545, %v6537, %v6542
    %v6547 = vrsqrt.pop %v6416
    %v6548 = vmul.f32 %v6547, %v6416
    %v6549 = vmul.f32 %v6548, %v6547
    %v6550 = vmul.f32 0.5, %v6549
    %v6551 = vsub.f32 1.5, %v6550
    %v6552 = vmul.f32 %v6547, %v6551
    %vm6553 = vweird.f32 %v6416
    %vm6554 = vweird.f32 %v6547
    %vm6555 = vmor %vm6553, %vm6554
    %v6556 = vsel %vm6555, %v6547, %v6552
    %v6557 = vrsqrt.pop %v6419
    %v6558 = vmul.f32 %v6557, %v6419
    %v6559 = vmul.f32 %v6558, %v6557
    %v6560 = vmul.f32 0.5, %v6559
    %v6561 = vsub.f32 1.5, %v6560
    %v6562 = vmul.f32 %v6557, %v6561
    %vm6563 = vweird.f32 %v6419
    %vm6564 = vweird.f32 %v6557
    %vm6565 = vmor %vm6563, %vm6564
    %v6566 = vsel %vm6565, %v6557, %v6562
    %v6567 = vrsqrt.pop %v6422
    %v6568 = vmul.f32 %v6567, %v6422
    %v6569 = vmul.f32 %v6568, %v6567
    %v6570 = vmul.f32 0.5, %v6569
    %v6571 = vsub.f32 1.5, %v6570
    %v6572 = vmul.f32 %v6567, %v6571
    %vm6573 = vweird.f32 %v6422
    %vm6574 = vweird.f32 %v6567
    %vm6575 = vmor %vm6573, %vm6574
    %v6576 = vsel %vm6575, %v6567, %v6572
    %v6577 = vrsqrt.pop %v6425
    %v6578 = vmul.f32 %v6577, %v6425
    %v6579 = vmul.f32 %v6578, %v6577
    %v6580 = vmul.f32 0.5, %v6579
    %v6581 = vsub.f32 1.5, %v6580
    %v6582 = vmul.f32 %v6577, %v6581
    %vm6583 = vweird.f32 %v6425
    %vm6584 = vweird.f32 %v6577
    %vm6585 = vmor %vm6583, %vm6584
    %v6586 = vsel %vm6585, %v6577, %v6582
    %6588 = vset.pattern.permute.xlu0 0
    %6589 = vperm.xlu0 %6588, %v6436
    %v6590 = vpop.permute.xlu0 %6589
    %6593 = vset.pattern.permute.xlu0 0
    %6594 = vperm.xlu0 %6593, %v6446
    %v6595 = vpop.permute.xlu0 %6594
    %6598 = vset.pattern.permute.xlu0 0
    %6599 = vperm.xlu0 %6598, %v6456
    %v6600 = vpop.permute.xlu0 %6599
    %6603 = vset.pattern.permute.xlu0 0
    %6604 = vperm.xlu0 %6603, %v6466
    %v6605 = vpop.permute.xlu0 %6604
    %6608 = vset.pattern.permute.xlu0 0
    %6609 = vperm.xlu0 %6608, %v6476
    %v6610 = vpop.permute.xlu0 %6609
    %6613 = vset.pattern.permute.xlu0 0
    %6614 = vperm.xlu0 %6613, %v6486
    %v6615 = vpop.permute.xlu0 %6614
    %6618 = vset.pattern.permute.xlu0 0
    %6619 = vperm.xlu0 %6618, %v6496
    %v6620 = vpop.permute.xlu0 %6619
    %6623 = vset.pattern.permute.xlu0 0
    %6624 = vperm.xlu0 %6623, %v6506
    %v6625 = vpop.permute.xlu0 %6624
    %6628 = vset.pattern.permute.xlu0 0
    %6629 = vperm.xlu0 %6628, %v6516
    %v6630 = vpop.permute.xlu0 %6629
    %6633 = vset.pattern.permute.xlu0 0
    %6634 = vperm.xlu0 %6633, %v6526
    %v6635 = vpop.permute.xlu0 %6634
    %6638 = vset.pattern.permute.xlu0 0
    %6639 = vperm.xlu0 %6638, %v6536
    %v6640 = vpop.permute.xlu0 %6639
    %6643 = vset.pattern.permute.xlu0 0
    %6644 = vperm.xlu0 %6643, %v6546
    %v6645 = vpop.permute.xlu0 %6644
    %6648 = vset.pattern.permute.xlu0 0
    %6649 = vperm.xlu0 %6648, %v6556
    %v6650 = vpop.permute.xlu0 %6649
    %6653 = vset.pattern.permute.xlu0 0
    %6654 = vperm.xlu0 %6653, %v6566
    %v6655 = vpop.permute.xlu0 %6654
    %6658 = vset.pattern.permute.xlu0 0
    %6659 = vperm.xlu0 %6658, %v6576
    %v6660 = vpop.permute.xlu0 %6659
    %6663 = vset.pattern.permute.xlu0 0
    %6664 = vperm.xlu0 %6663, %v6586
    %v6665 = vpop.permute.xlu0 %6664
    %v6667 = vmul.f32 %v5866, %v6590
    %v6668 = vmul.f32 %v5867, %v6595
    %v6669 = vmul.f32 %v5868, %v6600
    %v6670 = vmul.f32 %v5869, %v6605
    %v6671 = vmul.f32 %v5870, %v6610
    %v6672 = vmul.f32 %v5871, %v6615
    %v6673 = vmul.f32 %v5872, %v6620
    %v6674 = vmul.f32 %v5873, %v6625
    %v6675 = vmul.f32 %v5874, %v6630
    %v6676 = vmul.f32 %v5875, %v6635
    %v6677 = vmul.f32 %v5876, %v6640
    %v6678 = vmul.f32 %v5877, %v6645
    %v6679 = vmul.f32 %v5878, %v6650
    %v6680 = vmul.f32 %v5879, %v6655
    %v6681 = vmul.f32 %v5880, %v6660
    %v6682 = vmul.f32 %v5881, %v6665
    %6684 = vset.pattern.permute.xlu0 0
    %6685 = vperm.xlu0 %6684, %v5449
    %v6686 = vpop.permute.xlu0 %6685
    %6689 = vset.pattern.permute.xlu0 0
    %6690 = vperm.xlu0 %6689, %v5450
    %v6691 = vpop.permute.xlu0 %6690
    %6694 = vset.pattern.permute.xlu0 0
    %6695 = vperm.xlu0 %6694, %v5451
    %v6696 = vpop.permute.xlu0 %6695
    %6699 = vset.pattern.permute.xlu0 0
    %6700 = vperm.xlu0 %6699, %v5452
    %v6701 = vpop.permute.xlu0 %6700
    %6704 = vset.pattern.permute.xlu0 0
    %6705 = vperm.xlu0 %6704, %v5453
    %v6706 = vpop.permute.xlu0 %6705
    %6709 = vset.pattern.permute.xlu0 0
    %6710 = vperm.xlu0 %6709, %v5454
    %v6711 = vpop.permute.xlu0 %6710
    %6714 = vset.pattern.permute.xlu0 0
    %6715 = vperm.xlu0 %6714, %v5455
    %v6716 = vpop.permute.xlu0 %6715
    %6719 = vset.pattern.permute.xlu0 0
    %6720 = vperm.xlu0 %6719, %v5456
    %v6721 = vpop.permute.xlu0 %6720
    %6724 = vset.pattern.permute.xlu0 0
    %6725 = vperm.xlu0 %6724, %v5457
    %v6726 = vpop.permute.xlu0 %6725
    %6729 = vset.pattern.permute.xlu0 0
    %6730 = vperm.xlu0 %6729, %v5458
    %v6731 = vpop.permute.xlu0 %6730
    %6734 = vset.pattern.permute.xlu0 0
    %6735 = vperm.xlu0 %6734, %v5459
    %v6736 = vpop.permute.xlu0 %6735
    %6739 = vset.pattern.permute.xlu0 0
    %6740 = vperm.xlu0 %6739, %v5460
    %v6741 = vpop.permute.xlu0 %6740
    %6744 = vset.pattern.permute.xlu0 0
    %6745 = vperm.xlu0 %6744, %v5461
    %v6746 = vpop.permute.xlu0 %6745
    %6749 = vset.pattern.permute.xlu0 0
    %6750 = vperm.xlu0 %6749, %v5462
    %v6751 = vpop.permute.xlu0 %6750
    %6754 = vset.pattern.permute.xlu0 0
    %6755 = vperm.xlu0 %6754, %v5463
    %v6756 = vpop.permute.xlu0 %6755
    %6759 = vset.pattern.permute.xlu0 0
    %6760 = vperm.xlu0 %6759, %v5464
    %v6761 = vpop.permute.xlu0 %6760
    %v6763 = vmul.f32 %v6667, %v6686
    %v6764 = vmul.f32 %v6668, %v6691
    %v6765 = vmul.f32 %v6669, %v6696
    %v6766 = vmul.f32 %v6670, %v6701
    %v6767 = vmul.f32 %v6671, %v6706
    %v6768 = vmul.f32 %v6672, %v6711
    %v6769 = vmul.f32 %v6673, %v6716
    %v6770 = vmul.f32 %v6674, %v6721
    %v6771 = vmul.f32 %v6675, %v6726
    %v6772 = vmul.f32 %v6676, %v6731
    %v6773 = vmul.f32 %v6677, %v6736
    %v6774 = vmul.f32 %v6678, %v6741
    %v6775 = vmul.f32 %v6679, %v6746
    %v6776 = vmul.f32 %v6680, %v6751
    %v6777 = vmul.f32 %v6681, %v6756
    %v6778 = vmul.f32 %v6682, %v6761
    %6780 = vset.pattern.permute.xlu0 0
    %6781 = vperm.xlu0 %6780, %v5465
    %v6782 = vpop.permute.xlu0 %6781
    %6785 = vset.pattern.permute.xlu0 0
    %6786 = vperm.xlu0 %6785, %v5466
    %v6787 = vpop.permute.xlu0 %6786
    %6790 = vset.pattern.permute.xlu0 0
    %6791 = vperm.xlu0 %6790, %v5467
    %v6792 = vpop.permute.xlu0 %6791
    %6795 = vset.pattern.permute.xlu0 0
    %6796 = vperm.xlu0 %6795, %v5468
    %v6797 = vpop.permute.xlu0 %6796
    %6800 = vset.pattern.permute.xlu0 0
    %6801 = vperm.xlu0 %6800, %v5469
    %v6802 = vpop.permute.xlu0 %6801
    %6805 = vset.pattern.permute.xlu0 0
    %6806 = vperm.xlu0 %6805, %v5470
    %v6807 = vpop.permute.xlu0 %6806
    %6810 = vset.pattern.permute.xlu0 0
    %6811 = vperm.xlu0 %6810, %v5471
    %v6812 = vpop.permute.xlu0 %6811
    %6815 = vset.pattern.permute.xlu0 0
    %6816 = vperm.xlu0 %6815, %v5472
    %v6817 = vpop.permute.xlu0 %6816
    %6820 = vset.pattern.permute.xlu0 0
    %6821 = vperm.xlu0 %6820, %v5473
    %v6822 = vpop.permute.xlu0 %6821
    %6825 = vset.pattern.permute.xlu0 0
    %6826 = vperm.xlu0 %6825, %v5474
    %v6827 = vpop.permute.xlu0 %6826
    %6830 = vset.pattern.permute.xlu0 0
    %6831 = vperm.xlu0 %6830, %v5475
    %v6832 = vpop.permute.xlu0 %6831
    %6835 = vset.pattern.permute.xlu0 0
    %6836 = vperm.xlu0 %6835, %v5476
    %v6837 = vpop.permute.xlu0 %6836
    %6840 = vset.pattern.permute.xlu0 0
    %6841 = vperm.xlu0 %6840, %v5477
    %v6842 = vpop.permute.xlu0 %6841
    %6845 = vset.pattern.permute.xlu0 0
    %6846 = vperm.xlu0 %6845, %v5478
    %v6847 = vpop.permute.xlu0 %6846
    %6850 = vset.pattern.permute.xlu0 0
    %6851 = vperm.xlu0 %6850, %v5479
    %v6852 = vpop.permute.xlu0 %6851
    %6855 = vset.pattern.permute.xlu0 0
    %6856 = vperm.xlu0 %6855, %v5480
    %v6857 = vpop.permute.xlu0 %6856
    %v6859 = vadd.f32 %v6763, %v6782
    %v6860 = vadd.f32 %v6764, %v6787
    %v6861 = vadd.f32 %v6765, %v6792
    %v6862 = vadd.f32 %v6766, %v6797
    %v6863 = vadd.f32 %v6767, %v6802
    %v6864 = vadd.f32 %v6768, %v6807
    %v6865 = vadd.f32 %v6769, %v6812
    %v6866 = vadd.f32 %v6770, %v6817
    %v6867 = vadd.f32 %v6771, %v6822
    %v6868 = vadd.f32 %v6772, %v6827
    %v6869 = vadd.f32 %v6773, %v6832
    %v6870 = vadd.f32 %v6774, %v6837
    %v6871 = vadd.f32 %v6775, %v6842
    %v6872 = vadd.f32 %v6776, %v6847
    %v6873 = vadd.f32 %v6777, %v6852
    %v6874 = vadd.f32 %v6778, %v6857
    %v6875 = vxor.u32 %v6859, 2147483648
    %v6876 = vxor.u32 %v6860, 2147483648
    %v6877 = vxor.u32 %v6861, 2147483648
    %v6878 = vxor.u32 %v6862, 2147483648
    %v6879 = vxor.u32 %v6863, 2147483648
    %v6880 = vxor.u32 %v6864, 2147483648
    %v6881 = vxor.u32 %v6865, 2147483648
    %v6882 = vxor.u32 %v6866, 2147483648
    %v6883 = vxor.u32 %v6867, 2147483648
    %v6884 = vxor.u32 %v6868, 2147483648
    %v6885 = vxor.u32 %v6869, 2147483648
    %v6886 = vxor.u32 %v6870, 2147483648
    %v6887 = vxor.u32 %v6871, 2147483648
    %v6888 = vxor.u32 %v6872, 2147483648
    %v6889 = vxor.u32 %v6873, 2147483648
    %v6890 = vxor.u32 %v6874, 2147483648
    %v6891 = vmul.f32 %v6875, 1.442695
    %v6892 = vpow.pop %v6891
    %v6893 = vmul.f32 %v6876, 1.442695
    %v6894 = vpow.pop %v6893
    %v6895 = vmul.f32 %v6877, 1.442695
    %v6896 = vpow.pop %v6895
    %v6897 = vmul.f32 %v6878, 1.442695
    %v6898 = vpow.pop %v6897
    %v6899 = vmul.f32 %v6879, 1.442695
    %v6900 = vpow.pop %v6899
    %v6901 = vmul.f32 %v6880, 1.442695
    %v6902 = vpow.pop %v6901
    %v6903 = vmul.f32 %v6881, 1.442695
    %v6904 = vpow.pop %v6903
    %v6905 = vmul.f32 %v6882, 1.442695
    %v6906 = vpow.pop %v6905
    %v6907 = vmul.f32 %v6883, 1.442695
    %v6908 = vpow.pop %v6907
    %v6909 = vmul.f32 %v6884, 1.442695
    %v6910 = vpow.pop %v6909
    %v6911 = vmul.f32 %v6885, 1.442695
    %v6912 = vpow.pop %v6911
    %v6913 = vmul.f32 %v6886, 1.442695
    %v6914 = vpow.pop %v6913
    %v6915 = vmul.f32 %v6887, 1.442695
    %v6916 = vpow.pop %v6915
    %v6917 = vmul.f32 %v6888, 1.442695
    %v6918 = vpow.pop %v6917
    %v6919 = vmul.f32 %v6889, 1.442695
    %v6920 = vpow.pop %v6919
    %v6921 = vmul.f32 %v6890, 1.442695
    %v6922 = vpow.pop %v6921
    %v6923 = vadd.f32 %v6892, 1.0
    %v6924 = vadd.f32 %v6894, 1.0
    %v6925 = vadd.f32 %v6896, 1.0
    %v6926 = vadd.f32 %v6898, 1.0
    %v6927 = vadd.f32 %v6900, 1.0
    %v6928 = vadd.f32 %v6902, 1.0
    %v6929 = vadd.f32 %v6904, 1.0
    %v6930 = vadd.f32 %v6906, 1.0
    %v6931 = vadd.f32 %v6908, 1.0
    %v6932 = vadd.f32 %v6910, 1.0
    %v6933 = vadd.f32 %v6912, 1.0
    %v6934 = vadd.f32 %v6914, 1.0
    %v6935 = vadd.f32 %v6916, 1.0
    %v6936 = vadd.f32 %v6918, 1.0
    %v6937 = vadd.f32 %v6920, 1.0
    %v6938 = vadd.f32 %v6922, 1.0
    %v6939 = vrcp.pop %v6923
    %v6940 = vmul.f32 %v6923, %v6939
    %v6941 = vsub.f32 1.0, %v6940
    %v6942 = vmul.f32 %v6939, %v6941
    %v6943 = vadd.f32 %v6939, %v6942
    %vm6944 = vweird.f32 %v6923
    %vm6945 = vweird.f32 %v6939
    %vm6946 = vmor %vm6944, %vm6945
    %v6947 = vsel %vm6946, %v6939, %v6943
    %v6948 = vand.u32 2147483647, %v6923
    %vm6949 = vcmp.eq.f32.partialorder %v6948, 8.507059e+37
    %v6950 = vand.u32 %v6923, 2147483648
    %v6951 = vor.u32 1.1754944e-38, %v6950
    %v6952 = vsel %vm6949, %v6951, %v6947
    %v6953 = vmul.f32 1.0, %v6952
    %v6954 = vrcp.pop %v6924
    %v6955 = vmul.f32 %v6924, %v6954
    %v6956 = vsub.f32 1.0, %v6955
    %v6957 = vmul.f32 %v6954, %v6956
    %v6958 = vadd.f32 %v6954, %v6957
    %vm6959 = vweird.f32 %v6924
    %vm6960 = vweird.f32 %v6954
    %vm6961 = vmor %vm6959, %vm6960
    %v6962 = vsel %vm6961, %v6954, %v6958
    %v6963 = vand.u32 2147483647, %v6924
    %vm6964 = vcmp.eq.f32.partialorder %v6963, 8.507059e+37
    %v6965 = vand.u32 %v6924, 2147483648
    %v6966 = vor.u32 1.1754944e-38, %v6965
    %v6967 = vsel %vm6964, %v6966, %v6962
    %v6968 = vmul.f32 1.0, %v6967
    %v6969 = vrcp.pop %v6925
    %v6970 = vmul.f32 %v6925, %v6969
    %v6971 = vsub.f32 1.0, %v6970
    %v6972 = vmul.f32 %v6969, %v6971
    %v6973 = vadd.f32 %v6969, %v6972
    %vm6974 = vweird.f32 %v6925
    %vm6975 = vweird.f32 %v6969
    %vm6976 = vmor %vm6974, %vm6975
    %v6977 = vsel %vm6976, %v6969, %v6973
    %v6978 = vand.u32 2147483647, %v6925
    %vm6979 = vcmp.eq.f32.partialorder %v6978, 8.507059e+37
    %v6980 = vand.u32 %v6925, 2147483648
    %v6981 = vor.u32 1.1754944e-38, %v6980
    %v6982 = vsel %vm6979, %v6981, %v6977
    %v6983 = vmul.f32 1.0, %v6982
    %v6984 = vrcp.pop %v6926
    %v6985 = vmul.f32 %v6926, %v6984
    %v6986 = vsub.f32 1.0, %v6985
    %v6987 = vmul.f32 %v6984, %v6986
    %v6988 = vadd.f32 %v6984, %v6987
    %vm6989 = vweird.f32 %v6926
    %vm6990 = vweird.f32 %v6984
    %vm6991 = vmor %vm6989, %vm6990
    %v6992 = vsel %vm6991, %v6984, %v6988
    %v6993 = vand.u32 2147483647, %v6926
    %vm6994 = vcmp.eq.f32.partialorder %v6993, 8.507059e+37
    %v6995 = vand.u32 %v6926, 2147483648
    %v6996 = vor.u32 1.1754944e-38, %v6995
    %v6997 = vsel %vm6994, %v6996, %v6992
    %v6998 = vmul.f32 1.0, %v6997
    %v6999 = vrcp.pop %v6927
    %v7000 = vmul.f32 %v6927, %v6999
    %v7001 = vsub.f32 1.0, %v7000
    %v7002 = vmul.f32 %v6999, %v7001
    %v7003 = vadd.f32 %v6999, %v7002
    %vm7004 = vweird.f32 %v6927
    %vm7005 = vweird.f32 %v6999
    %vm7006 = vmor %vm7004, %vm7005
    %v7007 = vsel %vm7006, %v6999, %v7003
    %v7008 = vand.u32 2147483647, %v6927
    %vm7009 = vcmp.eq.f32.partialorder %v7008, 8.507059e+37
    %v7010 = vand.u32 %v6927, 2147483648
    %v7011 = vor.u32 1.1754944e-38, %v7010
    %v7012 = vsel %vm7009, %v7011, %v7007
    %v7013 = vmul.f32 1.0, %v7012
    %v7014 = vrcp.pop %v6928
    %v7015 = vmul.f32 %v6928, %v7014
    %v7016 = vsub.f32 1.0, %v7015
    %v7017 = vmul.f32 %v7014, %v7016
    %v7018 = vadd.f32 %v7014, %v7017
    %vm7019 = vweird.f32 %v6928
    %vm7020 = vweird.f32 %v7014
    %vm7021 = vmor %vm7019, %vm7020
    %v7022 = vsel %vm7021, %v7014, %v7018
    %v7023 = vand.u32 2147483647, %v6928
    %vm7024 = vcmp.eq.f32.partialorder %v7023, 8.507059e+37
    %v7025 = vand.u32 %v6928, 2147483648
    %v7026 = vor.u32 1.1754944e-38, %v7025
    %v7027 = vsel %vm7024, %v7026, %v7022
    %v7028 = vmul.f32 1.0, %v7027
    %v7029 = vrcp.pop %v6929
    %v7030 = vmul.f32 %v6929, %v7029
    %v7031 = vsub.f32 1.0, %v7030
    %v7032 = vmul.f32 %v7029, %v7031
    %v7033 = vadd.f32 %v7029, %v7032
    %vm7034 = vweird.f32 %v6929
    %vm7035 = vweird.f32 %v7029
    %vm7036 = vmor %vm7034, %vm7035
    %v7037 = vsel %vm7036, %v7029, %v7033
    %v7038 = vand.u32 2147483647, %v6929
    %vm7039 = vcmp.eq.f32.partialorder %v7038, 8.507059e+37
    %v7040 = vand.u32 %v6929, 2147483648
    %v7041 = vor.u32 1.1754944e-38, %v7040
    %v7042 = vsel %vm7039, %v7041, %v7037
    %v7043 = vmul.f32 1.0, %v7042
    %v7044 = vrcp.pop %v6930
    %v7045 = vmul.f32 %v6930, %v7044
    %v7046 = vsub.f32 1.0, %v7045
    %v7047 = vmul.f32 %v7044, %v7046
    %v7048 = vadd.f32 %v7044, %v7047
    %vm7049 = vweird.f32 %v6930
    %vm7050 = vweird.f32 %v7044
    %vm7051 = vmor %vm7049, %vm7050
    %v7052 = vsel %vm7051, %v7044, %v7048
    %v7053 = vand.u32 2147483647, %v6930
    %vm7054 = vcmp.eq.f32.partialorder %v7053, 8.507059e+37
    %v7055 = vand.u32 %v6930, 2147483648
    %v7056 = vor.u32 1.1754944e-38, %v7055
    %v7057 = vsel %vm7054, %v7056, %v7052
    %v7058 = vmul.f32 1.0, %v7057
    %v7059 = vrcp.pop %v6931
    %v7060 = vmul.f32 %v6931, %v7059
    %v7061 = vsub.f32 1.0, %v7060
    %v7062 = vmul.f32 %v7059, %v7061
    %v7063 = vadd.f32 %v7059, %v7062
    %vm7064 = vweird.f32 %v6931
    %vm7065 = vweird.f32 %v7059
    %vm7066 = vmor %vm7064, %vm7065
    %v7067 = vsel %vm7066, %v7059, %v7063
    %v7068 = vand.u32 2147483647, %v6931
    %vm7069 = vcmp.eq.f32.partialorder %v7068, 8.507059e+37
    %v7070 = vand.u32 %v6931, 2147483648
    %v7071 = vor.u32 1.1754944e-38, %v7070
    %v7072 = vsel %vm7069, %v7071, %v7067
    %v7073 = vmul.f32 1.0, %v7072
    %v7074 = vrcp.pop %v6932
    %v7075 = vmul.f32 %v6932, %v7074
    %v7076 = vsub.f32 1.0, %v7075
    %v7077 = vmul.f32 %v7074, %v7076
    %v7078 = vadd.f32 %v7074, %v7077
    %vm7079 = vweird.f32 %v6932
    %vm7080 = vweird.f32 %v7074
    %vm7081 = vmor %vm7079, %vm7080
    %v7082 = vsel %vm7081, %v7074, %v7078
    %v7083 = vand.u32 2147483647, %v6932
    %vm7084 = vcmp.eq.f32.partialorder %v7083, 8.507059e+37
    %v7085 = vand.u32 %v6932, 2147483648
    %v7086 = vor.u32 1.1754944e-38, %v7085
    %v7087 = vsel %vm7084, %v7086, %v7082
    %v7088 = vmul.f32 1.0, %v7087
    %v7089 = vrcp.pop %v6933
    %v7090 = vmul.f32 %v6933, %v7089
    %v7091 = vsub.f32 1.0, %v7090
    %v7092 = vmul.f32 %v7089, %v7091
    %v7093 = vadd.f32 %v7089, %v7092
    %vm7094 = vweird.f32 %v6933
    %vm7095 = vweird.f32 %v7089
    %vm7096 = vmor %vm7094, %vm7095
    %v7097 = vsel %vm7096, %v7089, %v7093
    %v7098 = vand.u32 2147483647, %v6933
    %vm7099 = vcmp.eq.f32.partialorder %v7098, 8.507059e+37
    %v7100 = vand.u32 %v6933, 2147483648
    %v7101 = vor.u32 1.1754944e-38, %v7100
    %v7102 = vsel %vm7099, %v7101, %v7097
    %v7103 = vmul.f32 1.0, %v7102
    %v7104 = vrcp.pop %v6934
    %v7105 = vmul.f32 %v6934, %v7104
    %v7106 = vsub.f32 1.0, %v7105
    %v7107 = vmul.f32 %v7104, %v7106
    %v7108 = vadd.f32 %v7104, %v7107
    %vm7109 = vweird.f32 %v6934
    %vm7110 = vweird.f32 %v7104
    %vm7111 = vmor %vm7109, %vm7110
    %v7112 = vsel %vm7111, %v7104, %v7108
    %v7113 = vand.u32 2147483647, %v6934
    %vm7114 = vcmp.eq.f32.partialorder %v7113, 8.507059e+37
    %v7115 = vand.u32 %v6934, 2147483648
    %v7116 = vor.u32 1.1754944e-38, %v7115
    %v7117 = vsel %vm7114, %v7116, %v7112
    %v7118 = vmul.f32 1.0, %v7117
    %v7119 = vrcp.pop %v6935
    %v7120 = vmul.f32 %v6935, %v7119
    %v7121 = vsub.f32 1.0, %v7120
    %v7122 = vmul.f32 %v7119, %v7121
    %v7123 = vadd.f32 %v7119, %v7122
    %vm7124 = vweird.f32 %v6935
    %vm7125 = vweird.f32 %v7119
    %vm7126 = vmor %vm7124, %vm7125
    %v7127 = vsel %vm7126, %v7119, %v7123
    %v7128 = vand.u32 2147483647, %v6935
    %vm7129 = vcmp.eq.f32.partialorder %v7128, 8.507059e+37
    %v7130 = vand.u32 %v6935, 2147483648
    %v7131 = vor.u32 1.1754944e-38, %v7130
    %v7132 = vsel %vm7129, %v7131, %v7127
    %v7133 = vmul.f32 1.0, %v7132
    %v7134 = vrcp.pop %v6936
    %v7135 = vmul.f32 %v6936, %v7134
    %v7136 = vsub.f32 1.0, %v7135
    %v7137 = vmul.f32 %v7134, %v7136
    %v7138 = vadd.f32 %v7134, %v7137
    %vm7139 = vweird.f32 %v6936
    %vm7140 = vweird.f32 %v7134
    %vm7141 = vmor %vm7139, %vm7140
    %v7142 = vsel %vm7141, %v7134, %v7138
    %v7143 = vand.u32 2147483647, %v6936
    %vm7144 = vcmp.eq.f32.partialorder %v7143, 8.507059e+37
    %v7145 = vand.u32 %v6936, 2147483648
    %v7146 = vor.u32 1.1754944e-38, %v7145
    %v7147 = vsel %vm7144, %v7146, %v7142
    %v7148 = vmul.f32 1.0, %v7147
    %v7149 = vrcp.pop %v6937
    %v7150 = vmul.f32 %v6937, %v7149
    %v7151 = vsub.f32 1.0, %v7150
    %v7152 = vmul.f32 %v7149, %v7151
    %v7153 = vadd.f32 %v7149, %v7152
    %vm7154 = vweird.f32 %v6937
    %vm7155 = vweird.f32 %v7149
    %vm7156 = vmor %vm7154, %vm7155
    %v7157 = vsel %vm7156, %v7149, %v7153
    %v7158 = vand.u32 2147483647, %v6937
    %vm7159 = vcmp.eq.f32.partialorder %v7158, 8.507059e+37
    %v7160 = vand.u32 %v6937, 2147483648
    %v7161 = vor.u32 1.1754944e-38, %v7160
    %v7162 = vsel %vm7159, %v7161, %v7157
    %v7163 = vmul.f32 1.0, %v7162
    %v7164 = vrcp.pop %v6938
    %v7165 = vmul.f32 %v6938, %v7164
    %v7166 = vsub.f32 1.0, %v7165
    %v7167 = vmul.f32 %v7164, %v7166
    %v7168 = vadd.f32 %v7164, %v7167
    %vm7169 = vweird.f32 %v6938
    %vm7170 = vweird.f32 %v7164
    %vm7171 = vmor %vm7169, %vm7170
    %v7172 = vsel %vm7171, %v7164, %v7168
    %v7173 = vand.u32 2147483647, %v6938
    %vm7174 = vcmp.eq.f32.partialorder %v7173, 8.507059e+37
    %v7175 = vand.u32 %v6938, 2147483648
    %v7176 = vor.u32 1.1754944e-38, %v7175
    %v7177 = vsel %vm7174, %v7176, %v7172
    %v7178 = vmul.f32 1.0, %v7177
    %v7179 = vmul.f32 %v6859, %v6953
    %v7180 = vmul.f32 %v6860, %v6968
    %v7181 = vmul.f32 %v6861, %v6983
    %v7182 = vmul.f32 %v6862, %v6998
    %v7183 = vmul.f32 %v6863, %v7013
    %v7184 = vmul.f32 %v6864, %v7028
    %v7185 = vmul.f32 %v6865, %v7043
    %v7186 = vmul.f32 %v6866, %v7058
    %v7187 = vmul.f32 %v6867, %v7073
    %v7188 = vmul.f32 %v6868, %v7088
    %v7189 = vmul.f32 %v6869, %v7103
    %v7190 = vmul.f32 %v6870, %v7118
    %v7191 = vmul.f32 %v6871, %v7133
    %v7192 = vmul.f32 %v6872, %v7148
    %v7193 = vmul.f32 %v6873, %v7163
    %v7194 = vmul.f32 %v6874, %v7178
    %7195 = vrot.lane.b32.xlu0 %v7179, 1
    %v7196 = vpop.permute.xlu0 %7195
    %7197 = vrot.lane.b32.xlu0 %v7180, 1
    %v7198 = vpop.permute.xlu0 %7197
    %7199 = vrot.lane.b32.xlu0 %v7181, 1
    %v7200 = vpop.permute.xlu0 %7199
    %7201 = vrot.lane.b32.xlu0 %v7182, 1
    %v7202 = vpop.permute.xlu0 %7201
    %7203 = vrot.lane.b32.xlu0 %v7183, 1
    %v7204 = vpop.permute.xlu0 %7203
    %7205 = vrot.lane.b32.xlu0 %v7184, 1
    %v7206 = vpop.permute.xlu0 %7205
    %7207 = vrot.lane.b32.xlu0 %v7185, 1
    %v7208 = vpop.permute.xlu0 %7207
    %7209 = vrot.lane.b32.xlu0 %v7186, 1
    %v7210 = vpop.permute.xlu0 %7209
    %7211 = vrot.lane.b32.xlu0 %v7187, 1
    %v7212 = vpop.permute.xlu0 %7211
    %7213 = vrot.lane.b32.xlu0 %v7188, 1
    %v7214 = vpop.permute.xlu0 %7213
    %7215 = vrot.lane.b32.xlu0 %v7189, 1
    %v7216 = vpop.permute.xlu0 %7215
    %7217 = vrot.lane.b32.xlu0 %v7190, 1
    %v7218 = vpop.permute.xlu0 %7217
    %7219 = vrot.lane.b32.xlu0 %v7191, 1
    %v7220 = vpop.permute.xlu0 %7219
    %7221 = vrot.lane.b32.xlu0 %v7192, 1
    %v7222 = vpop.permute.xlu0 %7221
    %7223 = vrot.lane.b32.xlu0 %v7193, 1
    %v7224 = vpop.permute.xlu0 %7223
    %7225 = vrot.lane.b32.xlu0 %v7194, 1
    %v7226 = vpop.permute.xlu0 %7225
    %v7227 = vmul.f32 %v7196, %v75
    %v7228 = vmul.f32 %v7198, %v75
    %v7229 = vmul.f32 %v7200, %v75
    %v7230 = vmul.f32 %v7202, %v75
    %v7231 = vmul.f32 %v7204, %v75
    %v7232 = vmul.f32 %v7206, %v75
    %v7233 = vmul.f32 %v7208, %v75
    %v7234 = vmul.f32 %v7210, %v75
    %v7235 = vmul.f32 %v7212, %v75
    %v7236 = vmul.f32 %v7214, %v75
    %v7237 = vmul.f32 %v7216, %v75
    %v7238 = vmul.f32 %v7218, %v75
    %v7239 = vmul.f32 %v7220, %v75
    %v7240 = vmul.f32 %v7222, %v75
    %v7241 = vmul.f32 %v7224, %v75
    %v7242 = vmul.f32 %v7226, %v75
    %7243 = vrot.lane.b32.xlu0 %v7179, 127
    %v7244 = vpop.permute.xlu0 %7243
    %7245 = vrot.lane.b32.xlu0 %v7180, 127
    %v7246 = vpop.permute.xlu0 %7245
    %7247 = vrot.lane.b32.xlu0 %v7181, 127
    %v7248 = vpop.permute.xlu0 %7247
    %7249 = vrot.lane.b32.xlu0 %v7182, 127
    %v7250 = vpop.permute.xlu0 %7249
    %7251 = vrot.lane.b32.xlu0 %v7183, 127
    %v7252 = vpop.permute.xlu0 %7251
    %7253 = vrot.lane.b32.xlu0 %v7184, 127
    %v7254 = vpop.permute.xlu0 %7253
    %7255 = vrot.lane.b32.xlu0 %v7185, 127
    %v7256 = vpop.permute.xlu0 %7255
    %7257 = vrot.lane.b32.xlu0 %v7186, 127
    %v7258 = vpop.permute.xlu0 %7257
    %7259 = vrot.lane.b32.xlu0 %v7187, 127
    %v7260 = vpop.permute.xlu0 %7259
    %7261 = vrot.lane.b32.xlu0 %v7188, 127
    %v7262 = vpop.permute.xlu0 %7261
    %7263 = vrot.lane.b32.xlu0 %v7189, 127
    %v7264 = vpop.permute.xlu0 %7263
    %7265 = vrot.lane.b32.xlu0 %v7190, 127
    %v7266 = vpop.permute.xlu0 %7265
    %7267 = vrot.lane.b32.xlu0 %v7191, 127
    %v7268 = vpop.permute.xlu0 %7267
    %7269 = vrot.lane.b32.xlu0 %v7192, 127
    %v7270 = vpop.permute.xlu0 %7269
    %7271 = vrot.lane.b32.xlu0 %v7193, 127
    %v7272 = vpop.permute.xlu0 %7271
    %7273 = vrot.lane.b32.xlu0 %v7194, 127
    %v7274 = vpop.permute.xlu0 %7273
    %v7275 = vmul.f32 %v7244, %v78
    %v7276 = vmul.f32 %v7246, %v78
    %v7277 = vmul.f32 %v7248, %v78
    %v7278 = vmul.f32 %v7250, %v78
    %v7279 = vmul.f32 %v7252, %v78
    %v7280 = vmul.f32 %v7254, %v78
    %v7281 = vmul.f32 %v7256, %v78
    %v7282 = vmul.f32 %v7258, %v78
    %v7283 = vmul.f32 %v7260, %v78
    %v7284 = vmul.f32 %v7262, %v78
    %v7285 = vmul.f32 %v7264, %v78
    %v7286 = vmul.f32 %v7266, %v78
    %v7287 = vmul.f32 %v7268, %v78
    %v7288 = vmul.f32 %v7270, %v78
    %v7289 = vmul.f32 %v7272, %v78
    %v7290 = vmul.f32 %v7274, %v78
    %7291 = vst [vmem:[#allocation2] sm:$0xff] %v7227
    %7292 = vst [vmem:[#allocation2 + $0x20] sm:$0xff] %v7228
    %7293 = vst [vmem:[#allocation2 + $0x40] sm:$0xff] %v7229
    %7294 = vst [vmem:[#allocation2 + $0x60] sm:$0xff] %v7230
    %7295 = vst [vmem:[#allocation2 + $0x80] sm:$0xff] %v7231
    %7296 = vst [vmem:[#allocation2 + $0xa0] sm:$0xff] %v7232
    %7297 = vst [vmem:[#allocation2 + $0xc0] sm:$0xff] %v7233
    %7298 = vst [vmem:[#allocation2 + $0xe0] sm:$0xff] %v7234
    %7299 = vst [vmem:[#allocation2 + $0x100] sm:$0xff] %v7235
    %7300 = vst [vmem:[#allocation2 + $0x120] sm:$0xff] %v7236
    %7301 = vst [vmem:[#allocation2 + $0x140] sm:$0xff] %v7237
    %7302 = vst [vmem:[#allocation2 + $0x160] sm:$0xff] %v7238
    %7303 = vst [vmem:[#allocation2 + $0x180] sm:$0xff] %v7239
    %7304 = vst [vmem:[#allocation2 + $0x1a0] sm:$0xff] %v7240
    %7305 = vst [vmem:[#allocation2 + $0x1c0] sm:$0xff] %v7241
    %7306 = vst [vmem:[#allocation2 + $0x1e0] sm:$0xff] %v7242
    %7307 = vst [vmem:[#allocation2 + $0x200] sm:$0xff] %v7179
    %7308 = vst [vmem:[#allocation2 + $0x220] sm:$0xff] %v7180
    %7309 = vst [vmem:[#allocation2 + $0x240] sm:$0xff] %v7181
    %7310 = vst [vmem:[#allocation2 + $0x260] sm:$0xff] %v7182
    %7311 = vst [vmem:[#allocation2 + $0x280] sm:$0xff] %v7183
    %7312 = vst [vmem:[#allocation2 + $0x2a0] sm:$0xff] %v7184
    %7313 = vst [vmem:[#allocation2 + $0x2c0] sm:$0xff] %v7185
    %7314 = vst [vmem:[#allocation2 + $0x2e0] sm:$0xff] %v7186
    %7315 = vst [vmem:[#allocation2 + $0x300] sm:$0xff] %v7187
    %7316 = vst [vmem:[#allocation2 + $0x320] sm:$0xff] %v7188
    %7317 = vst [vmem:[#allocation2 + $0x340] sm:$0xff] %v7189
    %7318 = vst [vmem:[#allocation2 + $0x360] sm:$0xff] %v7190
    %7319 = vst [vmem:[#allocation2 + $0x380] sm:$0xff] %v7191
    %7320 = vst [vmem:[#allocation2 + $0x3a0] sm:$0xff] %v7192
    %7321 = vst [vmem:[#allocation2 + $0x3c0] sm:$0xff] %v7193
    %7322 = vst [vmem:[#allocation2 + $0x3e0] sm:$0xff] %v7194
    %7323 = vst [vmem:[#allocation2 + $0x400] sm:$0xff] %v7275
    %7324 = vst [vmem:[#allocation2 + $0x420] sm:$0xff] %v7276
    %7325 = vst [vmem:[#allocation2 + $0x440] sm:$0xff] %v7277
    %7326 = vst [vmem:[#allocation2 + $0x460] sm:$0xff] %v7278
    %7327 = vst [vmem:[#allocation2 + $0x480] sm:$0xff] %v7279
    %7328 = vst [vmem:[#allocation2 + $0x4a0] sm:$0xff] %v7280
    %7329 = vst [vmem:[#allocation2 + $0x4c0] sm:$0xff] %v7281
    %7330 = vst [vmem:[#allocation2 + $0x4e0] sm:$0xff] %v7282
    %7331 = vst [vmem:[#allocation2 + $0x500] sm:$0xff] %v7283
    %7332 = vst [vmem:[#allocation2 + $0x520] sm:$0xff] %v7284
    %7333 = vst [vmem:[#allocation2 + $0x540] sm:$0xff] %v7285
    %7334 = vst [vmem:[#allocation2 + $0x560] sm:$0xff] %v7286
    %7335 = vst [vmem:[#allocation2 + $0x580] sm:$0xff] %v7287
    %7336 = vst [vmem:[#allocation2 + $0x5a0] sm:$0xff] %v7288
    %7337 = vst [vmem:[#allocation2 + $0x5c0] sm:$0xff] %v7289
    %7338 = vst [vmem:[#allocation2 + $0x5e0] sm:$0xff] %v7290
    %v7339 = vld [vmem:[%s5172] sm:$0xff]
    %v7340 = vld [vmem:[%s5172 + $0x8] sm:$0xff]
    %v7341 = vld [vmem:[%s5172 + $0x10] sm:$0xff]
    %v7342 = vld [vmem:[%s5172 + $0x18] sm:$0xff]
    %v7343 = vld [vmem:[%s5172 + $0x20] sm:$0xff]
    %v7344 = vld [vmem:[%s5172 + $0x28] sm:$0xff]
    %v7345 = vld [vmem:[%s5172 + $0x30] sm:$0xff]
    %v7346 = vld [vmem:[%s5172 + $0x38] sm:$0xff]
    %v7347 = vld [vmem:[%s5172 + $0x40] sm:$0xff]
    %v7348 = vld [vmem:[%s5172 + $0x48] sm:$0xff]
    %v7349 = vld [vmem:[%s5172 + $0x50] sm:$0xff]
    %v7350 = vld [vmem:[%s5172 + $0x58] sm:$0xff]
    %v7351 = vld [vmem:[%s5172 + $0x60] sm:$0xff]
    %v7352 = vld [vmem:[%s5172 + $0x68] sm:$0xff]
    %v7353 = vld [vmem:[%s5172 + $0x70] sm:$0xff]
    %v7354 = vld [vmem:[%s5172 + $0x78] sm:$0xff]
    %v7355 = vsub.f32 %v7339, %v5932
    %v7356 = vsub.f32 %v7340, %v5936
    %v7357 = vsub.f32 %v7341, %v5940
    %v7358 = vsub.f32 %v7342, %v5944
    %v7359 = vsub.f32 %v7343, %v5948
    %v7360 = vsub.f32 %v7344, %v5952
    %v7361 = vsub.f32 %v7345, %v5956
    %v7362 = vsub.f32 %v7346, %v5960
    %v7363 = vsub.f32 %v7347, %v5964
    %v7364 = vsub.f32 %v7348, %v5968
    %v7365 = vsub.f32 %v7349, %v5972
    %v7366 = vsub.f32 %v7350, %v5976
    %v7367 = vsub.f32 %v7351, %v5980
    %v7368 = vsub.f32 %v7352, %v5984
    %v7369 = vsub.f32 %v7353, %v5988
    %v7370 = vsub.f32 %v7354, %v5992
    %7371 = vset.pattern.permute.xlu0 1
    %7372 = vperm.xlu0 %7371, %v6436
    %v7373 = vpop.permute.xlu0 %7372
    %7375 = vset.pattern.permute.xlu0 1
    %7376 = vperm.xlu0 %7375, %v6446
    %v7377 = vpop.permute.xlu0 %7376
    %7379 = vset.pattern.permute.xlu0 1
    %7380 = vperm.xlu0 %7379, %v6456
    %v7381 = vpop.permute.xlu0 %7380
    %7383 = vset.pattern.permute.xlu0 1
    %7384 = vperm.xlu0 %7383, %v6466
    %v7385 = vpop.permute.xlu0 %7384
    %7387 = vset.pattern.permute.xlu0 1
    %7388 = vperm.xlu0 %7387, %v6476
    %v7389 = vpop.permute.xlu0 %7388
    %7391 = vset.pattern.permute.xlu0 1
    %7392 = vperm.xlu0 %7391, %v6486
    %v7393 = vpop.permute.xlu0 %7392
    %7395 = vset.pattern.permute.xlu0 1
    %7396 = vperm.xlu0 %7395, %v6496
    %v7397 = vpop.permute.xlu0 %7396
    %7399 = vset.pattern.permute.xlu0 1
    %7400 = vperm.xlu0 %7399, %v6506
    %v7401 = vpop.permute.xlu0 %7400
    %7403 = vset.pattern.permute.xlu0 1
    %7404 = vperm.xlu0 %7403, %v6516
    %v7405 = vpop.permute.xlu0 %7404
    %7407 = vset.pattern.permute.xlu0 1
    %7408 = vperm.xlu0 %7407, %v6526
    %v7409 = vpop.permute.xlu0 %7408
    %7411 = vset.pattern.permute.xlu0 1
    %7412 = vperm.xlu0 %7411, %v6536
    %v7413 = vpop.permute.xlu0 %7412
    %7415 = vset.pattern.permute.xlu0 1
    %7416 = vperm.xlu0 %7415, %v6546
    %v7417 = vpop.permute.xlu0 %7416
    %7419 = vset.pattern.permute.xlu0 1
    %7420 = vperm.xlu0 %7419, %v6556
    %v7421 = vpop.permute.xlu0 %7420
    %7423 = vset.pattern.permute.xlu0 1
    %7424 = vperm.xlu0 %7423, %v6566
    %v7425 = vpop.permute.xlu0 %7424
    %7427 = vset.pattern.permute.xlu0 1
    %7428 = vperm.xlu0 %7427, %v6576
    %v7429 = vpop.permute.xlu0 %7428
    %7431 = vset.pattern.permute.xlu0 1
    %7432 = vperm.xlu0 %7431, %v6586
    %v7433 = vpop.permute.xlu0 %7432
    %v7435 = vmul.f32 %v7355, %v7373
    %v7436 = vmul.f32 %v7356, %v7377
    %v7437 = vmul.f32 %v7357, %v7381
    %v7438 = vmul.f32 %v7358, %v7385
    %v7439 = vmul.f32 %v7359, %v7389
    %v7440 = vmul.f32 %v7360, %v7393
    %v7441 = vmul.f32 %v7361, %v7397
    %v7442 = vmul.f32 %v7362, %v7401
    %v7443 = vmul.f32 %v7363, %v7405
    %v7444 = vmul.f32 %v7364, %v7409
    %v7445 = vmul.f32 %v7365, %v7413
    %v7446 = vmul.f32 %v7366, %v7417
    %v7447 = vmul.f32 %v7367, %v7421
    %v7448 = vmul.f32 %v7368, %v7425
    %v7449 = vmul.f32 %v7369, %v7429
    %v7450 = vmul.f32 %v7370, %v7433
    %v7451 = vmul.f32 %v7435, %v6686
    %v7452 = vmul.f32 %v7436, %v6691
    %v7453 = vmul.f32 %v7437, %v6696
    %v7454 = vmul.f32 %v7438, %v6701
    %v7455 = vmul.f32 %v7439, %v6706
    %v7456 = vmul.f32 %v7440, %v6711
    %v7457 = vmul.f32 %v7441, %v6716
    %v7458 = vmul.f32 %v7442, %v6721
    %v7459 = vmul.f32 %v7443, %v6726
    %v7460 = vmul.f32 %v7444, %v6731
    %v7461 = vmul.f32 %v7445, %v6736
    %v7462 = vmul.f32 %v7446, %v6741
    %v7463 = vmul.f32 %v7447, %v6746
    %v7464 = vmul.f32 %v7448, %v6751
    %v7465 = vmul.f32 %v7449, %v6756
    %v7466 = vmul.f32 %v7450, %v6761
    %v7467 = vadd.f32 %v7451, %v6782
    %v7468 = vadd.f32 %v7452, %v6787
    %v7469 = vadd.f32 %v7453, %v6792
    %v7470 = vadd.f32 %v7454, %v6797
    %v7471 = vadd.f32 %v7455, %v6802
    %v7472 = vadd.f32 %v7456, %v6807
    %v7473 = vadd.f32 %v7457, %v6812
    %v7474 = vadd.f32 %v7458, %v6817
    %v7475 = vadd.f32 %v7459, %v6822
    %v7476 = vadd.f32 %v7460, %v6827
    %v7477 = vadd.f32 %v7461, %v6832
    %v7478 = vadd.f32 %v7462, %v6837
    %v7479 = vadd.f32 %v7463, %v6842
    %v7480 = vadd.f32 %v7464, %v6847
    %v7481 = vadd.f32 %v7465, %v6852
    %v7482 = vadd.f32 %v7466, %v6857
    %v7483 = vxor.u32 %v7467, 2147483648
    %v7484 = vxor.u32 %v7468, 2147483648
    %v7485 = vxor.u32 %v7469, 2147483648
    %v7486 = vxor.u32 %v7470, 2147483648
    %v7487 = vxor.u32 %v7471, 2147483648
    %v7488 = vxor.u32 %v7472, 2147483648
    %v7489 = vxor.u32 %v7473, 2147483648
    %v7490 = vxor.u32 %v7474, 2147483648
    %v7491 = vxor.u32 %v7475, 2147483648
    %v7492 = vxor.u32 %v7476, 2147483648
    %v7493 = vxor.u32 %v7477, 2147483648
    %v7494 = vxor.u32 %v7478, 2147483648
    %v7495 = vxor.u32 %v7479, 2147483648
    %v7496 = vxor.u32 %v7480, 2147483648
    %v7497 = vxor.u32 %v7481, 2147483648
    %v7498 = vxor.u32 %v7482, 2147483648
    %v7499 = vmul.f32 %v7483, 1.442695
    %v7500 = vpow.pop %v7499
    %v7501 = vmul.f32 %v7484, 1.442695
    %v7502 = vpow.pop %v7501
    %v7503 = vmul.f32 %v7485, 1.442695
    %v7504 = vpow.pop %v7503
    %v7505 = vmul.f32 %v7486, 1.442695
    %v7506 = vpow.pop %v7505
    %v7507 = vmul.f32 %v7487, 1.442695
    %v7508 = vpow.pop %v7507
    %v7509 = vmul.f32 %v7488, 1.442695
    %v7510 = vpow.pop %v7509
    %v7511 = vmul.f32 %v7489, 1.442695
    %v7512 = vpow.pop %v7511
    %v7513 = vmul.f32 %v7490, 1.442695
    %v7514 = vpow.pop %v7513
    %v7515 = vmul.f32 %v7491, 1.442695
    %v7516 = vpow.pop %v7515
    %v7517 = vmul.f32 %v7492, 1.442695
    %v7518 = vpow.pop %v7517
    %v7519 = vmul.f32 %v7493, 1.442695
    %v7520 = vpow.pop %v7519
    %v7521 = vmul.f32 %v7494, 1.442695
    %v7522 = vpow.pop %v7521
    %v7523 = vmul.f32 %v7495, 1.442695
    %v7524 = vpow.pop %v7523
    %v7525 = vmul.f32 %v7496, 1.442695
    %v7526 = vpow.pop %v7525
    %v7527 = vmul.f32 %v7497, 1.442695
    %v7528 = vpow.pop %v7527
    %v7529 = vmul.f32 %v7498, 1.442695
    %v7530 = vpow.pop %v7529
    %v7531 = vadd.f32 %v7500, 1.0
    %v7532 = vadd.f32 %v7502, 1.0
    %v7533 = vadd.f32 %v7504, 1.0
    %v7534 = vadd.f32 %v7506, 1.0
    %v7535 = vadd.f32 %v7508, 1.0
    %v7536 = vadd.f32 %v7510, 1.0
    %v7537 = vadd.f32 %v7512, 1.0
    %v7538 = vadd.f32 %v7514, 1.0
    %v7539 = vadd.f32 %v7516, 1.0
    %v7540 = vadd.f32 %v7518, 1.0
    %v7541 = vadd.f32 %v7520, 1.0
    %v7542 = vadd.f32 %v7522, 1.0
    %v7543 = vadd.f32 %v7524, 1.0
    %v7544 = vadd.f32 %v7526, 1.0
    %v7545 = vadd.f32 %v7528, 1.0
    %v7546 = vadd.f32 %v7530, 1.0
    %v7547 = vrcp.pop %v7531
    %v7548 = vmul.f32 %v7531, %v7547
    %v7549 = vsub.f32 1.0, %v7548
    %v7550 = vmul.f32 %v7547, %v7549
    %v7551 = vadd.f32 %v7547, %v7550
    %vm7552 = vweird.f32 %v7531
    %vm7553 = vweird.f32 %v7547
    %vm7554 = vmor %vm7552, %vm7553
    %v7555 = vsel %vm7554, %v7547, %v7551
    %v7556 = vand.u32 2147483647, %v7531
    %vm7557 = vcmp.eq.f32.partialorder %v7556, 8.507059e+37
    %v7558 = vand.u32 %v7531, 2147483648
    %v7559 = vor.u32 1.1754944e-38, %v7558
    %v7560 = vsel %vm7557, %v7559, %v7555
    %v7561 = vmul.f32 1.0, %v7560
    %v7562 = vrcp.pop %v7532
    %v7563 = vmul.f32 %v7532, %v7562
    %v7564 = vsub.f32 1.0, %v7563
    %v7565 = vmul.f32 %v7562, %v7564
    %v7566 = vadd.f32 %v7562, %v7565
    %vm7567 = vweird.f32 %v7532
    %vm7568 = vweird.f32 %v7562
    %vm7569 = vmor %vm7567, %vm7568
    %v7570 = vsel %vm7569, %v7562, %v7566
    %v7571 = vand.u32 2147483647, %v7532
    %vm7572 = vcmp.eq.f32.partialorder %v7571, 8.507059e+37
    %v7573 = vand.u32 %v7532, 2147483648
    %v7574 = vor.u32 1.1754944e-38, %v7573
    %v7575 = vsel %vm7572, %v7574, %v7570
    %v7576 = vmul.f32 1.0, %v7575
    %v7577 = vrcp.pop %v7533
    %v7578 = vmul.f32 %v7533, %v7577
    %v7579 = vsub.f32 1.0, %v7578
    %v7580 = vmul.f32 %v7577, %v7579
    %v7581 = vadd.f32 %v7577, %v7580
    %vm7582 = vweird.f32 %v7533
    %vm7583 = vweird.f32 %v7577
    %vm7584 = vmor %vm7582, %vm7583
    %v7585 = vsel %vm7584, %v7577, %v7581
    %v7586 = vand.u32 2147483647, %v7533
    %vm7587 = vcmp.eq.f32.partialorder %v7586, 8.507059e+37
    %v7588 = vand.u32 %v7533, 2147483648
    %v7589 = vor.u32 1.1754944e-38, %v7588
    %v7590 = vsel %vm7587, %v7589, %v7585
    %v7591 = vmul.f32 1.0, %v7590
    %v7592 = vrcp.pop %v7534
    %v7593 = vmul.f32 %v7534, %v7592
    %v7594 = vsub.f32 1.0, %v7593
    %v7595 = vmul.f32 %v7592, %v7594
    %v7596 = vadd.f32 %v7592, %v7595
    %vm7597 = vweird.f32 %v7534
    %vm7598 = vweird.f32 %v7592
    %vm7599 = vmor %vm7597, %vm7598
    %v7600 = vsel %vm7599, %v7592, %v7596
    %v7601 = vand.u32 2147483647, %v7534
    %vm7602 = vcmp.eq.f32.partialorder %v7601, 8.507059e+37
    %v7603 = vand.u32 %v7534, 2147483648
    %v7604 = vor.u32 1.1754944e-38, %v7603
    %v7605 = vsel %vm7602, %v7604, %v7600
    %v7606 = vmul.f32 1.0, %v7605
    %v7607 = vrcp.pop %v7535
    %v7608 = vmul.f32 %v7535, %v7607
    %v7609 = vsub.f32 1.0, %v7608
    %v7610 = vmul.f32 %v7607, %v7609
    %v7611 = vadd.f32 %v7607, %v7610
    %vm7612 = vweird.f32 %v7535
    %vm7613 = vweird.f32 %v7607
    %vm7614 = vmor %vm7612, %vm7613
    %v7615 = vsel %vm7614, %v7607, %v7611
    %v7616 = vand.u32 2147483647, %v7535
    %vm7617 = vcmp.eq.f32.partialorder %v7616, 8.507059e+37
    %v7618 = vand.u32 %v7535, 2147483648
    %v7619 = vor.u32 1.1754944e-38, %v7618
    %v7620 = vsel %vm7617, %v7619, %v7615
    %v7621 = vmul.f32 1.0, %v7620
    %v7622 = vrcp.pop %v7536
    %v7623 = vmul.f32 %v7536, %v7622
    %v7624 = vsub.f32 1.0, %v7623
    %v7625 = vmul.f32 %v7622, %v7624
    %v7626 = vadd.f32 %v7622, %v7625
    %vm7627 = vweird.f32 %v7536
    %vm7628 = vweird.f32 %v7622
    %vm7629 = vmor %vm7627, %vm7628
    %v7630 = vsel %vm7629, %v7622, %v7626
    %v7631 = vand.u32 2147483647, %v7536
    %vm7632 = vcmp.eq.f32.partialorder %v7631, 8.507059e+37
    %v7633 = vand.u32 %v7536, 2147483648
    %v7634 = vor.u32 1.1754944e-38, %v7633
    %v7635 = vsel %vm7632, %v7634, %v7630
    %v7636 = vmul.f32 1.0, %v7635
    %v7637 = vrcp.pop %v7537
    %v7638 = vmul.f32 %v7537, %v7637
    %v7639 = vsub.f32 1.0, %v7638
    %v7640 = vmul.f32 %v7637, %v7639
    %v7641 = vadd.f32 %v7637, %v7640
    %vm7642 = vweird.f32 %v7537
    %vm7643 = vweird.f32 %v7637
    %vm7644 = vmor %vm7642, %vm7643
    %v7645 = vsel %vm7644, %v7637, %v7641
    %v7646 = vand.u32 2147483647, %v7537
    %vm7647 = vcmp.eq.f32.partialorder %v7646, 8.507059e+37
    %v7648 = vand.u32 %v7537, 2147483648
    %v7649 = vor.u32 1.1754944e-38, %v7648
    %v7650 = vsel %vm7647, %v7649, %v7645
    %v7651 = vmul.f32 1.0, %v7650
    %v7652 = vrcp.pop %v7538
    %v7653 = vmul.f32 %v7538, %v7652
    %v7654 = vsub.f32 1.0, %v7653
    %v7655 = vmul.f32 %v7652, %v7654
    %v7656 = vadd.f32 %v7652, %v7655
    %vm7657 = vweird.f32 %v7538
    %vm7658 = vweird.f32 %v7652
    %vm7659 = vmor %vm7657, %vm7658
    %v7660 = vsel %vm7659, %v7652, %v7656
    %v7661 = vand.u32 2147483647, %v7538
    %vm7662 = vcmp.eq.f32.partialorder %v7661, 8.507059e+37
    %v7663 = vand.u32 %v7538, 2147483648
    %v7664 = vor.u32 1.1754944e-38, %v7663
    %v7665 = vsel %vm7662, %v7664, %v7660
    %v7666 = vmul.f32 1.0, %v7665
    %v7667 = vrcp.pop %v7539
    %v7668 = vmul.f32 %v7539, %v7667
    %v7669 = vsub.f32 1.0, %v7668
    %v7670 = vmul.f32 %v7667, %v7669
    %v7671 = vadd.f32 %v7667, %v7670
    %vm7672 = vweird.f32 %v7539
    %vm7673 = vweird.f32 %v7667
    %vm7674 = vmor %vm7672, %vm7673
    %v7675 = vsel %vm7674, %v7667, %v7671
    %v7676 = vand.u32 2147483647, %v7539
    %vm7677 = vcmp.eq.f32.partialorder %v7676, 8.507059e+37
    %v7678 = vand.u32 %v7539, 2147483648
    %v7679 = vor.u32 1.1754944e-38, %v7678
    %v7680 = vsel %vm7677, %v7679, %v7675
    %v7681 = vmul.f32 1.0, %v7680
    %v7682 = vrcp.pop %v7540
    %v7683 = vmul.f32 %v7540, %v7682
    %v7684 = vsub.f32 1.0, %v7683
    %v7685 = vmul.f32 %v7682, %v7684
    %v7686 = vadd.f32 %v7682, %v7685
    %vm7687 = vweird.f32 %v7540
    %vm7688 = vweird.f32 %v7682
    %vm7689 = vmor %vm7687, %vm7688
    %v7690 = vsel %vm7689, %v7682, %v7686
    %v7691 = vand.u32 2147483647, %v7540
    %vm7692 = vcmp.eq.f32.partialorder %v7691, 8.507059e+37
    %v7693 = vand.u32 %v7540, 2147483648
    %v7694 = vor.u32 1.1754944e-38, %v7693
    %v7695 = vsel %vm7692, %v7694, %v7690
    %v7696 = vmul.f32 1.0, %v7695
    %v7697 = vrcp.pop %v7541
    %v7698 = vmul.f32 %v7541, %v7697
    %v7699 = vsub.f32 1.0, %v7698
    %v7700 = vmul.f32 %v7697, %v7699
    %v7701 = vadd.f32 %v7697, %v7700
    %vm7702 = vweird.f32 %v7541
    %vm7703 = vweird.f32 %v7697
    %vm7704 = vmor %vm7702, %vm7703
    %v7705 = vsel %vm7704, %v7697, %v7701
    %v7706 = vand.u32 2147483647, %v7541
    %vm7707 = vcmp.eq.f32.partialorder %v7706, 8.507059e+37
    %v7708 = vand.u32 %v7541, 2147483648
    %v7709 = vor.u32 1.1754944e-38, %v7708
    %v7710 = vsel %vm7707, %v7709, %v7705
    %v7711 = vmul.f32 1.0, %v7710
    %v7712 = vrcp.pop %v7542
    %v7713 = vmul.f32 %v7542, %v7712
    %v7714 = vsub.f32 1.0, %v7713
    %v7715 = vmul.f32 %v7712, %v7714
    %v7716 = vadd.f32 %v7712, %v7715
    %vm7717 = vweird.f32 %v7542
    %vm7718 = vweird.f32 %v7712
    %vm7719 = vmor %vm7717, %vm7718
    %v7720 = vsel %vm7719, %v7712, %v7716
    %v7721 = vand.u32 2147483647, %v7542
    %vm7722 = vcmp.eq.f32.partialorder %v7721, 8.507059e+37
    %v7723 = vand.u32 %v7542, 2147483648
    %v7724 = vor.u32 1.1754944e-38, %v7723
    %v7725 = vsel %vm7722, %v7724, %v7720
    %v7726 = vmul.f32 1.0, %v7725
    %v7727 = vrcp.pop %v7543
    %v7728 = vmul.f32 %v7543, %v7727
    %v7729 = vsub.f32 1.0, %v7728
    %v7730 = vmul.f32 %v7727, %v7729
    %v7731 = vadd.f32 %v7727, %v7730
    %vm7732 = vweird.f32 %v7543
    %vm7733 = vweird.f32 %v7727
    %vm7734 = vmor %vm7732, %vm7733
    %v7735 = vsel %vm7734, %v7727, %v7731
    %v7736 = vand.u32 2147483647, %v7543
    %vm7737 = vcmp.eq.f32.partialorder %v7736, 8.507059e+37
    %v7738 = vand.u32 %v7543, 2147483648
    %v7739 = vor.u32 1.1754944e-38, %v7738
    %v7740 = vsel %vm7737, %v7739, %v7735
    %v7741 = vmul.f32 1.0, %v7740
    %v7742 = vrcp.pop %v7544
    %v7743 = vmul.f32 %v7544, %v7742
    %v7744 = vsub.f32 1.0, %v7743
    %v7745 = vmul.f32 %v7742, %v7744
    %v7746 = vadd.f32 %v7742, %v7745
    %vm7747 = vweird.f32 %v7544
    %vm7748 = vweird.f32 %v7742
    %vm7749 = vmor %vm7747, %vm7748
    %v7750 = vsel %vm7749, %v7742, %v7746
    %v7751 = vand.u32 2147483647, %v7544
    %vm7752 = vcmp.eq.f32.partialorder %v7751, 8.507059e+37
    %v7753 = vand.u32 %v7544, 2147483648
    %v7754 = vor.u32 1.1754944e-38, %v7753
    %v7755 = vsel %vm7752, %v7754, %v7750
    %v7756 = vmul.f32 1.0, %v7755
    %v7757 = vrcp.pop %v7545
    %v7758 = vmul.f32 %v7545, %v7757
    %v7759 = vsub.f32 1.0, %v7758
    %v7760 = vmul.f32 %v7757, %v7759
    %v7761 = vadd.f32 %v7757, %v7760
    %vm7762 = vweird.f32 %v7545
    %vm7763 = vweird.f32 %v7757
    %vm7764 = vmor %vm7762, %vm7763
    %v7765 = vsel %vm7764, %v7757, %v7761
    %v7766 = vand.u32 2147483647, %v7545
    %vm7767 = vcmp.eq.f32.partialorder %v7766, 8.507059e+37
    %v7768 = vand.u32 %v7545, 2147483648
    %v7769 = vor.u32 1.1754944e-38, %v7768
    %v7770 = vsel %vm7767, %v7769, %v7765
    %v7771 = vmul.f32 1.0, %v7770
    %v7772 = vrcp.pop %v7546
    %v7773 = vmul.f32 %v7546, %v7772
    %v7774 = vsub.f32 1.0, %v7773
    %v7775 = vmul.f32 %v7772, %v7774
    %v7776 = vadd.f32 %v7772, %v7775
    %vm7777 = vweird.f32 %v7546
    %vm7778 = vweird.f32 %v7772
    %vm7779 = vmor %vm7777, %vm7778
    %v7780 = vsel %vm7779, %v7772, %v7776
    %v7781 = vand.u32 2147483647, %v7546
    %vm7782 = vcmp.eq.f32.partialorder %v7781, 8.507059e+37
    %v7783 = vand.u32 %v7546, 2147483648
    %v7784 = vor.u32 1.1754944e-38, %v7783
    %v7785 = vsel %vm7782, %v7784, %v7780
    %v7786 = vmul.f32 1.0, %v7785
    %v7787 = vmul.f32 %v7467, %v7561
    %v7788 = vmul.f32 %v7468, %v7576
    %v7789 = vmul.f32 %v7469, %v7591
    %v7790 = vmul.f32 %v7470, %v7606
    %v7791 = vmul.f32 %v7471, %v7621
    %v7792 = vmul.f32 %v7472, %v7636
    %v7793 = vmul.f32 %v7473, %v7651
    %v7794 = vmul.f32 %v7474, %v7666
    %v7795 = vmul.f32 %v7475, %v7681
    %v7796 = vmul.f32 %v7476, %v7696
    %v7797 = vmul.f32 %v7477, %v7711
    %v7798 = vmul.f32 %v7478, %v7726
    %v7799 = vmul.f32 %v7479, %v7741
    %v7800 = vmul.f32 %v7480, %v7756
    %v7801 = vmul.f32 %v7481, %v7771
    %v7802 = vmul.f32 %v7482, %v7786
    %7803 = vrot.lane.b32.xlu0 %v7787, 1
    %v7804 = vpop.permute.xlu0 %7803
    %7805 = vrot.lane.b32.xlu0 %v7788, 1
    %v7806 = vpop.permute.xlu0 %7805
    %7807 = vrot.lane.b32.xlu0 %v7789, 1
    %v7808 = vpop.permute.xlu0 %7807
    %7809 = vrot.lane.b32.xlu0 %v7790, 1
    %v7810 = vpop.permute.xlu0 %7809
    %7811 = vrot.lane.b32.xlu0 %v7791, 1
    %v7812 = vpop.permute.xlu0 %7811
    %7813 = vrot.lane.b32.xlu0 %v7792, 1
    %v7814 = vpop.permute.xlu0 %7813
    %7815 = vrot.lane.b32.xlu0 %v7793, 1
    %v7816 = vpop.permute.xlu0 %7815
    %7817 = vrot.lane.b32.xlu0 %v7794, 1
    %v7818 = vpop.permute.xlu0 %7817
    %7819 = vrot.lane.b32.xlu0 %v7795, 1
    %v7820 = vpop.permute.xlu0 %7819
    %7821 = vrot.lane.b32.xlu0 %v7796, 1
    %v7822 = vpop.permute.xlu0 %7821
    %7823 = vrot.lane.b32.xlu0 %v7797, 1
    %v7824 = vpop.permute.xlu0 %7823
    %7825 = vrot.lane.b32.xlu0 %v7798, 1
    %v7826 = vpop.permute.xlu0 %7825
    %7827 = vrot.lane.b32.xlu0 %v7799, 1
    %v7828 = vpop.permute.xlu0 %7827
    %7829 = vrot.lane.b32.xlu0 %v7800, 1
    %v7830 = vpop.permute.xlu0 %7829
    %7831 = vrot.lane.b32.xlu0 %v7801, 1
    %v7832 = vpop.permute.xlu0 %7831
    %7833 = vrot.lane.b32.xlu0 %v7802, 1
    %v7834 = vpop.permute.xlu0 %7833
    %v7835 = vmul.f32 %v7804, %v75
    %v7836 = vmul.f32 %v7806, %v75
    %v7837 = vmul.f32 %v7808, %v75
    %v7838 = vmul.f32 %v7810, %v75
    %v7839 = vmul.f32 %v7812, %v75
    %v7840 = vmul.f32 %v7814, %v75
    %v7841 = vmul.f32 %v7816, %v75
    %v7842 = vmul.f32 %v7818, %v75
    %v7843 = vmul.f32 %v7820, %v75
    %v7844 = vmul.f32 %v7822, %v75
    %v7845 = vmul.f32 %v7824, %v75
    %v7846 = vmul.f32 %v7826, %v75
    %v7847 = vmul.f32 %v7828, %v75
    %v7848 = vmul.f32 %v7830, %v75
    %v7849 = vmul.f32 %v7832, %v75
    %v7850 = vmul.f32 %v7834, %v75
    %7851 = vrot.lane.b32.xlu0 %v7787, 127
    %v7852 = vpop.permute.xlu0 %7851
    %7853 = vrot.lane.b32.xlu0 %v7788, 127
    %v7854 = vpop.permute.xlu0 %7853
    %7855 = vrot.lane.b32.xlu0 %v7789, 127
    %v7856 = vpop.permute.xlu0 %7855
    %7857 = vrot.lane.b32.xlu0 %v7790, 127
    %v7858 = vpop.permute.xlu0 %7857
    %7859 = vrot.lane.b32.xlu0 %v7791, 127
    %v7860 = vpop.permute.xlu0 %7859
    %7861 = vrot.lane.b32.xlu0 %v7792, 127
    %v7862 = vpop.permute.xlu0 %7861
    %7863 = vrot.lane.b32.xlu0 %v7793, 127
    %v7864 = vpop.permute.xlu0 %7863
    %7865 = vrot.lane.b32.xlu0 %v7794, 127
    %v7866 = vpop.permute.xlu0 %7865
    %7867 = vrot.lane.b32.xlu0 %v7795, 127
    %v7868 = vpop.permute.xlu0 %7867
    %7869 = vrot.lane.b32.xlu0 %v7796, 127
    %v7870 = vpop.permute.xlu0 %7869
    %7871 = vrot.lane.b32.xlu0 %v7797, 127
    %v7872 = vpop.permute.xlu0 %7871
    %7873 = vrot.lane.b32.xlu0 %v7798, 127
    %v7874 = vpop.permute.xlu0 %7873
    %7875 = vrot.lane.b32.xlu0 %v7799, 127
    %v7876 = vpop.permute.xlu0 %7875
    %7877 = vrot.lane.b32.xlu0 %v7800, 127
    %v7878 = vpop.permute.xlu0 %7877
    %7879 = vrot.lane.b32.xlu0 %v7801, 127
    %v7880 = vpop.permute.xlu0 %7879
    %7881 = vrot.lane.b32.xlu0 %v7802, 127
    %v7882 = vpop.permute.xlu0 %7881
    %v7883 = vmul.f32 %v7852, %v78
    %v7884 = vmul.f32 %v7854, %v78
    %v7885 = vmul.f32 %v7856, %v78
    %v7886 = vmul.f32 %v7858, %v78
    %v7887 = vmul.f32 %v7860, %v78
    %v7888 = vmul.f32 %v7862, %v78
    %v7889 = vmul.f32 %v7864, %v78
    %v7890 = vmul.f32 %v7866, %v78
    %v7891 = vmul.f32 %v7868, %v78
    %v7892 = vmul.f32 %v7870, %v78
    %v7893 = vmul.f32 %v7872, %v78
    %v7894 = vmul.f32 %v7874, %v78
    %v7895 = vmul.f32 %v7876, %v78
    %v7896 = vmul.f32 %v7878, %v78
    %v7897 = vmul.f32 %v7880, %v78
    %v7898 = vmul.f32 %v7882, %v78
    %7899 = vst [vmem:[#allocation2 + $0x8] sm:$0xff] %v7835
    %7900 = vst [vmem:[#allocation2 + $0x28] sm:$0xff] %v7836
    %7901 = vst [vmem:[#allocation2 + $0x48] sm:$0xff] %v7837
    %7902 = vst [vmem:[#allocation2 + $0x68] sm:$0xff] %v7838
    %7903 = vst [vmem:[#allocation2 + $0x88] sm:$0xff] %v7839
    %7904 = vst [vmem:[#allocation2 + $0xa8] sm:$0xff] %v7840
    %7905 = vst [vmem:[#allocation2 + $0xc8] sm:$0xff] %v7841
    %7906 = vst [vmem:[#allocation2 + $0xe8] sm:$0xff] %v7842
    %7907 = vst [vmem:[#allocation2 + $0x108] sm:$0xff] %v7843
    %7908 = vst [vmem:[#allocation2 + $0x128] sm:$0xff] %v7844
    %7909 = vst [vmem:[#allocation2 + $0x148] sm:$0xff] %v7845
    %7910 = vst [vmem:[#allocation2 + $0x168] sm:$0xff] %v7846
    %7911 = vst [vmem:[#allocation2 + $0x188] sm:$0xff] %v7847
    %7912 = vst [vmem:[#allocation2 + $0x1a8] sm:$0xff] %v7848
    %7913 = vst [vmem:[#allocation2 + $0x1c8] sm:$0xff] %v7849
    %7914 = vst [vmem:[#allocation2 + $0x1e8] sm:$0xff] %v7850
    %7915 = vst [vmem:[#allocation2 + $0x208] sm:$0xff] %v7787
    %7916 = vst [vmem:[#allocation2 + $0x228] sm:$0xff] %v7788
    %7917 = vst [vmem:[#allocation2 + $0x248] sm:$0xff] %v7789
    %7918 = vst [vmem:[#allocation2 + $0x268] sm:$0xff] %v7790
    %7919 = vst [vmem:[#allocation2 + $0x288] sm:$0xff] %v7791
    %7920 = vst [vmem:[#allocation2 + $0x2a8] sm:$0xff] %v7792
    %7921 = vst [vmem:[#allocation2 + $0x2c8] sm:$0xff] %v7793
    %7922 = vst [vmem:[#allocation2 + $0x2e8] sm:$0xff] %v7794
    %7923 = vst [vmem:[#allocation2 + $0x308] sm:$0xff] %v7795
    %7924 = vst [vmem:[#allocation2 + $0x328] sm:$0xff] %v7796
    %7925 = vst [vmem:[#allocation2 + $0x348] sm:$0xff] %v7797
    %7926 = vst [vmem:[#allocation2 + $0x368] sm:$0xff] %v7798
    %7927 = vst [vmem:[#allocation2 + $0x388] sm:$0xff] %v7799
    %7928 = vst [vmem:[#allocation2 + $0x3a8] sm:$0xff] %v7800
    %7929 = vst [vmem:[#allocation2 + $0x3c8] sm:$0xff] %v7801
    %7930 = vst [vmem:[#allocation2 + $0x3e8] sm:$0xff] %v7802
    %7931 = vst [vmem:[#allocation2 + $0x408] sm:$0xff] %v7883
    %7932 = vst [vmem:[#allocation2 + $0x428] sm:$0xff] %v7884
    %7933 = vst [vmem:[#allocation2 + $0x448] sm:$0xff] %v7885
    %7934 = vst [vmem:[#allocation2 + $0x468] sm:$0xff] %v7886
    %7935 = vst [vmem:[#allocation2 + $0x488] sm:$0xff] %v7887
    %7936 = vst [vmem:[#allocation2 + $0x4a8] sm:$0xff] %v7888
    %7937 = vst [vmem:[#allocation2 + $0x4c8] sm:$0xff] %v7889
    %7938 = vst [vmem:[#allocation2 + $0x4e8] sm:$0xff] %v7890
    %7939 = vst [vmem:[#allocation2 + $0x508] sm:$0xff] %v7891
    %7940 = vst [vmem:[#allocation2 + $0x528] sm:$0xff] %v7892
    %7941 = vst [vmem:[#allocation2 + $0x548] sm:$0xff] %v7893
    %7942 = vst [vmem:[#allocation2 + $0x568] sm:$0xff] %v7894
    %7943 = vst [vmem:[#allocation2 + $0x588] sm:$0xff] %v7895
    %7944 = vst [vmem:[#allocation2 + $0x5a8] sm:$0xff] %v7896
    %7945 = vst [vmem:[#allocation2 + $0x5c8] sm:$0xff] %v7897
    %7946 = vst [vmem:[#allocation2 + $0x5e8] sm:$0xff] %v7898
    %v7947 = vld [vmem:[%s5302] sm:$0xff]
    %v7948 = vld [vmem:[%s5302 + $0x8] sm:$0xff]
    %v7949 = vld [vmem:[%s5302 + $0x10] sm:$0xff]
    %v7950 = vld [vmem:[%s5302 + $0x18] sm:$0xff]
    %v7951 = vld [vmem:[%s5302 + $0x20] sm:$0xff]
    %v7952 = vld [vmem:[%s5302 + $0x28] sm:$0xff]
    %v7953 = vld [vmem:[%s5302 + $0x30] sm:$0xff]
    %v7954 = vld [vmem:[%s5302 + $0x38] sm:$0xff]
    %v7955 = vld [vmem:[%s5302 + $0x40] sm:$0xff]
    %v7956 = vld [vmem:[%s5302 + $0x48] sm:$0xff]
    %v7957 = vld [vmem:[%s5302 + $0x50] sm:$0xff]
    %v7958 = vld [vmem:[%s5302 + $0x58] sm:$0xff]
    %v7959 = vld [vmem:[%s5302 + $0x60] sm:$0xff]
    %v7960 = vld [vmem:[%s5302 + $0x68] sm:$0xff]
    %v7961 = vld [vmem:[%s5302 + $0x70] sm:$0xff]
    %v7962 = vld [vmem:[%s5302 + $0x78] sm:$0xff]
    %v7963 = vsub.f32 %v7947, %v6060
    %v7964 = vsub.f32 %v7948, %v6064
    %v7965 = vsub.f32 %v7949, %v6068
    %v7966 = vsub.f32 %v7950, %v6072
    %v7967 = vsub.f32 %v7951, %v6076
    %v7968 = vsub.f32 %v7952, %v6080
    %v7969 = vsub.f32 %v7953, %v6084
    %v7970 = vsub.f32 %v7954, %v6088
    %v7971 = vsub.f32 %v7955, %v6092
    %v7972 = vsub.f32 %v7956, %v6096
    %v7973 = vsub.f32 %v7957, %v6100
    %v7974 = vsub.f32 %v7958, %v6104
    %v7975 = vsub.f32 %v7959, %v6108
    %v7976 = vsub.f32 %v7960, %v6112
    %v7977 = vsub.f32 %v7961, %v6116
    %v7978 = vsub.f32 %v7962, %v6120
    %7979 = vset.pattern.permute.xlu0 2
    %7980 = vperm.xlu0 %7979, %v6436
    %v7981 = vpop.permute.xlu0 %7980
    %7983 = vset.pattern.permute.xlu0 2
    %7984 = vperm.xlu0 %7983, %v6446
    %v7985 = vpop.permute.xlu0 %7984
    %7987 = vset.pattern.permute.xlu0 2
    %7988 = vperm.xlu0 %7987, %v6456
    %v7989 = vpop.permute.xlu0 %7988
    %7991 = vset.pattern.permute.xlu0 2
    %7992 = vperm.xlu0 %7991, %v6466
    %v7993 = vpop.permute.xlu0 %7992
    %7995 = vset.pattern.permute.xlu0 2
    %7996 = vperm.xlu0 %7995, %v6476
    %v7997 = vpop.permute.xlu0 %7996
    %7999 = vset.pattern.permute.xlu0 2
    %8000 = vperm.xlu0 %7999, %v6486
    %v8001 = vpop.permute.xlu0 %8000
    %8003 = vset.pattern.permute.xlu0 2
    %8004 = vperm.xlu0 %8003, %v6496
    %v8005 = vpop.permute.xlu0 %8004
    %8007 = vset.pattern.permute.xlu0 2
    %8008 = vperm.xlu0 %8007, %v6506
    %v8009 = vpop.permute.xlu0 %8008
    %8011 = vset.pattern.permute.xlu0 2
    %8012 = vperm.xlu0 %8011, %v6516
    %v8013 = vpop.permute.xlu0 %8012
    %8015 = vset.pattern.permute.xlu0 2
    %8016 = vperm.xlu0 %8015, %v6526
    %v8017 = vpop.permute.xlu0 %8016
    %8019 = vset.pattern.permute.xlu0 2
    %8020 = vperm.xlu0 %8019, %v6536
    %v8021 = vpop.permute.xlu0 %8020
    %8023 = vset.pattern.permute.xlu0 2
    %8024 = vperm.xlu0 %8023, %v6546
    %v8025 = vpop.permute.xlu0 %8024
    %8027 = vset.pattern.permute.xlu0 2
    %8028 = vperm.xlu0 %8027, %v6556
    %v8029 = vpop.permute.xlu0 %8028
    %8031 = vset.pattern.permute.xlu0 2
    %8032 = vperm.xlu0 %8031, %v6566
    %v8033 = vpop.permute.xlu0 %8032
    %8035 = vset.pattern.permute.xlu0 2
    %8036 = vperm.xlu0 %8035, %v6576
    %v8037 = vpop.permute.xlu0 %8036
    %8039 = vset.pattern.permute.xlu0 2
    %8040 = vperm.xlu0 %8039, %v6586
    %v8041 = vpop.permute.xlu0 %8040
    %v8043 = vmul.f32 %v7963, %v7981
    %v8044 = vmul.f32 %v7964, %v7985
    %v8045 = vmul.f32 %v7965, %v7989
    %v8046 = vmul.f32 %v7966, %v7993
    %v8047 = vmul.f32 %v7967, %v7997
    %v8048 = vmul.f32 %v7968, %v8001
    %v8049 = vmul.f32 %v7969, %v8005
    %v8050 = vmul.f32 %v7970, %v8009
    %v8051 = vmul.f32 %v7971, %v8013
    %v8052 = vmul.f32 %v7972, %v8017
    %v8053 = vmul.f32 %v7973, %v8021
    %v8054 = vmul.f32 %v7974, %v8025
    %v8055 = vmul.f32 %v7975, %v8029
    %v8056 = vmul.f32 %v7976, %v8033
    %v8057 = vmul.f32 %v7977, %v8037
    %v8058 = vmul.f32 %v7978, %v8041
    %v8059 = vmul.f32 %v8043, %v6686
    %v8060 = vmul.f32 %v8044, %v6691
    %v8061 = vmul.f32 %v8045, %v6696
    %v8062 = vmul.f32 %v8046, %v6701
    %v8063 = vmul.f32 %v8047, %v6706
    %v8064 = vmul.f32 %v8048, %v6711
    %v8065 = vmul.f32 %v8049, %v6716
    %v8066 = vmul.f32 %v8050, %v6721
    %v8067 = vmul.f32 %v8051, %v6726
    %v8068 = vmul.f32 %v8052, %v6731
    %v8069 = vmul.f32 %v8053, %v6736
    %v8070 = vmul.f32 %v8054, %v6741
    %v8071 = vmul.f32 %v8055, %v6746
    %v8072 = vmul.f32 %v8056, %v6751
    %v8073 = vmul.f32 %v8057, %v6756
    %v8074 = vmul.f32 %v8058, %v6761
    %v8075 = vadd.f32 %v8059, %v6782
    %v8076 = vadd.f32 %v8060, %v6787
    %v8077 = vadd.f32 %v8061, %v6792
    %v8078 = vadd.f32 %v8062, %v6797
    %v8079 = vadd.f32 %v8063, %v6802
    %v8080 = vadd.f32 %v8064, %v6807
    %v8081 = vadd.f32 %v8065, %v6812
    %v8082 = vadd.f32 %v8066, %v6817
    %v8083 = vadd.f32 %v8067, %v6822
    %v8084 = vadd.f32 %v8068, %v6827
    %v8085 = vadd.f32 %v8069, %v6832
    %v8086 = vadd.f32 %v8070, %v6837
    %v8087 = vadd.f32 %v8071, %v6842
    %v8088 = vadd.f32 %v8072, %v6847
    %v8089 = vadd.f32 %v8073, %v6852
    %v8090 = vadd.f32 %v8074, %v6857
    %v8091 = vxor.u32 %v8075, 2147483648
    %v8092 = vxor.u32 %v8076, 2147483648
    %v8093 = vxor.u32 %v8077, 2147483648
    %v8094 = vxor.u32 %v8078, 2147483648
    %v8095 = vxor.u32 %v8079, 2147483648
    %v8096 = vxor.u32 %v8080, 2147483648
    %v8097 = vxor.u32 %v8081, 2147483648
    %v8098 = vxor.u32 %v8082, 2147483648
    %v8099 = vxor.u32 %v8083, 2147483648
    %v8100 = vxor.u32 %v8084, 2147483648
    %v8101 = vxor.u32 %v8085, 2147483648
    %v8102 = vxor.u32 %v8086, 2147483648
    %v8103 = vxor.u32 %v8087, 2147483648
    %v8104 = vxor.u32 %v8088, 2147483648
    %v8105 = vxor.u32 %v8089, 2147483648
    %v8106 = vxor.u32 %v8090, 2147483648
    %v8107 = vmul.f32 %v8091, 1.442695
    %v8108 = vpow.pop %v8107
    %v8109 = vmul.f32 %v8092, 1.442695
    %v8110 = vpow.pop %v8109
    %v8111 = vmul.f32 %v8093, 1.442695
    %v8112 = vpow.pop %v8111
    %v8113 = vmul.f32 %v8094, 1.442695
    %v8114 = vpow.pop %v8113
    %v8115 = vmul.f32 %v8095, 1.442695
    %v8116 = vpow.pop %v8115
    %v8117 = vmul.f32 %v8096, 1.442695
    %v8118 = vpow.pop %v8117
    %v8119 = vmul.f32 %v8097, 1.442695
    %v8120 = vpow.pop %v8119
    %v8121 = vmul.f32 %v8098, 1.442695
    %v8122 = vpow.pop %v8121
    %v8123 = vmul.f32 %v8099, 1.442695
    %v8124 = vpow.pop %v8123
    %v8125 = vmul.f32 %v8100, 1.442695
    %v8126 = vpow.pop %v8125
    %v8127 = vmul.f32 %v8101, 1.442695
    %v8128 = vpow.pop %v8127
    %v8129 = vmul.f32 %v8102, 1.442695
    %v8130 = vpow.pop %v8129
    %v8131 = vmul.f32 %v8103, 1.442695
    %v8132 = vpow.pop %v8131
    %v8133 = vmul.f32 %v8104, 1.442695
    %v8134 = vpow.pop %v8133
    %v8135 = vmul.f32 %v8105, 1.442695
    %v8136 = vpow.pop %v8135
    %v8137 = vmul.f32 %v8106, 1.442695
    %v8138 = vpow.pop %v8137
    %v8139 = vadd.f32 %v8108, 1.0
    %v8140 = vadd.f32 %v8110, 1.0
    %v8141 = vadd.f32 %v8112, 1.0
    %v8142 = vadd.f32 %v8114, 1.0
    %v8143 = vadd.f32 %v8116, 1.0
    %v8144 = vadd.f32 %v8118, 1.0
    %v8145 = vadd.f32 %v8120, 1.0
    %v8146 = vadd.f32 %v8122, 1.0
    %v8147 = vadd.f32 %v8124, 1.0
    %v8148 = vadd.f32 %v8126, 1.0
    %v8149 = vadd.f32 %v8128, 1.0
    %v8150 = vadd.f32 %v8130, 1.0
    %v8151 = vadd.f32 %v8132, 1.0
    %v8152 = vadd.f32 %v8134, 1.0
    %v8153 = vadd.f32 %v8136, 1.0
    %v8154 = vadd.f32 %v8138, 1.0
    %v8155 = vrcp.pop %v8139
    %v8156 = vmul.f32 %v8139, %v8155
    %v8157 = vsub.f32 1.0, %v8156
    %v8158 = vmul.f32 %v8155, %v8157
    %v8159 = vadd.f32 %v8155, %v8158
    %vm8160 = vweird.f32 %v8139
    %vm8161 = vweird.f32 %v8155
    %vm8162 = vmor %vm8160, %vm8161
    %v8163 = vsel %vm8162, %v8155, %v8159
    %v8164 = vand.u32 2147483647, %v8139
    %vm8165 = vcmp.eq.f32.partialorder %v8164, 8.507059e+37
    %v8166 = vand.u32 %v8139, 2147483648
    %v8167 = vor.u32 1.1754944e-38, %v8166
    %v8168 = vsel %vm8165, %v8167, %v8163
    %v8169 = vmul.f32 1.0, %v8168
    %v8170 = vrcp.pop %v8140
    %v8171 = vmul.f32 %v8140, %v8170
    %v8172 = vsub.f32 1.0, %v8171
    %v8173 = vmul.f32 %v8170, %v8172
    %v8174 = vadd.f32 %v8170, %v8173
    %vm8175 = vweird.f32 %v8140
    %vm8176 = vweird.f32 %v8170
    %vm8177 = vmor %vm8175, %vm8176
    %v8178 = vsel %vm8177, %v8170, %v8174
    %v8179 = vand.u32 2147483647, %v8140
    %vm8180 = vcmp.eq.f32.partialorder %v8179, 8.507059e+37
    %v8181 = vand.u32 %v8140, 2147483648
    %v8182 = vor.u32 1.1754944e-38, %v8181
    %v8183 = vsel %vm8180, %v8182, %v8178
    %v8184 = vmul.f32 1.0, %v8183
    %v8185 = vrcp.pop %v8141
    %v8186 = vmul.f32 %v8141, %v8185
    %v8187 = vsub.f32 1.0, %v8186
    %v8188 = vmul.f32 %v8185, %v8187
    %v8189 = vadd.f32 %v8185, %v8188
    %vm8190 = vweird.f32 %v8141
    %vm8191 = vweird.f32 %v8185
    %vm8192 = vmor %vm8190, %vm8191
    %v8193 = vsel %vm8192, %v8185, %v8189
    %v8194 = vand.u32 2147483647, %v8141
    %vm8195 = vcmp.eq.f32.partialorder %v8194, 8.507059e+37
    %v8196 = vand.u32 %v8141, 2147483648
    %v8197 = vor.u32 1.1754944e-38, %v8196
    %v8198 = vsel %vm8195, %v8197, %v8193
    %v8199 = vmul.f32 1.0, %v8198
    %v8200 = vrcp.pop %v8142
    %v8201 = vmul.f32 %v8142, %v8200
    %v8202 = vsub.f32 1.0, %v8201
    %v8203 = vmul.f32 %v8200, %v8202
    %v8204 = vadd.f32 %v8200, %v8203
    %vm8205 = vweird.f32 %v8142
    %vm8206 = vweird.f32 %v8200
    %vm8207 = vmor %vm8205, %vm8206
    %v8208 = vsel %vm8207, %v8200, %v8204
    %v8209 = vand.u32 2147483647, %v8142
    %vm8210 = vcmp.eq.f32.partialorder %v8209, 8.507059e+37
    %v8211 = vand.u32 %v8142, 2147483648
    %v8212 = vor.u32 1.1754944e-38, %v8211
    %v8213 = vsel %vm8210, %v8212, %v8208
    %v8214 = vmul.f32 1.0, %v8213
    %v8215 = vrcp.pop %v8143
    %v8216 = vmul.f32 %v8143, %v8215
    %v8217 = vsub.f32 1.0, %v8216
    %v8218 = vmul.f32 %v8215, %v8217
    %v8219 = vadd.f32 %v8215, %v8218
    %vm8220 = vweird.f32 %v8143
    %vm8221 = vweird.f32 %v8215
    %vm8222 = vmor %vm8220, %vm8221
    %v8223 = vsel %vm8222, %v8215, %v8219
    %v8224 = vand.u32 2147483647, %v8143
    %vm8225 = vcmp.eq.f32.partialorder %v8224, 8.507059e+37
    %v8226 = vand.u32 %v8143, 2147483648
    %v8227 = vor.u32 1.1754944e-38, %v8226
    %v8228 = vsel %vm8225, %v8227, %v8223
    %v8229 = vmul.f32 1.0, %v8228
    %v8230 = vrcp.pop %v8144
    %v8231 = vmul.f32 %v8144, %v8230
    %v8232 = vsub.f32 1.0, %v8231
    %v8233 = vmul.f32 %v8230, %v8232
    %v8234 = vadd.f32 %v8230, %v8233
    %vm8235 = vweird.f32 %v8144
    %vm8236 = vweird.f32 %v8230
    %vm8237 = vmor %vm8235, %vm8236
    %v8238 = vsel %vm8237, %v8230, %v8234
    %v8239 = vand.u32 2147483647, %v8144
    %vm8240 = vcmp.eq.f32.partialorder %v8239, 8.507059e+37
    %v8241 = vand.u32 %v8144, 2147483648
    %v8242 = vor.u32 1.1754944e-38, %v8241
    %v8243 = vsel %vm8240, %v8242, %v8238
    %v8244 = vmul.f32 1.0, %v8243
    %v8245 = vrcp.pop %v8145
    %v8246 = vmul.f32 %v8145, %v8245
    %v8247 = vsub.f32 1.0, %v8246
    %v8248 = vmul.f32 %v8245, %v8247
    %v8249 = vadd.f32 %v8245, %v8248
    %vm8250 = vweird.f32 %v8145
    %vm8251 = vweird.f32 %v8245
    %vm8252 = vmor %vm8250, %vm8251
    %v8253 = vsel %vm8252, %v8245, %v8249
    %v8254 = vand.u32 2147483647, %v8145
    %vm8255 = vcmp.eq.f32.partialorder %v8254, 8.507059e+37
    %v8256 = vand.u32 %v8145, 2147483648
    %v8257 = vor.u32 1.1754944e-38, %v8256
    %v8258 = vsel %vm8255, %v8257, %v8253
    %v8259 = vmul.f32 1.0, %v8258
    %v8260 = vrcp.pop %v8146
    %v8261 = vmul.f32 %v8146, %v8260
    %v8262 = vsub.f32 1.0, %v8261
    %v8263 = vmul.f32 %v8260, %v8262
    %v8264 = vadd.f32 %v8260, %v8263
    %vm8265 = vweird.f32 %v8146
    %vm8266 = vweird.f32 %v8260
    %vm8267 = vmor %vm8265, %vm8266
    %v8268 = vsel %vm8267, %v8260, %v8264
    %v8269 = vand.u32 2147483647, %v8146
    %vm8270 = vcmp.eq.f32.partialorder %v8269, 8.507059e+37
    %v8271 = vand.u32 %v8146, 2147483648
    %v8272 = vor.u32 1.1754944e-38, %v8271
    %v8273 = vsel %vm8270, %v8272, %v8268
    %v8274 = vmul.f32 1.0, %v8273
    %v8275 = vrcp.pop %v8147
    %v8276 = vmul.f32 %v8147, %v8275
    %v8277 = vsub.f32 1.0, %v8276
    %v8278 = vmul.f32 %v8275, %v8277
    %v8279 = vadd.f32 %v8275, %v8278
    %vm8280 = vweird.f32 %v8147
    %vm8281 = vweird.f32 %v8275
    %vm8282 = vmor %vm8280, %vm8281
    %v8283 = vsel %vm8282, %v8275, %v8279
    %v8284 = vand.u32 2147483647, %v8147
    %vm8285 = vcmp.eq.f32.partialorder %v8284, 8.507059e+37
    %v8286 = vand.u32 %v8147, 2147483648
    %v8287 = vor.u32 1.1754944e-38, %v8286
    %v8288 = vsel %vm8285, %v8287, %v8283
    %v8289 = vmul.f32 1.0, %v8288
    %v8290 = vrcp.pop %v8148
    %v8291 = vmul.f32 %v8148, %v8290
    %v8292 = vsub.f32 1.0, %v8291
    %v8293 = vmul.f32 %v8290, %v8292
    %v8294 = vadd.f32 %v8290, %v8293
    %vm8295 = vweird.f32 %v8148
    %vm8296 = vweird.f32 %v8290
    %vm8297 = vmor %vm8295, %vm8296
    %v8298 = vsel %vm8297, %v8290, %v8294
    %v8299 = vand.u32 2147483647, %v8148
    %vm8300 = vcmp.eq.f32.partialorder %v8299, 8.507059e+37
    %v8301 = vand.u32 %v8148, 2147483648
    %v8302 = vor.u32 1.1754944e-38, %v8301
    %v8303 = vsel %vm8300, %v8302, %v8298
    %v8304 = vmul.f32 1.0, %v8303
    %v8305 = vrcp.pop %v8149
    %v8306 = vmul.f32 %v8149, %v8305
    %v8307 = vsub.f32 1.0, %v8306
    %v8308 = vmul.f32 %v8305, %v8307
    %v8309 = vadd.f32 %v8305, %v8308
    %vm8310 = vweird.f32 %v8149
    %vm8311 = vweird.f32 %v8305
    %vm8312 = vmor %vm8310, %vm8311
    %v8313 = vsel %vm8312, %v8305, %v8309
    %v8314 = vand.u32 2147483647, %v8149
    %vm8315 = vcmp.eq.f32.partialorder %v8314, 8.507059e+37
    %v8316 = vand.u32 %v8149, 2147483648
    %v8317 = vor.u32 1.1754944e-38, %v8316
    %v8318 = vsel %vm8315, %v8317, %v8313
    %v8319 = vmul.f32 1.0, %v8318
    %v8320 = vrcp.pop %v8150
    %v8321 = vmul.f32 %v8150, %v8320
    %v8322 = vsub.f32 1.0, %v8321
    %v8323 = vmul.f32 %v8320, %v8322
    %v8324 = vadd.f32 %v8320, %v8323
    %vm8325 = vweird.f32 %v8150
    %vm8326 = vweird.f32 %v8320
    %vm8327 = vmor %vm8325, %vm8326
    %v8328 = vsel %vm8327, %v8320, %v8324
    %v8329 = vand.u32 2147483647, %v8150
    %vm8330 = vcmp.eq.f32.partialorder %v8329, 8.507059e+37
    %v8331 = vand.u32 %v8150, 2147483648
    %v8332 = vor.u32 1.1754944e-38, %v8331
    %v8333 = vsel %vm8330, %v8332, %v8328
    %v8334 = vmul.f32 1.0, %v8333
    %v8335 = vrcp.pop %v8151
    %v8336 = vmul.f32 %v8151, %v8335
    %v8337 = vsub.f32 1.0, %v8336
    %v8338 = vmul.f32 %v8335, %v8337
    %v8339 = vadd.f32 %v8335, %v8338
    %vm8340 = vweird.f32 %v8151
    %vm8341 = vweird.f32 %v8335
    %vm8342 = vmor %vm8340, %vm8341
    %v8343 = vsel %vm8342, %v8335, %v8339
    %v8344 = vand.u32 2147483647, %v8151
    %vm8345 = vcmp.eq.f32.partialorder %v8344, 8.507059e+37
    %v8346 = vand.u32 %v8151, 2147483648
    %v8347 = vor.u32 1.1754944e-38, %v8346
    %v8348 = vsel %vm8345, %v8347, %v8343
    %v8349 = vmul.f32 1.0, %v8348
    %v8350 = vrcp.pop %v8152
    %v8351 = vmul.f32 %v8152, %v8350
    %v8352 = vsub.f32 1.0, %v8351
    %v8353 = vmul.f32 %v8350, %v8352
    %v8354 = vadd.f32 %v8350, %v8353
    %vm8355 = vweird.f32 %v8152
    %vm8356 = vweird.f32 %v8350
    %vm8357 = vmor %vm8355, %vm8356
    %v8358 = vsel %vm8357, %v8350, %v8354
    %v8359 = vand.u32 2147483647, %v8152
    %vm8360 = vcmp.eq.f32.partialorder %v8359, 8.507059e+37
    %v8361 = vand.u32 %v8152, 2147483648
    %v8362 = vor.u32 1.1754944e-38, %v8361
    %v8363 = vsel %vm8360, %v8362, %v8358
    %v8364 = vmul.f32 1.0, %v8363
    %v8365 = vrcp.pop %v8153
    %v8366 = vmul.f32 %v8153, %v8365
    %v8367 = vsub.f32 1.0, %v8366
    %v8368 = vmul.f32 %v8365, %v8367
    %v8369 = vadd.f32 %v8365, %v8368
    %vm8370 = vweird.f32 %v8153
    %vm8371 = vweird.f32 %v8365
    %vm8372 = vmor %vm8370, %vm8371
    %v8373 = vsel %vm8372, %v8365, %v8369
    %v8374 = vand.u32 2147483647, %v8153
    %vm8375 = vcmp.eq.f32.partialorder %v8374, 8.507059e+37
    %v8376 = vand.u32 %v8153, 2147483648
    %v8377 = vor.u32 1.1754944e-38, %v8376
    %v8378 = vsel %vm8375, %v8377, %v8373
    %v8379 = vmul.f32 1.0, %v8378
    %v8380 = vrcp.pop %v8154
    %v8381 = vmul.f32 %v8154, %v8380
    %v8382 = vsub.f32 1.0, %v8381
    %v8383 = vmul.f32 %v8380, %v8382
    %v8384 = vadd.f32 %v8380, %v8383
    %vm8385 = vweird.f32 %v8154
    %vm8386 = vweird.f32 %v8380
    %vm8387 = vmor %vm8385, %vm8386
    %v8388 = vsel %vm8387, %v8380, %v8384
    %v8389 = vand.u32 2147483647, %v8154
    %vm8390 = vcmp.eq.f32.partialorder %v8389, 8.507059e+37
    %v8391 = vand.u32 %v8154, 2147483648
    %v8392 = vor.u32 1.1754944e-38, %v8391
    %v8393 = vsel %vm8390, %v8392, %v8388
    %v8394 = vmul.f32 1.0, %v8393
    %v8395 = vmul.f32 %v8075, %v8169
    %v8396 = vmul.f32 %v8076, %v8184
    %v8397 = vmul.f32 %v8077, %v8199
    %v8398 = vmul.f32 %v8078, %v8214
    %v8399 = vmul.f32 %v8079, %v8229
    %v8400 = vmul.f32 %v8080, %v8244
    %v8401 = vmul.f32 %v8081, %v8259
    %v8402 = vmul.f32 %v8082, %v8274
    %v8403 = vmul.f32 %v8083, %v8289
    %v8404 = vmul.f32 %v8084, %v8304
    %v8405 = vmul.f32 %v8085, %v8319
    %v8406 = vmul.f32 %v8086, %v8334
    %v8407 = vmul.f32 %v8087, %v8349
    %v8408 = vmul.f32 %v8088, %v8364
    %v8409 = vmul.f32 %v8089, %v8379
    %v8410 = vmul.f32 %v8090, %v8394
    %8411 = vrot.lane.b32.xlu0 %v8395, 1
    %v8412 = vpop.permute.xlu0 %8411
    %8413 = vrot.lane.b32.xlu0 %v8396, 1
    %v8414 = vpop.permute.xlu0 %8413
    %8415 = vrot.lane.b32.xlu0 %v8397, 1
    %v8416 = vpop.permute.xlu0 %8415
    %8417 = vrot.lane.b32.xlu0 %v8398, 1
    %v8418 = vpop.permute.xlu0 %8417
    %8419 = vrot.lane.b32.xlu0 %v8399, 1
    %v8420 = vpop.permute.xlu0 %8419
    %8421 = vrot.lane.b32.xlu0 %v8400, 1
    %v8422 = vpop.permute.xlu0 %8421
    %8423 = vrot.lane.b32.xlu0 %v8401, 1
    %v8424 = vpop.permute.xlu0 %8423
    %8425 = vrot.lane.b32.xlu0 %v8402, 1
    %v8426 = vpop.permute.xlu0 %8425
    %8427 = vrot.lane.b32.xlu0 %v8403, 1
    %v8428 = vpop.permute.xlu0 %8427
    %8429 = vrot.lane.b32.xlu0 %v8404, 1
    %v8430 = vpop.permute.xlu0 %8429
    %8431 = vrot.lane.b32.xlu0 %v8405, 1
    %v8432 = vpop.permute.xlu0 %8431
    %8433 = vrot.lane.b32.xlu0 %v8406, 1
    %v8434 = vpop.permute.xlu0 %8433
    %8435 = vrot.lane.b32.xlu0 %v8407, 1
    %v8436 = vpop.permute.xlu0 %8435
    %8437 = vrot.lane.b32.xlu0 %v8408, 1
    %v8438 = vpop.permute.xlu0 %8437
    %8439 = vrot.lane.b32.xlu0 %v8409, 1
    %v8440 = vpop.permute.xlu0 %8439
    %8441 = vrot.lane.b32.xlu0 %v8410, 1
    %v8442 = vpop.permute.xlu0 %8441
    %v8443 = vmul.f32 %v8412, %v75
    %v8444 = vmul.f32 %v8414, %v75
    %v8445 = vmul.f32 %v8416, %v75
    %v8446 = vmul.f32 %v8418, %v75
    %v8447 = vmul.f32 %v8420, %v75
    %v8448 = vmul.f32 %v8422, %v75
    %v8449 = vmul.f32 %v8424, %v75
    %v8450 = vmul.f32 %v8426, %v75
    %v8451 = vmul.f32 %v8428, %v75
    %v8452 = vmul.f32 %v8430, %v75
    %v8453 = vmul.f32 %v8432, %v75
    %v8454 = vmul.f32 %v8434, %v75
    %v8455 = vmul.f32 %v8436, %v75
    %v8456 = vmul.f32 %v8438, %v75
    %v8457 = vmul.f32 %v8440, %v75
    %v8458 = vmul.f32 %v8442, %v75
    %8459 = vrot.lane.b32.xlu0 %v8395, 127
    %v8460 = vpop.permute.xlu0 %8459
    %8461 = vrot.lane.b32.xlu0 %v8396, 127
    %v8462 = vpop.permute.xlu0 %8461
    %8463 = vrot.lane.b32.xlu0 %v8397, 127
    %v8464 = vpop.permute.xlu0 %8463
    %8465 = vrot.lane.b32.xlu0 %v8398, 127
    %v8466 = vpop.permute.xlu0 %8465
    %8467 = vrot.lane.b32.xlu0 %v8399, 127
    %v8468 = vpop.permute.xlu0 %8467
    %8469 = vrot.lane.b32.xlu0 %v8400, 127
    %v8470 = vpop.permute.xlu0 %8469
    %8471 = vrot.lane.b32.xlu0 %v8401, 127
    %v8472 = vpop.permute.xlu0 %8471
    %8473 = vrot.lane.b32.xlu0 %v8402, 127
    %v8474 = vpop.permute.xlu0 %8473
    %8475 = vrot.lane.b32.xlu0 %v8403, 127
    %v8476 = vpop.permute.xlu0 %8475
    %8477 = vrot.lane.b32.xlu0 %v8404, 127
    %v8478 = vpop.permute.xlu0 %8477
    %8479 = vrot.lane.b32.xlu0 %v8405, 127
    %v8480 = vpop.permute.xlu0 %8479
    %8481 = vrot.lane.b32.xlu0 %v8406, 127
    %v8482 = vpop.permute.xlu0 %8481
    %8483 = vrot.lane.b32.xlu0 %v8407, 127
    %v8484 = vpop.permute.xlu0 %8483
    %8485 = vrot.lane.b32.xlu0 %v8408, 127
    %v8486 = vpop.permute.xlu0 %8485
    %8487 = vrot.lane.b32.xlu0 %v8409, 127
    %v8488 = vpop.permute.xlu0 %8487
    %8489 = vrot.lane.b32.xlu0 %v8410, 127
    %v8490 = vpop.permute.xlu0 %8489
    %v8491 = vmul.f32 %v8460, %v78
    %v8492 = vmul.f32 %v8462, %v78
    %v8493 = vmul.f32 %v8464, %v78
    %v8494 = vmul.f32 %v8466, %v78
    %v8495 = vmul.f32 %v8468, %v78
    %v8496 = vmul.f32 %v8470, %v78
    %v8497 = vmul.f32 %v8472, %v78
    %v8498 = vmul.f32 %v8474, %v78
    %v8499 = vmul.f32 %v8476, %v78
    %v8500 = vmul.f32 %v8478, %v78
    %v8501 = vmul.f32 %v8480, %v78
    %v8502 = vmul.f32 %v8482, %v78
    %v8503 = vmul.f32 %v8484, %v78
    %v8504 = vmul.f32 %v8486, %v78
    %v8505 = vmul.f32 %v8488, %v78
    %v8506 = vmul.f32 %v8490, %v78
    %8507 = vst [vmem:[#allocation2 + $0x10] sm:$0xff] %v8443
    %8508 = vst [vmem:[#allocation2 + $0x30] sm:$0xff] %v8444
    %8509 = vst [vmem:[#allocation2 + $0x50] sm:$0xff] %v8445
    %8510 = vst [vmem:[#allocation2 + $0x70] sm:$0xff] %v8446
    %8511 = vst [vmem:[#allocation2 + $0x90] sm:$0xff] %v8447
    %8512 = vst [vmem:[#allocation2 + $0xb0] sm:$0xff] %v8448
    %8513 = vst [vmem:[#allocation2 + $0xd0] sm:$0xff] %v8449
    %8514 = vst [vmem:[#allocation2 + $0xf0] sm:$0xff] %v8450
    %8515 = vst [vmem:[#allocation2 + $0x110] sm:$0xff] %v8451
    %8516 = vst [vmem:[#allocation2 + $0x130] sm:$0xff] %v8452
    %8517 = vst [vmem:[#allocation2 + $0x150] sm:$0xff] %v8453
    %8518 = vst [vmem:[#allocation2 + $0x170] sm:$0xff] %v8454
    %8519 = vst [vmem:[#allocation2 + $0x190] sm:$0xff] %v8455
    %8520 = vst [vmem:[#allocation2 + $0x1b0] sm:$0xff] %v8456
    %8521 = vst [vmem:[#allocation2 + $0x1d0] sm:$0xff] %v8457
    %8522 = vst [vmem:[#allocation2 + $0x1f0] sm:$0xff] %v8458
    %8523 = vst [vmem:[#allocation2 + $0x210] sm:$0xff] %v8395
    %8524 = vst [vmem:[#allocation2 + $0x230] sm:$0xff] %v8396
    %8525 = vst [vmem:[#allocation2 + $0x250] sm:$0xff] %v8397
    %8526 = vst [vmem:[#allocation2 + $0x270] sm:$0xff] %v8398
    %8527 = vst [vmem:[#allocation2 + $0x290] sm:$0xff] %v8399
    %8528 = vst [vmem:[#allocation2 + $0x2b0] sm:$0xff] %v8400
    %8529 = vst [vmem:[#allocation2 + $0x2d0] sm:$0xff] %v8401
    %8530 = vst [vmem:[#allocation2 + $0x2f0] sm:$0xff] %v8402
    %8531 = vst [vmem:[#allocation2 + $0x310] sm:$0xff] %v8403
    %8532 = vst [vmem:[#allocation2 + $0x330] sm:$0xff] %v8404
    %8533 = vst [vmem:[#allocation2 + $0x350] sm:$0xff] %v8405
    %8534 = vst [vmem:[#allocation2 + $0x370] sm:$0xff] %v8406
    %8535 = vst [vmem:[#allocation2 + $0x390] sm:$0xff] %v8407
    %8536 = vst [vmem:[#allocation2 + $0x3b0] sm:$0xff] %v8408
    %8537 = vst [vmem:[#allocation2 + $0x3d0] sm:$0xff] %v8409
    %8538 = vst [vmem:[#allocation2 + $0x3f0] sm:$0xff] %v8410
    %8539 = vst [vmem:[#allocation2 + $0x410] sm:$0xff] %v8491
    %8540 = vst [vmem:[#allocation2 + $0x430] sm:$0xff] %v8492
    %8541 = vst [vmem:[#allocation2 + $0x450] sm:$0xff] %v8493
    %8542 = vst [vmem:[#allocation2 + $0x470] sm:$0xff] %v8494
    %8543 = vst [vmem:[#allocation2 + $0x490] sm:$0xff] %v8495
    %8544 = vst [vmem:[#allocation2 + $0x4b0] sm:$0xff] %v8496
    %8545 = vst [vmem:[#allocation2 + $0x4d0] sm:$0xff] %v8497
    %8546 = vst [vmem:[#allocation2 + $0x4f0] sm:$0xff] %v8498
    %8547 = vst [vmem:[#allocation2 + $0x510] sm:$0xff] %v8499
    %8548 = vst [vmem:[#allocation2 + $0x530] sm:$0xff] %v8500
    %8549 = vst [vmem:[#allocation2 + $0x550] sm:$0xff] %v8501
    %8550 = vst [vmem:[#allocation2 + $0x570] sm:$0xff] %v8502
    %8551 = vst [vmem:[#allocation2 + $0x590] sm:$0xff] %v8503
    %8552 = vst [vmem:[#allocation2 + $0x5b0] sm:$0xff] %v8504
    %8553 = vst [vmem:[#allocation2 + $0x5d0] sm:$0xff] %v8505
    %8554 = vst [vmem:[#allocation2 + $0x5f0] sm:$0xff] %v8506
    %v8555 = vld [vmem:[%s5432] sm:$0xff]
    %v8556 = vld [vmem:[%s5432 + $0x8] sm:$0xff]
    %v8557 = vld [vmem:[%s5432 + $0x10] sm:$0xff]
    %v8558 = vld [vmem:[%s5432 + $0x18] sm:$0xff]
    %v8559 = vld [vmem:[%s5432 + $0x20] sm:$0xff]
    %v8560 = vld [vmem:[%s5432 + $0x28] sm:$0xff]
    %v8561 = vld [vmem:[%s5432 + $0x30] sm:$0xff]
    %v8562 = vld [vmem:[%s5432 + $0x38] sm:$0xff]
    %v8563 = vld [vmem:[%s5432 + $0x40] sm:$0xff]
    %v8564 = vld [vmem:[%s5432 + $0x48] sm:$0xff]
    %v8565 = vld [vmem:[%s5432 + $0x50] sm:$0xff]
    %v8566 = vld [vmem:[%s5432 + $0x58] sm:$0xff]
    %v8567 = vld [vmem:[%s5432 + $0x60] sm:$0xff]
    %v8568 = vld [vmem:[%s5432 + $0x68] sm:$0xff]
    %v8569 = vld [vmem:[%s5432 + $0x70] sm:$0xff]
    %v8570 = vld [vmem:[%s5432 + $0x78] sm:$0xff]
    %v8571 = vsub.f32 %v8555, %v6188
    %v8572 = vsub.f32 %v8556, %v6192
    %v8573 = vsub.f32 %v8557, %v6196
    %v8574 = vsub.f32 %v8558, %v6200
    %v8575 = vsub.f32 %v8559, %v6204
    %v8576 = vsub.f32 %v8560, %v6208
    %v8577 = vsub.f32 %v8561, %v6212
    %v8578 = vsub.f32 %v8562, %v6216
    %v8579 = vsub.f32 %v8563, %v6220
    %v8580 = vsub.f32 %v8564, %v6224
    %v8581 = vsub.f32 %v8565, %v6228
    %v8582 = vsub.f32 %v8566, %v6232
    %v8583 = vsub.f32 %v8567, %v6236
    %v8584 = vsub.f32 %v8568, %v6240
    %v8585 = vsub.f32 %v8569, %v6244
    %v8586 = vsub.f32 %v8570, %v6248
    %8587 = vset.pattern.permute.xlu0 3
    %8588 = vperm.xlu0 %8587, %v6436
    %v8589 = vpop.permute.xlu0 %8588
    %8591 = vset.pattern.permute.xlu0 3
    %8592 = vperm.xlu0 %8591, %v6446
    %v8593 = vpop.permute.xlu0 %8592
    %8595 = vset.pattern.permute.xlu0 3
    %8596 = vperm.xlu0 %8595, %v6456
    %v8597 = vpop.permute.xlu0 %8596
    %8599 = vset.pattern.permute.xlu0 3
    %8600 = vperm.xlu0 %8599, %v6466
    %v8601 = vpop.permute.xlu0 %8600
    %8603 = vset.pattern.permute.xlu0 3
    %8604 = vperm.xlu0 %8603, %v6476
    %v8605 = vpop.permute.xlu0 %8604
    %8607 = vset.pattern.permute.xlu0 3
    %8608 = vperm.xlu0 %8607, %v6486
    %v8609 = vpop.permute.xlu0 %8608
    %8611 = vset.pattern.permute.xlu0 3
    %8612 = vperm.xlu0 %8611, %v6496
    %v8613 = vpop.permute.xlu0 %8612
    %8615 = vset.pattern.permute.xlu0 3
    %8616 = vperm.xlu0 %8615, %v6506
    %v8617 = vpop.permute.xlu0 %8616
    %8619 = vset.pattern.permute.xlu0 3
    %8620 = vperm.xlu0 %8619, %v6516
    %v8621 = vpop.permute.xlu0 %8620
    %8623 = vset.pattern.permute.xlu0 3
    %8624 = vperm.xlu0 %8623, %v6526
    %v8625 = vpop.permute.xlu0 %8624
    %8627 = vset.pattern.permute.xlu0 3
    %8628 = vperm.xlu0 %8627, %v6536
    %v8629 = vpop.permute.xlu0 %8628
    %8631 = vset.pattern.permute.xlu0 3
    %8632 = vperm.xlu0 %8631, %v6546
    %v8633 = vpop.permute.xlu0 %8632
    %8635 = vset.pattern.permute.xlu0 3
    %8636 = vperm.xlu0 %8635, %v6556
    %v8637 = vpop.permute.xlu0 %8636
    %8639 = vset.pattern.permute.xlu0 3
    %8640 = vperm.xlu0 %8639, %v6566
    %v8641 = vpop.permute.xlu0 %8640
    %8643 = vset.pattern.permute.xlu0 3
    %8644 = vperm.xlu0 %8643, %v6576
    %v8645 = vpop.permute.xlu0 %8644
    %8647 = vset.pattern.permute.xlu0 3
    %8648 = vperm.xlu0 %8647, %v6586
    %v8649 = vpop.permute.xlu0 %8648
    %v8651 = vmul.f32 %v8571, %v8589
    %v8652 = vmul.f32 %v8572, %v8593
    %v8653 = vmul.f32 %v8573, %v8597
    %v8654 = vmul.f32 %v8574, %v8601
    %v8655 = vmul.f32 %v8575, %v8605
    %v8656 = vmul.f32 %v8576, %v8609
    %v8657 = vmul.f32 %v8577, %v8613
    %v8658 = vmul.f32 %v8578, %v8617
    %v8659 = vmul.f32 %v8579, %v8621
    %v8660 = vmul.f32 %v8580, %v8625
    %v8661 = vmul.f32 %v8581, %v8629
    %v8662 = vmul.f32 %v8582, %v8633
    %v8663 = vmul.f32 %v8583, %v8637
    %v8664 = vmul.f32 %v8584, %v8641
    %v8665 = vmul.f32 %v8585, %v8645
    %v8666 = vmul.f32 %v8586, %v8649
    %v8667 = vmul.f32 %v8651, %v6686
    %v8668 = vmul.f32 %v8652, %v6691
    %v8669 = vmul.f32 %v8653, %v6696
    %v8670 = vmul.f32 %v8654, %v6701
    %v8671 = vmul.f32 %v8655, %v6706
    %v8672 = vmul.f32 %v8656, %v6711
    %v8673 = vmul.f32 %v8657, %v6716
    %v8674 = vmul.f32 %v8658, %v6721
    %v8675 = vmul.f32 %v8659, %v6726
    %v8676 = vmul.f32 %v8660, %v6731
    %v8677 = vmul.f32 %v8661, %v6736
    %v8678 = vmul.f32 %v8662, %v6741
    %v8679 = vmul.f32 %v8663, %v6746
    %v8680 = vmul.f32 %v8664, %v6751
    %v8681 = vmul.f32 %v8665, %v6756
    %v8682 = vmul.f32 %v8666, %v6761
    %v8683 = vadd.f32 %v8667, %v6782
    %v8684 = vadd.f32 %v8668, %v6787
    %v8685 = vadd.f32 %v8669, %v6792
    %v8686 = vadd.f32 %v8670, %v6797
    %v8687 = vadd.f32 %v8671, %v6802
    %v8688 = vadd.f32 %v8672, %v6807
    %v8689 = vadd.f32 %v8673, %v6812
    %v8690 = vadd.f32 %v8674, %v6817
    %v8691 = vadd.f32 %v8675, %v6822
    %v8692 = vadd.f32 %v8676, %v6827
    %v8693 = vadd.f32 %v8677, %v6832
    %v8694 = vadd.f32 %v8678, %v6837
    %v8695 = vadd.f32 %v8679, %v6842
    %v8696 = vadd.f32 %v8680, %v6847
    %v8697 = vadd.f32 %v8681, %v6852
    %v8698 = vadd.f32 %v8682, %v6857
    %v8699 = vxor.u32 %v8683, 2147483648
    %v8700 = vxor.u32 %v8684, 2147483648
    %v8701 = vxor.u32 %v8685, 2147483648
    %v8702 = vxor.u32 %v8686, 2147483648
    %v8703 = vxor.u32 %v8687, 2147483648
    %v8704 = vxor.u32 %v8688, 2147483648
    %v8705 = vxor.u32 %v8689, 2147483648
    %v8706 = vxor.u32 %v8690, 2147483648
    %v8707 = vxor.u32 %v8691, 2147483648
    %v8708 = vxor.u32 %v8692, 2147483648
    %v8709 = vxor.u32 %v8693, 2147483648
    %v8710 = vxor.u32 %v8694, 2147483648
    %v8711 = vxor.u32 %v8695, 2147483648
    %v8712 = vxor.u32 %v8696, 2147483648
    %v8713 = vxor.u32 %v8697, 2147483648
    %v8714 = vxor.u32 %v8698, 2147483648
    %v8715 = vmul.f32 %v8699, 1.442695
    %v8716 = vpow.pop %v8715
    %v8717 = vmul.f32 %v8700, 1.442695
    %v8718 = vpow.pop %v8717
    %v8719 = vmul.f32 %v8701, 1.442695
    %v8720 = vpow.pop %v8719
    %v8721 = vmul.f32 %v8702, 1.442695
    %v8722 = vpow.pop %v8721
    %v8723 = vmul.f32 %v8703, 1.442695
    %v8724 = vpow.pop %v8723
    %v8725 = vmul.f32 %v8704, 1.442695
    %v8726 = vpow.pop %v8725
    %v8727 = vmul.f32 %v8705, 1.442695
    %v8728 = vpow.pop %v8727
    %v8729 = vmul.f32 %v8706, 1.442695
    %v8730 = vpow.pop %v8729
    %v8731 = vmul.f32 %v8707, 1.442695
    %v8732 = vpow.pop %v8731
    %v8733 = vmul.f32 %v8708, 1.442695
    %v8734 = vpow.pop %v8733
    %v8735 = vmul.f32 %v8709, 1.442695
    %v8736 = vpow.pop %v8735
    %v8737 = vmul.f32 %v8710, 1.442695
    %v8738 = vpow.pop %v8737
    %v8739 = vmul.f32 %v8711, 1.442695
    %v8740 = vpow.pop %v8739
    %v8741 = vmul.f32 %v8712, 1.442695
    %v8742 = vpow.pop %v8741
    %v8743 = vmul.f32 %v8713, 1.442695
    %v8744 = vpow.pop %v8743
    %v8745 = vmul.f32 %v8714, 1.442695
    %v8746 = vpow.pop %v8745
    %v8747 = vadd.f32 %v8716, 1.0
    %v8748 = vadd.f32 %v8718, 1.0
    %v8749 = vadd.f32 %v8720, 1.0
    %v8750 = vadd.f32 %v8722, 1.0
    %v8751 = vadd.f32 %v8724, 1.0
    %v8752 = vadd.f32 %v8726, 1.0
    %v8753 = vadd.f32 %v8728, 1.0
    %v8754 = vadd.f32 %v8730, 1.0
    %v8755 = vadd.f32 %v8732, 1.0
    %v8756 = vadd.f32 %v8734, 1.0
    %v8757 = vadd.f32 %v8736, 1.0
    %v8758 = vadd.f32 %v8738, 1.0
    %v8759 = vadd.f32 %v8740, 1.0
    %v8760 = vadd.f32 %v8742, 1.0
    %v8761 = vadd.f32 %v8744, 1.0
    %v8762 = vadd.f32 %v8746, 1.0
    %v8763 = vrcp.pop %v8747
    %v8764 = vmul.f32 %v8747, %v8763
    %v8765 = vsub.f32 1.0, %v8764
    %v8766 = vmul.f32 %v8763, %v8765
    %v8767 = vadd.f32 %v8763, %v8766
    %vm8768 = vweird.f32 %v8747
    %vm8769 = vweird.f32 %v8763
    %vm8770 = vmor %vm8768, %vm8769
    %v8771 = vsel %vm8770, %v8763, %v8767
    %v8772 = vand.u32 2147483647, %v8747
    %vm8773 = vcmp.eq.f32.partialorder %v8772, 8.507059e+37
    %v8774 = vand.u32 %v8747, 2147483648
    %v8775 = vor.u32 1.1754944e-38, %v8774
    %v8776 = vsel %vm8773, %v8775, %v8771
    %v8777 = vmul.f32 1.0, %v8776
    %v8778 = vrcp.pop %v8748
    %v8779 = vmul.f32 %v8748, %v8778
    %v8780 = vsub.f32 1.0, %v8779
    %v8781 = vmul.f32 %v8778, %v8780
    %v8782 = vadd.f32 %v8778, %v8781
    %vm8783 = vweird.f32 %v8748
    %vm8784 = vweird.f32 %v8778
    %vm8785 = vmor %vm8783, %vm8784
    %v8786 = vsel %vm8785, %v8778, %v8782
    %v8787 = vand.u32 2147483647, %v8748
    %vm8788 = vcmp.eq.f32.partialorder %v8787, 8.507059e+37
    %v8789 = vand.u32 %v8748, 2147483648
    %v8790 = vor.u32 1.1754944e-38, %v8789
    %v8791 = vsel %vm8788, %v8790, %v8786
    %v8792 = vmul.f32 1.0, %v8791
    %v8793 = vrcp.pop %v8749
    %v8794 = vmul.f32 %v8749, %v8793
    %v8795 = vsub.f32 1.0, %v8794
    %v8796 = vmul.f32 %v8793, %v8795
    %v8797 = vadd.f32 %v8793, %v8796
    %vm8798 = vweird.f32 %v8749
    %vm8799 = vweird.f32 %v8793
    %vm8800 = vmor %vm8798, %vm8799
    %v8801 = vsel %vm8800, %v8793, %v8797
    %v8802 = vand.u32 2147483647, %v8749
    %vm8803 = vcmp.eq.f32.partialorder %v8802, 8.507059e+37
    %v8804 = vand.u32 %v8749, 2147483648
    %v8805 = vor.u32 1.1754944e-38, %v8804
    %v8806 = vsel %vm8803, %v8805, %v8801
    %v8807 = vmul.f32 1.0, %v8806
    %v8808 = vrcp.pop %v8750
    %v8809 = vmul.f32 %v8750, %v8808
    %v8810 = vsub.f32 1.0, %v8809
    %v8811 = vmul.f32 %v8808, %v8810
    %v8812 = vadd.f32 %v8808, %v8811
    %vm8813 = vweird.f32 %v8750
    %vm8814 = vweird.f32 %v8808
    %vm8815 = vmor %vm8813, %vm8814
    %v8816 = vsel %vm8815, %v8808, %v8812
    %v8817 = vand.u32 2147483647, %v8750
    %vm8818 = vcmp.eq.f32.partialorder %v8817, 8.507059e+37
    %v8819 = vand.u32 %v8750, 2147483648
    %v8820 = vor.u32 1.1754944e-38, %v8819
    %v8821 = vsel %vm8818, %v8820, %v8816
    %v8822 = vmul.f32 1.0, %v8821
    %v8823 = vrcp.pop %v8751
    %v8824 = vmul.f32 %v8751, %v8823
    %v8825 = vsub.f32 1.0, %v8824
    %v8826 = vmul.f32 %v8823, %v8825
    %v8827 = vadd.f32 %v8823, %v8826
    %vm8828 = vweird.f32 %v8751
    %vm8829 = vweird.f32 %v8823
    %vm8830 = vmor %vm8828, %vm8829
    %v8831 = vsel %vm8830, %v8823, %v8827
    %v8832 = vand.u32 2147483647, %v8751
    %vm8833 = vcmp.eq.f32.partialorder %v8832, 8.507059e+37
    %v8834 = vand.u32 %v8751, 2147483648
    %v8835 = vor.u32 1.1754944e-38, %v8834
    %v8836 = vsel %vm8833, %v8835, %v8831
    %v8837 = vmul.f32 1.0, %v8836
    %v8838 = vrcp.pop %v8752
    %v8839 = vmul.f32 %v8752, %v8838
    %v8840 = vsub.f32 1.0, %v8839
    %v8841 = vmul.f32 %v8838, %v8840
    %v8842 = vadd.f32 %v8838, %v8841
    %vm8843 = vweird.f32 %v8752
    %vm8844 = vweird.f32 %v8838
    %vm8845 = vmor %vm8843, %vm8844
    %v8846 = vsel %vm8845, %v8838, %v8842
    %v8847 = vand.u32 2147483647, %v8752
    %vm8848 = vcmp.eq.f32.partialorder %v8847, 8.507059e+37
    %v8849 = vand.u32 %v8752, 2147483648
    %v8850 = vor.u32 1.1754944e-38, %v8849
    %v8851 = vsel %vm8848, %v8850, %v8846
    %v8852 = vmul.f32 1.0, %v8851
    %v8853 = vrcp.pop %v8753
    %v8854 = vmul.f32 %v8753, %v8853
    %v8855 = vsub.f32 1.0, %v8854
    %v8856 = vmul.f32 %v8853, %v8855
    %v8857 = vadd.f32 %v8853, %v8856
    %vm8858 = vweird.f32 %v8753
    %vm8859 = vweird.f32 %v8853
    %vm8860 = vmor %vm8858, %vm8859
    %v8861 = vsel %vm8860, %v8853, %v8857
    %v8862 = vand.u32 2147483647, %v8753
    %vm8863 = vcmp.eq.f32.partialorder %v8862, 8.507059e+37
    %v8864 = vand.u32 %v8753, 2147483648
    %v8865 = vor.u32 1.1754944e-38, %v8864
    %v8866 = vsel %vm8863, %v8865, %v8861
    %v8867 = vmul.f32 1.0, %v8866
    %v8868 = vrcp.pop %v8754
    %v8869 = vmul.f32 %v8754, %v8868
    %v8870 = vsub.f32 1.0, %v8869
    %v8871 = vmul.f32 %v8868, %v8870
    %v8872 = vadd.f32 %v8868, %v8871
    %vm8873 = vweird.f32 %v8754
    %vm8874 = vweird.f32 %v8868
    %vm8875 = vmor %vm8873, %vm8874
    %v8876 = vsel %vm8875, %v8868, %v8872
    %v8877 = vand.u32 2147483647, %v8754
    %vm8878 = vcmp.eq.f32.partialorder %v8877, 8.507059e+37
    %v8879 = vand.u32 %v8754, 2147483648
    %v8880 = vor.u32 1.1754944e-38, %v8879
    %v8881 = vsel %vm8878, %v8880, %v8876
    %v8882 = vmul.f32 1.0, %v8881
    %v8883 = vrcp.pop %v8755
    %v8884 = vmul.f32 %v8755, %v8883
    %v8885 = vsub.f32 1.0, %v8884
    %v8886 = vmul.f32 %v8883, %v8885
    %v8887 = vadd.f32 %v8883, %v8886
    %vm8888 = vweird.f32 %v8755
    %vm8889 = vweird.f32 %v8883
    %vm8890 = vmor %vm8888, %vm8889
    %v8891 = vsel %vm8890, %v8883, %v8887
    %v8892 = vand.u32 2147483647, %v8755
    %vm8893 = vcmp.eq.f32.partialorder %v8892, 8.507059e+37
    %v8894 = vand.u32 %v8755, 2147483648
    %v8895 = vor.u32 1.1754944e-38, %v8894
    %v8896 = vsel %vm8893, %v8895, %v8891
    %v8897 = vmul.f32 1.0, %v8896
    %v8898 = vrcp.pop %v8756
    %v8899 = vmul.f32 %v8756, %v8898
    %v8900 = vsub.f32 1.0, %v8899
    %v8901 = vmul.f32 %v8898, %v8900
    %v8902 = vadd.f32 %v8898, %v8901
    %vm8903 = vweird.f32 %v8756
    %vm8904 = vweird.f32 %v8898
    %vm8905 = vmor %vm8903, %vm8904
    %v8906 = vsel %vm8905, %v8898, %v8902
    %v8907 = vand.u32 2147483647, %v8756
    %vm8908 = vcmp.eq.f32.partialorder %v8907, 8.507059e+37
    %v8909 = vand.u32 %v8756, 2147483648
    %v8910 = vor.u32 1.1754944e-38, %v8909
    %v8911 = vsel %vm8908, %v8910, %v8906
    %v8912 = vmul.f32 1.0, %v8911
    %v8913 = vrcp.pop %v8757
    %v8914 = vmul.f32 %v8757, %v8913
    %v8915 = vsub.f32 1.0, %v8914
    %v8916 = vmul.f32 %v8913, %v8915
    %v8917 = vadd.f32 %v8913, %v8916
    %vm8918 = vweird.f32 %v8757
    %vm8919 = vweird.f32 %v8913
    %vm8920 = vmor %vm8918, %vm8919
    %v8921 = vsel %vm8920, %v8913, %v8917
    %v8922 = vand.u32 2147483647, %v8757
    %vm8923 = vcmp.eq.f32.partialorder %v8922, 8.507059e+37
    %v8924 = vand.u32 %v8757, 2147483648
    %v8925 = vor.u32 1.1754944e-38, %v8924
    %v8926 = vsel %vm8923, %v8925, %v8921
    %v8927 = vmul.f32 1.0, %v8926
    %v8928 = vrcp.pop %v8758
    %v8929 = vmul.f32 %v8758, %v8928
    %v8930 = vsub.f32 1.0, %v8929
    %v8931 = vmul.f32 %v8928, %v8930
    %v8932 = vadd.f32 %v8928, %v8931
    %vm8933 = vweird.f32 %v8758
    %vm8934 = vweird.f32 %v8928
    %vm8935 = vmor %vm8933, %vm8934
    %v8936 = vsel %vm8935, %v8928, %v8932
    %v8937 = vand.u32 2147483647, %v8758
    %vm8938 = vcmp.eq.f32.partialorder %v8937, 8.507059e+37
    %v8939 = vand.u32 %v8758, 2147483648
    %v8940 = vor.u32 1.1754944e-38, %v8939
    %v8941 = vsel %vm8938, %v8940, %v8936
    %v8942 = vmul.f32 1.0, %v8941
    %v8943 = vrcp.pop %v8759
    %v8944 = vmul.f32 %v8759, %v8943
    %v8945 = vsub.f32 1.0, %v8944
    %v8946 = vmul.f32 %v8943, %v8945
    %v8947 = vadd.f32 %v8943, %v8946
    %vm8948 = vweird.f32 %v8759
    %vm8949 = vweird.f32 %v8943
    %vm8950 = vmor %vm8948, %vm8949
    %v8951 = vsel %vm8950, %v8943, %v8947
    %v8952 = vand.u32 2147483647, %v8759
    %vm8953 = vcmp.eq.f32.partialorder %v8952, 8.507059e+37
    %v8954 = vand.u32 %v8759, 2147483648
    %v8955 = vor.u32 1.1754944e-38, %v8954
    %v8956 = vsel %vm8953, %v8955, %v8951
    %v8957 = vmul.f32 1.0, %v8956
    %v8958 = vrcp.pop %v8760
    %v8959 = vmul.f32 %v8760, %v8958
    %v8960 = vsub.f32 1.0, %v8959
    %v8961 = vmul.f32 %v8958, %v8960
    %v8962 = vadd.f32 %v8958, %v8961
    %vm8963 = vweird.f32 %v8760
    %vm8964 = vweird.f32 %v8958
    %vm8965 = vmor %vm8963, %vm8964
    %v8966 = vsel %vm8965, %v8958, %v8962
    %v8967 = vand.u32 2147483647, %v8760
    %vm8968 = vcmp.eq.f32.partialorder %v8967, 8.507059e+37
    %v8969 = vand.u32 %v8760, 2147483648
    %v8970 = vor.u32 1.1754944e-38, %v8969
    %v8971 = vsel %vm8968, %v8970, %v8966
    %v8972 = vmul.f32 1.0, %v8971
    %v8973 = vrcp.pop %v8761
    %v8974 = vmul.f32 %v8761, %v8973
    %v8975 = vsub.f32 1.0, %v8974
    %v8976 = vmul.f32 %v8973, %v8975
    %v8977 = vadd.f32 %v8973, %v8976
    %vm8978 = vweird.f32 %v8761
    %vm8979 = vweird.f32 %v8973
    %vm8980 = vmor %vm8978, %vm8979
    %v8981 = vsel %vm8980, %v8973, %v8977
    %v8982 = vand.u32 2147483647, %v8761
    %vm8983 = vcmp.eq.f32.partialorder %v8982, 8.507059e+37
    %v8984 = vand.u32 %v8761, 2147483648
    %v8985 = vor.u32 1.1754944e-38, %v8984
    %v8986 = vsel %vm8983, %v8985, %v8981
    %v8987 = vmul.f32 1.0, %v8986
    %v8988 = vrcp.pop %v8762
    %v8989 = vmul.f32 %v8762, %v8988
    %v8990 = vsub.f32 1.0, %v8989
    %v8991 = vmul.f32 %v8988, %v8990
    %v8992 = vadd.f32 %v8988, %v8991
    %vm8993 = vweird.f32 %v8762
    %vm8994 = vweird.f32 %v8988
    %vm8995 = vmor %vm8993, %vm8994
    %v8996 = vsel %vm8995, %v8988, %v8992
    %v8997 = vand.u32 2147483647, %v8762
    %vm8998 = vcmp.eq.f32.partialorder %v8997, 8.507059e+37
    %v8999 = vand.u32 %v8762, 2147483648
    %v9000 = vor.u32 1.1754944e-38, %v8999
    %v9001 = vsel %vm8998, %v9000, %v8996
    %v9002 = vmul.f32 1.0, %v9001
    %v9003 = vmul.f32 %v8683, %v8777
    %v9004 = vmul.f32 %v8684, %v8792
    %v9005 = vmul.f32 %v8685, %v8807
    %v9006 = vmul.f32 %v8686, %v8822
    %v9007 = vmul.f32 %v8687, %v8837
    %v9008 = vmul.f32 %v8688, %v8852
    %v9009 = vmul.f32 %v8689, %v8867
    %v9010 = vmul.f32 %v8690, %v8882
    %v9011 = vmul.f32 %v8691, %v8897
    %v9012 = vmul.f32 %v8692, %v8912
    %v9013 = vmul.f32 %v8693, %v8927
    %v9014 = vmul.f32 %v8694, %v8942
    %v9015 = vmul.f32 %v8695, %v8957
    %v9016 = vmul.f32 %v8696, %v8972
    %v9017 = vmul.f32 %v8697, %v8987
    %v9018 = vmul.f32 %v8698, %v9002
    %9019 = vrot.lane.b32.xlu0 %v9003, 1
    %v9020 = vpop.permute.xlu0 %9019
    %9021 = vrot.lane.b32.xlu0 %v9004, 1
    %v9022 = vpop.permute.xlu0 %9021
    %9023 = vrot.lane.b32.xlu0 %v9005, 1
    %v9024 = vpop.permute.xlu0 %9023
    %9025 = vrot.lane.b32.xlu0 %v9006, 1
    %v9026 = vpop.permute.xlu0 %9025
    %9027 = vrot.lane.b32.xlu0 %v9007, 1
    %v9028 = vpop.permute.xlu0 %9027
    %9029 = vrot.lane.b32.xlu0 %v9008, 1
    %v9030 = vpop.permute.xlu0 %9029
    %9031 = vrot.lane.b32.xlu0 %v9009, 1
    %v9032 = vpop.permute.xlu0 %9031
    %9033 = vrot.lane.b32.xlu0 %v9010, 1
    %v9034 = vpop.permute.xlu0 %9033
    %9035 = vrot.lane.b32.xlu0 %v9011, 1
    %v9036 = vpop.permute.xlu0 %9035
    %9037 = vrot.lane.b32.xlu0 %v9012, 1
    %v9038 = vpop.permute.xlu0 %9037
    %9039 = vrot.lane.b32.xlu0 %v9013, 1
    %v9040 = vpop.permute.xlu0 %9039
    %9041 = vrot.lane.b32.xlu0 %v9014, 1
    %v9042 = vpop.permute.xlu0 %9041
    %9043 = vrot.lane.b32.xlu0 %v9015, 1
    %v9044 = vpop.permute.xlu0 %9043
    %9045 = vrot.lane.b32.xlu0 %v9016, 1
    %v9046 = vpop.permute.xlu0 %9045
    %9047 = vrot.lane.b32.xlu0 %v9017, 1
    %v9048 = vpop.permute.xlu0 %9047
    %9049 = vrot.lane.b32.xlu0 %v9018, 1
    %v9050 = vpop.permute.xlu0 %9049
    %v9051 = vmul.f32 %v9020, %v75
    %v9052 = vmul.f32 %v9022, %v75
    %v9053 = vmul.f32 %v9024, %v75
    %v9054 = vmul.f32 %v9026, %v75
    %v9055 = vmul.f32 %v9028, %v75
    %v9056 = vmul.f32 %v9030, %v75
    %v9057 = vmul.f32 %v9032, %v75
    %v9058 = vmul.f32 %v9034, %v75
    %v9059 = vmul.f32 %v9036, %v75
    %v9060 = vmul.f32 %v9038, %v75
    %v9061 = vmul.f32 %v9040, %v75
    %v9062 = vmul.f32 %v9042, %v75
    %v9063 = vmul.f32 %v9044, %v75
    %v9064 = vmul.f32 %v9046, %v75
    %v9065 = vmul.f32 %v9048, %v75
    %v9066 = vmul.f32 %v9050, %v75
    %9067 = vrot.lane.b32.xlu0 %v9003, 127
    %v9068 = vpop.permute.xlu0 %9067
    %9069 = vrot.lane.b32.xlu0 %v9004, 127
    %v9070 = vpop.permute.xlu0 %9069
    %9071 = vrot.lane.b32.xlu0 %v9005, 127
    %v9072 = vpop.permute.xlu0 %9071
    %9073 = vrot.lane.b32.xlu0 %v9006, 127
    %v9074 = vpop.permute.xlu0 %9073
    %9075 = vrot.lane.b32.xlu0 %v9007, 127
    %v9076 = vpop.permute.xlu0 %9075
    %9077 = vrot.lane.b32.xlu0 %v9008, 127
    %v9078 = vpop.permute.xlu0 %9077
    %9079 = vrot.lane.b32.xlu0 %v9009, 127
    %v9080 = vpop.permute.xlu0 %9079
    %9081 = vrot.lane.b32.xlu0 %v9010, 127
    %v9082 = vpop.permute.xlu0 %9081
    %9083 = vrot.lane.b32.xlu0 %v9011, 127
    %v9084 = vpop.permute.xlu0 %9083
    %9085 = vrot.lane.b32.xlu0 %v9012, 127
    %v9086 = vpop.permute.xlu0 %9085
    %9087 = vrot.lane.b32.xlu0 %v9013, 127
    %v9088 = vpop.permute.xlu0 %9087
    %9089 = vrot.lane.b32.xlu0 %v9014, 127
    %v9090 = vpop.permute.xlu0 %9089
    %9091 = vrot.lane.b32.xlu0 %v9015, 127
    %v9092 = vpop.permute.xlu0 %9091
    %9093 = vrot.lane.b32.xlu0 %v9016, 127
    %v9094 = vpop.permute.xlu0 %9093
    %9095 = vrot.lane.b32.xlu0 %v9017, 127
    %v9096 = vpop.permute.xlu0 %9095
    %9097 = vrot.lane.b32.xlu0 %v9018, 127
    %v9098 = vpop.permute.xlu0 %9097
    %v9099 = vmul.f32 %v9068, %v78
    %v9100 = vmul.f32 %v9070, %v78
    %v9101 = vmul.f32 %v9072, %v78
    %v9102 = vmul.f32 %v9074, %v78
    %v9103 = vmul.f32 %v9076, %v78
    %v9104 = vmul.f32 %v9078, %v78
    %v9105 = vmul.f32 %v9080, %v78
    %v9106 = vmul.f32 %v9082, %v78
    %v9107 = vmul.f32 %v9084, %v78
    %v9108 = vmul.f32 %v9086, %v78
    %v9109 = vmul.f32 %v9088, %v78
    %v9110 = vmul.f32 %v9090, %v78
    %v9111 = vmul.f32 %v9092, %v78
    %v9112 = vmul.f32 %v9094, %v78
    %v9113 = vmul.f32 %v9096, %v78
    %v9114 = vmul.f32 %v9098, %v78
    %9115 = vst [vmem:[#allocation2 + $0x18] sm:$0xff] %v9051
    %9116 = vst [vmem:[#allocation2 + $0x38] sm:$0xff] %v9052
    %9117 = vst [vmem:[#allocation2 + $0x58] sm:$0xff] %v9053
    %9118 = vst [vmem:[#allocation2 + $0x78] sm:$0xff] %v9054
    %9119 = vst [vmem:[#allocation2 + $0x98] sm:$0xff] %v9055
    %9120 = vst [vmem:[#allocation2 + $0xb8] sm:$0xff] %v9056
    %9121 = vst [vmem:[#allocation2 + $0xd8] sm:$0xff] %v9057
    %9122 = vst [vmem:[#allocation2 + $0xf8] sm:$0xff] %v9058
    %9123 = vst [vmem:[#allocation2 + $0x118] sm:$0xff] %v9059
    %9124 = vst [vmem:[#allocation2 + $0x138] sm:$0xff] %v9060
    %9125 = vst [vmem:[#allocation2 + $0x158] sm:$0xff] %v9061
    %9126 = vst [vmem:[#allocation2 + $0x178] sm:$0xff] %v9062
    %9127 = vst [vmem:[#allocation2 + $0x198] sm:$0xff] %v9063
    %9128 = vst [vmem:[#allocation2 + $0x1b8] sm:$0xff] %v9064
    %9129 = vst [vmem:[#allocation2 + $0x1d8] sm:$0xff] %v9065
    %9130 = vst [vmem:[#allocation2 + $0x1f8] sm:$0xff] %v9066
    %9131 = vst [vmem:[#allocation2 + $0x218] sm:$0xff] %v9003
    %9132 = vst [vmem:[#allocation2 + $0x238] sm:$0xff] %v9004
    %9133 = vst [vmem:[#allocation2 + $0x258] sm:$0xff] %v9005
    %9134 = vst [vmem:[#allocation2 + $0x278] sm:$0xff] %v9006
    %9135 = vst [vmem:[#allocation2 + $0x298] sm:$0xff] %v9007
    %9136 = vst [vmem:[#allocation2 + $0x2b8] sm:$0xff] %v9008
    %9137 = vst [vmem:[#allocation2 + $0x2d8] sm:$0xff] %v9009
    %9138 = vst [vmem:[#allocation2 + $0x2f8] sm:$0xff] %v9010
    %9139 = vst [vmem:[#allocation2 + $0x318] sm:$0xff] %v9011
    %9140 = vst [vmem:[#allocation2 + $0x338] sm:$0xff] %v9012
    %9141 = vst [vmem:[#allocation2 + $0x358] sm:$0xff] %v9013
    %9142 = vst [vmem:[#allocation2 + $0x378] sm:$0xff] %v9014
    %9143 = vst [vmem:[#allocation2 + $0x398] sm:$0xff] %v9015
    %9144 = vst [vmem:[#allocation2 + $0x3b8] sm:$0xff] %v9016
    %9145 = vst [vmem:[#allocation2 + $0x3d8] sm:$0xff] %v9017
    %9146 = vst [vmem:[#allocation2 + $0x3f8] sm:$0xff] %v9018
    %9147 = vst [vmem:[#allocation2 + $0x418] sm:$0xff] %v9099
    %9148 = vst [vmem:[#allocation2 + $0x438] sm:$0xff] %v9100
    %9149 = vst [vmem:[#allocation2 + $0x458] sm:$0xff] %v9101
    %9150 = vst [vmem:[#allocation2 + $0x478] sm:$0xff] %v9102
    %9151 = vst [vmem:[#allocation2 + $0x498] sm:$0xff] %v9103
    %9152 = vst [vmem:[#allocation2 + $0x4b8] sm:$0xff] %v9104
    %9153 = vst [vmem:[#allocation2 + $0x4d8] sm:$0xff] %v9105
    %9154 = vst [vmem:[#allocation2 + $0x4f8] sm:$0xff] %v9106
    %9155 = vst [vmem:[#allocation2 + $0x518] sm:$0xff] %v9107
    %9156 = vst [vmem:[#allocation2 + $0x538] sm:$0xff] %v9108
    %9157 = vst [vmem:[#allocation2 + $0x558] sm:$0xff] %v9109
    %9158 = vst [vmem:[#allocation2 + $0x578] sm:$0xff] %v9110
    %9159 = vst [vmem:[#allocation2 + $0x598] sm:$0xff] %v9111
    %9160 = vst [vmem:[#allocation2 + $0x5b8] sm:$0xff] %v9112
    %9161 = vst [vmem:[#allocation2 + $0x5d8] sm:$0xff] %v9113
    %9162 = vst [vmem:[#allocation2 + $0x5f8] sm:$0xff] %v9114
    %v9163 = vld [vmem:[#allocation7] sm:$0xff]
    %v9164 = vld [vmem:[#allocation7 + $0x8] sm:$0xff]
    %v9165 = vld [vmem:[#allocation7 + $0x10] sm:$0xff]
    %v9166 = vld [vmem:[#allocation7 + $0x18] sm:$0xff]
    %v9167 = vld [vmem:[#allocation7 + $0x20] sm:$0xff]
    %v9168 = vld [vmem:[#allocation7 + $0x28] sm:$0xff]
    %v9169 = vld [vmem:[#allocation7 + $0x30] sm:$0xff]
    %v9170 = vld [vmem:[#allocation7 + $0x38] sm:$0xff]
    %v9171 = vld [vmem:[#allocation7 + $0x40] sm:$0xff]
    %v9172 = vld [vmem:[#allocation7 + $0x48] sm:$0xff]
    %v9173 = vld [vmem:[#allocation7 + $0x50] sm:$0xff]
    %v9174 = vld [vmem:[#allocation7 + $0x58] sm:$0xff]
    %v9175 = vld [vmem:[#allocation7 + $0x60] sm:$0xff]
    %v9176 = vld [vmem:[#allocation7 + $0x68] sm:$0xff]
    %v9177 = vld [vmem:[#allocation7 + $0x70] sm:$0xff]
    %v9178 = vld [vmem:[#allocation7 + $0x78] sm:$0xff]
    %v9179 = vld [vmem:[#allocation7 + $0x80] sm:$0xff]
    %v9180 = vld [vmem:[#allocation7 + $0x88] sm:$0xff]
    %v9181 = vld [vmem:[#allocation7 + $0x90] sm:$0xff]
    %v9182 = vld [vmem:[#allocation7 + $0x98] sm:$0xff]
    %v9183 = vld [vmem:[#allocation7 + $0xa0] sm:$0xff]
    %v9184 = vld [vmem:[#allocation7 + $0xa8] sm:$0xff]
    %v9185 = vld [vmem:[#allocation7 + $0xb0] sm:$0xff]
    %v9186 = vld [vmem:[#allocation7 + $0xb8] sm:$0xff]
    %v9187 = vld [vmem:[#allocation7 + $0xc0] sm:$0xff]
    %v9188 = vld [vmem:[#allocation7 + $0xc8] sm:$0xff]
    %v9189 = vld [vmem:[#allocation7 + $0xd0] sm:$0xff]
    %v9190 = vld [vmem:[#allocation7 + $0xd8] sm:$0xff]
    %v9191 = vld [vmem:[#allocation7 + $0xe0] sm:$0xff]
    %v9192 = vld [vmem:[#allocation7 + $0xe8] sm:$0xff]
    %v9193 = vld [vmem:[#allocation7 + $0xf0] sm:$0xff]
    %v9194 = vld [vmem:[#allocation7 + $0xf8] sm:$0xff]
    %v9195 = vld [vmem:[#allocation7 + $0x100] sm:$0xff]
    %v9196 = vld [vmem:[#allocation7 + $0x108] sm:$0xff]
    %v9197 = vld [vmem:[#allocation7 + $0x110] sm:$0xff]
    %v9198 = vld [vmem:[#allocation7 + $0x118] sm:$0xff]
    %v9199 = vld [vmem:[#allocation7 + $0x120] sm:$0xff]
    %v9200 = vld [vmem:[#allocation7 + $0x128] sm:$0xff]
    %v9201 = vld [vmem:[#allocation7 + $0x130] sm:$0xff]
    %v9202 = vld [vmem:[#allocation7 + $0x138] sm:$0xff]
    %v9203 = vld [vmem:[#allocation7 + $0x140] sm:$0xff]
    %v9204 = vld [vmem:[#allocation7 + $0x148] sm:$0xff]
    %v9205 = vld [vmem:[#allocation7 + $0x150] sm:$0xff]
    %v9206 = vld [vmem:[#allocation7 + $0x158] sm:$0xff]
    %v9207 = vld [vmem:[#allocation7 + $0x160] sm:$0xff]
    %v9208 = vld [vmem:[#allocation7 + $0x168] sm:$0xff]
    %v9209 = vld [vmem:[#allocation7 + $0x170] sm:$0xff]
    %v9210 = vld [vmem:[#allocation7 + $0x178] sm:$0xff]
    %v9211 = vld [vmem:[#allocation2] sm:$0xff]
    %v9212 = vld [vmem:[#allocation2 + $0x8] sm:$0xff]
    %v9213 = vld [vmem:[#allocation2 + $0x10] sm:$0xff]
    %v9214 = vld [vmem:[#allocation2 + $0x18] sm:$0xff]
    %v9215 = vld [vmem:[#allocation2 + $0x20] sm:$0xff]
    %v9216 = vld [vmem:[#allocation2 + $0x28] sm:$0xff]
    %v9217 = vld [vmem:[#allocation2 + $0x30] sm:$0xff]
    %v9218 = vld [vmem:[#allocation2 + $0x38] sm:$0xff]
    %v9219 = vld [vmem:[#allocation2 + $0x40] sm:$0xff]
    %v9220 = vld [vmem:[#allocation2 + $0x48] sm:$0xff]
    %v9221 = vld [vmem:[#allocation2 + $0x50] sm:$0xff]
    %v9222 = vld [vmem:[#allocation2 + $0x58] sm:$0xff]
    %v9223 = vld [vmem:[#allocation2 + $0x60] sm:$0xff]
    %v9224 = vld [vmem:[#allocation2 + $0x68] sm:$0xff]
    %v9225 = vld [vmem:[#allocation2 + $0x70] sm:$0xff]
    %v9226 = vld [vmem:[#allocation2 + $0x78] sm:$0xff]
    %v9227 = vld [vmem:[#allocation2 + $0x80] sm:$0xff]
    %v9228 = vld [vmem:[#allocation2 + $0x88] sm:$0xff]
    %v9229 = vld [vmem:[#allocation2 + $0x90] sm:$0xff]
    %v9230 = vld [vmem:[#allocation2 + $0x98] sm:$0xff]
    %v9231 = vld [vmem:[#allocation2 + $0xa0] sm:$0xff]
    %v9232 = vld [vmem:[#allocation2 + $0xa8] sm:$0xff]
    %v9233 = vld [vmem:[#allocation2 + $0xb0] sm:$0xff]
    %v9234 = vld [vmem:[#allocation2 + $0xb8] sm:$0xff]
    %v9235 = vld [vmem:[#allocation2 + $0xc0] sm:$0xff]
    %v9236 = vld [vmem:[#allocation2 + $0xc8] sm:$0xff]
    %v9237 = vld [vmem:[#allocation2 + $0xd0] sm:$0xff]
    %v9238 = vld [vmem:[#allocation2 + $0xd8] sm:$0xff]
    %v9239 = vld [vmem:[#allocation2 + $0xe0] sm:$0xff]
    %v9240 = vld [vmem:[#allocation2 + $0xe8] sm:$0xff]
    %v9241 = vld [vmem:[#allocation2 + $0xf0] sm:$0xff]
    %v9242 = vld [vmem:[#allocation2 + $0xf8] sm:$0xff]
    %v9243 = vld [vmem:[#allocation2 + $0x100] sm:$0xff]
    %v9244 = vld [vmem:[#allocation2 + $0x108] sm:$0xff]
    %v9245 = vld [vmem:[#allocation2 + $0x110] sm:$0xff]
    %v9246 = vld [vmem:[#allocation2 + $0x118] sm:$0xff]
    %v9247 = vld [vmem:[#allocation2 + $0x120] sm:$0xff]
    %v9248 = vld [vmem:[#allocation2 + $0x128] sm:$0xff]
    %v9249 = vld [vmem:[#allocation2 + $0x130] sm:$0xff]
    %v9250 = vld [vmem:[#allocation2 + $0x138] sm:$0xff]
    %v9251 = vld [vmem:[#allocation2 + $0x140] sm:$0xff]
    %v9252 = vld [vmem:[#allocation2 + $0x148] sm:$0xff]
    %v9253 = vld [vmem:[#allocation2 + $0x150] sm:$0xff]
    %v9254 = vld [vmem:[#allocation2 + $0x158] sm:$0xff]
    %v9255 = vld [vmem:[#allocation2 + $0x160] sm:$0xff]
    %v9256 = vld [vmem:[#allocation2 + $0x168] sm:$0xff]
    %v9257 = vld [vmem:[#allocation2 + $0x170] sm:$0xff]
    %v9258 = vld [vmem:[#allocation2 + $0x178] sm:$0xff]
    %v9259 = vld [vmem:[#allocation2 + $0x180] sm:$0xff]
    %v9260 = vld [vmem:[#allocation2 + $0x188] sm:$0xff]
    %v9261 = vld [vmem:[#allocation2 + $0x190] sm:$0xff]
    %v9262 = vld [vmem:[#allocation2 + $0x198] sm:$0xff]
    %v9263 = vld [vmem:[#allocation2 + $0x1a0] sm:$0xff]
    %v9264 = vld [vmem:[#allocation2 + $0x1a8] sm:$0xff]
    %v9265 = vld [vmem:[#allocation2 + $0x1b0] sm:$0xff]
    %v9266 = vld [vmem:[#allocation2 + $0x1b8] sm:$0xff]
    %v9267 = vld [vmem:[#allocation2 + $0x1c0] sm:$0xff]
    %v9268 = vld [vmem:[#allocation2 + $0x1c8] sm:$0xff]
    %v9269 = vld [vmem:[#allocation2 + $0x1d0] sm:$0xff]
    %v9270 = vld [vmem:[#allocation2 + $0x1d8] sm:$0xff]
    %v9271 = vld [vmem:[#allocation2 + $0x1e0] sm:$0xff]
    %v9272 = vld [vmem:[#allocation2 + $0x1e8] sm:$0xff]
    %v9273 = vld [vmem:[#allocation2 + $0x1f0] sm:$0xff]
    %v9274 = vld [vmem:[#allocation2 + $0x1f8] sm:$0xff]
    %v9275 = vld [vmem:[#allocation2 + $0x200] sm:$0xff]
    %v9276 = vld [vmem:[#allocation2 + $0x208] sm:$0xff]
    %v9277 = vld [vmem:[#allocation2 + $0x210] sm:$0xff]
    %v9278 = vld [vmem:[#allocation2 + $0x218] sm:$0xff]
    %v9279 = vld [vmem:[#allocation2 + $0x220] sm:$0xff]
    %v9280 = vld [vmem:[#allocation2 + $0x228] sm:$0xff]
    %v9281 = vld [vmem:[#allocation2 + $0x230] sm:$0xff]
    %v9282 = vld [vmem:[#allocation2 + $0x238] sm:$0xff]
    %v9283 = vld [vmem:[#allocation2 + $0x240] sm:$0xff]
    %v9284 = vld [vmem:[#allocation2 + $0x248] sm:$0xff]
    %v9285 = vld [vmem:[#allocation2 + $0x250] sm:$0xff]
    %v9286 = vld [vmem:[#allocation2 + $0x258] sm:$0xff]
    %v9287 = vld [vmem:[#allocation2 + $0x260] sm:$0xff]
    %v9288 = vld [vmem:[#allocation2 + $0x268] sm:$0xff]
    %v9289 = vld [vmem:[#allocation2 + $0x270] sm:$0xff]
    %v9290 = vld [vmem:[#allocation2 + $0x278] sm:$0xff]
    %v9291 = vld [vmem:[#allocation2 + $0x280] sm:$0xff]
    %v9292 = vld [vmem:[#allocation2 + $0x288] sm:$0xff]
    %v9293 = vld [vmem:[#allocation2 + $0x290] sm:$0xff]
    %v9294 = vld [vmem:[#allocation2 + $0x298] sm:$0xff]
    %v9295 = vld [vmem:[#allocation2 + $0x2a0] sm:$0xff]
    %v9296 = vld [vmem:[#allocation2 + $0x2a8] sm:$0xff]
    %v9297 = vld [vmem:[#allocation2 + $0x2b0] sm:$0xff]
    %v9298 = vld [vmem:[#allocation2 + $0x2b8] sm:$0xff]
    %v9299 = vld [vmem:[#allocation2 + $0x2c0] sm:$0xff]
    %v9300 = vld [vmem:[#allocation2 + $0x2c8] sm:$0xff]
    %v9301 = vld [vmem:[#allocation2 + $0x2d0] sm:$0xff]
    %v9302 = vld [vmem:[#allocation2 + $0x2d8] sm:$0xff]
    %v9303 = vld [vmem:[#allocation2 + $0x2e0] sm:$0xff]
    %v9304 = vld [vmem:[#allocation2 + $0x2e8] sm:$0xff]
    %v9305 = vld [vmem:[#allocation2 + $0x2f0] sm:$0xff]
    %v9306 = vld [vmem:[#allocation2 + $0x2f8] sm:$0xff]
    %v9307 = vld [vmem:[#allocation2 + $0x300] sm:$0xff]
    %v9308 = vld [vmem:[#allocation2 + $0x308] sm:$0xff]
    %v9309 = vld [vmem:[#allocation2 + $0x310] sm:$0xff]
    %v9310 = vld [vmem:[#allocation2 + $0x318] sm:$0xff]
    %v9311 = vld [vmem:[#allocation2 + $0x320] sm:$0xff]
    %v9312 = vld [vmem:[#allocation2 + $0x328] sm:$0xff]
    %v9313 = vld [vmem:[#allocation2 + $0x330] sm:$0xff]
    %v9314 = vld [vmem:[#allocation2 + $0x338] sm:$0xff]
    %v9315 = vld [vmem:[#allocation2 + $0x340] sm:$0xff]
    %v9316 = vld [vmem:[#allocation2 + $0x348] sm:$0xff]
    %v9317 = vld [vmem:[#allocation2 + $0x350] sm:$0xff]
    %v9318 = vld [vmem:[#allocation2 + $0x358] sm:$0xff]
    %v9319 = vld [vmem:[#allocation2 + $0x360] sm:$0xff]
    %v9320 = vld [vmem:[#allocation2 + $0x368] sm:$0xff]
    %v9321 = vld [vmem:[#allocation2 + $0x370] sm:$0xff]
    %v9322 = vld [vmem:[#allocation2 + $0x378] sm:$0xff]
    %v9323 = vld [vmem:[#allocation2 + $0x380] sm:$0xff]
    %v9324 = vld [vmem:[#allocation2 + $0x388] sm:$0xff]
    %v9325 = vld [vmem:[#allocation2 + $0x390] sm:$0xff]
    %v9326 = vld [vmem:[#allocation2 + $0x398] sm:$0xff]
    %v9327 = vld [vmem:[#allocation2 + $0x3a0] sm:$0xff]
    %v9328 = vld [vmem:[#allocation2 + $0x3a8] sm:$0xff]
    %v9329 = vld [vmem:[#allocation2 + $0x3b0] sm:$0xff]
    %v9330 = vld [vmem:[#allocation2 + $0x3b8] sm:$0xff]
    %v9331 = vld [vmem:[#allocation2 + $0x3c0] sm:$0xff]
    %v9332 = vld [vmem:[#allocation2 + $0x3c8] sm:$0xff]
    %v9333 = vld [vmem:[#allocation2 + $0x3d0] sm:$0xff]
    %v9334 = vld [vmem:[#allocation2 + $0x3d8] sm:$0xff]
    %v9335 = vld [vmem:[#allocation2 + $0x3e0] sm:$0xff]
    %v9336 = vld [vmem:[#allocation2 + $0x3e8] sm:$0xff]
    %v9337 = vld [vmem:[#allocation2 + $0x3f0] sm:$0xff]
    %v9338 = vld [vmem:[#allocation2 + $0x3f8] sm:$0xff]
    %v9339 = vld [vmem:[#allocation2 + $0x400] sm:$0xff]
    %v9340 = vld [vmem:[#allocation2 + $0x408] sm:$0xff]
    %v9341 = vld [vmem:[#allocation2 + $0x410] sm:$0xff]
    %v9342 = vld [vmem:[#allocation2 + $0x418] sm:$0xff]
    %v9343 = vld [vmem:[#allocation2 + $0x420] sm:$0xff]
    %v9344 = vld [vmem:[#allocation2 + $0x428] sm:$0xff]
    %v9345 = vld [vmem:[#allocation2 + $0x430] sm:$0xff]
    %v9346 = vld [vmem:[#allocation2 + $0x438] sm:$0xff]
    %v9347 = vld [vmem:[#allocation2 + $0x440] sm:$0xff]
    %v9348 = vld [vmem:[#allocation2 + $0x448] sm:$0xff]
    %v9349 = vld [vmem:[#allocation2 + $0x450] sm:$0xff]
    %v9350 = vld [vmem:[#allocation2 + $0x458] sm:$0xff]
    %v9351 = vld [vmem:[#allocation2 + $0x460] sm:$0xff]
    %v9352 = vld [vmem:[#allocation2 + $0x468] sm:$0xff]
    %v9353 = vld [vmem:[#allocation2 + $0x470] sm:$0xff]
    %v9354 = vld [vmem:[#allocation2 + $0x478] sm:$0xff]
    %v9355 = vld [vmem:[#allocation2 + $0x480] sm:$0xff]
    %v9356 = vld [vmem:[#allocation2 + $0x488] sm:$0xff]
    %v9357 = vld [vmem:[#allocation2 + $0x490] sm:$0xff]
    %v9358 = vld [vmem:[#allocation2 + $0x498] sm:$0xff]
    %v9359 = vld [vmem:[#allocation2 + $0x4a0] sm:$0xff]
    %v9360 = vld [vmem:[#allocation2 + $0x4a8] sm:$0xff]
    %v9361 = vld [vmem:[#allocation2 + $0x4b0] sm:$0xff]
    %v9362 = vld [vmem:[#allocation2 + $0x4b8] sm:$0xff]
    %v9363 = vld [vmem:[#allocation2 + $0x4c0] sm:$0xff]
    %v9364 = vld [vmem:[#allocation2 + $0x4c8] sm:$0xff]
    %v9365 = vld [vmem:[#allocation2 + $0x4d0] sm:$0xff]
    %v9366 = vld [vmem:[#allocation2 + $0x4d8] sm:$0xff]
    %v9367 = vld [vmem:[#allocation2 + $0x4e0] sm:$0xff]
    %v9368 = vld [vmem:[#allocation2 + $0x4e8] sm:$0xff]
    %v9369 = vld [vmem:[#allocation2 + $0x4f0] sm:$0xff]
    %v9370 = vld [vmem:[#allocation2 + $0x4f8] sm:$0xff]
    %v9371 = vld [vmem:[#allocation2 + $0x500] sm:$0xff]
    %v9372 = vld [vmem:[#allocation2 + $0x508] sm:$0xff]
    %v9373 = vld [vmem:[#allocation2 + $0x510] sm:$0xff]
    %v9374 = vld [vmem:[#allocation2 + $0x518] sm:$0xff]
    %v9375 = vld [vmem:[#allocation2 + $0x520] sm:$0xff]
    %v9376 = vld [vmem:[#allocation2 + $0x528] sm:$0xff]
    %v9377 = vld [vmem:[#allocation2 + $0x530] sm:$0xff]
    %v9378 = vld [vmem:[#allocation2 + $0x538] sm:$0xff]
    %v9379 = vld [vmem:[#allocation2 + $0x540] sm:$0xff]
    %v9380 = vld [vmem:[#allocation2 + $0x548] sm:$0xff]
    %v9381 = vld [vmem:[#allocation2 + $0x550] sm:$0xff]
    %v9382 = vld [vmem:[#allocation2 + $0x558] sm:$0xff]
    %v9383 = vld [vmem:[#allocation2 + $0x560] sm:$0xff]
    %v9384 = vld [vmem:[#allocation2 + $0x568] sm:$0xff]
    %v9385 = vld [vmem:[#allocation2 + $0x570] sm:$0xff]
    %v9386 = vld [vmem:[#allocation2 + $0x578] sm:$0xff]
    %v9387 = vld [vmem:[#allocation2 + $0x580] sm:$0xff]
    %v9388 = vld [vmem:[#allocation2 + $0x588] sm:$0xff]
    %v9389 = vld [vmem:[#allocation2 + $0x590] sm:$0xff]
    %v9390 = vld [vmem:[#allocation2 + $0x598] sm:$0xff]
    %v9391 = vld [vmem:[#allocation2 + $0x5a0] sm:$0xff]
    %v9392 = vld [vmem:[#allocation2 + $0x5a8] sm:$0xff]
    %v9393 = vld [vmem:[#allocation2 + $0x5b0] sm:$0xff]
    %v9394 = vld [vmem:[#allocation2 + $0x5b8] sm:$0xff]
    %v9395 = vld [vmem:[#allocation2 + $0x5c0] sm:$0xff]
    %v9396 = vld [vmem:[#allocation2 + $0x5c8] sm:$0xff]
    %v9397 = vld [vmem:[#allocation2 + $0x5d0] sm:$0xff]
    %v9398 = vld [vmem:[#allocation2 + $0x5d8] sm:$0xff]
    %v9399 = vld [vmem:[#allocation2 + $0x5e0] sm:$0xff]
    %v9400 = vld [vmem:[#allocation2 + $0x5e8] sm:$0xff]
    %v9401 = vld [vmem:[#allocation2 + $0x5f0] sm:$0xff]
    %v9402 = vld [vmem:[#allocation2 + $0x5f8] sm:$0xff]
    %v9403 = vld [vmem:[%s10] sm:$0xff]
    %v9404 = vld [vmem:[%s10 + $0x8] sm:$0xff]
    %v9405 = vld [vmem:[%s10 + $0x10] sm:$0xff]
    %v9406 = vld [vmem:[%s10 + $0x18] sm:$0xff]
    %v9407 = vld [vmem:[%s10 + $0x20] sm:$0xff]
    %v9408 = vld [vmem:[%s10 + $0x28] sm:$0xff]
    %v9409 = vld [vmem:[%s10 + $0x30] sm:$0xff]
    %v9410 = vld [vmem:[%s10 + $0x38] sm:$0xff]
    %v9411 = vld [vmem:[%s10 + $0x40] sm:$0xff]
    %v9412 = vld [vmem:[%s10 + $0x48] sm:$0xff]
    %v9413 = vld [vmem:[%s10 + $0x50] sm:$0xff]
    %v9414 = vld [vmem:[%s10 + $0x58] sm:$0xff]
    %v9415 = vld [vmem:[%s10 + $0x60] sm:$0xff]
    %v9416 = vld [vmem:[%s10 + $0x68] sm:$0xff]
    %v9417 = vld [vmem:[%s10 + $0x70] sm:$0xff]
    %v9418 = vld [vmem:[%s10 + $0x78] sm:$0xff]
    %9420 = vset.pattern.permute.xlu0 0
    %9421 = vperm.xlu0 %9420, %v9403
    %v9422 = vpop.permute.xlu0 %9421
    %9425 = vset.pattern.permute.xlu0 0
    %9426 = vperm.xlu0 %9425, %v9404
    %v9427 = vpop.permute.xlu0 %9426
    %9430 = vset.pattern.permute.xlu0 0
    %9431 = vperm.xlu0 %9430, %v9405
    %v9432 = vpop.permute.xlu0 %9431
    %9435 = vset.pattern.permute.xlu0 0
    %9436 = vperm.xlu0 %9435, %v9406
    %v9437 = vpop.permute.xlu0 %9436
    %9440 = vset.pattern.permute.xlu0 0
    %9441 = vperm.xlu0 %9440, %v9407
    %v9442 = vpop.permute.xlu0 %9441
    %9445 = vset.pattern.permute.xlu0 0
    %9446 = vperm.xlu0 %9445, %v9408
    %v9447 = vpop.permute.xlu0 %9446
    %9450 = vset.pattern.permute.xlu0 0
    %9451 = vperm.xlu0 %9450, %v9409
    %v9452 = vpop.permute.xlu0 %9451
    %9455 = vset.pattern.permute.xlu0 0
    %9456 = vperm.xlu0 %9455, %v9410
    %v9457 = vpop.permute.xlu0 %9456
    %9460 = vset.pattern.permute.xlu0 0
    %9461 = vperm.xlu0 %9460, %v9411
    %v9462 = vpop.permute.xlu0 %9461
    %9465 = vset.pattern.permute.xlu0 0
    %9466 = vperm.xlu0 %9465, %v9412
    %v9467 = vpop.permute.xlu0 %9466
    %9470 = vset.pattern.permute.xlu0 0
    %9471 = vperm.xlu0 %9470, %v9413
    %v9472 = vpop.permute.xlu0 %9471
    %9475 = vset.pattern.permute.xlu0 0
    %9476 = vperm.xlu0 %9475, %v9414
    %v9477 = vpop.permute.xlu0 %9476
    %9480 = vset.pattern.permute.xlu0 0
    %9481 = vperm.xlu0 %9480, %v9415
    %v9482 = vpop.permute.xlu0 %9481
    %9485 = vset.pattern.permute.xlu0 0
    %9486 = vperm.xlu0 %9485, %v9416
    %v9487 = vpop.permute.xlu0 %9486
    %9490 = vset.pattern.permute.xlu0 0
    %9491 = vperm.xlu0 %9490, %v9417
    %v9492 = vpop.permute.xlu0 %9491
    %9495 = vset.pattern.permute.xlu0 0
    %9496 = vperm.xlu0 %9495, %v9418
    %v9497 = vpop.permute.xlu0 %9496
    %9499 = vmatpush.msra.mxu0 %v9271
    %9500 = vmatpush.msra.mxu0 %v9267
    %9501 = vmatpush.msra.mxu0 %v9263
    %9502 = vmatpush.msra.mxu0 %v9259
    %9503 = vmatpush.msra.mxu0 %v9255
    %9504 = vmatpush.msra.mxu0 %v9251
    %9505 = vmatpush.msra.mxu0 %v9247
    %9506 = vmatpush.msra.mxu0 %v9243
    %9507 = vmatpush.msra.mxu0 %v9239
    %9508 = vmatpush.msra.mxu0 %v9235
    %9509 = vmatpush.msra.mxu0 %v9231
    %9510 = vmatpush.msra.mxu0 %v9227
    %9511 = vmatpush.msra.mxu0 %v9223
    %9512 = vmatpush.msra.mxu0 %v9219
    %9513 = vmatpush.msra.mxu0 %v9215
    %9514 = vmatpush.msra.mxu0 %v9211
    %9515 = vmatmul.f32.gmra.mxu0 %v9163
    %v9516 = vpop.f32.mrf.mxu0
    %v9517 = vadd.f32 %v9422, %v9516
    %9518 = vmatmul.f32.gmra.mxu0 %v9166
    %v9519 = vpop.f32.mrf.mxu0
    %v9520 = vadd.f32 %v9427, %v9519
    %9521 = vmatmul.f32.gmra.mxu0 %v9169
    %v9522 = vpop.f32.mrf.mxu0
    %v9523 = vadd.f32 %v9432, %v9522
    %9524 = vmatmul.f32.gmra.mxu0 %v9172
    %v9525 = vpop.f32.mrf.mxu0
    %v9526 = vadd.f32 %v9437, %v9525
    %9527 = vmatmul.f32.gmra.mxu0 %v9175
    %v9528 = vpop.f32.mrf.mxu0
    %v9529 = vadd.f32 %v9442, %v9528
    %9530 = vmatmul.f32.gmra.mxu0 %v9178
    %v9531 = vpop.f32.mrf.mxu0
    %v9532 = vadd.f32 %v9447, %v9531
    %9533 = vmatmul.f32.gmra.mxu0 %v9181
    %v9534 = vpop.f32.mrf.mxu0
    %v9535 = vadd.f32 %v9452, %v9534
    %9536 = vmatmul.f32.gmra.mxu0 %v9184
    %v9537 = vpop.f32.mrf.mxu0
    %v9538 = vadd.f32 %v9457, %v9537
    %9539 = vmatmul.f32.gmra.mxu0 %v9187
    %v9540 = vpop.f32.mrf.mxu0
    %v9541 = vadd.f32 %v9462, %v9540
    %9542 = vmatmul.f32.gmra.mxu0 %v9190
    %v9543 = vpop.f32.mrf.mxu0
    %v9544 = vadd.f32 %v9467, %v9543
    %9545 = vmatmul.f32.gmra.mxu0 %v9193
    %v9546 = vpop.f32.mrf.mxu0
    %v9547 = vadd.f32 %v9472, %v9546
    %9548 = vmatmul.f32.gmra.mxu0 %v9196
    %v9549 = vpop.f32.mrf.mxu0
    %v9550 = vadd.f32 %v9477, %v9549
    %9551 = vmatmul.f32.gmra.mxu0 %v9199
    %v9552 = vpop.f32.mrf.mxu0
    %v9553 = vadd.f32 %v9482, %v9552
    %9554 = vmatmul.f32.gmra.mxu0 %v9202
    %v9555 = vpop.f32.mrf.mxu0
    %v9556 = vadd.f32 %v9487, %v9555
    %9557 = vmatmul.f32.gmra.mxu0 %v9205
    %v9558 = vpop.f32.mrf.mxu0
    %v9559 = vadd.f32 %v9492, %v9558
    %9560 = vmatmul.f32.gmra.mxu0 %v9208
    %v9561 = vpop.f32.mrf.mxu0
    %v9562 = vadd.f32 %v9497, %v9561
    %9563 = vdwg.mxu0
    %9564 = vmatpush.msra.mxu0 %v9335
    %9565 = vmatpush.msra.mxu0 %v9331
    %9566 = vmatpush.msra.mxu0 %v9327
    %9567 = vmatpush.msra.mxu0 %v9323
    %9568 = vmatpush.msra.mxu0 %v9319
    %9569 = vmatpush.msra.mxu0 %v9315
    %9570 = vmatpush.msra.mxu0 %v9311
    %9571 = vmatpush.msra.mxu0 %v9307
    %9572 = vmatpush.msra.mxu0 %v9303
    %9573 = vmatpush.msra.mxu0 %v9299
    %9574 = vmatpush.msra.mxu0 %v9295
    %9575 = vmatpush.msra.mxu0 %v9291
    %9576 = vmatpush.msra.mxu0 %v9287
    %9577 = vmatpush.msra.mxu0 %v9283
    %9578 = vmatpush.msra.mxu0 %v9279
    %9579 = vmatpush.msra.mxu0 %v9275
    %9580 = vmatmul.f32.gmra.mxu0 %v9164
    %v9581 = vpop.f32.mrf.mxu0
    %v9582 = vadd.f32 %v9517, %v9581
    %9583 = vmatmul.f32.gmra.mxu0 %v9167
    %v9584 = vpop.f32.mrf.mxu0
    %v9585 = vadd.f32 %v9520, %v9584
    %9586 = vmatmul.f32.gmra.mxu0 %v9170
    %v9587 = vpop.f32.mrf.mxu0
    %v9588 = vadd.f32 %v9523, %v9587
    %9589 = vmatmul.f32.gmra.mxu0 %v9173
    %v9590 = vpop.f32.mrf.mxu0
    %v9591 = vadd.f32 %v9526, %v9590
    %9592 = vmatmul.f32.gmra.mxu0 %v9176
    %v9593 = vpop.f32.mrf.mxu0
    %v9594 = vadd.f32 %v9529, %v9593
    %9595 = vmatmul.f32.gmra.mxu0 %v9179
    %v9596 = vpop.f32.mrf.mxu0
    %v9597 = vadd.f32 %v9532, %v9596
    %9598 = vmatmul.f32.gmra.mxu0 %v9182
    %v9599 = vpop.f32.mrf.mxu0
    %v9600 = vadd.f32 %v9535, %v9599
    %9601 = vmatmul.f32.gmra.mxu0 %v9185
    %v9602 = vpop.f32.mrf.mxu0
    %v9603 = vadd.f32 %v9538, %v9602
    %9604 = vmatmul.f32.gmra.mxu0 %v9188
    %v9605 = vpop.f32.mrf.mxu0
    %v9606 = vadd.f32 %v9541, %v9605
    %9607 = vmatmul.f32.gmra.mxu0 %v9191
    %v9608 = vpop.f32.mrf.mxu0
    %v9609 = vadd.f32 %v9544, %v9608
    %9610 = vmatmul.f32.gmra.mxu0 %v9194
    %v9611 = vpop.f32.mrf.mxu0
    %v9612 = vadd.f32 %v9547, %v9611
    %9613 = vmatmul.f32.gmra.mxu0 %v9197
    %v9614 = vpop.f32.mrf.mxu0
    %v9615 = vadd.f32 %v9550, %v9614
    %9616 = vmatmul.f32.gmra.mxu0 %v9200
    %v9617 = vpop.f32.mrf.mxu0
    %v9618 = vadd.f32 %v9553, %v9617
    %9619 = vmatmul.f32.gmra.mxu0 %v9203
    %v9620 = vpop.f32.mrf.mxu0
    %v9621 = vadd.f32 %v9556, %v9620
    %9622 = vmatmul.f32.gmra.mxu0 %v9206
    %v9623 = vpop.f32.mrf.mxu0
    %v9624 = vadd.f32 %v9559, %v9623
    %9625 = vmatmul.f32.gmra.mxu0 %v9209
    %v9626 = vpop.f32.mrf.mxu0
    %v9627 = vadd.f32 %v9562, %v9626
    %9628 = vdwg.mxu0
    %9629 = vmatpush.msra.mxu0 %v9399
    %9630 = vmatpush.msra.mxu0 %v9395
    %9631 = vmatpush.msra.mxu0 %v9391
    %9632 = vmatpush.msra.mxu0 %v9387
    %9633 = vmatpush.msra.mxu0 %v9383
    %9634 = vmatpush.msra.mxu0 %v9379
    %9635 = vmatpush.msra.mxu0 %v9375
    %9636 = vmatpush.msra.mxu0 %v9371
    %9637 = vmatpush.msra.mxu0 %v9367
    %9638 = vmatpush.msra.mxu0 %v9363
    %9639 = vmatpush.msra.mxu0 %v9359
    %9640 = vmatpush.msra.mxu0 %v9355
    %9641 = vmatpush.msra.mxu0 %v9351
    %9642 = vmatpush.msra.mxu0 %v9347
    %9643 = vmatpush.msra.mxu0 %v9343
    %9644 = vmatpush.msra.mxu0 %v9339
    %9645 = vmatmul.f32.gmra.mxu0 %v9165
    %v9646 = vpop.f32.mrf.mxu0
    %v9647 = vadd.f32 %v9582, %v9646
    %9648 = vmatmul.f32.gmra.mxu0 %v9168
    %v9649 = vpop.f32.mrf.mxu0
    %v9650 = vadd.f32 %v9585, %v9649
    %9651 = vmatmul.f32.gmra.mxu0 %v9171
    %v9652 = vpop.f32.mrf.mxu0
    %v9653 = vadd.f32 %v9588, %v9652
    %9654 = vmatmul.f32.gmra.mxu0 %v9174
    %v9655 = vpop.f32.mrf.mxu0
    %v9656 = vadd.f32 %v9591, %v9655
    %9657 = vmatmul.f32.gmra.mxu0 %v9177
    %v9658 = vpop.f32.mrf.mxu0
    %v9659 = vadd.f32 %v9594, %v9658
    %9660 = vmatmul.f32.gmra.mxu0 %v9180
    %v9661 = vpop.f32.mrf.mxu0
    %v9662 = vadd.f32 %v9597, %v9661
    %9663 = vmatmul.f32.gmra.mxu0 %v9183
    %v9664 = vpop.f32.mrf.mxu0
    %v9665 = vadd.f32 %v9600, %v9664
    %9666 = vmatmul.f32.gmra.mxu0 %v9186
    %v9667 = vpop.f32.mrf.mxu0
    %v9668 = vadd.f32 %v9603, %v9667
    %9669 = vmatmul.f32.gmra.mxu0 %v9189
    %v9670 = vpop.f32.mrf.mxu0
    %v9671 = vadd.f32 %v9606, %v9670
    %9672 = vmatmul.f32.gmra.mxu0 %v9192
    %v9673 = vpop.f32.mrf.mxu0
    %v9674 = vadd.f32 %v9609, %v9673
    %9675 = vmatmul.f32.gmra.mxu0 %v9195
    %v9676 = vpop.f32.mrf.mxu0
    %v9677 = vadd.f32 %v9612, %v9676
    %9678 = vmatmul.f32.gmra.mxu0 %v9198
    %v9679 = vpop.f32.mrf.mxu0
    %v9680 = vadd.f32 %v9615, %v9679
    %9681 = vmatmul.f32.gmra.mxu0 %v9201
    %v9682 = vpop.f32.mrf.mxu0
    %v9683 = vadd.f32 %v9618, %v9682
    %9684 = vmatmul.f32.gmra.mxu0 %v9204
    %v9685 = vpop.f32.mrf.mxu0
    %v9686 = vadd.f32 %v9621, %v9685
    %9687 = vmatmul.f32.gmra.mxu0 %v9207
    %v9688 = vpop.f32.mrf.mxu0
    %v9689 = vadd.f32 %v9624, %v9688
    %9690 = vmatmul.f32.gmra.mxu0 %v9210
    %v9691 = vpop.f32.mrf.mxu0
    %v9692 = vadd.f32 %v9627, %v9691
    %9693 = vdwg.mxu0
    %9694 = vmatpush.msra.mxu0 %v9272
    %9695 = vmatpush.msra.mxu0 %v9268
    %9696 = vmatpush.msra.mxu0 %v9264
    %9697 = vmatpush.msra.mxu0 %v9260
    %9698 = vmatpush.msra.mxu0 %v9256
    %9699 = vmatpush.msra.mxu0 %v9252
    %9700 = vmatpush.msra.mxu0 %v9248
    %9701 = vmatpush.msra.mxu0 %v9244
    %9702 = vmatpush.msra.mxu0 %v9240
    %9703 = vmatpush.msra.mxu0 %v9236
    %9704 = vmatpush.msra.mxu0 %v9232
    %9705 = vmatpush.msra.mxu0 %v9228
    %9706 = vmatpush.msra.mxu0 %v9224
    %9707 = vmatpush.msra.mxu0 %v9220
    %9708 = vmatpush.msra.mxu0 %v9216
    %9709 = vmatpush.msra.mxu0 %v9212
    %9710 = vmatmul.f32.gmra.mxu0 %v9163
    %v9711 = vpop.f32.mrf.mxu0
    %v9712 = vadd.f32 %v9422, %v9711
    %9713 = vmatmul.f32.gmra.mxu0 %v9166
    %v9714 = vpop.f32.mrf.mxu0
    %v9715 = vadd.f32 %v9427, %v9714
    %9716 = vmatmul.f32.gmra.mxu0 %v9169
    %v9717 = vpop.f32.mrf.mxu0
    %v9718 = vadd.f32 %v9432, %v9717
    %9719 = vmatmul.f32.gmra.mxu0 %v9172
    %v9720 = vpop.f32.mrf.mxu0
    %v9721 = vadd.f32 %v9437, %v9720
    %9722 = vmatmul.f32.gmra.mxu0 %v9175
    %v9723 = vpop.f32.mrf.mxu0
    %v9724 = vadd.f32 %v9442, %v9723
    %9725 = vmatmul.f32.gmra.mxu0 %v9178
    %v9726 = vpop.f32.mrf.mxu0
    %v9727 = vadd.f32 %v9447, %v9726
    %9728 = vmatmul.f32.gmra.mxu0 %v9181
    %v9729 = vpop.f32.mrf.mxu0
    %v9730 = vadd.f32 %v9452, %v9729
    %9731 = vmatmul.f32.gmra.mxu0 %v9184
    %v9732 = vpop.f32.mrf.mxu0
    %v9733 = vadd.f32 %v9457, %v9732
    %9734 = vmatmul.f32.gmra.mxu0 %v9187
    %v9735 = vpop.f32.mrf.mxu0
    %v9736 = vadd.f32 %v9462, %v9735
    %9737 = vmatmul.f32.gmra.mxu0 %v9190
    %v9738 = vpop.f32.mrf.mxu0
    %v9739 = vadd.f32 %v9467, %v9738
    %9740 = vmatmul.f32.gmra.mxu0 %v9193
    %v9741 = vpop.f32.mrf.mxu0
    %v9742 = vadd.f32 %v9472, %v9741
    %9743 = vmatmul.f32.gmra.mxu0 %v9196
    %v9744 = vpop.f32.mrf.mxu0
    %v9745 = vadd.f32 %v9477, %v9744
    %9746 = vmatmul.f32.gmra.mxu0 %v9199
    %v9747 = vpop.f32.mrf.mxu0
    %v9748 = vadd.f32 %v9482, %v9747
    %9749 = vmatmul.f32.gmra.mxu0 %v9202
    %v9750 = vpop.f32.mrf.mxu0
    %v9751 = vadd.f32 %v9487, %v9750
    %9752 = vmatmul.f32.gmra.mxu0 %v9205
    %v9753 = vpop.f32.mrf.mxu0
    %v9754 = vadd.f32 %v9492, %v9753
    %9755 = vmatmul.f32.gmra.mxu0 %v9208
    %v9756 = vpop.f32.mrf.mxu0
    %v9757 = vadd.f32 %v9497, %v9756
    %9758 = vdwg.mxu0
    %9759 = vmatpush.msra.mxu0 %v9336
    %9760 = vmatpush.msra.mxu0 %v9332
    %9761 = vmatpush.msra.mxu0 %v9328
    %9762 = vmatpush.msra.mxu0 %v9324
    %9763 = vmatpush.msra.mxu0 %v9320
    %9764 = vmatpush.msra.mxu0 %v9316
    %9765 = vmatpush.msra.mxu0 %v9312
    %9766 = vmatpush.msra.mxu0 %v9308
    %9767 = vmatpush.msra.mxu0 %v9304
    %9768 = vmatpush.msra.mxu0 %v9300
    %9769 = vmatpush.msra.mxu0 %v9296
    %9770 = vmatpush.msra.mxu0 %v9292
    %9771 = vmatpush.msra.mxu0 %v9288
    %9772 = vmatpush.msra.mxu0 %v9284
    %9773 = vmatpush.msra.mxu0 %v9280
    %9774 = vmatpush.msra.mxu0 %v9276
    %9775 = vmatmul.f32.gmra.mxu0 %v9164
    %v9776 = vpop.f32.mrf.mxu0
    %v9777 = vadd.f32 %v9712, %v9776
    %9778 = vmatmul.f32.gmra.mxu0 %v9167
    %v9779 = vpop.f32.mrf.mxu0
    %v9780 = vadd.f32 %v9715, %v9779
    %9781 = vmatmul.f32.gmra.mxu0 %v9170
    %v9782 = vpop.f32.mrf.mxu0
    %v9783 = vadd.f32 %v9718, %v9782
    %9784 = vmatmul.f32.gmra.mxu0 %v9173
    %v9785 = vpop.f32.mrf.mxu0
    %v9786 = vadd.f32 %v9721, %v9785
    %9787 = vmatmul.f32.gmra.mxu0 %v9176
    %v9788 = vpop.f32.mrf.mxu0
    %v9789 = vadd.f32 %v9724, %v9788
    %9790 = vmatmul.f32.gmra.mxu0 %v9179
    %v9791 = vpop.f32.mrf.mxu0
    %v9792 = vadd.f32 %v9727, %v9791
    %9793 = vmatmul.f32.gmra.mxu0 %v9182
    %v9794 = vpop.f32.mrf.mxu0
    %v9795 = vadd.f32 %v9730, %v9794
    %9796 = vmatmul.f32.gmra.mxu0 %v9185
    %v9797 = vpop.f32.mrf.mxu0
    %v9798 = vadd.f32 %v9733, %v9797
    %9799 = vmatmul.f32.gmra.mxu0 %v9188
    %v9800 = vpop.f32.mrf.mxu0
    %v9801 = vadd.f32 %v9736, %v9800
    %9802 = vmatmul.f32.gmra.mxu0 %v9191
    %v9803 = vpop.f32.mrf.mxu0
    %v9804 = vadd.f32 %v9739, %v9803
    %9805 = vmatmul.f32.gmra.mxu0 %v9194
    %v9806 = vpop.f32.mrf.mxu0
    %v9807 = vadd.f32 %v9742, %v9806
    %9808 = vmatmul.f32.gmra.mxu0 %v9197
    %v9809 = vpop.f32.mrf.mxu0
    %v9810 = vadd.f32 %v9745, %v9809
    %9811 = vmatmul.f32.gmra.mxu0 %v9200
    %v9812 = vpop.f32.mrf.mxu0
    %v9813 = vadd.f32 %v9748, %v9812
    %9814 = vmatmul.f32.gmra.mxu0 %v9203
    %v9815 = vpop.f32.mrf.mxu0
    %v9816 = vadd.f32 %v9751, %v9815
    %9817 = vmatmul.f32.gmra.mxu0 %v9206
    %v9818 = vpop.f32.mrf.mxu0
    %v9819 = vadd.f32 %v9754, %v9818
    %9820 = vmatmul.f32.gmra.mxu0 %v9209
    %v9821 = vpop.f32.mrf.mxu0
    %v9822 = vadd.f32 %v9757, %v9821
    %9823 = vdwg.mxu0
    %9824 = vmatpush.msra.mxu0 %v9400
    %9825 = vmatpush.msra.mxu0 %v9396
    %9826 = vmatpush.msra.mxu0 %v9392
    %9827 = vmatpush.msra.mxu0 %v9388
    %9828 = vmatpush.msra.mxu0 %v9384
    %9829 = vmatpush.msra.mxu0 %v9380
    %9830 = vmatpush.msra.mxu0 %v9376
    %9831 = vmatpush.msra.mxu0 %v9372
    %9832 = vmatpush.msra.mxu0 %v9368
    %9833 = vmatpush.msra.mxu0 %v9364
    %9834 = vmatpush.msra.mxu0 %v9360
    %9835 = vmatpush.msra.mxu0 %v9356
    %9836 = vmatpush.msra.mxu0 %v9352
    %9837 = vmatpush.msra.mxu0 %v9348
    %9838 = vmatpush.msra.mxu0 %v9344
    %9839 = vmatpush.msra.mxu0 %v9340
    %9840 = vmatmul.f32.gmra.mxu0 %v9165
    %v9841 = vpop.f32.mrf.mxu0
    %v9842 = vadd.f32 %v9777, %v9841
    %9843 = vmatmul.f32.gmra.mxu0 %v9168
    %v9844 = vpop.f32.mrf.mxu0
    %v9845 = vadd.f32 %v9780, %v9844
    %9846 = vmatmul.f32.gmra.mxu0 %v9171
    %v9847 = vpop.f32.mrf.mxu0
    %v9848 = vadd.f32 %v9783, %v9847
    %9849 = vmatmul.f32.gmra.mxu0 %v9174
    %v9850 = vpop.f32.mrf.mxu0
    %v9851 = vadd.f32 %v9786, %v9850
    %9852 = vmatmul.f32.gmra.mxu0 %v9177
    %v9853 = vpop.f32.mrf.mxu0
    %v9854 = vadd.f32 %v9789, %v9853
    %9855 = vmatmul.f32.gmra.mxu0 %v9180
    %v9856 = vpop.f32.mrf.mxu0
    %v9857 = vadd.f32 %v9792, %v9856
    %9858 = vmatmul.f32.gmra.mxu0 %v9183
    %v9859 = vpop.f32.mrf.mxu0
    %v9860 = vadd.f32 %v9795, %v9859
    %9861 = vmatmul.f32.gmra.mxu0 %v9186
    %v9862 = vpop.f32.mrf.mxu0
    %v9863 = vadd.f32 %v9798, %v9862
    %9864 = vmatmul.f32.gmra.mxu0 %v9189
    %v9865 = vpop.f32.mrf.mxu0
    %v9866 = vadd.f32 %v9801, %v9865
    %9867 = vmatmul.f32.gmra.mxu0 %v9192
    %v9868 = vpop.f32.mrf.mxu0
    %v9869 = vadd.f32 %v9804, %v9868
    %9870 = vmatmul.f32.gmra.mxu0 %v9195
    %v9871 = vpop.f32.mrf.mxu0
    %v9872 = vadd.f32 %v9807, %v9871
    %9873 = vmatmul.f32.gmra.mxu0 %v9198
    %v9874 = vpop.f32.mrf.mxu0
    %v9875 = vadd.f32 %v9810, %v9874
    %9876 = vmatmul.f32.gmra.mxu0 %v9201
    %v9877 = vpop.f32.mrf.mxu0
    %v9878 = vadd.f32 %v9813, %v9877
    %9879 = vmatmul.f32.gmra.mxu0 %v9204
    %v9880 = vpop.f32.mrf.mxu0
    %v9881 = vadd.f32 %v9816, %v9880
    %9882 = vmatmul.f32.gmra.mxu0 %v9207
    %v9883 = vpop.f32.mrf.mxu0
    %v9884 = vadd.f32 %v9819, %v9883
    %9885 = vmatmul.f32.gmra.mxu0 %v9210
    %v9886 = vpop.f32.mrf.mxu0
    %v9887 = vadd.f32 %v9822, %v9886
    %9888 = vdwg.mxu0
    %9889 = vmatpush.msra.mxu0 %v9273
    %9890 = vmatpush.msra.mxu0 %v9269
    %9891 = vmatpush.msra.mxu0 %v9265
    %9892 = vmatpush.msra.mxu0 %v9261
    %9893 = vmatpush.msra.mxu0 %v9257
    %9894 = vmatpush.msra.mxu0 %v9253
    %9895 = vmatpush.msra.mxu0 %v9249
    %9896 = vmatpush.msra.mxu0 %v9245
    %9897 = vmatpush.msra.mxu0 %v9241
    %9898 = vmatpush.msra.mxu0 %v9237
    %9899 = vmatpush.msra.mxu0 %v9233
    %9900 = vmatpush.msra.mxu0 %v9229
    %9901 = vmatpush.msra.mxu0 %v9225
    %9902 = vmatpush.msra.mxu0 %v9221
    %9903 = vmatpush.msra.mxu0 %v9217
    %9904 = vmatpush.msra.mxu0 %v9213
    %9905 = vmatmul.f32.gmra.mxu0 %v9163
    %v9906 = vpop.f32.mrf.mxu0
    %v9907 = vadd.f32 %v9422, %v9906
    %9908 = vmatmul.f32.gmra.mxu0 %v9166
    %v9909 = vpop.f32.mrf.mxu0
    %v9910 = vadd.f32 %v9427, %v9909
    %9911 = vmatmul.f32.gmra.mxu0 %v9169
    %v9912 = vpop.f32.mrf.mxu0
    %v9913 = vadd.f32 %v9432, %v9912
    %9914 = vmatmul.f32.gmra.mxu0 %v9172
    %v9915 = vpop.f32.mrf.mxu0
    %v9916 = vadd.f32 %v9437, %v9915
    %9917 = vmatmul.f32.gmra.mxu0 %v9175
    %v9918 = vpop.f32.mrf.mxu0
    %v9919 = vadd.f32 %v9442, %v9918
    %9920 = vmatmul.f32.gmra.mxu0 %v9178
    %v9921 = vpop.f32.mrf.mxu0
    %v9922 = vadd.f32 %v9447, %v9921
    %9923 = vmatmul.f32.gmra.mxu0 %v9181
    %v9924 = vpop.f32.mrf.mxu0
    %v9925 = vadd.f32 %v9452, %v9924
    %9926 = vmatmul.f32.gmra.mxu0 %v9184
    %v9927 = vpop.f32.mrf.mxu0
    %v9928 = vadd.f32 %v9457, %v9927
    %9929 = vmatmul.f32.gmra.mxu0 %v9187
    %v9930 = vpop.f32.mrf.mxu0
    %v9931 = vadd.f32 %v9462, %v9930
    %9932 = vmatmul.f32.gmra.mxu0 %v9190
    %v9933 = vpop.f32.mrf.mxu0
    %v9934 = vadd.f32 %v9467, %v9933
    %9935 = vmatmul.f32.gmra.mxu0 %v9193
    %v9936 = vpop.f32.mrf.mxu0
    %v9937 = vadd.f32 %v9472, %v9936
    %9938 = vmatmul.f32.gmra.mxu0 %v9196
    %v9939 = vpop.f32.mrf.mxu0
    %v9940 = vadd.f32 %v9477, %v9939
    %9941 = vmatmul.f32.gmra.mxu0 %v9199
    %v9942 = vpop.f32.mrf.mxu0
    %v9943 = vadd.f32 %v9482, %v9942
    %9944 = vmatmul.f32.gmra.mxu0 %v9202
    %v9945 = vpop.f32.mrf.mxu0
    %v9946 = vadd.f32 %v9487, %v9945
    %9947 = vmatmul.f32.gmra.mxu0 %v9205
    %v9948 = vpop.f32.mrf.mxu0
    %v9949 = vadd.f32 %v9492, %v9948
    %9950 = vmatmul.f32.gmra.mxu0 %v9208
    %v9951 = vpop.f32.mrf.mxu0
    %v9952 = vadd.f32 %v9497, %v9951
    %9953 = vdwg.mxu0
    %9954 = vmatpush.msra.mxu0 %v9337
    %9955 = vmatpush.msra.mxu0 %v9333
    %9956 = vmatpush.msra.mxu0 %v9329
    %9957 = vmatpush.msra.mxu0 %v9325
    %9958 = vmatpush.msra.mxu0 %v9321
    %9959 = vmatpush.msra.mxu0 %v9317
    %9960 = vmatpush.msra.mxu0 %v9313
    %9961 = vmatpush.msra.mxu0 %v9309
    %9962 = vmatpush.msra.mxu0 %v9305
    %9963 = vmatpush.msra.mxu0 %v9301
    %9964 = vmatpush.msra.mxu0 %v9297
    %9965 = vmatpush.msra.mxu0 %v9293
    %9966 = vmatpush.msra.mxu0 %v9289
    %9967 = vmatpush.msra.mxu0 %v9285
    %9968 = vmatpush.msra.mxu0 %v9281
    %9969 = vmatpush.msra.mxu0 %v9277
    %9970 = vmatmul.f32.gmra.mxu0 %v9164
    %v9971 = vpop.f32.mrf.mxu0
    %v9972 = vadd.f32 %v9907, %v9971
    %9973 = vmatmul.f32.gmra.mxu0 %v9167
    %v9974 = vpop.f32.mrf.mxu0
    %v9975 = vadd.f32 %v9910, %v9974
    %9976 = vmatmul.f32.gmra.mxu0 %v9170
    %v9977 = vpop.f32.mrf.mxu0
    %v9978 = vadd.f32 %v9913, %v9977
    %9979 = vmatmul.f32.gmra.mxu0 %v9173
    %v9980 = vpop.f32.mrf.mxu0
    %v9981 = vadd.f32 %v9916, %v9980
    %9982 = vmatmul.f32.gmra.mxu0 %v9176
    %v9983 = vpop.f32.mrf.mxu0
    %v9984 = vadd.f32 %v9919, %v9983
    %9985 = vmatmul.f32.gmra.mxu0 %v9179
    %v9986 = vpop.f32.mrf.mxu0
    %v9987 = vadd.f32 %v9922, %v9986
    %9988 = vmatmul.f32.gmra.mxu0 %v9182
    %v9989 = vpop.f32.mrf.mxu0
    %v9990 = vadd.f32 %v9925, %v9989
    %9991 = vmatmul.f32.gmra.mxu0 %v9185
    %v9992 = vpop.f32.mrf.mxu0
    %v9993 = vadd.f32 %v9928, %v9992
    %9994 = vmatmul.f32.gmra.mxu0 %v9188
    %v9995 = vpop.f32.mrf.mxu0
    %v9996 = vadd.f32 %v9931, %v9995
    %9997 = vmatmul.f32.gmra.mxu0 %v9191
    %v9998 = vpop.f32.mrf.mxu0
    %v9999 = vadd.f32 %v9934, %v9998
    %10000 = vmatmul.f32.gmra.mxu0 %v9194
    %v10001 = vpop.f32.mrf.mxu0
    %v10002 = vadd.f32 %v9937, %v10001
    %10003 = vmatmul.f32.gmra.mxu0 %v9197
    %v10004 = vpop.f32.mrf.mxu0
    %v10005 = vadd.f32 %v9940, %v10004
    %10006 = vmatmul.f32.gmra.mxu0 %v9200
    %v10007 = vpop.f32.mrf.mxu0
    %v10008 = vadd.f32 %v9943, %v10007
    %10009 = vmatmul.f32.gmra.mxu0 %v9203
    %v10010 = vpop.f32.mrf.mxu0
    %v10011 = vadd.f32 %v9946, %v10010
    %10012 = vmatmul.f32.gmra.mxu0 %v9206
    %v10013 = vpop.f32.mrf.mxu0
    %v10014 = vadd.f32 %v9949, %v10013
    %10015 = vmatmul.f32.gmra.mxu0 %v9209
    %v10016 = vpop.f32.mrf.mxu0
    %v10017 = vadd.f32 %v9952, %v10016
    %10018 = vdwg.mxu0
    %10019 = vmatpush.msra.mxu0 %v9401
    %10020 = vmatpush.msra.mxu0 %v9397
    %10021 = vmatpush.msra.mxu0 %v9393
    %10022 = vmatpush.msra.mxu0 %v9389
    %10023 = vmatpush.msra.mxu0 %v9385
    %10024 = vmatpush.msra.mxu0 %v9381
    %10025 = vmatpush.msra.mxu0 %v9377
    %10026 = vmatpush.msra.mxu0 %v9373
    %10027 = vmatpush.msra.mxu0 %v9369
    %10028 = vmatpush.msra.mxu0 %v9365
    %10029 = vmatpush.msra.mxu0 %v9361
    %10030 = vmatpush.msra.mxu0 %v9357
    %10031 = vmatpush.msra.mxu0 %v9353
    %10032 = vmatpush.msra.mxu0 %v9349
    %10033 = vmatpush.msra.mxu0 %v9345
    %10034 = vmatpush.msra.mxu0 %v9341
    %10035 = vmatmul.f32.gmra.mxu0 %v9165
    %v10036 = vpop.f32.mrf.mxu0
    %v10037 = vadd.f32 %v9972, %v10036
    %10038 = vmatmul.f32.gmra.mxu0 %v9168
    %v10039 = vpop.f32.mrf.mxu0
    %v10040 = vadd.f32 %v9975, %v10039
    %10041 = vmatmul.f32.gmra.mxu0 %v9171
    %v10042 = vpop.f32.mrf.mxu0
    %v10043 = vadd.f32 %v9978, %v10042
    %10044 = vmatmul.f32.gmra.mxu0 %v9174
    %v10045 = vpop.f32.mrf.mxu0
    %v10046 = vadd.f32 %v9981, %v10045
    %10047 = vmatmul.f32.gmra.mxu0 %v9177
    %v10048 = vpop.f32.mrf.mxu0
    %v10049 = vadd.f32 %v9984, %v10048
    %10050 = vmatmul.f32.gmra.mxu0 %v9180
    %v10051 = vpop.f32.mrf.mxu0
    %v10052 = vadd.f32 %v9987, %v10051
    %10053 = vmatmul.f32.gmra.mxu0 %v9183
    %v10054 = vpop.f32.mrf.mxu0
    %v10055 = vadd.f32 %v9990, %v10054
    %10056 = vmatmul.f32.gmra.mxu0 %v9186
    %v10057 = vpop.f32.mrf.mxu0
    %v10058 = vadd.f32 %v9993, %v10057
    %10059 = vmatmul.f32.gmra.mxu0 %v9189
    %v10060 = vpop.f32.mrf.mxu0
    %v10061 = vadd.f32 %v9996, %v10060
    %10062 = vmatmul.f32.gmra.mxu0 %v9192
    %v10063 = vpop.f32.mrf.mxu0
    %v10064 = vadd.f32 %v9999, %v10063
    %10065 = vmatmul.f32.gmra.mxu0 %v9195
    %v10066 = vpop.f32.mrf.mxu0
    %v10067 = vadd.f32 %v10002, %v10066
    %10068 = vmatmul.f32.gmra.mxu0 %v9198
    %v10069 = vpop.f32.mrf.mxu0
    %v10070 = vadd.f32 %v10005, %v10069
    %10071 = vmatmul.f32.gmra.mxu0 %v9201
    %v10072 = vpop.f32.mrf.mxu0
    %v10073 = vadd.f32 %v10008, %v10072
    %10074 = vmatmul.f32.gmra.mxu0 %v9204
    %v10075 = vpop.f32.mrf.mxu0
    %v10076 = vadd.f32 %v10011, %v10075
    %10077 = vmatmul.f32.gmra.mxu0 %v9207
    %v10078 = vpop.f32.mrf.mxu0
    %v10079 = vadd.f32 %v10014, %v10078
    %10080 = vmatmul.f32.gmra.mxu0 %v9210
    %v10081 = vpop.f32.mrf.mxu0
    %v10082 = vadd.f32 %v10017, %v10081
    %10083 = vdwg.mxu0
    %10084 = vmatpush.msra.mxu0 %v9274
    %10085 = vmatpush.msra.mxu0 %v9270
    %10086 = vmatpush.msra.mxu0 %v9266
    %10087 = vmatpush.msra.mxu0 %v9262
    %10088 = vmatpush.msra.mxu0 %v9258
    %10089 = vmatpush.msra.mxu0 %v9254
    %10090 = vmatpush.msra.mxu0 %v9250
    %10091 = vmatpush.msra.mxu0 %v9246
    %10092 = vmatpush.msra.mxu0 %v9242
    %10093 = vmatpush.msra.mxu0 %v9238
    %10094 = vmatpush.msra.mxu0 %v9234
    %10095 = vmatpush.msra.mxu0 %v9230
    %10096 = vmatpush.msra.mxu0 %v9226
    %10097 = vmatpush.msra.mxu0 %v9222
    %10098 = vmatpush.msra.mxu0 %v9218
    %10099 = vmatpush.msra.mxu0 %v9214
    %10100 = vmatmul.f32.gmra.mxu0 %v9163
    %v10101 = vpop.f32.mrf.mxu0
    %v10102 = vadd.f32 %v9422, %v10101
    %10103 = vmatmul.f32.gmra.mxu0 %v9166
    %v10104 = vpop.f32.mrf.mxu0
    %v10105 = vadd.f32 %v9427, %v10104
    %10106 = vmatmul.f32.gmra.mxu0 %v9169
    %v10107 = vpop.f32.mrf.mxu0
    %v10108 = vadd.f32 %v9432, %v10107
    %10109 = vmatmul.f32.gmra.mxu0 %v9172
    %v10110 = vpop.f32.mrf.mxu0
    %v10111 = vadd.f32 %v9437, %v10110
    %10112 = vmatmul.f32.gmra.mxu0 %v9175
    %v10113 = vpop.f32.mrf.mxu0
    %v10114 = vadd.f32 %v9442, %v10113
    %10115 = vmatmul.f32.gmra.mxu0 %v9178
    %v10116 = vpop.f32.mrf.mxu0
    %v10117 = vadd.f32 %v9447, %v10116
    %10118 = vmatmul.f32.gmra.mxu0 %v9181
    %v10119 = vpop.f32.mrf.mxu0
    %v10120 = vadd.f32 %v9452, %v10119
    %10121 = vmatmul.f32.gmra.mxu0 %v9184
    %v10122 = vpop.f32.mrf.mxu0
    %v10123 = vadd.f32 %v9457, %v10122
    %10124 = vmatmul.f32.gmra.mxu0 %v9187
    %v10125 = vpop.f32.mrf.mxu0
    %v10126 = vadd.f32 %v9462, %v10125
    %10127 = vmatmul.f32.gmra.mxu0 %v9190
    %v10128 = vpop.f32.mrf.mxu0
    %v10129 = vadd.f32 %v9467, %v10128
    %10130 = vmatmul.f32.gmra.mxu0 %v9193
    %v10131 = vpop.f32.mrf.mxu0
    %v10132 = vadd.f32 %v9472, %v10131
    %10133 = vmatmul.f32.gmra.mxu0 %v9196
    %v10134 = vpop.f32.mrf.mxu0
    %v10135 = vadd.f32 %v9477, %v10134
    %10136 = vmatmul.f32.gmra.mxu0 %v9199
    %v10137 = vpop.f32.mrf.mxu0
    %v10138 = vadd.f32 %v9482, %v10137
    %10139 = vmatmul.f32.gmra.mxu0 %v9202
    %v10140 = vpop.f32.mrf.mxu0
    %v10141 = vadd.f32 %v9487, %v10140
    %10142 = vmatmul.f32.gmra.mxu0 %v9205
    %v10143 = vpop.f32.mrf.mxu0
    %v10144 = vadd.f32 %v9492, %v10143
    %10145 = vmatmul.f32.gmra.mxu0 %v9208
    %v10146 = vpop.f32.mrf.mxu0
    %v10147 = vadd.f32 %v9497, %v10146
    %10148 = vdwg.mxu0
    %10149 = vmatpush.msra.mxu0 %v9338
    %10150 = vmatpush.msra.mxu0 %v9334
    %10151 = vmatpush.msra.mxu0 %v9330
    %10152 = vmatpush.msra.mxu0 %v9326
    %10153 = vmatpush.msra.mxu0 %v9322
    %10154 = vmatpush.msra.mxu0 %v9318
    %10155 = vmatpush.msra.mxu0 %v9314
    %10156 = vmatpush.msra.mxu0 %v9310
    %10157 = vmatpush.msra.mxu0 %v9306
    %10158 = vmatpush.msra.mxu0 %v9302
    %10159 = vmatpush.msra.mxu0 %v9298
    %10160 = vmatpush.msra.mxu0 %v9294
    %10161 = vmatpush.msra.mxu0 %v9290
    %10162 = vmatpush.msra.mxu0 %v9286
    %10163 = vmatpush.msra.mxu0 %v9282
    %10164 = vmatpush.msra.mxu0 %v9278
    %10165 = vmatmul.f32.gmra.mxu0 %v9164
    %v10166 = vpop.f32.mrf.mxu0
    %v10167 = vadd.f32 %v10102, %v10166
    %10168 = vmatmul.f32.gmra.mxu0 %v9167
    %v10169 = vpop.f32.mrf.mxu0
    %v10170 = vadd.f32 %v10105, %v10169
    %10171 = vmatmul.f32.gmra.mxu0 %v9170
    %v10172 = vpop.f32.mrf.mxu0
    %v10173 = vadd.f32 %v10108, %v10172
    %10174 = vmatmul.f32.gmra.mxu0 %v9173
    %v10175 = vpop.f32.mrf.mxu0
    %v10176 = vadd.f32 %v10111, %v10175
    %10177 = vmatmul.f32.gmra.mxu0 %v9176
    %v10178 = vpop.f32.mrf.mxu0
    %v10179 = vadd.f32 %v10114, %v10178
    %10180 = vmatmul.f32.gmra.mxu0 %v9179
    %v10181 = vpop.f32.mrf.mxu0
    %v10182 = vadd.f32 %v10117, %v10181
    %10183 = vmatmul.f32.gmra.mxu0 %v9182
    %v10184 = vpop.f32.mrf.mxu0
    %v10185 = vadd.f32 %v10120, %v10184
    %10186 = vmatmul.f32.gmra.mxu0 %v9185
    %v10187 = vpop.f32.mrf.mxu0
    %v10188 = vadd.f32 %v10123, %v10187
    %10189 = vmatmul.f32.gmra.mxu0 %v9188
    %v10190 = vpop.f32.mrf.mxu0
    %v10191 = vadd.f32 %v10126, %v10190
    %10192 = vmatmul.f32.gmra.mxu0 %v9191
    %v10193 = vpop.f32.mrf.mxu0
    %v10194 = vadd.f32 %v10129, %v10193
    %10195 = vmatmul.f32.gmra.mxu0 %v9194
    %v10196 = vpop.f32.mrf.mxu0
    %v10197 = vadd.f32 %v10132, %v10196
    %10198 = vmatmul.f32.gmra.mxu0 %v9197
    %v10199 = vpop.f32.mrf.mxu0
    %v10200 = vadd.f32 %v10135, %v10199
    %10201 = vmatmul.f32.gmra.mxu0 %v9200
    %v10202 = vpop.f32.mrf.mxu0
    %v10203 = vadd.f32 %v10138, %v10202
    %10204 = vmatmul.f32.gmra.mxu0 %v9203
    %v10205 = vpop.f32.mrf.mxu0
    %v10206 = vadd.f32 %v10141, %v10205
    %10207 = vmatmul.f32.gmra.mxu0 %v9206
    %v10208 = vpop.f32.mrf.mxu0
    %v10209 = vadd.f32 %v10144, %v10208
    %10210 = vmatmul.f32.gmra.mxu0 %v9209
    %v10211 = vpop.f32.mrf.mxu0
    %v10212 = vadd.f32 %v10147, %v10211
    %10213 = vdwg.mxu0
    %10214 = vmatpush.msra.mxu0 %v9402
    %10215 = vmatpush.msra.mxu0 %v9398
    %10216 = vmatpush.msra.mxu0 %v9394
    %10217 = vmatpush.msra.mxu0 %v9390
    %10218 = vmatpush.msra.mxu0 %v9386
    %10219 = vmatpush.msra.mxu0 %v9382
    %10220 = vmatpush.msra.mxu0 %v9378
    %10221 = vmatpush.msra.mxu0 %v9374
    %10222 = vmatpush.msra.mxu0 %v9370
    %10223 = vmatpush.msra.mxu0 %v9366
    %10224 = vmatpush.msra.mxu0 %v9362
    %10225 = vmatpush.msra.mxu0 %v9358
    %10226 = vmatpush.msra.mxu0 %v9354
    %10227 = vmatpush.msra.mxu0 %v9350
    %10228 = vmatpush.msra.mxu0 %v9346
    %10229 = vmatpush.msra.mxu0 %v9342
    %10230 = vmatmul.f32.gmra.mxu0 %v9165
    %v10231 = vpop.f32.mrf.mxu0
    %v10232 = vadd.f32 %v10167, %v10231
    %10233 = vmatmul.f32.gmra.mxu0 %v9168
    %v10234 = vpop.f32.mrf.mxu0
    %v10235 = vadd.f32 %v10170, %v10234
    %10236 = vmatmul.f32.gmra.mxu0 %v9171
    %v10237 = vpop.f32.mrf.mxu0
    %v10238 = vadd.f32 %v10173, %v10237
    %10239 = vmatmul.f32.gmra.mxu0 %v9174
    %v10240 = vpop.f32.mrf.mxu0
    %v10241 = vadd.f32 %v10176, %v10240
    %10242 = vmatmul.f32.gmra.mxu0 %v9177
    %v10243 = vpop.f32.mrf.mxu0
    %v10244 = vadd.f32 %v10179, %v10243
    %10245 = vmatmul.f32.gmra.mxu0 %v9180
    %v10246 = vpop.f32.mrf.mxu0
    %v10247 = vadd.f32 %v10182, %v10246
    %10248 = vmatmul.f32.gmra.mxu0 %v9183
    %v10249 = vpop.f32.mrf.mxu0
    %v10250 = vadd.f32 %v10185, %v10249
    %10251 = vmatmul.f32.gmra.mxu0 %v9186
    %v10252 = vpop.f32.mrf.mxu0
    %v10253 = vadd.f32 %v10188, %v10252
    %10254 = vmatmul.f32.gmra.mxu0 %v9189
    %v10255 = vpop.f32.mrf.mxu0
    %v10256 = vadd.f32 %v10191, %v10255
    %10257 = vmatmul.f32.gmra.mxu0 %v9192
    %v10258 = vpop.f32.mrf.mxu0
    %v10259 = vadd.f32 %v10194, %v10258
    %10260 = vmatmul.f32.gmra.mxu0 %v9195
    %v10261 = vpop.f32.mrf.mxu0
    %v10262 = vadd.f32 %v10197, %v10261
    %10263 = vmatmul.f32.gmra.mxu0 %v9198
    %v10264 = vpop.f32.mrf.mxu0
    %v10265 = vadd.f32 %v10200, %v10264
    %10266 = vmatmul.f32.gmra.mxu0 %v9201
    %v10267 = vpop.f32.mrf.mxu0
    %v10268 = vadd.f32 %v10203, %v10267
    %10269 = vmatmul.f32.gmra.mxu0 %v9204
    %v10270 = vpop.f32.mrf.mxu0
    %v10271 = vadd.f32 %v10206, %v10270
    %10272 = vmatmul.f32.gmra.mxu0 %v9207
    %v10273 = vpop.f32.mrf.mxu0
    %v10274 = vadd.f32 %v10209, %v10273
    %10275 = vmatmul.f32.gmra.mxu0 %v9210
    %v10276 = vpop.f32.mrf.mxu0
    %v10277 = vadd.f32 %v10212, %v10276
    %10278 = vdwg.mxu0
    %v10279 = vld [vmem:[%s0] sm:$0xff]
    %v10280 = vld [vmem:[%s0 + $0x8] sm:$0xff]
    %v10281 = vld [vmem:[%s0 + $0x10] sm:$0xff]
    %v10282 = vld [vmem:[%s0 + $0x18] sm:$0xff]
    %v10283 = vld [vmem:[%s0 + $0x20] sm:$0xff]
    %v10284 = vld [vmem:[%s0 + $0x28] sm:$0xff]
    %v10285 = vld [vmem:[%s0 + $0x30] sm:$0xff]
    %v10286 = vld [vmem:[%s0 + $0x38] sm:$0xff]
    %v10287 = vld [vmem:[%s0 + $0x40] sm:$0xff]
    %v10288 = vld [vmem:[%s0 + $0x48] sm:$0xff]
    %v10289 = vld [vmem:[%s0 + $0x50] sm:$0xff]
    %v10290 = vld [vmem:[%s0 + $0x58] sm:$0xff]
    %v10291 = vld [vmem:[%s0 + $0x60] sm:$0xff]
    %v10292 = vld [vmem:[%s0 + $0x68] sm:$0xff]
    %v10293 = vld [vmem:[%s0 + $0x70] sm:$0xff]
    %v10294 = vld [vmem:[%s0 + $0x78] sm:$0xff]
    %v10295 = vadd.f32 %v10279, %v9647
    %v10296 = vadd.f32 %v10280, %v9650
    %v10297 = vadd.f32 %v10281, %v9653
    %v10298 = vadd.f32 %v10282, %v9656
    %v10299 = vadd.f32 %v10283, %v9659
    %v10300 = vadd.f32 %v10284, %v9662
    %v10301 = vadd.f32 %v10285, %v9665
    %v10302 = vadd.f32 %v10286, %v9668
    %v10303 = vadd.f32 %v10287, %v9671
    %v10304 = vadd.f32 %v10288, %v9674
    %v10305 = vadd.f32 %v10289, %v9677
    %v10306 = vadd.f32 %v10290, %v9680
    %v10307 = vadd.f32 %v10291, %v9683
    %v10308 = vadd.f32 %v10292, %v9686
    %v10309 = vadd.f32 %v10293, %v9689
    %v10310 = vadd.f32 %v10294, %v9692
    %10311 = vst [vmem:[#allocation9] sm:$0xff] %v10295
    %10312 = vst [vmem:[#allocation9 + $0x8] sm:$0xff] %v10296
    %10313 = vst [vmem:[#allocation9 + $0x10] sm:$0xff] %v10297
    %10314 = vst [vmem:[#allocation9 + $0x18] sm:$0xff] %v10298
    %10315 = vst [vmem:[#allocation9 + $0x20] sm:$0xff] %v10299
    %10316 = vst [vmem:[#allocation9 + $0x28] sm:$0xff] %v10300
    %10317 = vst [vmem:[#allocation9 + $0x30] sm:$0xff] %v10301
    %10318 = vst [vmem:[#allocation9 + $0x38] sm:$0xff] %v10302
    %10319 = vst [vmem:[#allocation9 + $0x40] sm:$0xff] %v10303
    %10320 = vst [vmem:[#allocation9 + $0x48] sm:$0xff] %v10304
    %10321 = vst [vmem:[#allocation9 + $0x50] sm:$0xff] %v10305
    %10322 = vst [vmem:[#allocation9 + $0x58] sm:$0xff] %v10306
    %10323 = vst [vmem:[#allocation9 + $0x60] sm:$0xff] %v10307
    %10324 = vst [vmem:[#allocation9 + $0x68] sm:$0xff] %v10308
    %10325 = vst [vmem:[#allocation9 + $0x70] sm:$0xff] %v10309
    %10326 = vst [vmem:[#allocation9 + $0x78] sm:$0xff] %v10310
    %v10327 = vld [vmem:[%s175] sm:$0xff]
    %v10328 = vld [vmem:[%s175 + $0x8] sm:$0xff]
    %v10329 = vld [vmem:[%s175 + $0x10] sm:$0xff]
    %v10330 = vld [vmem:[%s175 + $0x18] sm:$0xff]
    %v10331 = vld [vmem:[%s175 + $0x20] sm:$0xff]
    %v10332 = vld [vmem:[%s175 + $0x28] sm:$0xff]
    %v10333 = vld [vmem:[%s175 + $0x30] sm:$0xff]
    %v10334 = vld [vmem:[%s175 + $0x38] sm:$0xff]
    %v10335 = vld [vmem:[%s175 + $0x40] sm:$0xff]
    %v10336 = vld [vmem:[%s175 + $0x48] sm:$0xff]
    %v10337 = vld [vmem:[%s175 + $0x50] sm:$0xff]
    %v10338 = vld [vmem:[%s175 + $0x58] sm:$0xff]
    %v10339 = vld [vmem:[%s175 + $0x60] sm:$0xff]
    %v10340 = vld [vmem:[%s175 + $0x68] sm:$0xff]
    %v10341 = vld [vmem:[%s175 + $0x70] sm:$0xff]
    %v10342 = vld [vmem:[%s175 + $0x78] sm:$0xff]
    %v10343 = vadd.f32 %v10327, %v9842
    %v10344 = vadd.f32 %v10328, %v9845
    %v10345 = vadd.f32 %v10329, %v9848
    %v10346 = vadd.f32 %v10330, %v9851
    %v10347 = vadd.f32 %v10331, %v9854
    %v10348 = vadd.f32 %v10332, %v9857
    %v10349 = vadd.f32 %v10333, %v9860
    %v10350 = vadd.f32 %v10334, %v9863
    %v10351 = vadd.f32 %v10335, %v9866
    %v10352 = vadd.f32 %v10336, %v9869
    %v10353 = vadd.f32 %v10337, %v9872
    %v10354 = vadd.f32 %v10338, %v9875
    %v10355 = vadd.f32 %v10339, %v9878
    %v10356 = vadd.f32 %v10340, %v9881
    %v10357 = vadd.f32 %v10341, %v9884
    %v10358 = vadd.f32 %v10342, %v9887
    %s10359 = scalar_lea.vmem [#allocation9], 128
    %10360 = vst [vmem:[%s10359] sm:$0xff] %v10343
    %10361 = vst [vmem:[%s10359 + $0x8] sm:$0xff] %v10344
    %10362 = vst [vmem:[%s10359 + $0x10] sm:$0xff] %v10345
    %10363 = vst [vmem:[%s10359 + $0x18] sm:$0xff] %v10346
    %10364 = vst [vmem:[%s10359 + $0x20] sm:$0xff] %v10347
    %10365 = vst [vmem:[%s10359 + $0x28] sm:$0xff] %v10348
    %10366 = vst [vmem:[%s10359 + $0x30] sm:$0xff] %v10349
    %10367 = vst [vmem:[%s10359 + $0x38] sm:$0xff] %v10350
    %10368 = vst [vmem:[%s10359 + $0x40] sm:$0xff] %v10351
    %10369 = vst [vmem:[%s10359 + $0x48] sm:$0xff] %v10352
    %10370 = vst [vmem:[%s10359 + $0x50] sm:$0xff] %v10353
    %10371 = vst [vmem:[%s10359 + $0x58] sm:$0xff] %v10354
    %10372 = vst [vmem:[%s10359 + $0x60] sm:$0xff] %v10355
    %10373 = vst [vmem:[%s10359 + $0x68] sm:$0xff] %v10356
    %10374 = vst [vmem:[%s10359 + $0x70] sm:$0xff] %v10357
    %10375 = vst [vmem:[%s10359 + $0x78] sm:$0xff] %v10358
    %v10376 = vld [vmem:[%s224] sm:$0xff]
    %v10377 = vld [vmem:[%s224 + $0x8] sm:$0xff]
    %v10378 = vld [vmem:[%s224 + $0x10] sm:$0xff]
    %v10379 = vld [vmem:[%s224 + $0x18] sm:$0xff]
    %v10380 = vld [vmem:[%s224 + $0x20] sm:$0xff]
    %v10381 = vld [vmem:[%s224 + $0x28] sm:$0xff]
    %v10382 = vld [vmem:[%s224 + $0x30] sm:$0xff]
    %v10383 = vld [vmem:[%s224 + $0x38] sm:$0xff]
    %v10384 = vld [vmem:[%s224 + $0x40] sm:$0xff]
    %v10385 = vld [vmem:[%s224 + $0x48] sm:$0xff]
    %v10386 = vld [vmem:[%s224 + $0x50] sm:$0xff]
    %v10387 = vld [vmem:[%s224 + $0x58] sm:$0xff]
    %v10388 = vld [vmem:[%s224 + $0x60] sm:$0xff]
    %v10389 = vld [vmem:[%s224 + $0x68] sm:$0xff]
    %v10390 = vld [vmem:[%s224 + $0x70] sm:$0xff]
    %v10391 = vld [vmem:[%s224 + $0x78] sm:$0xff]
    %v10392 = vadd.f32 %v10376, %v10037
    %v10393 = vadd.f32 %v10377, %v10040
    %v10394 = vadd.f32 %v10378, %v10043
    %v10395 = vadd.f32 %v10379, %v10046
    %v10396 = vadd.f32 %v10380, %v10049
    %v10397 = vadd.f32 %v10381, %v10052
    %v10398 = vadd.f32 %v10382, %v10055
    %v10399 = vadd.f32 %v10383, %v10058
    %v10400 = vadd.f32 %v10384, %v10061
    %v10401 = vadd.f32 %v10385, %v10064
    %v10402 = vadd.f32 %v10386, %v10067
    %v10403 = vadd.f32 %v10387, %v10070
    %v10404 = vadd.f32 %v10388, %v10073
    %v10405 = vadd.f32 %v10389, %v10076
    %v10406 = vadd.f32 %v10390, %v10079
    %v10407 = vadd.f32 %v10391, %v10082
    %s10408 = scalar_lea.vmem [#allocation9], 256
    %10409 = vst [vmem:[%s10408] sm:$0xff] %v10392
    %10410 = vst [vmem:[%s10408 + $0x8] sm:$0xff] %v10393
    %10411 = vst [vmem:[%s10408 + $0x10] sm:$0xff] %v10394
    %10412 = vst [vmem:[%s10408 + $0x18] sm:$0xff] %v10395
    %10413 = vst [vmem:[%s10408 + $0x20] sm:$0xff] %v10396
    %10414 = vst [vmem:[%s10408 + $0x28] sm:$0xff] %v10397
    %10415 = vst [vmem:[%s10408 + $0x30] sm:$0xff] %v10398
    %10416 = vst [vmem:[%s10408 + $0x38] sm:$0xff] %v10399
    %10417 = vst [vmem:[%s10408 + $0x40] sm:$0xff] %v10400
    %10418 = vst [vmem:[%s10408 + $0x48] sm:$0xff] %v10401
    %10419 = vst [vmem:[%s10408 + $0x50] sm:$0xff] %v10402
    %10420 = vst [vmem:[%s10408 + $0x58] sm:$0xff] %v10403
    %10421 = vst [vmem:[%s10408 + $0x60] sm:$0xff] %v10404
    %10422 = vst [vmem:[%s10408 + $0x68] sm:$0xff] %v10405
    %10423 = vst [vmem:[%s10408 + $0x70] sm:$0xff] %v10406
    %10424 = vst [vmem:[%s10408 + $0x78] sm:$0xff] %v10407
    %v10425 = vld [vmem:[%s273] sm:$0xff]
    %v10426 = vld [vmem:[%s273 + $0x8] sm:$0xff]
    %v10427 = vld [vmem:[%s273 + $0x10] sm:$0xff]
    %v10428 = vld [vmem:[%s273 + $0x18] sm:$0xff]
    %v10429 = vld [vmem:[%s273 + $0x20] sm:$0xff]
    %v10430 = vld [vmem:[%s273 + $0x28] sm:$0xff]
    %v10431 = vld [vmem:[%s273 + $0x30] sm:$0xff]
    %v10432 = vld [vmem:[%s273 + $0x38] sm:$0xff]
    %v10433 = vld [vmem:[%s273 + $0x40] sm:$0xff]
    %v10434 = vld [vmem:[%s273 + $0x48] sm:$0xff]
    %v10435 = vld [vmem:[%s273 + $0x50] sm:$0xff]
    %v10436 = vld [vmem:[%s273 + $0x58] sm:$0xff]
    %v10437 = vld [vmem:[%s273 + $0x60] sm:$0xff]
    %v10438 = vld [vmem:[%s273 + $0x68] sm:$0xff]
    %v10439 = vld [vmem:[%s273 + $0x70] sm:$0xff]
    %v10440 = vld [vmem:[%s273 + $0x78] sm:$0xff]
    %v10441 = vadd.f32 %v10425, %v10232
    %v10442 = vadd.f32 %v10426, %v10235
    %v10443 = vadd.f32 %v10427, %v10238
    %v10444 = vadd.f32 %v10428, %v10241
    %v10445 = vadd.f32 %v10429, %v10244
    %v10446 = vadd.f32 %v10430, %v10247
    %v10447 = vadd.f32 %v10431, %v10250
    %v10448 = vadd.f32 %v10432, %v10253
    %v10449 = vadd.f32 %v10433, %v10256
    %v10450 = vadd.f32 %v10434, %v10259
    %v10451 = vadd.f32 %v10435, %v10262
    %v10452 = vadd.f32 %v10436, %v10265
    %v10453 = vadd.f32 %v10437, %v10268
    %v10454 = vadd.f32 %v10438, %v10271
    %v10455 = vadd.f32 %v10439, %v10274
    %v10456 = vadd.f32 %v10440, %v10277
    %s10457 = scalar_lea.vmem [#allocation9], 384
    %10458 = vst [vmem:[%s10457] sm:$0xff] %v10441
    %10459 = vst [vmem:[%s10457 + $0x8] sm:$0xff] %v10442
    %10460 = vst [vmem:[%s10457 + $0x10] sm:$0xff] %v10443
    %10461 = vst [vmem:[%s10457 + $0x18] sm:$0xff] %v10444
    %10462 = vst [vmem:[%s10457 + $0x20] sm:$0xff] %v10445
    %10463 = vst [vmem:[%s10457 + $0x28] sm:$0xff] %v10446
    %10464 = vst [vmem:[%s10457 + $0x30] sm:$0xff] %v10447
    %10465 = vst [vmem:[%s10457 + $0x38] sm:$0xff] %v10448
    %10466 = vst [vmem:[%s10457 + $0x40] sm:$0xff] %v10449
    %10467 = vst [vmem:[%s10457 + $0x48] sm:$0xff] %v10450
    %10468 = vst [vmem:[%s10457 + $0x50] sm:$0xff] %v10451
    %10469 = vst [vmem:[%s10457 + $0x58] sm:$0xff] %v10452
    %10470 = vst [vmem:[%s10457 + $0x60] sm:$0xff] %v10453
    %10471 = vst [vmem:[%s10457 + $0x68] sm:$0xff] %v10454
    %10472 = vst [vmem:[%s10457 + $0x70] sm:$0xff] %v10455
    %10473 = vst [vmem:[%s10457 + $0x78] sm:$0xff] %v10456
    // Predicated region
    $region54: #{tpu_custom_call.1} parent=1 // pred_check
      _
    $region55: #{tpu_custom_call.1} parent=1 // pred_check_branch
      %10475 = sbr.rel (0) target = $region57
    $region56: #{tpu_custom_call.1} parent=1 // pred_region
      %10477 = vsyncadd [#allocation6], 0
      %s10478 = sshll.u32 [#allocation9], 4
      %s10479 = int_to_ptr.vmem [resolvable:$true] %s10478
      %s10480 = sshll.u32 %s11, 4
      %s10481 = int_to_ptr.hbm [resolvable:$true] %s10480
      %10486 = dma.vmem_to_hbm [thread:$0]  %s10479, 8192, %s10481, [#allocation6], 128, 128, 8
    $region57: #{tpu_custom_call.1} parent=1 // pred_fallthru
      _
    // Predicated region
    $region58: #{tpu_custom_call.1} parent=1 // pred_check
      _
    $region59: #{tpu_custom_call.1} parent=1 // pred_check_branch
      %10488 = sbr.rel (0) target = $region61
    $region60: #{tpu_custom_call.1} parent=1 // pred_region
      %10490 = dma.done [#allocation6], 8192
    $region61: #{tpu_custom_call.1} parent=1 // pred_fallthru
      _
    %10491 = vsyncpa [#allocation5], 1
    %10492 = vsyncpa [#allocation8], 1
    %10493 = vsyncpa [#allocation6], 1

</llo_original>
